<compile_context>
chip_gen: v6e
topology: v6e:2x2x1
jax: 0.10.0
libtpu: 0.0.40
codegen_flags: <defaults>
</compile_context>

<pallas_src>
import functools

import jax
import jax.numpy as jnp
from jax import lax
from jax.experimental import pallas as pl
from jax.experimental.pallas import tpu as pltpu


def _basic_block_kernel(x_ref, w1_ref, s1_ref, b1_ref, w2_ref, s2_ref, b2_ref,
                        out_ref, patches_ref, h_ref, *, H, W):
    """Fused BasicBlock forward for one image (one grid step).

    x_ref       : (H*W, C)    f32   flattened NHWC input (C padded to k*128)
    w1_ref      : (9*C, C)    cdt   conv1 weights, rows ordered (kh, kw, cin)
    s1_ref      : (1, C)      f32   bn1 folded scale
    b1_ref      : (1, C)      f32   bn1 folded bias
    w2_ref      : (9*C, C)    cdt   conv2 weights
    s2_ref      : (1, C)      f32   bn2 folded scale
    b2_ref      : (1, C)      f32   bn2 folded bias
    out_ref     : (H*W, C)    f32
    patches_ref : (H*W, 9*C)  cdt   im2col scratch (cdt = compute dtype)
    h_ref       : (H*W, C)    f32   hidden activation scratch
    """
    HW, C = x_ref.shape
    cdtype = patches_ref.dtype

    # Edge-validity masks (computed once, reused by both convs).
    flat = lax.broadcasted_iota(jnp.int32, (HW, 1), 0)
    col = flat % W
    row_ok = {-1: flat >= W, 1: flat < (H - 1) * W}
    col_ok = {-1: col >= 1, 1: col <= W - 2}

    def im2col(src):
        # src: (H*W, C) f32 value.  For tap (kh, kw) the contribution to output
        # pixel m = i*W + j is src[m + (kh-1)*W + (kw-1)], i.e. a rotation of
        # the flattened image with out-of-image positions masked to zero.
        # Every patches store is a full-height, 128-lane-aligned column block.
        for kh in range(3):
            for kw in range(3):
                dh, dw = kh - 1, kw - 1
                tap = kh * 3 + kw
                d = dh * W + dw
                if d == 0:
                    shifted = src
                else:
                    shifted = pltpu.roll(src, shift=(-d) % HW, axis=0)
                conds = []
                if dh != 0:
                    conds.append(row_ok[dh])
                if dw != 0:
                    conds.append(col_ok[dw])
                if conds:
                    ok = conds[0] if len(conds) == 1 else jnp.logical_and(*conds)
                    shifted = jnp.where(ok, shifted, jnp.zeros((), shifted.dtype))
                patches_ref[:, tap * C:(tap + 1) * C] = shifted.astype(cdtype)

    def conv_bn(w_ref, s_ref, b_ref):
        # Single MXU matmul with K = 9*C, f32 accumulation, f32 BN epilogue.
        acc = jnp.dot(patches_ref[...], w_ref[...],
                      preferred_element_type=jnp.float32)
        return acc * s_ref[...] + b_ref[...]

    # conv1 -> (Scaler: identity in eval) -> bn1 -> relu
    im2col(x_ref[...])
    h_ref[...] = jnp.maximum(conv_bn(w1_ref, s1_ref, b1_ref), 0.0)

    # conv2 -> bn2 -> + residual -> relu
    im2col(h_ref[...])
    y = conv_bn(w2_ref, s2_ref, b2_ref) + x_ref[...]
    out_ref[...] = jnp.maximum(y, 0.0)


def _round_up(n, m):
    return (n + m - 1) // m * m


def _fold_bn(gamma, beta, mean, var, c_pad, eps=1e-5):
    scale = gamma / jnp.sqrt(var + eps)
    bias = beta - mean * scale
    pad = c_pad - scale.shape[0]
    scale = jnp.pad(scale, (0, pad)).reshape(1, c_pad).astype(jnp.float32)
    bias = jnp.pad(bias, (0, pad)).reshape(1, c_pad).astype(jnp.float32)
    return scale, bias


def _prep_conv_weight(w_oihw, c_pad, cdtype):
    """(Cout, Cin, 3, 3) PyTorch layout -> (9*Cp, Cp), rows ordered (kh, kw, cin)."""
    cout, cin = w_oihw.shape[:2]
    w = jnp.transpose(w_oihw, (2, 3, 1, 0))                       # -> HWIO
    w = jnp.pad(w, ((0, 0), (0, 0), (0, c_pad - cin), (0, c_pad - cout)))
    return w.reshape(9 * c_pad, c_pad).astype(cdtype)


@functools.partial(jax.jit, static_argnames=("compute_dtype",))
def basic_block_forward_nhwc(x_nhwc, params, *, compute_dtype=jnp.bfloat16):
    """Eval-mode BasicBlock forward, NHWC in / NHWC out (no layout transposes)."""
    N, H, W, C = x_nhwc.shape
    cout, cin = params["conv1_w"].shape[:2]
    assert cin == C and cout == C, "stride-1 identity-residual block needs Cin == Cout"
    Cp = _round_up(C, 128)
    HW = H * W

    x = jnp.pad(x_nhwc.astype(jnp.float32), ((0, 0), (0, 0), (0, 0), (0, Cp - C)))
    x = x.reshape(N, HW, Cp)

    w1 = _prep_conv_weight(params["conv1_w"], Cp, compute_dtype)
    w2 = _prep_conv_weight(params["conv2_w"], Cp, compute_dtype)
    s1, b1 = _fold_bn(params["bn1_gamma"], params["bn1_beta"],
                      params["bn1_mean"], params["bn1_var"], Cp)
    s2, b2 = _fold_bn(params["bn2_gamma"], params["bn2_beta"],
                      params["bn2_mean"], params["bn2_var"], Cp)

    cbytes = jnp.dtype(compute_dtype).itemsize
    vmem_est = (2 * HW * Cp * 4                    # x blocks (double-buffered)
                + 2 * HW * Cp * 4                  # out blocks (double-buffered)
                + 2 * 2 * 9 * Cp * Cp * cbytes     # w1, w2 (double-buffered)
                + 2 * 4 * Cp * 4                   # bn scale / bias
                + HW * 9 * Cp * cbytes             # im2col scratch
                + HW * Cp * 4)                     # hidden scratch
    vmem_limit = int(min(max(2 * vmem_est, 32 * 1024 * 1024), 100 * 1024 * 1024))

    act_in_spec = pl.BlockSpec((None, HW, Cp), lambda n: (n, 0, 0))
    act_out_spec = pl.BlockSpec((None, HW, Cp), lambda n: (n, 0, 0))
    full2d = lambda shape: pl.BlockSpec(shape, lambda n: (0, 0))

    out = pl.pallas_call(
        functools.partial(_basic_block_kernel, H=H, W=W),
        out_shape=jax.ShapeDtypeStruct((N, HW, Cp), jnp.float32),
        grid_spec=pltpu.PrefetchScalarGridSpec(
            num_scalar_prefetch=0,
            grid=(N,),
            in_specs=[
                act_in_spec,
                full2d((9 * Cp, Cp)), full2d((1, Cp)), full2d((1, Cp)),
                full2d((9 * Cp, Cp)), full2d((1, Cp)), full2d((1, Cp)),
            ],
            out_specs=act_out_spec,
            scratch_shapes=[
                pltpu.VMEM((HW, 9 * Cp), compute_dtype),   # im2col patches
                pltpu.VMEM((HW, Cp), jnp.float32),         # hidden activation
            ],
        ),
        compiler_params=pltpu.CompilerParams(
            dimension_semantics=("parallel",),
            vmem_limit_bytes=vmem_limit,
        ),
    )(x, w1, s1, b1, w2, s2, b2)

    return out[:, :, :C].reshape(N, H, W, C)


def basic_block_forward(x_nchw, params, *, compute_dtype=jnp.bfloat16):
    """NCHW (PyTorch-convention) wrapper.  Inside a full network prefer the
    NHWC entry point so activations stay NHWC (no per-block transposes)."""
    x = jnp.transpose(x_nchw, (0, 2, 3, 1))
    y = basic_block_forward_nhwc(x, params, compute_dtype=compute_dtype)
    return jnp.transpose(y, (0, 3, 1, 2))


def _reference_forward(x_nchw, params, eps=1e-5):
    """Pure-JAX reference (same eval-mode semantics) for validation."""
    x = jnp.transpose(x_nchw, (0, 2, 3, 1)).astype(jnp.float32)
    w1 = jnp.transpose(params["conv1_w"], (2, 3, 1, 0)).astype(jnp.float32)
    w2 = jnp.transpose(params["conv2_w"], (2, 3, 1, 0)).astype(jnp.float32)
    dn = lax.conv_dimension_numbers(x.shape, w1.shape, ("NHWC", "HWIO", "NHWC"))

    def conv(inp, w):
        return lax.conv_general_dilated(inp, w, (1, 1), ((1, 1), (1, 1)),
                                        dimension_numbers=dn,
                                        precision=lax.Precision.HIGHEST)

    def bn(inp, g, b, m, v):
        return (inp - m) / jnp.sqrt(v + eps) * g + b

    h = conv(x, w1)
    h = bn(h, params["bn1_gamma"], params["bn1_beta"],
           params["bn1_mean"], params["bn1_var"])
    h = jnp.maximum(h, 0.0)
    h = conv(h, w2)
    h = bn(h, params["bn2_gamma"], params["bn2_beta"],
           params["bn2_mean"], params["bn2_var"])
    h = jnp.maximum(h + x, 0.0)
    return jnp.transpose(h, (0, 3, 1, 2))


def _init_params(key, inplanes, planes):
    ks = jax.random.split(key, 10)
    return {
        # conv weights in PyTorch layout (Cout, Cin, 3, 3), bias=False
        "conv1_w": 0.1 * jax.random.normal(ks[0], (planes, inplanes, 3, 3), jnp.float32),
        "conv2_w": 0.1 * jax.random.normal(ks[1], (planes, planes, 3, 3), jnp.float32),
        # BatchNorm2d params / running stats (num_channels = planes)
        "bn1_gamma": 1.0 + 0.1 * jax.random.normal(ks[2], (planes,), jnp.float32),
        "bn1_beta": 0.1 * jax.random.normal(ks[3], (planes,), jnp.float32),
        "bn1_mean": 0.1 * jax.random.normal(ks[4], (planes,), jnp.float32),
        "bn1_var": 1.0 + 0.1 * jax.random.uniform(ks[5], (planes,), jnp.float32),
        "bn2_gamma": 1.0 + 0.1 * jax.random.normal(ks[6], (planes,), jnp.float32),
        "bn2_beta": 0.1 * jax.random.normal(ks[7], (planes,), jnp.float32),
        "bn2_mean": 0.1 * jax.random.normal(ks[8], (planes,), jnp.float32),
        "bn2_var": 1.0 + 0.1 * jax.random.uniform(ks[9], (planes,), jnp.float32),
    }


if __name__ == "__main__":
    key = jax.random.PRNGKey(0)
    k_x, k_p = jax.random.split(key)

    N, C, H, W = 2, 4, 16, 16            # inplanes = planes = 4, stride = 1
    x = jax.random.normal(k_x, (N, C, H, W), jnp.float32)
    params = _init_params(k_p, inplanes=C, planes=C)

    ref = _reference_forward(x, params)

    # f32 compute path: exact-semantics check.
    out_f32 = jax.block_until_ready(
        basic_block_forward(x, params, compute_dtype=jnp.float32))
    assert out_f32.shape == (N, C, H, W)
    assert jnp.allclose(out_f32, ref, atol=1e-3, rtol=1e-3), "f32 mismatch vs reference"

    # bf16 MXU path (v6e/v7x recommendation): looser tolerance.
    out_bf16 = jax.block_until_ready(
        basic_block_forward(x, params, compute_dtype=jnp.bfloat16))
    assert out_bf16.shape == (N, C, H, W)
    assert jnp.allclose(out_bf16, ref, atol=5e-2, rtol=5e-2), "bf16 mismatch vs reference"

    print("KERNEL_OK")
</pallas_src>

<mosaic_0001>
module attributes {stable_mosaic.version = 11 : i64} {
  func.func @_basic_block_kernel(%arg0: i32, %arg1: memref<1x256x128xf32, #tpu.memory_space<vmem>>, %arg2: memref<1152x128xf32, #tpu.memory_space<vmem>>, %arg3: memref<1x128xf32, #tpu.memory_space<vmem>>, %arg4: memref<1x128xf32, #tpu.memory_space<vmem>>, %arg5: memref<1152x128xf32, #tpu.memory_space<vmem>>, %arg6: memref<1x128xf32, #tpu.memory_space<vmem>>, %arg7: memref<1x128xf32, #tpu.memory_space<vmem>>, %arg8: memref<1x256x128xf32, #tpu.memory_space<vmem>>, %arg9: memref<256x1152xf32, #tpu.memory_space<vmem>>, %arg10: memref<256x128xf32, #tpu.memory_space<vmem>>) attributes {dimension_semantics = [#tpu.dimension_semantics<parallel>], iteration_bounds = array<i64: 2>, scalar_prefetch = 0 : i64, scratch_operands = 2 : i64, tpu.core_type = #tpu.core_type<tc>, window_params = [{transform_indices = @transform_0, window_bounds = array<i64: 1, 256, 128>}, {pipeline_mode = #tpu.pipeline_mode<synchronous>, transform_indices = @transform_1, window_bounds = array<i64: 1152, 128>}, {pipeline_mode = #tpu.pipeline_mode<synchronous>, transform_indices = @transform_2, window_bounds = array<i64: 1, 128>}, {pipeline_mode = #tpu.pipeline_mode<synchronous>, transform_indices = @transform_3, window_bounds = array<i64: 1, 128>}, {pipeline_mode = #tpu.pipeline_mode<synchronous>, transform_indices = @transform_4, window_bounds = array<i64: 1152, 128>}, {pipeline_mode = #tpu.pipeline_mode<synchronous>, transform_indices = @transform_5, window_bounds = array<i64: 1, 128>}, {pipeline_mode = #tpu.pipeline_mode<synchronous>, transform_indices = @transform_6, window_bounds = array<i64: 1, 128>}, {transform_indices = @transform_7, window_bounds = array<i64: 1, 256, 128>}]} {
    %0 = tpu.iota {dimensions = array<i32: 0>} : vector<256x1xi32>
    %c16_i32 = arith.constant 16 : i32
    %c0_i32 = arith.constant 0 : i32
    %1 = arith.cmpi eq, %c16_i32, %c0_i32 : i32
    %c1_i32 = arith.constant 1 : i32
    %2 = arith.select %1, %c1_i32, %c16_i32 : i32
    %3 = vector.broadcast %2 : i32 to vector<256x1xi32>
    %4 = arith.remsi %0, %3 : vector<256x1xi32>
    %c0_i32_0 = arith.constant 0 : i32
    %5 = vector.broadcast %c0_i32_0 : i32 to vector<256x1xi32>
    %6 = arith.cmpi ne, %4, %5 : vector<256x1xi32>
    %c0_i32_1 = arith.constant 0 : i32
    %7 = vector.broadcast %c0_i32_1 : i32 to vector<256x1xi32>
    %8 = arith.cmpi slt, %4, %7 : vector<256x1xi32>
    %c0_i32_2 = arith.constant 0 : i32
    %9 = arith.cmpi slt, %2, %c0_i32_2 : i32
    %10 = vector.broadcast %9 : i1 to vector<256x1xi1>
    %11 = vector.broadcast %10 : vector<256x1xi1> to vector<256x1xi1>
    %12 = arith.xori %8, %11 : vector<256x1xi1>
    %13 = arith.andi %12, %6 : vector<256x1xi1>
    %14 = vector.broadcast %2 : i32 to vector<256x1xi32>
    %15 = arith.addi %4, %14 : vector<256x1xi32>
    %16 = arith.select %13, %15, %4 : vector<256x1xi1>, vector<256x1xi32>
    %c16_i32_3 = arith.constant 16 : i32
    %17 = vector.broadcast %c16_i32_3 : i32 to vector<256x1xi32>
    %18 = arith.cmpi sge, %0, %17 : vector<256x1xi32>
    %c240_i32 = arith.constant 240 : i32
    %19 = vector.broadcast %c240_i32 : i32 to vector<256x1xi32>
    %20 = arith.cmpi slt, %0, %19 : vector<256x1xi32>
    %c1_i32_4 = arith.constant 1 : i32
    %21 = vector.broadcast %c1_i32_4 : i32 to vector<256x1xi32>
    %22 = arith.cmpi sge, %16, %21 : vector<256x1xi32>
    %c14_i32 = arith.constant 14 : i32
    %23 = vector.broadcast %c14_i32 : i32 to vector<256x1xi32>
    %24 = arith.cmpi sle, %16, %23 : vector<256x1xi32>
    %c0 = arith.constant 0 : index
    %c0_5 = arith.constant 0 : index
    %c0_6 = arith.constant 0 : index
    %25 = vector.load %arg1[%c0, %c0_5, %c0_6] : memref<1x256x128xf32, #tpu.memory_space<vmem>>, vector<1x256x128xf32>
    %26 = vector.shape_cast %25 : vector<1x256x128xf32> to vector<256x128xf32>
    %c17_i32 = arith.constant 17 : i32
    %27 = tpu.dynamic_rotate %26 by %c17_i32 dim 0 : vector<256x128xf32>, i32 -> vector<256x128xf32>
    %28 = arith.andi %18, %22 : vector<256x1xi1>
    %cst = arith.constant 0.000000e+00 : f32
    %29 = vector.shape_cast %28 : vector<256x1xi1> to vector<256x1xi1>
    %30 = vector.broadcast %29 : vector<256x1xi1> to vector<256x128xi1>
    %31 = vector.broadcast %cst : f32 to vector<256x128xf32>
    %32 = arith.select %30, %27, %31 : vector<256x128xi1>, vector<256x128xf32>
    %c0_7 = arith.constant 0 : index
    %c0_8 = arith.constant 0 : index
    %33 = vector.load %arg9[%c0_7, %c0_8] : memref<256x1152xf32, #tpu.memory_space<vmem>>, vector<256x128xf32>
    tpu.vector_store %arg9[%c0_7, %c0_8], %32 {strides = array<i32>} : memref<256x1152xf32, #tpu.memory_space<vmem>>, vector<256x128xf32>,
    %c16_i32_9 = arith.constant 16 : i32
    %34 = tpu.dynamic_rotate %26 by %c16_i32_9 dim 0 : vector<256x128xf32>, i32 -> vector<256x128xf32>
    %cst_10 = arith.constant 0.000000e+00 : f32
    %35 = vector.shape_cast %18 : vector<256x1xi1> to vector<256x1xi1>
    %36 = vector.broadcast %35 : vector<256x1xi1> to vector<256x128xi1>
    %37 = vector.broadcast %cst_10 : f32 to vector<256x128xf32>
    %38 = arith.select %36, %34, %37 : vector<256x128xi1>, vector<256x128xf32>
    %c0_11 = arith.constant 0 : index
    %c128 = arith.constant 128 : index
    %39 = vector.load %arg9[%c0_11, %c128] : memref<256x1152xf32, #tpu.memory_space<vmem>>, vector<256x128xf32>
    tpu.vector_store %arg9[%c0_11, %c128], %38 {strides = array<i32>} : memref<256x1152xf32, #tpu.memory_space<vmem>>, vector<256x128xf32>,
    %c15_i32 = arith.constant 15 : i32
    %40 = tpu.dynamic_rotate %26 by %c15_i32 dim 0 : vector<256x128xf32>, i32 -> vector<256x128xf32>
    %41 = arith.andi %18, %24 : vector<256x1xi1>
    %cst_12 = arith.constant 0.000000e+00 : f32
    %42 = vector.shape_cast %41 : vector<256x1xi1> to vector<256x1xi1>
    %43 = vector.broadcast %42 : vector<256x1xi1> to vector<256x128xi1>
    %44 = vector.broadcast %cst_12 : f32 to vector<256x128xf32>
    %45 = arith.select %43, %40, %44 : vector<256x128xi1>, vector<256x128xf32>
    %c0_13 = arith.constant 0 : index
    %c256 = arith.constant 256 : index
    %46 = vector.load %arg9[%c0_13, %c256] : memref<256x1152xf32, #tpu.memory_space<vmem>>, vector<256x128xf32>
    tpu.vector_store %arg9[%c0_13, %c256], %45 {strides = array<i32>} : memref<256x1152xf32, #tpu.memory_space<vmem>>, vector<256x128xf32>,
    %c1_i32_14 = arith.constant 1 : i32
    %47 = tpu.dynamic_rotate %26 by %c1_i32_14 dim 0 : vector<256x128xf32>, i32 -> vector<256x128xf32>
    %cst_15 = arith.constant 0.000000e+00 : f32
    %48 = vector.shape_cast %22 : vector<256x1xi1> to vector<256x1xi1>
    %49 = vector.broadcast %48 : vector<256x1xi1> to vector<256x128xi1>
    %50 = vector.broadcast %cst_15 : f32 to vector<256x128xf32>
    %51 = arith.select %49, %47, %50 : vector<256x128xi1>, vector<256x128xf32>
    %c0_16 = arith.constant 0 : index
    %c384 = arith.constant 384 : index
    %52 = vector.load %arg9[%c0_16, %c384] : memref<256x1152xf32, #tpu.memory_space<vmem>>, vector<256x128xf32>
    tpu.vector_store %arg9[%c0_16, %c384], %51 {strides = array<i32>} : memref<256x1152xf32, #tpu.memory_space<vmem>>, vector<256x128xf32>,
    %c0_17 = arith.constant 0 : index
    %c512 = arith.constant 512 : index
    %53 = vector.load %arg9[%c0_17, %c512] : memref<256x1152xf32, #tpu.memory_space<vmem>>, vector<256x128xf32>
    tpu.vector_store %arg9[%c0_17, %c512], %26 {strides = array<i32>} : memref<256x1152xf32, #tpu.memory_space<vmem>>, vector<256x128xf32>,
    %c255_i32 = arith.constant 255 : i32
    %54 = tpu.dynamic_rotate %26 by %c255_i32 dim 0 : vector<256x128xf32>, i32 -> vector<256x128xf32>
    %cst_18 = arith.constant 0.000000e+00 : f32
    %55 = vector.shape_cast %24 : vector<256x1xi1> to vector<256x1xi1>
    %56 = vector.broadcast %55 : vector<256x1xi1> to vector<256x128xi1>
    %57 = vector.broadcast %cst_18 : f32 to vector<256x128xf32>
    %58 = arith.select %56, %54, %57 : vector<256x128xi1>, vector<256x128xf32>
    %c0_19 = arith.constant 0 : index
    %c640 = arith.constant 640 : index
    %59 = vector.load %arg9[%c0_19, %c640] : memref<256x1152xf32, #tpu.memory_space<vmem>>, vector<256x128xf32>
    tpu.vector_store %arg9[%c0_19, %c640], %58 {strides = array<i32>} : memref<256x1152xf32, #tpu.memory_space<vmem>>, vector<256x128xf32>,
    %c241_i32 = arith.constant 241 : i32
    %60 = tpu.dynamic_rotate %26 by %c241_i32 dim 0 : vector<256x128xf32>, i32 -> vector<256x128xf32>
    %61 = arith.andi %20, %22 : vector<256x1xi1>
    %cst_20 = arith.constant 0.000000e+00 : f32
    %62 = vector.shape_cast %61 : vector<256x1xi1> to vector<256x1xi1>
    %63 = vector.broadcast %62 : vector<256x1xi1> to vector<256x128xi1>
    %64 = vector.broadcast %cst_20 : f32 to vector<256x128xf32>
    %65 = arith.select %63, %60, %64 : vector<256x128xi1>, vector<256x128xf32>
    %c0_21 = arith.constant 0 : index
    %c768 = arith.constant 768 : index
    %66 = vector.load %arg9[%c0_21, %c768] : memref<256x1152xf32, #tpu.memory_space<vmem>>, vector<256x128xf32>
    tpu.vector_store %arg9[%c0_21, %c768], %65 {strides = array<i32>} : memref<256x1152xf32, #tpu.memory_space<vmem>>, vector<256x128xf32>,
    %c240_i32_22 = arith.constant 240 : i32
    %67 = tpu.dynamic_rotate %26 by %c240_i32_22 dim 0 : vector<256x128xf32>, i32 -> vector<256x128xf32>
    %cst_23 = arith.constant 0.000000e+00 : f32
    %68 = vector.shape_cast %20 : vector<256x1xi1> to vector<256x1xi1>
    %69 = vector.broadcast %68 : vector<256x1xi1> to vector<256x128xi1>
    %70 = vector.broadcast %cst_23 : f32 to vector<256x128xf32>
    %71 = arith.select %69, %67, %70 : vector<256x128xi1>, vector<256x128xf32>
    %c0_24 = arith.constant 0 : index
    %c896 = arith.constant 896 : index
    %72 = vector.load %arg9[%c0_24, %c896] : memref<256x1152xf32, #tpu.memory_space<vmem>>, vector<256x128xf32>
    tpu.vector_store %arg9[%c0_24, %c896], %71 {strides = array<i32>} : memref<256x1152xf32, #tpu.memory_space<vmem>>, vector<256x128xf32>,
    %c239_i32 = arith.constant 239 : i32
    %73 = tpu.dynamic_rotate %26 by %c239_i32 dim 0 : vector<256x128xf32>, i32 -> vector<256x128xf32>
    %74 = arith.andi %20, %24 : vector<256x1xi1>
    %cst_25 = arith.constant 0.000000e+00 : f32
    %75 = vector.shape_cast %74 : vector<256x1xi1> to vector<256x1xi1>
    %76 = vector.broadcast %75 : vector<256x1xi1> to vector<256x128xi1>
    %77 = vector.broadcast %cst_25 : f32 to vector<256x128xf32>
    %78 = arith.select %76, %73, %77 : vector<256x128xi1>, vector<256x128xf32>
    %c0_26 = arith.constant 0 : index
    %c1024 = arith.constant 1024 : index
    %79 = vector.load %arg9[%c0_26, %c1024] : memref<256x1152xf32, #tpu.memory_space<vmem>>, vector<256x128xf32>
    tpu.vector_store %arg9[%c0_26, %c1024], %78 {strides = array<i32>} : memref<256x1152xf32, #tpu.memory_space<vmem>>, vector<256x128xf32>,
    %c0_27 = arith.constant 0 : index
    %c0_28 = arith.constant 0 : index
    %80 = vector.load %arg9[%c0_27, %c0_28] : memref<256x1152xf32, #tpu.memory_space<vmem>>, vector<256x1152xf32>
    %c0_29 = arith.constant 0 : index
    %c0_30 = arith.constant 0 : index
    %81 = vector.load %arg2[%c0_29, %c0_30] : memref<1152x128xf32, #tpu.memory_space<vmem>>, vector<1152x128xf32>
    %cst_31 = arith.constant dense<0.000000e+00> : vector<256x128xf32>
    %82 = tpu.matmul %80, %81, %cst_31 {dimension_numbers = #tpu.dot_dimension_numbers<[1], [0], [0], [1], [0, 0, 1, 1], [], []>} : vector<256x1152xf32>, vector<1152x128xf32>, vector<256x128xf32> -> vector<256x128xf32>
    %c0_32 = arith.constant 0 : index
    %c0_33 = arith.constant 0 : index
    %83 = vector.load %arg3[%c0_32, %c0_33] : memref<1x128xf32, #tpu.memory_space<vmem>>, vector<1x128xf32>
    %84 = vector.broadcast %83 : vector<1x128xf32> to vector<256x128xf32>
    %85 = arith.mulf %82, %84 : vector<256x128xf32>
    %c0_34 = arith.constant 0 : index
    %c0_35 = arith.constant 0 : index
    %86 = vector.load %arg4[%c0_34, %c0_35] : memref<1x128xf32, #tpu.memory_space<vmem>>, vector<1x128xf32>
    %87 = vector.broadcast %86 : vector<1x128xf32> to vector<256x128xf32>
    %88 = arith.addf %85, %87 : vector<256x128xf32>
    %cst_36 = arith.constant 0.000000e+00 : f32
    %89 = vector.broadcast %cst_36 : f32 to vector<256x128xf32>
    %90 = arith.maximumf %88, %89 : vector<256x128xf32>
    %c0_37 = arith.constant 0 : index
    %c0_38 = arith.constant 0 : index
    %91 = vector.load %arg10[%c0_37, %c0_38] : memref<256x128xf32, #tpu.memory_space<vmem>>, vector<256x128xf32>
    tpu.vector_store %arg10[%c0_37, %c0_38], %90 {strides = array<i32>} : memref<256x128xf32, #tpu.memory_space<vmem>>, vector<256x128xf32>,
    %c0_39 = arith.constant 0 : index
    %c0_40 = arith.constant 0 : index
    %92 = vector.load %arg10[%c0_39, %c0_40] : memref<256x128xf32, #tpu.memory_space<vmem>>, vector<256x128xf32>
    %c17_i32_41 = arith.constant 17 : i32
    %93 = tpu.dynamic_rotate %92 by %c17_i32_41 dim 0 : vector<256x128xf32>, i32 -> vector<256x128xf32>
    %94 = arith.andi %18, %22 : vector<256x1xi1>
    %cst_42 = arith.constant 0.000000e+00 : f32
    %95 = vector.shape_cast %94 : vector<256x1xi1> to vector<256x1xi1>
    %96 = vector.broadcast %95 : vector<256x1xi1> to vector<256x128xi1>
    %97 = vector.broadcast %cst_42 : f32 to vector<256x128xf32>
    %98 = arith.select %96, %93, %97 : vector<256x128xi1>, vector<256x128xf32>
    %c0_43 = arith.constant 0 : index
    %c0_44 = arith.constant 0 : index
    %99 = vector.load %arg9[%c0_43, %c0_44] : memref<256x1152xf32, #tpu.memory_space<vmem>>, vector<256x128xf32>
    tpu.vector_store %arg9[%c0_43, %c0_44], %98 {strides = array<i32>} : memref<256x1152xf32, #tpu.memory_space<vmem>>, vector<256x128xf32>,
    %c16_i32_45 = arith.constant 16 : i32
    %100 = tpu.dynamic_rotate %92 by %c16_i32_45 dim 0 : vector<256x128xf32>, i32 -> vector<256x128xf32>
    %cst_46 = arith.constant 0.000000e+00 : f32
    %101 = vector.shape_cast %18 : vector<256x1xi1> to vector<256x1xi1>
    %102 = vector.broadcast %101 : vector<256x1xi1> to vector<256x128xi1>
    %103 = vector.broadcast %cst_46 : f32 to vector<256x128xf32>
    %104 = arith.select %102, %100, %103 : vector<256x128xi1>, vector<256x128xf32>
    %c0_47 = arith.constant 0 : index
    %c128_48 = arith.constant 128 : index
    %105 = vector.load %arg9[%c0_47, %c128_48] : memref<256x1152xf32, #tpu.memory_space<vmem>>, vector<256x128xf32>
    tpu.vector_store %arg9[%c0_47, %c128_48], %104 {strides = array<i32>} : memref<256x1152xf32, #tpu.memory_space<vmem>>, vector<256x128xf32>,
    %c15_i32_49 = arith.constant 15 : i32
    %106 = tpu.dynamic_rotate %92 by %c15_i32_49 dim 0 : vector<256x128xf32>, i32 -> vector<256x128xf32>
    %107 = arith.andi %18, %24 : vector<256x1xi1>
    %cst_50 = arith.constant 0.000000e+00 : f32
    %108 = vector.shape_cast %107 : vector<256x1xi1> to vector<256x1xi1>
    %109 = vector.broadcast %108 : vector<256x1xi1> to vector<256x128xi1>
    %110 = vector.broadcast %cst_50 : f32 to vector<256x128xf32>
    %111 = arith.select %109, %106, %110 : vector<256x128xi1>, vector<256x128xf32>
    %c0_51 = arith.constant 0 : index
    %c256_52 = arith.constant 256 : index
    %112 = vector.load %arg9[%c0_51, %c256_52] : memref<256x1152xf32, #tpu.memory_space<vmem>>, vector<256x128xf32>
    tpu.vector_store %arg9[%c0_51, %c256_52], %111 {strides = array<i32>} : memref<256x1152xf32, #tpu.memory_space<vmem>>, vector<256x128xf32>,
    %c1_i32_53 = arith.constant 1 : i32
    %113 = tpu.dynamic_rotate %92 by %c1_i32_53 dim 0 : vector<256x128xf32>, i32 -> vector<256x128xf32>
    %cst_54 = arith.constant 0.000000e+00 : f32
    %114 = vector.shape_cast %22 : vector<256x1xi1> to vector<256x1xi1>
    %115 = vector.broadcast %114 : vector<256x1xi1> to vector<256x128xi1>
    %116 = vector.broadcast %cst_54 : f32 to vector<256x128xf32>
    %117 = arith.select %115, %113, %116 : vector<256x128xi1>, vector<256x128xf32>
    %c0_55 = arith.constant 0 : index
    %c384_56 = arith.constant 384 : index
    %118 = vector.load %arg9[%c0_55, %c384_56] : memref<256x1152xf32, #tpu.memory_space<vmem>>, vector<256x128xf32>
    tpu.vector_store %arg9[%c0_55, %c384_56], %117 {strides = array<i32>} : memref<256x1152xf32, #tpu.memory_space<vmem>>, vector<256x128xf32>,
    %c0_57 = arith.constant 0 : index
    %c512_58 = arith.constant 512 : index
    %119 = vector.load %arg9[%c0_57, %c512_58] : memref<256x1152xf32, #tpu.memory_space<vmem>>, vector<256x128xf32>
    tpu.vector_store %arg9[%c0_57, %c512_58], %92 {strides = array<i32>} : memref<256x1152xf32, #tpu.memory_space<vmem>>, vector<256x128xf32>,
    %c255_i32_59 = arith.constant 255 : i32
    %120 = tpu.dynamic_rotate %92 by %c255_i32_59 dim 0 : vector<256x128xf32>, i32 -> vector<256x128xf32>
    %cst_60 = arith.constant 0.000000e+00 : f32
    %121 = vector.shape_cast %24 : vector<256x1xi1> to vector<256x1xi1>
    %122 = vector.broadcast %121 : vector<256x1xi1> to vector<256x128xi1>
    %123 = vector.broadcast %cst_60 : f32 to vector<256x128xf32>
    %124 = arith.select %122, %120, %123 : vector<256x128xi1>, vector<256x128xf32>
    %c0_61 = arith.constant 0 : index
    %c640_62 = arith.constant 640 : index
    %125 = vector.load %arg9[%c0_61, %c640_62] : memref<256x1152xf32, #tpu.memory_space<vmem>>, vector<256x128xf32>
    tpu.vector_store %arg9[%c0_61, %c640_62], %124 {strides = array<i32>} : memref<256x1152xf32, #tpu.memory_space<vmem>>, vector<256x128xf32>,
    %c241_i32_63 = arith.constant 241 : i32
    %126 = tpu.dynamic_rotate %92 by %c241_i32_63 dim 0 : vector<256x128xf32>, i32 -> vector<256x128xf32>
    %127 = arith.andi %20, %22 : vector<256x1xi1>
    %cst_64 = arith.constant 0.000000e+00 : f32
    %128 = vector.shape_cast %127 : vector<256x1xi1> to vector<256x1xi1>
    %129 = vector.broadcast %128 : vector<256x1xi1> to vector<256x128xi1>
    %130 = vector.broadcast %cst_64 : f32 to vector<256x128xf32>
    %131 = arith.select %129, %126, %130 : vector<256x128xi1>, vector<256x128xf32>
    %c0_65 = arith.constant 0 : index
    %c768_66 = arith.constant 768 : index
    %132 = vector.load %arg9[%c0_65, %c768_66] : memref<256x1152xf32, #tpu.memory_space<vmem>>, vector<256x128xf32>
    tpu.vector_store %arg9[%c0_65, %c768_66], %131 {strides = array<i32>} : memref<256x1152xf32, #tpu.memory_space<vmem>>, vector<256x128xf32>,
    %c240_i32_67 = arith.constant 240 : i32
    %133 = tpu.dynamic_rotate %92 by %c240_i32_67 dim 0 : vector<256x128xf32>, i32 -> vector<256x128xf32>
    %cst_68 = arith.constant 0.000000e+00 : f32
    %134 = vector.shape_cast %20 : vector<256x1xi1> to vector<256x1xi1>
    %135 = vector.broadcast %134 : vector<256x1xi1> to vector<256x128xi1>
    %136 = vector.broadcast %cst_68 : f32 to vector<256x128xf32>
    %137 = arith.select %135, %133, %136 : vector<256x128xi1>, vector<256x128xf32>
    %c0_69 = arith.constant 0 : index
    %c896_70 = arith.constant 896 : index
    %138 = vector.load %arg9[%c0_69, %c896_70] : memref<256x1152xf32, #tpu.memory_space<vmem>>, vector<256x128xf32>
    tpu.vector_store %arg9[%c0_69, %c896_70], %137 {strides = array<i32>} : memref<256x1152xf32, #tpu.memory_space<vmem>>, vector<256x128xf32>,
    %c239_i32_71 = arith.constant 239 : i32
    %139 = tpu.dynamic_rotate %92 by %c239_i32_71 dim 0 : vector<256x128xf32>, i32 -> vector<256x128xf32>
    %140 = arith.andi %20, %24 : vector<256x1xi1>
    %cst_72 = arith.constant 0.000000e+00 : f32
    %141 = vector.shape_cast %140 : vector<256x1xi1> to vector<256x1xi1>
    %142 = vector.broadcast %141 : vector<256x1xi1> to vector<256x128xi1>
    %143 = vector.broadcast %cst_72 : f32 to vector<256x128xf32>
    %144 = arith.select %142, %139, %143 : vector<256x128xi1>, vector<256x128xf32>
    %c0_73 = arith.constant 0 : index
    %c1024_74 = arith.constant 1024 : index
    %145 = vector.load %arg9[%c0_73, %c1024_74] : memref<256x1152xf32, #tpu.memory_space<vmem>>, vector<256x128xf32>
    tpu.vector_store %arg9[%c0_73, %c1024_74], %144 {strides = array<i32>} : memref<256x1152xf32, #tpu.memory_space<vmem>>, vector<256x128xf32>,
    %c0_75 = arith.constant 0 : index
    %c0_76 = arith.constant 0 : index
    %146 = vector.load %arg9[%c0_75, %c0_76] : memref<256x1152xf32, #tpu.memory_space<vmem>>, vector<256x1152xf32>
    %c0_77 = arith.constant 0 : index
    %c0_78 = arith.constant 0 : index
    %147 = vector.load %arg5[%c0_77, %c0_78] : memref<1152x128xf32, #tpu.memory_space<vmem>>, vector<1152x128xf32>
    %cst_79 = arith.constant dense<0.000000e+00> : vector<256x128xf32>
    %148 = tpu.matmul %146, %147, %cst_79 {dimension_numbers = #tpu.dot_dimension_numbers<[1], [0], [0], [1], [0, 0, 1, 1], [], []>} : vector<256x1152xf32>, vector<1152x128xf32>, vector<256x128xf32> -> vector<256x128xf32>
    %c0_80 = arith.constant 0 : index
    %c0_81 = arith.constant 0 : index
    %149 = vector.load %arg6[%c0_80, %c0_81] : memref<1x128xf32, #tpu.memory_space<vmem>>, vector<1x128xf32>
    %150 = vector.broadcast %149 : vector<1x128xf32> to vector<256x128xf32>
    %151 = arith.mulf %148, %150 : vector<256x128xf32>
    %c0_82 = arith.constant 0 : index
    %c0_83 = arith.constant 0 : index
    %152 = vector.load %arg7[%c0_82, %c0_83] : memref<1x128xf32, #tpu.memory_space<vmem>>, vector<1x128xf32>
    %153 = vector.broadcast %152 : vector<1x128xf32> to vector<256x128xf32>
    %154 = arith.addf %151, %153 : vector<256x128xf32>
    %c0_84 = arith.constant 0 : index
    %c0_85 = arith.constant 0 : index
    %c0_86 = arith.constant 0 : index
    %155 = vector.load %arg1[%c0_84, %c0_85, %c0_86] : memref<1x256x128xf32, #tpu.memory_space<vmem>>, vector<1x256x128xf32>
    %156 = vector.shape_cast %155 : vector<1x256x128xf32> to vector<256x128xf32>
    %157 = arith.addf %154, %156 : vector<256x128xf32>
    %cst_87 = arith.constant 0.000000e+00 : f32
    %158 = vector.broadcast %cst_87 : f32 to vector<256x128xf32>
    %159 = arith.maximumf %157, %158 : vector<256x128xf32>
    %c0_88 = arith.constant 0 : index
    %c0_89 = arith.constant 0 : index
    %c0_90 = arith.constant 0 : index
    %160 = vector.load %arg8[%c0_88, %c0_89, %c0_90] : memref<1x256x128xf32, #tpu.memory_space<vmem>>, vector<1x256x128xf32>
    %161 = vector.shape_cast %160 : vector<1x256x128xf32> to vector<256x128xf32>
    %162 = vector.shape_cast %159 : vector<256x128xf32> to vector<1x256x128xf32>
    tpu.vector_store %arg8[%c0_88, %c0_89, %c0_90], %162 {strides = array<i32>} : memref<1x256x128xf32, #tpu.memory_space<vmem>>, vector<1x256x128xf32>,
    return
  }
  func.func @transform_0(%arg0: i32) -> (i32, i32, i32) {
    %c0_i32 = arith.constant 0 : i32
    %c0_i32_0 = arith.constant 0 : i32
    %c0_i32_1 = arith.constant 0 : i32
    return %arg0, %c0_i32, %c0_i32_0 : i32, i32, i32
  }
  func.func @transform_1(%arg0: i32) -> (i32, i32) {
    %c0_i32 = arith.constant 0 : i32
    %c0_i32_0 = arith.constant 0 : i32
    %c0_i32_1 = arith.constant 0 : i32
    return %c0_i32, %c0_i32_0 : i32, i32
  }
  func.func @transform_2(%arg0: i32) -> (i32, i32) {
    %c0_i32 = arith.constant 0 : i32
    %c0_i32_0 = arith.constant 0 : i32
    %c0_i32_1 = arith.constant 0 : i32
    return %c0_i32, %c0_i32_0 : i32, i32
  }
  func.func @transform_3(%arg0: i32) -> (i32, i32) {
    %c0_i32 = arith.constant 0 : i32
    %c0_i32_0 = arith.constant 0 : i32
    %c0_i32_1 = arith.constant 0 : i32
    return %c0_i32, %c0_i32_0 : i32, i32
  }
  func.func @transform_4(%arg0: i32) -> (i32, i32) {
    %c0_i32 = arith.constant 0 : i32
    %c0_i32_0 = arith.constant 0 : i32
    %c0_i32_1 = arith.constant 0 : i32
    return %c0_i32, %c0_i32_0 : i32, i32
  }
  func.func @transform_5(%arg0: i32) -> (i32, i32) {
    %c0_i32 = arith.constant 0 : i32
    %c0_i32_0 = arith.constant 0 : i32
    %c0_i32_1 = arith.constant 0 : i32
    return %c0_i32, %c0_i32_0 : i32, i32
  }
  func.func @transform_6(%arg0: i32) -> (i32, i32) {
    %c0_i32 = arith.constant 0 : i32
    %c0_i32_0 = arith.constant 0 : i32
    %c0_i32_1 = arith.constant 0 : i32
    return %c0_i32, %c0_i32_0 : i32, i32
  }
  func.func @transform_7(%arg0: i32) -> (i32, i32, i32) {
    %c0_i32 = arith.constant 0 : i32
    %c0_i32_0 = arith.constant 0 : i32
    %c0_i32_1 = arith.constant 0 : i32
    return %arg0, %c0_i32, %c0_i32_0 : i32, i32, i32
  }
}

</mosaic_0001>

<llo_original>
// kernel: basic_block_forward_nhwc.1
$region0: #{basic_block_forward_nhwc.1}
  #allocation0 [shape = 'u32[]', space=smem, size = 0x4, offset = 0x4, fixed_abs, tag = 'smem constant byte address 0x4 - core index']
  #allocation1 [shape = 'u32[144,128]{1,0:T(1,128)}', space=vmem, size = 0x12000, scoped, tag = 'internal scratch']
  #allocation2 [shape = 'f32[256,1152]{1,0:T(8,128)}', space=vmem, size = 0x120000, scoped, tag = 'scratch operand']
  #allocation3 [shape = 'f32[256,128]{1,0:T(8,128)}', space=vmem, size = 0x20000, scoped, tag = 'scratch operand']
  %s0 = inlined_call_operand.vmem [shape: f32[2,256,128], index: 0, kind: input, shape index: {}]
  %s1 = inlined_call_operand.vmem [shape: f32[1152,128], index: 1, kind: input, shape index: {}]
  %s2 = inlined_call_operand.vmem [shape: f32[1,128], index: 2, kind: input, shape index: {}]
  %s3 = inlined_call_operand.vmem [shape: f32[1,128], index: 3, kind: input, shape index: {}]
  %s4 = inlined_call_operand.vmem [shape: f32[1152,128], index: 4, kind: input, shape index: {}]
  %s5 = inlined_call_operand.vmem [shape: f32[1,128], index: 5, kind: input, shape index: {}]
  %s6 = inlined_call_operand.vmem [shape: f32[1,128], index: 6, kind: input, shape index: {}]
  %s7 = inlined_call_operand.vmem [shape: f32[2,256,128], index: 7, kind: output, shape index: {}]
  %s8 = sld [smem:[#allocation0]]
  $region61: #{basic_block_forward_nhwc.1} parent=0
    _
  %s10 = ssub.s32 1, %s8
  %s11 = scalar_select 0, %s10, %s8
  loop: start=0, step=1, limit=4
  $region2: #{basic_block_forward_nhwc.1} parent=0 // loop_pre_header
    _
  $region3: #{basic_block_forward_nhwc.1} parent=0 // loop_header
    %s13 = sphi 0, %s17
    %p14 = scmp.ge.s32.totalorder %s13, 4
    %s23 = sphi 0, %s25
    %s26 = sphi 0, %s23
    %s27 = sphi 0, %s26
    %s43 = sphi 0, %s27
    %s47 = sphi 0, %s47
    %s49 = sphi 0, %s47
    %s50 = sphi 0, %s49
    %s64 = sphi 0, %s50
    %s68 = sphi 0, %s68
    %s70 = sphi 0, %s68
    %s71 = sphi 0, %s70
    %s85 = sphi 0, %s71
    %s89 = sphi 0, %s89
    %s91 = sphi 0, %s89
    %s92 = sphi 0, %s91
    %s106 = sphi 0, %s92
    %s110 = sphi 0, %s110
    %s112 = sphi 0, %s110
    %s113 = sphi 0, %s112
    %s127 = sphi 0, %s113
    %s131 = sphi 0, %s131
    %s133 = sphi 0, %s131
    %s134 = sphi 0, %s133
    %s148 = sphi 0, %s134
    %s152 = sphi 0, %s152
    %s154 = sphi 0, %s152
    %s155 = sphi 0, %s154
    %s169 = sphi 0, %s155
    %s175 = sphi 0, %s177
    %s178 = sphi 0, %s175
    %s179 = sphi 0, %s178
    %s195 = sphi 0, %s179
  $region4: #{basic_block_forward_nhwc.1} parent=0 // loop_header_branch
    %16 = sbr.rel (%p14) target = $region8
  $region5: #{basic_block_forward_nhwc.1} parent=0 // loop_body
    %s18 = ssub.s32 %s13, 1
    %s19 = ssub.s32 %s13, 2
    %s20 = sadd.s32 %s13, 1
    %s21 = ssub.s32 %s13, %s20
    %p22 = scmp.eq.s32.totalorder %s21, 0
    %s24 = sadd.s32 %s23, 1
    %s25 = scalar_select %p22, %s23, %s24
    %p28 = pneg %p22
    %p29 = scmp.eq.s32.totalorder %s13, 1
    %p30 = por %p28, %p29
    %p31 = scmp.ne.s32.totalorder %s23, %s26
    %p32 = scmp.eq.s32.totalorder %s13, 0
    %p33 = por %p31, %p32
    %p34 = scmp.ne.s32.totalorder %s23, %s26
    %p35 = scmp.eq.s32.totalorder %s18, 1
    %p36 = por %p34, %p35
    %p37 = scmp.ne.s32.totalorder %s26, %s27
    %p38 = scmp.eq.s32.totalorder %s18, 0
    %p39 = por %p37, %p38
    %p40 = scmp.ne.s32.totalorder %s26, %s27
    %p41 = scmp.eq.s32.totalorder %s19, 1
    %p42 = por %p40, %p41
    %p44 = scmp.ne.s32.totalorder %s27, %s43
    %p45 = scmp.eq.s32.totalorder %s19, 0
    %p46 = por %p44, %p45
    %s48 = sadd.s32 %s47, 1
    %p51 = scmp.eq.s32.totalorder %s13, 1
    %p52 = scmp.ne.s32.totalorder %s47, %s49
    %p53 = scmp.eq.s32.totalorder %s13, 0
    %p54 = por %p52, %p53
    %p55 = scmp.ne.s32.totalorder %s47, %s49
    %p56 = scmp.eq.s32.totalorder %s18, 1
    %p57 = por %p55, %p56
    %p58 = scmp.ne.s32.totalorder %s49, %s50
    %p59 = scmp.eq.s32.totalorder %s18, 0
    %p60 = por %p58, %p59
    %p61 = scmp.ne.s32.totalorder %s49, %s50
    %p62 = scmp.eq.s32.totalorder %s19, 1
    %p63 = por %p61, %p62
    %p65 = scmp.ne.s32.totalorder %s50, %s64
    %p66 = scmp.eq.s32.totalorder %s19, 0
    %p67 = por %p65, %p66
    %s69 = sadd.s32 %s68, 1
    %p72 = scmp.eq.s32.totalorder %s13, 1
    %p73 = scmp.ne.s32.totalorder %s68, %s70
    %p74 = scmp.eq.s32.totalorder %s13, 0
    %p75 = por %p73, %p74
    %p76 = scmp.ne.s32.totalorder %s68, %s70
    %p77 = scmp.eq.s32.totalorder %s18, 1
    %p78 = por %p76, %p77
    %p79 = scmp.ne.s32.totalorder %s70, %s71
    %p80 = scmp.eq.s32.totalorder %s18, 0
    %p81 = por %p79, %p80
    %p82 = scmp.ne.s32.totalorder %s70, %s71
    %p83 = scmp.eq.s32.totalorder %s19, 1
    %p84 = por %p82, %p83
    %p86 = scmp.ne.s32.totalorder %s71, %s85
    %p87 = scmp.eq.s32.totalorder %s19, 0
    %p88 = por %p86, %p87
    %s90 = sadd.s32 %s89, 1
    %p93 = scmp.eq.s32.totalorder %s13, 1
    %p94 = scmp.ne.s32.totalorder %s89, %s91
    %p95 = scmp.eq.s32.totalorder %s13, 0
    %p96 = por %p94, %p95
    %p97 = scmp.ne.s32.totalorder %s89, %s91
    %p98 = scmp.eq.s32.totalorder %s18, 1
    %p99 = por %p97, %p98
    %p100 = scmp.ne.s32.totalorder %s91, %s92
    %p101 = scmp.eq.s32.totalorder %s18, 0
    %p102 = por %p100, %p101
    %p103 = scmp.ne.s32.totalorder %s91, %s92
    %p104 = scmp.eq.s32.totalorder %s19, 1
    %p105 = por %p103, %p104
    %p107 = scmp.ne.s32.totalorder %s92, %s106
    %p108 = scmp.eq.s32.totalorder %s19, 0
    %p109 = por %p107, %p108
    %s111 = sadd.s32 %s110, 1
    %p114 = scmp.eq.s32.totalorder %s13, 1
    %p115 = scmp.ne.s32.totalorder %s110, %s112
    %p116 = scmp.eq.s32.totalorder %s13, 0
    %p117 = por %p115, %p116
    %p118 = scmp.ne.s32.totalorder %s110, %s112
    %p119 = scmp.eq.s32.totalorder %s18, 1
    %p120 = por %p118, %p119
    %p121 = scmp.ne.s32.totalorder %s112, %s113
    %p122 = scmp.eq.s32.totalorder %s18, 0
    %p123 = por %p121, %p122
    %p124 = scmp.ne.s32.totalorder %s112, %s113
    %p125 = scmp.eq.s32.totalorder %s19, 1
    %p126 = por %p124, %p125
    %p128 = scmp.ne.s32.totalorder %s113, %s127
    %p129 = scmp.eq.s32.totalorder %s19, 0
    %p130 = por %p128, %p129
    %s132 = sadd.s32 %s131, 1
    %p135 = scmp.eq.s32.totalorder %s13, 1
    %p136 = scmp.ne.s32.totalorder %s131, %s133
    %p137 = scmp.eq.s32.totalorder %s13, 0
    %p138 = por %p136, %p137
    %p139 = scmp.ne.s32.totalorder %s131, %s133
    %p140 = scmp.eq.s32.totalorder %s18, 1
    %p141 = por %p139, %p140
    %p142 = scmp.ne.s32.totalorder %s133, %s134
    %p143 = scmp.eq.s32.totalorder %s18, 0
    %p144 = por %p142, %p143
    %p145 = scmp.ne.s32.totalorder %s133, %s134
    %p146 = scmp.eq.s32.totalorder %s19, 1
    %p147 = por %p145, %p146
    %p149 = scmp.ne.s32.totalorder %s134, %s148
    %p150 = scmp.eq.s32.totalorder %s19, 0
    %p151 = por %p149, %p150
    %s153 = sadd.s32 %s152, 1
    %p156 = scmp.eq.s32.totalorder %s13, 1
    %p157 = scmp.ne.s32.totalorder %s152, %s154
    %p158 = scmp.eq.s32.totalorder %s13, 0
    %p159 = por %p157, %p158
    %p160 = scmp.ne.s32.totalorder %s152, %s154
    %p161 = scmp.eq.s32.totalorder %s18, 1
    %p162 = por %p160, %p161
    %p163 = scmp.ne.s32.totalorder %s154, %s155
    %p164 = scmp.eq.s32.totalorder %s18, 0
    %p165 = por %p163, %p164
    %p166 = scmp.ne.s32.totalorder %s154, %s155
    %p167 = scmp.eq.s32.totalorder %s19, 1
    %p168 = por %p166, %p167
    %p170 = scmp.ne.s32.totalorder %s155, %s169
    %p171 = scmp.eq.s32.totalorder %s19, 0
    %p172 = por %p170, %p171
    %s173 = ssub.s32 %s13, %s20
    %p174 = scmp.eq.s32.totalorder %s173, 0
    %s176 = sadd.s32 %s175, 1
    %s177 = scalar_select %p174, %s175, %s176
    %p180 = pneg %p174
    %p181 = scmp.eq.s32.totalorder %s13, 1
    %p182 = por %p180, %p181
    %p183 = scmp.ne.s32.totalorder %s175, %s178
    %p184 = scmp.eq.s32.totalorder %s13, 0
    %p185 = por %p183, %p184
    %p186 = scmp.ne.s32.totalorder %s175, %s178
    %p187 = scmp.eq.s32.totalorder %s18, 1
    %p188 = por %p186, %p187
    %p189 = scmp.ne.s32.totalorder %s178, %s179
    %p190 = scmp.eq.s32.totalorder %s18, 0
    %p191 = por %p189, %p190
    %p192 = scmp.ne.s32.totalorder %s178, %s179
    %p193 = scmp.eq.s32.totalorder %s19, 1
    %p194 = por %p192, %p193
    %p196 = scmp.ne.s32.totalorder %s179, %s195
    %p197 = scmp.eq.s32.totalorder %s19, 0
    %p198 = por %p196, %p197
    %p199 = scmp.le.s32.totalorder 1, %s13
    %p200 = scmp.lt.s32.totalorder %s13, 3
    %p201 = pnand %p199, %p200
    %p202 = pneg %p201
    // Predicated region
    $region9: #{basic_block_forward_nhwc.1} parent=5 // pred_check
      _
    $region10: #{basic_block_forward_nhwc.1} parent=5 // pred_check_branch
      %204 = sbr.rel (%p201) target = $region12
    $region11: #{basic_block_forward_nhwc.1} parent=5 // pred_region
      %s205 = ssub.s32 %s13, 1
      // Predicated region
      $region13: #{basic_block_forward_nhwc.1} parent=11 // pred_check
        %p206 = pneg %p60
      $region14: #{basic_block_forward_nhwc.1} parent=11 // pred_check_branch
        %208 = sbr.rel (%p206) target = $region16
      $region15: #{basic_block_forward_nhwc.1} parent=11 // pred_region
        _
      $region16: #{basic_block_forward_nhwc.1} parent=11 // pred_fallthru
        _
      // Predicated region
      $region17: #{basic_block_forward_nhwc.1} parent=11 // pred_check
        %p209 = pneg %p81
      $region18: #{basic_block_forward_nhwc.1} parent=11 // pred_check_branch
        %211 = sbr.rel (%p209) target = $region20
      $region19: #{basic_block_forward_nhwc.1} parent=11 // pred_region
        _
      $region20: #{basic_block_forward_nhwc.1} parent=11 // pred_fallthru
        _
      // Predicated region
      $region21: #{basic_block_forward_nhwc.1} parent=11 // pred_check
        %p212 = pneg %p102
      $region22: #{basic_block_forward_nhwc.1} parent=11 // pred_check_branch
        %214 = sbr.rel (%p212) target = $region24
      $region23: #{basic_block_forward_nhwc.1} parent=11 // pred_region
        _
      $region24: #{basic_block_forward_nhwc.1} parent=11 // pred_fallthru
        _
      // Predicated region
      $region25: #{basic_block_forward_nhwc.1} parent=11 // pred_check
        %p215 = pneg %p123
      $region26: #{basic_block_forward_nhwc.1} parent=11 // pred_check_branch
        %217 = sbr.rel (%p215) target = $region28
      $region27: #{basic_block_forward_nhwc.1} parent=11 // pred_region
        _
      $region28: #{basic_block_forward_nhwc.1} parent=11 // pred_fallthru
        _
      // Predicated region
      $region29: #{basic_block_forward_nhwc.1} parent=11 // pred_check
        %p218 = pneg %p144
      $region30: #{basic_block_forward_nhwc.1} parent=11 // pred_check_branch
        %220 = sbr.rel (%p218) target = $region32
      $region31: #{basic_block_forward_nhwc.1} parent=11 // pred_region
        _
      $region32: #{basic_block_forward_nhwc.1} parent=11 // pred_fallthru
        _
      // Predicated region
      $region33: #{basic_block_forward_nhwc.1} parent=11 // pred_check
        %p221 = pneg %p165
      $region34: #{basic_block_forward_nhwc.1} parent=11 // pred_check_branch
        %223 = sbr.rel (%p221) target = $region36
      $region35: #{basic_block_forward_nhwc.1} parent=11 // pred_region
        _
      $region36: #{basic_block_forward_nhwc.1} parent=11 // pred_fallthru
        _
    $region12: #{basic_block_forward_nhwc.1} parent=5 // pred_fallthru
      _
    %p224 = scmp.lt.s32.totalorder %s13, 2
    // Predicated region
    $region37: #{basic_block_forward_nhwc.1} parent=5 // pred_check
      %p225 = pneg %p224
    $region38: #{basic_block_forward_nhwc.1} parent=5 // pred_check_branch
      %227 = sbr.rel (%p225) target = $region40
    $region39: #{basic_block_forward_nhwc.1} parent=5 // pred_region
      // Predicated region
      $region41: #{basic_block_forward_nhwc.1} parent=39 // pred_check
        %p228 = pneg %p33
      $region42: #{basic_block_forward_nhwc.1} parent=39 // pred_check_branch
        %230 = sbr.rel (%p228) target = $region44
      $region43: #{basic_block_forward_nhwc.1} parent=39 // pred_region
        %p231 = scmp.lt.s32.totalorder %s13, 1
        %s232 = scalar_select %p231, %s13, 1
        %s233 = smul.addr %s232, 32
        %s234 = smul.addr %s233, 8
        %s235 = scalar_lea.vmem %s0, %s234
      $region44: #{basic_block_forward_nhwc.1} parent=39 // pred_fallthru
        _
    $region40: #{basic_block_forward_nhwc.1} parent=5 // pred_fallthru
      _
    %p236 = scmp.le.s32.totalorder 1, %s13
    %p237 = scmp.lt.s32.totalorder %s13, 3
    %p238 = pnand %p236, %p237
    %p239 = pneg %p238
    // Predicated region
    $region45: #{basic_block_forward_nhwc.1} parent=5 // pred_check
      _
    $region46: #{basic_block_forward_nhwc.1} parent=5 // pred_check_branch
      %241 = sbr.rel (%p238) target = $region48
    $region47: #{basic_block_forward_nhwc.1} parent=5 // pred_region
      %s242 = ssub.s32 %s13, 1
      %p243 = scmp.lt.s32.totalorder %s18, 1
      %s244 = scalar_select %p243, %s18, 1
      %s245 = smul.addr %s244, 32
      %s246 = smul.addr %s245, 8
      %s247 = scalar_lea.vmem %s0, %s246
      %p248 = pneg %p39
      %p249 = pneg %p36
      %p250 = pneg %p60
      %p251 = pneg %p57
      %p252 = pneg %p81
      %p253 = pneg %p78
      %p254 = pneg %p102
      %p255 = pneg %p99
      %p256 = pneg %p123
      %p257 = pneg %p120
      %p258 = pneg %p144
      %p259 = pneg %p141
      %p260 = pneg %p165
      %p261 = pneg %p162
      %p262 = pneg %p191
      %p263 = pneg %p188
      %p264 = scmp.lt.s32.totalorder %s18, 1
      %s265 = scalar_select %p264, %s18, 1
      %s266 = smul.addr %s265, 32
      %s267 = smul.addr %s266, 8
      %s268 = scalar_lea.vmem %s7, %s267
      %p269 = scmp.lt.s32.totalorder %s18, 1
      %s270 = scalar_select %p269, %s18, 1
      %s271 = smul.addr %s270, 32
      %s272 = smul.addr %s271, 8
      %s273 = scalar_lea.vmem %s0, %s272
      %p274 = scmp.lt.s32.totalorder %s18, 1
      %s275 = scalar_select %p274, %s18, 1
      %s276 = smul.addr %s275, 32
      %s277 = smul.addr %s276, 8
      %s278 = scalar_lea.vmem %s7, %s277
      %v279 = vlaneseq
      %v280 = vshrl.u32 %v279, 7
      %v281 = vadd.s32 %v280, 8
      %v282 = vadd.s32 %v280, 16
      %v283 = vadd.s32 %v280, 24
      %v284 = vadd.s32 %v280, 32
      %v285 = vadd.s32 %v280, 40
      %v286 = vadd.s32 %v280, 48
      %v287 = vadd.s32 %v280, 56
      %v288 = vadd.s32 %v280, 64
      %v289 = vadd.s32 %v280, 72
      %v290 = vadd.s32 %v280, 80
      %v291 = vadd.s32 %v280, 88
      %v292 = vadd.s32 %v280, 96
      %v293 = vadd.s32 %v280, 104
      %v294 = vadd.s32 %v280, 112
      %v295 = vadd.s32 %v280, 120
      %v296 = vadd.s32 %v280, 128
      %v297 = vadd.s32 %v280, 136
      %v298 = vadd.s32 %v280, 144
      %v299 = vadd.s32 %v280, 152
      %v300 = vadd.s32 %v280, 160
      %v301 = vadd.s32 %v280, 168
      %v302 = vadd.s32 %v280, 176
      %v303 = vadd.s32 %v280, 184
      %v304 = vadd.s32 %v280, 192
      %v305 = vadd.s32 %v280, 200
      %v306 = vadd.s32 %v280, 208
      %v307 = vadd.s32 %v280, 216
      %v308 = vadd.s32 %v280, 224
      %v309 = vadd.s32 %v280, 232
      %v310 = vadd.s32 %v280, 240
      %v311 = vadd.s32 %v280, 248
      %vm312 = vcmp.lt.s32.totalorder %v280, 0
      %v313 = vsub.s32 0, %v280
      %v314 = vsel %vm312, %v313, %v280
      %v315 = vshrl.u32 %v314, 4
      %v316 = vand.u32 %v314, 15
      %v317 = vsub.s32 0, %v316
      %v318 = vsel %vm312, %v317, %v316
      %vm319 = vcmp.lt.s32.totalorder %v281, 0
      %v320 = vsub.s32 0, %v281
      %v321 = vsel %vm319, %v320, %v281
      %v322 = vshrl.u32 %v321, 4
      %v323 = vand.u32 %v321, 15
      %v324 = vsub.s32 0, %v323
      %v325 = vsel %vm319, %v324, %v323
      %vm326 = vcmp.lt.s32.totalorder %v282, 0
      %v327 = vsub.s32 0, %v282
      %v328 = vsel %vm326, %v327, %v282
      %v329 = vshrl.u32 %v328, 4
      %v330 = vand.u32 %v328, 15
      %v331 = vsub.s32 0, %v330
      %v332 = vsel %vm326, %v331, %v330
      %vm333 = vcmp.lt.s32.totalorder %v283, 0
      %v334 = vsub.s32 0, %v283
      %v335 = vsel %vm333, %v334, %v283
      %v336 = vshrl.u32 %v335, 4
      %v337 = vand.u32 %v335, 15
      %v338 = vsub.s32 0, %v337
      %v339 = vsel %vm333, %v338, %v337
      %vm340 = vcmp.lt.s32.totalorder %v284, 0
      %v341 = vsub.s32 0, %v284
      %v342 = vsel %vm340, %v341, %v284
      %v343 = vshrl.u32 %v342, 4
      %v344 = vand.u32 %v342, 15
      %v345 = vsub.s32 0, %v344
      %v346 = vsel %vm340, %v345, %v344
      %vm347 = vcmp.lt.s32.totalorder %v285, 0
      %v348 = vsub.s32 0, %v285
      %v349 = vsel %vm347, %v348, %v285
      %v350 = vshrl.u32 %v349, 4
      %v351 = vand.u32 %v349, 15
      %v352 = vsub.s32 0, %v351
      %v353 = vsel %vm347, %v352, %v351
      %vm354 = vcmp.lt.s32.totalorder %v286, 0
      %v355 = vsub.s32 0, %v286
      %v356 = vsel %vm354, %v355, %v286
      %v357 = vshrl.u32 %v356, 4
      %v358 = vand.u32 %v356, 15
      %v359 = vsub.s32 0, %v358
      %v360 = vsel %vm354, %v359, %v358
      %vm361 = vcmp.lt.s32.totalorder %v287, 0
      %v362 = vsub.s32 0, %v287
      %v363 = vsel %vm361, %v362, %v287
      %v364 = vshrl.u32 %v363, 4
      %v365 = vand.u32 %v363, 15
      %v366 = vsub.s32 0, %v365
      %v367 = vsel %vm361, %v366, %v365
      %vm368 = vcmp.lt.s32.totalorder %v288, 0
      %v369 = vsub.s32 0, %v288
      %v370 = vsel %vm368, %v369, %v288
      %v371 = vshrl.u32 %v370, 4
      %v372 = vand.u32 %v370, 15
      %v373 = vsub.s32 0, %v372
      %v374 = vsel %vm368, %v373, %v372
      %vm375 = vcmp.lt.s32.totalorder %v289, 0
      %v376 = vsub.s32 0, %v289
      %v377 = vsel %vm375, %v376, %v289
      %v378 = vshrl.u32 %v377, 4
      %v379 = vand.u32 %v377, 15
      %v380 = vsub.s32 0, %v379
      %v381 = vsel %vm375, %v380, %v379
      %vm382 = vcmp.lt.s32.totalorder %v290, 0
      %v383 = vsub.s32 0, %v290
      %v384 = vsel %vm382, %v383, %v290
      %v385 = vshrl.u32 %v384, 4
      %v386 = vand.u32 %v384, 15
      %v387 = vsub.s32 0, %v386
      %v388 = vsel %vm382, %v387, %v386
      %vm389 = vcmp.lt.s32.totalorder %v291, 0
      %v390 = vsub.s32 0, %v291
      %v391 = vsel %vm389, %v390, %v291
      %v392 = vshrl.u32 %v391, 4
      %v393 = vand.u32 %v391, 15
      %v394 = vsub.s32 0, %v393
      %v395 = vsel %vm389, %v394, %v393
      %vm396 = vcmp.lt.s32.totalorder %v292, 0
      %v397 = vsub.s32 0, %v292
      %v398 = vsel %vm396, %v397, %v292
      %v399 = vshrl.u32 %v398, 4
      %v400 = vand.u32 %v398, 15
      %v401 = vsub.s32 0, %v400
      %v402 = vsel %vm396, %v401, %v400
      %vm403 = vcmp.lt.s32.totalorder %v293, 0
      %v404 = vsub.s32 0, %v293
      %v405 = vsel %vm403, %v404, %v293
      %v406 = vshrl.u32 %v405, 4
      %v407 = vand.u32 %v405, 15
      %v408 = vsub.s32 0, %v407
      %v409 = vsel %vm403, %v408, %v407
      %vm410 = vcmp.lt.s32.totalorder %v294, 0
      %v411 = vsub.s32 0, %v294
      %v412 = vsel %vm410, %v411, %v294
      %v413 = vshrl.u32 %v412, 4
      %v414 = vand.u32 %v412, 15
      %v415 = vsub.s32 0, %v414
      %v416 = vsel %vm410, %v415, %v414
      %vm417 = vcmp.lt.s32.totalorder %v295, 0
      %v418 = vsub.s32 0, %v295
      %v419 = vsel %vm417, %v418, %v295
      %v420 = vshrl.u32 %v419, 4
      %v421 = vand.u32 %v419, 15
      %v422 = vsub.s32 0, %v421
      %v423 = vsel %vm417, %v422, %v421
      %vm424 = vcmp.lt.s32.totalorder %v296, 0
      %v425 = vsub.s32 0, %v296
      %v426 = vsel %vm424, %v425, %v296
      %v427 = vshrl.u32 %v426, 4
      %v428 = vand.u32 %v426, 15
      %v429 = vsub.s32 0, %v428
      %v430 = vsel %vm424, %v429, %v428
      %vm431 = vcmp.lt.s32.totalorder %v297, 0
      %v432 = vsub.s32 0, %v297
      %v433 = vsel %vm431, %v432, %v297
      %v434 = vshrl.u32 %v433, 4
      %v435 = vand.u32 %v433, 15
      %v436 = vsub.s32 0, %v435
      %v437 = vsel %vm431, %v436, %v435
      %vm438 = vcmp.lt.s32.totalorder %v298, 0
      %v439 = vsub.s32 0, %v298
      %v440 = vsel %vm438, %v439, %v298
      %v441 = vshrl.u32 %v440, 4
      %v442 = vand.u32 %v440, 15
      %v443 = vsub.s32 0, %v442
      %v444 = vsel %vm438, %v443, %v442
      %vm445 = vcmp.lt.s32.totalorder %v299, 0
      %v446 = vsub.s32 0, %v299
      %v447 = vsel %vm445, %v446, %v299
      %v448 = vshrl.u32 %v447, 4
      %v449 = vand.u32 %v447, 15
      %v450 = vsub.s32 0, %v449
      %v451 = vsel %vm445, %v450, %v449
      %vm452 = vcmp.lt.s32.totalorder %v300, 0
      %v453 = vsub.s32 0, %v300
      %v454 = vsel %vm452, %v453, %v300
      %v455 = vshrl.u32 %v454, 4
      %v456 = vand.u32 %v454, 15
      %v457 = vsub.s32 0, %v456
      %v458 = vsel %vm452, %v457, %v456
      %vm459 = vcmp.lt.s32.totalorder %v301, 0
      %v460 = vsub.s32 0, %v301
      %v461 = vsel %vm459, %v460, %v301
      %v462 = vshrl.u32 %v461, 4
      %v463 = vand.u32 %v461, 15
      %v464 = vsub.s32 0, %v463
      %v465 = vsel %vm459, %v464, %v463
      %vm466 = vcmp.lt.s32.totalorder %v302, 0
      %v467 = vsub.s32 0, %v302
      %v468 = vsel %vm466, %v467, %v302
      %v469 = vshrl.u32 %v468, 4
      %v470 = vand.u32 %v468, 15
      %v471 = vsub.s32 0, %v470
      %v472 = vsel %vm466, %v471, %v470
      %vm473 = vcmp.lt.s32.totalorder %v303, 0
      %v474 = vsub.s32 0, %v303
      %v475 = vsel %vm473, %v474, %v303
      %v476 = vshrl.u32 %v475, 4
      %v477 = vand.u32 %v475, 15
      %v478 = vsub.s32 0, %v477
      %v479 = vsel %vm473, %v478, %v477
      %vm480 = vcmp.lt.s32.totalorder %v304, 0
      %v481 = vsub.s32 0, %v304
      %v482 = vsel %vm480, %v481, %v304
      %v483 = vshrl.u32 %v482, 4
      %v484 = vand.u32 %v482, 15
      %v485 = vsub.s32 0, %v484
      %v486 = vsel %vm480, %v485, %v484
      %vm487 = vcmp.lt.s32.totalorder %v305, 0
      %v488 = vsub.s32 0, %v305
      %v489 = vsel %vm487, %v488, %v305
      %v490 = vshrl.u32 %v489, 4
      %v491 = vand.u32 %v489, 15
      %v492 = vsub.s32 0, %v491
      %v493 = vsel %vm487, %v492, %v491
      %vm494 = vcmp.lt.s32.totalorder %v306, 0
      %v495 = vsub.s32 0, %v306
      %v496 = vsel %vm494, %v495, %v306
      %v497 = vshrl.u32 %v496, 4
      %v498 = vand.u32 %v496, 15
      %v499 = vsub.s32 0, %v498
      %v500 = vsel %vm494, %v499, %v498
      %vm501 = vcmp.lt.s32.totalorder %v307, 0
      %v502 = vsub.s32 0, %v307
      %v503 = vsel %vm501, %v502, %v307
      %v504 = vshrl.u32 %v503, 4
      %v505 = vand.u32 %v503, 15
      %v506 = vsub.s32 0, %v505
      %v507 = vsel %vm501, %v506, %v505
      %vm508 = vcmp.lt.s32.totalorder %v308, 0
      %v509 = vsub.s32 0, %v308
      %v510 = vsel %vm508, %v509, %v308
      %v511 = vshrl.u32 %v510, 4
      %v512 = vand.u32 %v510, 15
      %v513 = vsub.s32 0, %v512
      %v514 = vsel %vm508, %v513, %v512
      %vm515 = vcmp.lt.s32.totalorder %v309, 0
      %v516 = vsub.s32 0, %v309
      %v517 = vsel %vm515, %v516, %v309
      %v518 = vshrl.u32 %v517, 4
      %v519 = vand.u32 %v517, 15
      %v520 = vsub.s32 0, %v519
      %v521 = vsel %vm515, %v520, %v519
      %vm522 = vcmp.lt.s32.totalorder %v310, 0
      %v523 = vsub.s32 0, %v310
      %v524 = vsel %vm522, %v523, %v310
      %v525 = vshrl.u32 %v524, 4
      %v526 = vand.u32 %v524, 15
      %v527 = vsub.s32 0, %v526
      %v528 = vsel %vm522, %v527, %v526
      %vm529 = vcmp.lt.s32.totalorder %v311, 0
      %v530 = vsub.s32 0, %v311
      %v531 = vsel %vm529, %v530, %v311
      %v532 = vshrl.u32 %v531, 4
      %v533 = vand.u32 %v531, 15
      %v534 = vsub.s32 0, %v533
      %v535 = vsel %vm529, %v534, %v533
      %vm536 = vcmp.ne.s32.totalorder %v318, 0
      %vm537 = vcmp.ne.s32.totalorder %v325, 0
      %vm538 = vcmp.ne.s32.totalorder %v332, 0
      %vm539 = vcmp.ne.s32.totalorder %v339, 0
      %vm540 = vcmp.ne.s32.totalorder %v346, 0
      %vm541 = vcmp.ne.s32.totalorder %v353, 0
      %vm542 = vcmp.ne.s32.totalorder %v360, 0
      %vm543 = vcmp.ne.s32.totalorder %v367, 0
      %vm544 = vcmp.ne.s32.totalorder %v374, 0
      %vm545 = vcmp.ne.s32.totalorder %v381, 0
      %vm546 = vcmp.ne.s32.totalorder %v388, 0
      %vm547 = vcmp.ne.s32.totalorder %v395, 0
      %vm548 = vcmp.ne.s32.totalorder %v402, 0
      %vm549 = vcmp.ne.s32.totalorder %v409, 0
      %vm550 = vcmp.ne.s32.totalorder %v416, 0
      %vm551 = vcmp.ne.s32.totalorder %v423, 0
      %vm552 = vcmp.ne.s32.totalorder %v430, 0
      %vm553 = vcmp.ne.s32.totalorder %v437, 0
      %vm554 = vcmp.ne.s32.totalorder %v444, 0
      %vm555 = vcmp.ne.s32.totalorder %v451, 0
      %vm556 = vcmp.ne.s32.totalorder %v458, 0
      %vm557 = vcmp.ne.s32.totalorder %v465, 0
      %vm558 = vcmp.ne.s32.totalorder %v472, 0
      %vm559 = vcmp.ne.s32.totalorder %v479, 0
      %vm560 = vcmp.ne.s32.totalorder %v486, 0
      %vm561 = vcmp.ne.s32.totalorder %v493, 0
      %vm562 = vcmp.ne.s32.totalorder %v500, 0
      %vm563 = vcmp.ne.s32.totalorder %v507, 0
      %vm564 = vcmp.ne.s32.totalorder %v514, 0
      %vm565 = vcmp.ne.s32.totalorder %v521, 0
      %vm566 = vcmp.ne.s32.totalorder %v528, 0
      %vm567 = vcmp.ne.s32.totalorder %v535, 0
      %vm568 = vcmp.lt.s32.totalorder %v318, 0
      %vm569 = vcmp.lt.s32.totalorder %v325, 0
      %vm570 = vcmp.lt.s32.totalorder %v332, 0
      %vm571 = vcmp.lt.s32.totalorder %v339, 0
      %vm572 = vcmp.lt.s32.totalorder %v346, 0
      %vm573 = vcmp.lt.s32.totalorder %v353, 0
      %vm574 = vcmp.lt.s32.totalorder %v360, 0
      %vm575 = vcmp.lt.s32.totalorder %v367, 0
      %vm576 = vcmp.lt.s32.totalorder %v374, 0
      %vm577 = vcmp.lt.s32.totalorder %v381, 0
      %vm578 = vcmp.lt.s32.totalorder %v388, 0
      %vm579 = vcmp.lt.s32.totalorder %v395, 0
      %vm580 = vcmp.lt.s32.totalorder %v402, 0
      %vm581 = vcmp.lt.s32.totalorder %v409, 0
      %vm582 = vcmp.lt.s32.totalorder %v416, 0
      %vm583 = vcmp.lt.s32.totalorder %v423, 0
      %vm584 = vcmp.lt.s32.totalorder %v430, 0
      %vm585 = vcmp.lt.s32.totalorder %v437, 0
      %vm586 = vcmp.lt.s32.totalorder %v444, 0
      %vm587 = vcmp.lt.s32.totalorder %v451, 0
      %vm588 = vcmp.lt.s32.totalorder %v458, 0
      %vm589 = vcmp.lt.s32.totalorder %v465, 0
      %vm590 = vcmp.lt.s32.totalorder %v472, 0
      %vm591 = vcmp.lt.s32.totalorder %v479, 0
      %vm592 = vcmp.lt.s32.totalorder %v486, 0
      %vm593 = vcmp.lt.s32.totalorder %v493, 0
      %vm594 = vcmp.lt.s32.totalorder %v500, 0
      %vm595 = vcmp.lt.s32.totalorder %v507, 0
      %vm596 = vcmp.lt.s32.totalorder %v514, 0
      %vm597 = vcmp.lt.s32.totalorder %v521, 0
      %vm598 = vcmp.lt.s32.totalorder %v528, 0
      %vm599 = vcmp.lt.s32.totalorder %v535, 0
      %vm600 = vmand %vm568, %vm536
      %vm601 = vmand %vm569, %vm537
      %vm602 = vmand %vm570, %vm538
      %vm603 = vmand %vm571, %vm539
      %vm604 = vmand %vm572, %vm540
      %vm605 = vmand %vm573, %vm541
      %vm606 = vmand %vm574, %vm542
      %vm607 = vmand %vm575, %vm543
      %vm608 = vmand %vm576, %vm544
      %vm609 = vmand %vm577, %vm545
      %vm610 = vmand %vm578, %vm546
      %vm611 = vmand %vm579, %vm547
      %vm612 = vmand %vm580, %vm548
      %vm613 = vmand %vm581, %vm549
      %vm614 = vmand %vm582, %vm550
      %vm615 = vmand %vm583, %vm551
      %vm616 = vmand %vm584, %vm552
      %vm617 = vmand %vm585, %vm553
      %vm618 = vmand %vm586, %vm554
      %vm619 = vmand %vm587, %vm555
      %vm620 = vmand %vm588, %vm556
      %vm621 = vmand %vm589, %vm557
      %vm622 = vmand %vm590, %vm558
      %vm623 = vmand %vm591, %vm559
      %vm624 = vmand %vm592, %vm560
      %vm625 = vmand %vm593, %vm561
      %vm626 = vmand %vm594, %vm562
      %vm627 = vmand %vm595, %vm563
      %vm628 = vmand %vm596, %vm564
      %vm629 = vmand %vm597, %vm565
      %vm630 = vmand %vm598, %vm566
      %vm631 = vmand %vm599, %vm567
      %v632 = vadd.s32 %v318, 16
      %v633 = vadd.s32 %v325, 16
      %v634 = vadd.s32 %v332, 16
      %v635 = vadd.s32 %v339, 16
      %v636 = vadd.s32 %v346, 16
      %v637 = vadd.s32 %v353, 16
      %v638 = vadd.s32 %v360, 16
      %v639 = vadd.s32 %v367, 16
      %v640 = vadd.s32 %v374, 16
      %v641 = vadd.s32 %v381, 16
      %v642 = vadd.s32 %v388, 16
      %v643 = vadd.s32 %v395, 16
      %v644 = vadd.s32 %v402, 16
      %v645 = vadd.s32 %v409, 16
      %v646 = vadd.s32 %v416, 16
      %v647 = vadd.s32 %v423, 16
      %v648 = vadd.s32 %v430, 16
      %v649 = vadd.s32 %v437, 16
      %v650 = vadd.s32 %v444, 16
      %v651 = vadd.s32 %v451, 16
      %v652 = vadd.s32 %v458, 16
      %v653 = vadd.s32 %v465, 16
      %v654 = vadd.s32 %v472, 16
      %v655 = vadd.s32 %v479, 16
      %v656 = vadd.s32 %v486, 16
      %v657 = vadd.s32 %v493, 16
      %v658 = vadd.s32 %v500, 16
      %v659 = vadd.s32 %v507, 16
      %v660 = vadd.s32 %v514, 16
      %v661 = vadd.s32 %v521, 16
      %v662 = vadd.s32 %v528, 16
      %v663 = vadd.s32 %v535, 16
      %v664 = vsel %vm600, %v632, %v318
      %v665 = vsel %vm601, %v633, %v325
      %v666 = vsel %vm602, %v634, %v332
      %v667 = vsel %vm603, %v635, %v339
      %v668 = vsel %vm604, %v636, %v346
      %v669 = vsel %vm605, %v637, %v353
      %v670 = vsel %vm606, %v638, %v360
      %v671 = vsel %vm607, %v639, %v367
      %v672 = vsel %vm608, %v640, %v374
      %v673 = vsel %vm609, %v641, %v381
      %v674 = vsel %vm610, %v642, %v388
      %v675 = vsel %vm611, %v643, %v395
      %v676 = vsel %vm612, %v644, %v402
      %v677 = vsel %vm613, %v645, %v409
      %v678 = vsel %vm614, %v646, %v416
      %v679 = vsel %vm615, %v647, %v423
      %v680 = vsel %vm616, %v648, %v430
      %v681 = vsel %vm617, %v649, %v437
      %v682 = vsel %vm618, %v650, %v444
      %v683 = vsel %vm619, %v651, %v451
      %v684 = vsel %vm620, %v652, %v458
      %v685 = vsel %vm621, %v653, %v465
      %v686 = vsel %vm622, %v654, %v472
      %v687 = vsel %vm623, %v655, %v479
      %v688 = vsel %vm624, %v656, %v486
      %v689 = vsel %vm625, %v657, %v493
      %v690 = vsel %vm626, %v658, %v500
      %v691 = vsel %vm627, %v659, %v507
      %v692 = vsel %vm628, %v660, %v514
      %v693 = vsel %vm629, %v661, %v521
      %v694 = vsel %vm630, %v662, %v528
      %v695 = vsel %vm631, %v663, %v535
      %vm696 = vcmp.ge.s32.totalorder %v280, 16
      %vm697 = vcmp.ge.s32.totalorder %v281, 16
      %vm698 = vcmp.ge.s32.totalorder %v282, 16
      %vm699 = vcmp.ge.s32.totalorder %v283, 16
      %vm700 = vcmp.ge.s32.totalorder %v284, 16
      %vm701 = vcmp.ge.s32.totalorder %v285, 16
      %vm702 = vcmp.ge.s32.totalorder %v286, 16
      %vm703 = vcmp.ge.s32.totalorder %v287, 16
      %vm704 = vcmp.ge.s32.totalorder %v288, 16
      %vm705 = vcmp.ge.s32.totalorder %v289, 16
      %vm706 = vcmp.ge.s32.totalorder %v290, 16
      %vm707 = vcmp.ge.s32.totalorder %v291, 16
      %vm708 = vcmp.ge.s32.totalorder %v292, 16
      %vm709 = vcmp.ge.s32.totalorder %v293, 16
      %vm710 = vcmp.ge.s32.totalorder %v294, 16
      %vm711 = vcmp.ge.s32.totalorder %v295, 16
      %vm712 = vcmp.ge.s32.totalorder %v296, 16
      %vm713 = vcmp.ge.s32.totalorder %v297, 16
      %vm714 = vcmp.ge.s32.totalorder %v298, 16
      %vm715 = vcmp.ge.s32.totalorder %v299, 16
      %vm716 = vcmp.ge.s32.totalorder %v300, 16
      %vm717 = vcmp.ge.s32.totalorder %v301, 16
      %vm718 = vcmp.ge.s32.totalorder %v302, 16
      %vm719 = vcmp.ge.s32.totalorder %v303, 16
      %vm720 = vcmp.ge.s32.totalorder %v304, 16
      %vm721 = vcmp.ge.s32.totalorder %v305, 16
      %vm722 = vcmp.ge.s32.totalorder %v306, 16
      %vm723 = vcmp.ge.s32.totalorder %v307, 16
      %vm724 = vcmp.ge.s32.totalorder %v308, 16
      %vm725 = vcmp.ge.s32.totalorder %v309, 16
      %vm726 = vcmp.ge.s32.totalorder %v310, 16
      %vm727 = vcmp.ge.s32.totalorder %v311, 16
      %vm728 = vcmp.lt.s32.totalorder %v280, 240
      %vm729 = vcmp.lt.s32.totalorder %v281, 240
      %vm730 = vcmp.lt.s32.totalorder %v282, 240
      %vm731 = vcmp.lt.s32.totalorder %v283, 240
      %vm732 = vcmp.lt.s32.totalorder %v284, 240
      %vm733 = vcmp.lt.s32.totalorder %v285, 240
      %vm734 = vcmp.lt.s32.totalorder %v286, 240
      %vm735 = vcmp.lt.s32.totalorder %v287, 240
      %vm736 = vcmp.lt.s32.totalorder %v288, 240
      %vm737 = vcmp.lt.s32.totalorder %v289, 240
      %vm738 = vcmp.lt.s32.totalorder %v290, 240
      %vm739 = vcmp.lt.s32.totalorder %v291, 240
      %vm740 = vcmp.lt.s32.totalorder %v292, 240
      %vm741 = vcmp.lt.s32.totalorder %v293, 240
      %vm742 = vcmp.lt.s32.totalorder %v294, 240
      %vm743 = vcmp.lt.s32.totalorder %v295, 240
      %vm744 = vcmp.lt.s32.totalorder %v296, 240
      %vm745 = vcmp.lt.s32.totalorder %v297, 240
      %vm746 = vcmp.lt.s32.totalorder %v298, 240
      %vm747 = vcmp.lt.s32.totalorder %v299, 240
      %vm748 = vcmp.lt.s32.totalorder %v300, 240
      %vm749 = vcmp.lt.s32.totalorder %v301, 240
      %vm750 = vcmp.lt.s32.totalorder %v302, 240
      %vm751 = vcmp.lt.s32.totalorder %v303, 240
      %vm752 = vcmp.lt.s32.totalorder %v304, 240
      %vm753 = vcmp.lt.s32.totalorder %v305, 240
      %vm754 = vcmp.lt.s32.totalorder %v306, 240
      %vm755 = vcmp.lt.s32.totalorder %v307, 240
      %vm756 = vcmp.lt.s32.totalorder %v308, 240
      %vm757 = vcmp.lt.s32.totalorder %v309, 240
      %vm758 = vcmp.lt.s32.totalorder %v310, 240
      %vm759 = vcmp.lt.s32.totalorder %v311, 240
      %vm760 = vcmp.ge.s32.totalorder %v664, 1
      %vm761 = vcmp.ge.s32.totalorder %v665, 1
      %vm762 = vcmp.ge.s32.totalorder %v666, 1
      %vm763 = vcmp.ge.s32.totalorder %v667, 1
      %vm764 = vcmp.ge.s32.totalorder %v668, 1
      %vm765 = vcmp.ge.s32.totalorder %v669, 1
      %vm766 = vcmp.ge.s32.totalorder %v670, 1
      %vm767 = vcmp.ge.s32.totalorder %v671, 1
      %vm768 = vcmp.ge.s32.totalorder %v672, 1
      %vm769 = vcmp.ge.s32.totalorder %v673, 1
      %vm770 = vcmp.ge.s32.totalorder %v674, 1
      %vm771 = vcmp.ge.s32.totalorder %v675, 1
      %vm772 = vcmp.ge.s32.totalorder %v676, 1
      %vm773 = vcmp.ge.s32.totalorder %v677, 1
      %vm774 = vcmp.ge.s32.totalorder %v678, 1
      %vm775 = vcmp.ge.s32.totalorder %v679, 1
      %vm776 = vcmp.ge.s32.totalorder %v680, 1
      %vm777 = vcmp.ge.s32.totalorder %v681, 1
      %vm778 = vcmp.ge.s32.totalorder %v682, 1
      %vm779 = vcmp.ge.s32.totalorder %v683, 1
      %vm780 = vcmp.ge.s32.totalorder %v684, 1
      %vm781 = vcmp.ge.s32.totalorder %v685, 1
      %vm782 = vcmp.ge.s32.totalorder %v686, 1
      %vm783 = vcmp.ge.s32.totalorder %v687, 1
      %vm784 = vcmp.ge.s32.totalorder %v688, 1
      %vm785 = vcmp.ge.s32.totalorder %v689, 1
      %vm786 = vcmp.ge.s32.totalorder %v690, 1
      %vm787 = vcmp.ge.s32.totalorder %v691, 1
      %vm788 = vcmp.ge.s32.totalorder %v692, 1
      %vm789 = vcmp.ge.s32.totalorder %v693, 1
      %vm790 = vcmp.ge.s32.totalorder %v694, 1
      %vm791 = vcmp.ge.s32.totalorder %v695, 1
      %vm792 = vcmp.le.s32.totalorder %v664, 14
      %vm793 = vcmp.le.s32.totalorder %v665, 14
      %vm794 = vcmp.le.s32.totalorder %v666, 14
      %vm795 = vcmp.le.s32.totalorder %v667, 14
      %vm796 = vcmp.le.s32.totalorder %v668, 14
      %vm797 = vcmp.le.s32.totalorder %v669, 14
      %vm798 = vcmp.le.s32.totalorder %v670, 14
      %vm799 = vcmp.le.s32.totalorder %v671, 14
      %vm800 = vcmp.le.s32.totalorder %v672, 14
      %vm801 = vcmp.le.s32.totalorder %v673, 14
      %vm802 = vcmp.le.s32.totalorder %v674, 14
      %vm803 = vcmp.le.s32.totalorder %v675, 14
      %vm804 = vcmp.le.s32.totalorder %v676, 14
      %vm805 = vcmp.le.s32.totalorder %v677, 14
      %vm806 = vcmp.le.s32.totalorder %v678, 14
      %vm807 = vcmp.le.s32.totalorder %v679, 14
      %vm808 = vcmp.le.s32.totalorder %v680, 14
      %vm809 = vcmp.le.s32.totalorder %v681, 14
      %vm810 = vcmp.le.s32.totalorder %v682, 14
      %vm811 = vcmp.le.s32.totalorder %v683, 14
      %vm812 = vcmp.le.s32.totalorder %v684, 14
      %vm813 = vcmp.le.s32.totalorder %v685, 14
      %vm814 = vcmp.le.s32.totalorder %v686, 14
      %vm815 = vcmp.le.s32.totalorder %v687, 14
      %vm816 = vcmp.le.s32.totalorder %v688, 14
      %vm817 = vcmp.le.s32.totalorder %v689, 14
      %vm818 = vcmp.le.s32.totalorder %v690, 14
      %vm819 = vcmp.le.s32.totalorder %v691, 14
      %vm820 = vcmp.le.s32.totalorder %v692, 14
      %vm821 = vcmp.le.s32.totalorder %v693, 14
      %vm822 = vcmp.le.s32.totalorder %v694, 14
      %vm823 = vcmp.le.s32.totalorder %v695, 14
      %v824 = vld [vmem:[%s273] sm:$0xff]
      %v825 = vld [vmem:[%s273 + $0x8] sm:$0xff]
      %v826 = vld [vmem:[%s273 + $0x10] sm:$0xff]
      %v827 = vld [vmem:[%s273 + $0x18] sm:$0xff]
      %v828 = vld [vmem:[%s273 + $0x20] sm:$0xff]
      %v829 = vld [vmem:[%s273 + $0x28] sm:$0xff]
      %v830 = vld [vmem:[%s273 + $0x30] sm:$0xff]
      %v831 = vld [vmem:[%s273 + $0x38] sm:$0xff]
      %v832 = vld [vmem:[%s273 + $0x40] sm:$0xff]
      %v833 = vld [vmem:[%s273 + $0x48] sm:$0xff]
      %v834 = vld [vmem:[%s273 + $0x50] sm:$0xff]
      %v835 = vld [vmem:[%s273 + $0x58] sm:$0xff]
      %v836 = vld [vmem:[%s273 + $0x60] sm:$0xff]
      %v837 = vld [vmem:[%s273 + $0x68] sm:$0xff]
      %v838 = vld [vmem:[%s273 + $0x70] sm:$0xff]
      %v839 = vld [vmem:[%s273 + $0x78] sm:$0xff]
      %v840 = vld [vmem:[%s273 + $0x80] sm:$0xff]
      %v841 = vld [vmem:[%s273 + $0x88] sm:$0xff]
      %v842 = vld [vmem:[%s273 + $0x90] sm:$0xff]
      %v843 = vld [vmem:[%s273 + $0x98] sm:$0xff]
      %v844 = vld [vmem:[%s273 + $0xa0] sm:$0xff]
      %v845 = vld [vmem:[%s273 + $0xa8] sm:$0xff]
      %v846 = vld [vmem:[%s273 + $0xb0] sm:$0xff]
      %v847 = vld [vmem:[%s273 + $0xb8] sm:$0xff]
      %v848 = vld [vmem:[%s273 + $0xc0] sm:$0xff]
      %v849 = vld [vmem:[%s273 + $0xc8] sm:$0xff]
      %v850 = vld [vmem:[%s273 + $0xd0] sm:$0xff]
      %v851 = vld [vmem:[%s273 + $0xd8] sm:$0xff]
      %v852 = vld [vmem:[%s273 + $0xe0] sm:$0xff]
      %v853 = vld [vmem:[%s273 + $0xe8] sm:$0xff]
      %v854 = vld [vmem:[%s273 + $0xf0] sm:$0xff]
      %v855 = vld [vmem:[%s273 + $0xf8] sm:$0xff]
      %v856 = vrot.slane %v824, 7
      %v857 = vrot.slane %v825, 7
      %v858 = vrot.slane %v826, 7
      %v859 = vrot.slane %v827, 7
      %v860 = vrot.slane %v828, 7
      %v861 = vrot.slane %v829, 7
      %v862 = vrot.slane %v830, 7
      %v863 = vrot.slane %v831, 7
      %v864 = vrot.slane %v832, 7
      %v865 = vrot.slane %v833, 7
      %v866 = vrot.slane %v834, 7
      %v867 = vrot.slane %v835, 7
      %v868 = vrot.slane %v836, 7
      %v869 = vrot.slane %v837, 7
      %v870 = vrot.slane %v838, 7
      %v871 = vrot.slane %v839, 7
      %v872 = vrot.slane %v840, 7
      %v873 = vrot.slane %v841, 7
      %v874 = vrot.slane %v842, 7
      %v875 = vrot.slane %v843, 7
      %v876 = vrot.slane %v844, 7
      %v877 = vrot.slane %v845, 7
      %v878 = vrot.slane %v846, 7
      %v879 = vrot.slane %v847, 7
      %v880 = vrot.slane %v848, 7
      %v881 = vrot.slane %v849, 7
      %v882 = vrot.slane %v850, 7
      %v883 = vrot.slane %v851, 7
      %v884 = vrot.slane %v852, 7
      %v885 = vrot.slane %v853, 7
      %v886 = vrot.slane %v854, 7
      %v887 = vrot.slane %v855, 7
      %vm888 = vcmp.lt.s32.totalorder %v280, 1
      %v889 = vsel %vm888, %v886, %v887
      %v890 = vsel %vm888, %v885, %v886
      %v891 = vsel %vm888, %v884, %v885
      %v892 = vsel %vm888, %v883, %v884
      %v893 = vsel %vm888, %v882, %v883
      %v894 = vsel %vm888, %v881, %v882
      %v895 = vsel %vm888, %v880, %v881
      %v896 = vsel %vm888, %v879, %v880
      %v897 = vsel %vm888, %v878, %v879
      %v898 = vsel %vm888, %v877, %v878
      %v899 = vsel %vm888, %v876, %v877
      %v900 = vsel %vm888, %v875, %v876
      %v901 = vsel %vm888, %v874, %v875
      %v902 = vsel %vm888, %v873, %v874
      %v903 = vsel %vm888, %v872, %v873
      %v904 = vsel %vm888, %v871, %v872
      %v905 = vsel %vm888, %v870, %v871
      %v906 = vsel %vm888, %v869, %v870
      %v907 = vsel %vm888, %v868, %v869
      %v908 = vsel %vm888, %v867, %v868
      %v909 = vsel %vm888, %v866, %v867
      %v910 = vsel %vm888, %v865, %v866
      %v911 = vsel %vm888, %v864, %v865
      %v912 = vsel %vm888, %v863, %v864
      %v913 = vsel %vm888, %v862, %v863
      %v914 = vsel %vm888, %v861, %v862
      %v915 = vsel %vm888, %v860, %v861
      %v916 = vsel %vm888, %v859, %v860
      %v917 = vsel %vm888, %v858, %v859
      %v918 = vsel %vm888, %v857, %v858
      %v919 = vsel %vm888, %v856, %v857
      %v920 = vsel %vm888, %v887, %v856
      %vm921 = vmand %vm696, %vm760
      %vm922 = vmand %vm697, %vm761
      %vm923 = vmand %vm698, %vm762
      %vm924 = vmand %vm699, %vm763
      %vm925 = vmand %vm700, %vm764
      %vm926 = vmand %vm701, %vm765
      %vm927 = vmand %vm702, %vm766
      %vm928 = vmand %vm703, %vm767
      %vm929 = vmand %vm704, %vm768
      %vm930 = vmand %vm705, %vm769
      %vm931 = vmand %vm706, %vm770
      %vm932 = vmand %vm707, %vm771
      %vm933 = vmand %vm708, %vm772
      %vm934 = vmand %vm709, %vm773
      %vm935 = vmand %vm710, %vm774
      %vm936 = vmand %vm711, %vm775
      %vm937 = vmand %vm712, %vm776
      %vm938 = vmand %vm713, %vm777
      %vm939 = vmand %vm714, %vm778
      %vm940 = vmand %vm715, %vm779
      %vm941 = vmand %vm716, %vm780
      %vm942 = vmand %vm717, %vm781
      %vm943 = vmand %vm718, %vm782
      %vm944 = vmand %vm719, %vm783
      %vm945 = vmand %vm720, %vm784
      %vm946 = vmand %vm721, %vm785
      %vm947 = vmand %vm722, %vm786
      %vm948 = vmand %vm723, %vm787
      %vm949 = vmand %vm724, %vm788
      %vm950 = vmand %vm725, %vm789
      %vm951 = vmand %vm726, %vm790
      %vm952 = vmand %vm727, %vm791
      %v953 = vsel %vm921, 1, 0
      %v954 = vsel %vm922, 1, 0
      %v955 = vsel %vm923, 1, 0
      %v956 = vsel %vm924, 1, 0
      %v957 = vsel %vm925, 1, 0
      %v958 = vsel %vm926, 1, 0
      %v959 = vsel %vm927, 1, 0
      %v960 = vsel %vm928, 1, 0
      %v961 = vsel %vm929, 1, 0
      %v962 = vsel %vm930, 1, 0
      %v963 = vsel %vm931, 1, 0
      %v964 = vsel %vm932, 1, 0
      %v965 = vsel %vm933, 1, 0
      %v966 = vsel %vm934, 1, 0
      %v967 = vsel %vm935, 1, 0
      %v968 = vsel %vm936, 1, 0
      %v969 = vsel %vm937, 1, 0
      %v970 = vsel %vm938, 1, 0
      %v971 = vsel %vm939, 1, 0
      %v972 = vsel %vm940, 1, 0
      %v973 = vsel %vm941, 1, 0
      %v974 = vsel %vm942, 1, 0
      %v975 = vsel %vm943, 1, 0
      %v976 = vsel %vm944, 1, 0
      %v977 = vsel %vm945, 1, 0
      %v978 = vsel %vm946, 1, 0
      %v979 = vsel %vm947, 1, 0
      %v980 = vsel %vm948, 1, 0
      %v981 = vsel %vm949, 1, 0
      %v982 = vsel %vm950, 1, 0
      %v983 = vsel %vm951, 1, 0
      %v984 = vsel %vm952, 1, 0
      %vm985 = vcmp.eq.s32.totalorder %v953, 1
      %vm986 = vcmp.eq.s32.totalorder %v954, 1
      %vm987 = vcmp.eq.s32.totalorder %v955, 1
      %vm988 = vcmp.eq.s32.totalorder %v956, 1
      %vm989 = vcmp.eq.s32.totalorder %v957, 1
      %vm990 = vcmp.eq.s32.totalorder %v958, 1
      %vm991 = vcmp.eq.s32.totalorder %v959, 1
      %vm992 = vcmp.eq.s32.totalorder %v960, 1
      %vm993 = vcmp.eq.s32.totalorder %v961, 1
      %vm994 = vcmp.eq.s32.totalorder %v962, 1
      %vm995 = vcmp.eq.s32.totalorder %v963, 1
      %vm996 = vcmp.eq.s32.totalorder %v964, 1
      %vm997 = vcmp.eq.s32.totalorder %v965, 1
      %vm998 = vcmp.eq.s32.totalorder %v966, 1
      %vm999 = vcmp.eq.s32.totalorder %v967, 1
      %vm1000 = vcmp.eq.s32.totalorder %v968, 1
      %vm1001 = vcmp.eq.s32.totalorder %v969, 1
      %vm1002 = vcmp.eq.s32.totalorder %v970, 1
      %vm1003 = vcmp.eq.s32.totalorder %v971, 1
      %vm1004 = vcmp.eq.s32.totalorder %v972, 1
      %vm1005 = vcmp.eq.s32.totalorder %v973, 1
      %vm1006 = vcmp.eq.s32.totalorder %v974, 1
      %vm1007 = vcmp.eq.s32.totalorder %v975, 1
      %vm1008 = vcmp.eq.s32.totalorder %v976, 1
      %vm1009 = vcmp.eq.s32.totalorder %v977, 1
      %vm1010 = vcmp.eq.s32.totalorder %v978, 1
      %vm1011 = vcmp.eq.s32.totalorder %v979, 1
      %vm1012 = vcmp.eq.s32.totalorder %v980, 1
      %vm1013 = vcmp.eq.s32.totalorder %v981, 1
      %vm1014 = vcmp.eq.s32.totalorder %v982, 1
      %vm1015 = vcmp.eq.s32.totalorder %v983, 1
      %vm1016 = vcmp.eq.s32.totalorder %v984, 1
      %v1017 = vsel %vm985, %v890, 0.0
      %v1018 = vsel %vm986, %v889, 0.0
      %v1019 = vsel %vm987, %v920, 0.0
      %v1020 = vsel %vm988, %v919, 0.0
      %v1021 = vsel %vm989, %v918, 0.0
      %v1022 = vsel %vm990, %v917, 0.0
      %v1023 = vsel %vm991, %v916, 0.0
      %v1024 = vsel %vm992, %v915, 0.0
      %v1025 = vsel %vm993, %v914, 0.0
      %v1026 = vsel %vm994, %v913, 0.0
      %v1027 = vsel %vm995, %v912, 0.0
      %v1028 = vsel %vm996, %v911, 0.0
      %v1029 = vsel %vm997, %v910, 0.0
      %v1030 = vsel %vm998, %v909, 0.0
      %v1031 = vsel %vm999, %v908, 0.0
      %v1032 = vsel %vm1000, %v907, 0.0
      %v1033 = vsel %vm1001, %v906, 0.0
      %v1034 = vsel %vm1002, %v905, 0.0
      %v1035 = vsel %vm1003, %v904, 0.0
      %v1036 = vsel %vm1004, %v903, 0.0
      %v1037 = vsel %vm1005, %v902, 0.0
      %v1038 = vsel %vm1006, %v901, 0.0
      %v1039 = vsel %vm1007, %v900, 0.0
      %v1040 = vsel %vm1008, %v899, 0.0
      %v1041 = vsel %vm1009, %v898, 0.0
      %v1042 = vsel %vm1010, %v897, 0.0
      %v1043 = vsel %vm1011, %v896, 0.0
      %v1044 = vsel %vm1012, %v895, 0.0
      %v1045 = vsel %vm1013, %v894, 0.0
      %v1046 = vsel %vm1014, %v893, 0.0
      %v1047 = vsel %vm1015, %v892, 0.0
      %v1048 = vsel %vm1016, %v891, 0.0
      %1049 = vst [vmem:[#allocation2] sm:$0xff] %v1017
      %1050 = vst [vmem:[#allocation2 + $0x48] sm:$0xff] %v1018
      %1051 = vst [vmem:[#allocation2 + $0x90] sm:$0xff] %v1019
      %1052 = vst [vmem:[#allocation2 + $0xd8] sm:$0xff] %v1020
      %1053 = vst [vmem:[#allocation2 + $0x120] sm:$0xff] %v1021
      %1054 = vst [vmem:[#allocation2 + $0x168] sm:$0xff] %v1022
      %1055 = vst [vmem:[#allocation2 + $0x1b0] sm:$0xff] %v1023
      %1056 = vst [vmem:[#allocation2 + $0x1f8] sm:$0xff] %v1024
      %1057 = vst [vmem:[#allocation2 + $0x240] sm:$0xff] %v1025
      %1058 = vst [vmem:[#allocation2 + $0x288] sm:$0xff] %v1026
      %1059 = vst [vmem:[#allocation2 + $0x2d0] sm:$0xff] %v1027
      %1060 = vst [vmem:[#allocation2 + $0x318] sm:$0xff] %v1028
      %1061 = vst [vmem:[#allocation2 + $0x360] sm:$0xff] %v1029
      %1062 = vst [vmem:[#allocation2 + $0x3a8] sm:$0xff] %v1030
      %1063 = vst [vmem:[#allocation2 + $0x3f0] sm:$0xff] %v1031
      %1064 = vst [vmem:[#allocation2 + $0x438] sm:$0xff] %v1032
      %1065 = vst [vmem:[#allocation2 + $0x480] sm:$0xff] %v1033
      %1066 = vst [vmem:[#allocation2 + $0x4c8] sm:$0xff] %v1034
      %1067 = vst [vmem:[#allocation2 + $0x510] sm:$0xff] %v1035
      %1068 = vst [vmem:[#allocation2 + $0x558] sm:$0xff] %v1036
      %1069 = vst [vmem:[#allocation2 + $0x5a0] sm:$0xff] %v1037
      %1070 = vst [vmem:[#allocation2 + $0x5e8] sm:$0xff] %v1038
      %1071 = vst [vmem:[#allocation2 + $0x630] sm:$0xff] %v1039
      %1072 = vst [vmem:[#allocation2 + $0x678] sm:$0xff] %v1040
      %1073 = vst [vmem:[#allocation2 + $0x6c0] sm:$0xff] %v1041
      %1074 = vst [vmem:[#allocation2 + $0x708] sm:$0xff] %v1042
      %1075 = vst [vmem:[#allocation2 + $0x750] sm:$0xff] %v1043
      %1076 = vst [vmem:[#allocation2 + $0x798] sm:$0xff] %v1044
      %1077 = vst [vmem:[#allocation2 + $0x7e0] sm:$0xff] %v1045
      %1078 = vst [vmem:[#allocation2 + $0x828] sm:$0xff] %v1046
      %1079 = vst [vmem:[#allocation2 + $0x870] sm:$0xff] %v1047
      %1080 = vst [vmem:[#allocation2 + $0x8b8] sm:$0xff] %v1048
      %v1081 = vsel %vm696, 1, 0
      %v1082 = vsel %vm697, 1, 0
      %v1083 = vsel %vm698, 1, 0
      %v1084 = vsel %vm699, 1, 0
      %v1085 = vsel %vm700, 1, 0
      %v1086 = vsel %vm701, 1, 0
      %v1087 = vsel %vm702, 1, 0
      %v1088 = vsel %vm703, 1, 0
      %v1089 = vsel %vm704, 1, 0
      %v1090 = vsel %vm705, 1, 0
      %v1091 = vsel %vm706, 1, 0
      %v1092 = vsel %vm707, 1, 0
      %v1093 = vsel %vm708, 1, 0
      %v1094 = vsel %vm709, 1, 0
      %v1095 = vsel %vm710, 1, 0
      %v1096 = vsel %vm711, 1, 0
      %v1097 = vsel %vm712, 1, 0
      %v1098 = vsel %vm713, 1, 0
      %v1099 = vsel %vm714, 1, 0
      %v1100 = vsel %vm715, 1, 0
      %v1101 = vsel %vm716, 1, 0
      %v1102 = vsel %vm717, 1, 0
      %v1103 = vsel %vm718, 1, 0
      %v1104 = vsel %vm719, 1, 0
      %v1105 = vsel %vm720, 1, 0
      %v1106 = vsel %vm721, 1, 0
      %v1107 = vsel %vm722, 1, 0
      %v1108 = vsel %vm723, 1, 0
      %v1109 = vsel %vm724, 1, 0
      %v1110 = vsel %vm725, 1, 0
      %v1111 = vsel %vm726, 1, 0
      %v1112 = vsel %vm727, 1, 0
      %vm1113 = vcmp.eq.s32.totalorder %v1081, 1
      %vm1114 = vcmp.eq.s32.totalorder %v1082, 1
      %vm1115 = vcmp.eq.s32.totalorder %v1083, 1
      %vm1116 = vcmp.eq.s32.totalorder %v1084, 1
      %vm1117 = vcmp.eq.s32.totalorder %v1085, 1
      %vm1118 = vcmp.eq.s32.totalorder %v1086, 1
      %vm1119 = vcmp.eq.s32.totalorder %v1087, 1
      %vm1120 = vcmp.eq.s32.totalorder %v1088, 1
      %vm1121 = vcmp.eq.s32.totalorder %v1089, 1
      %vm1122 = vcmp.eq.s32.totalorder %v1090, 1
      %vm1123 = vcmp.eq.s32.totalorder %v1091, 1
      %vm1124 = vcmp.eq.s32.totalorder %v1092, 1
      %vm1125 = vcmp.eq.s32.totalorder %v1093, 1
      %vm1126 = vcmp.eq.s32.totalorder %v1094, 1
      %vm1127 = vcmp.eq.s32.totalorder %v1095, 1
      %vm1128 = vcmp.eq.s32.totalorder %v1096, 1
      %vm1129 = vcmp.eq.s32.totalorder %v1097, 1
      %vm1130 = vcmp.eq.s32.totalorder %v1098, 1
      %vm1131 = vcmp.eq.s32.totalorder %v1099, 1
      %vm1132 = vcmp.eq.s32.totalorder %v1100, 1
      %vm1133 = vcmp.eq.s32.totalorder %v1101, 1
      %vm1134 = vcmp.eq.s32.totalorder %v1102, 1
      %vm1135 = vcmp.eq.s32.totalorder %v1103, 1
      %vm1136 = vcmp.eq.s32.totalorder %v1104, 1
      %vm1137 = vcmp.eq.s32.totalorder %v1105, 1
      %vm1138 = vcmp.eq.s32.totalorder %v1106, 1
      %vm1139 = vcmp.eq.s32.totalorder %v1107, 1
      %vm1140 = vcmp.eq.s32.totalorder %v1108, 1
      %vm1141 = vcmp.eq.s32.totalorder %v1109, 1
      %vm1142 = vcmp.eq.s32.totalorder %v1110, 1
      %vm1143 = vcmp.eq.s32.totalorder %v1111, 1
      %vm1144 = vcmp.eq.s32.totalorder %v1112, 1
      %v1145 = vsel %vm1113, %v854, 0.0
      %v1146 = vsel %vm1114, %v855, 0.0
      %v1147 = vsel %vm1115, %v824, 0.0
      %v1148 = vsel %vm1116, %v825, 0.0
      %v1149 = vsel %vm1117, %v826, 0.0
      %v1150 = vsel %vm1118, %v827, 0.0
      %v1151 = vsel %vm1119, %v828, 0.0
      %v1152 = vsel %vm1120, %v829, 0.0
      %v1153 = vsel %vm1121, %v830, 0.0
      %v1154 = vsel %vm1122, %v831, 0.0
      %v1155 = vsel %vm1123, %v832, 0.0
      %v1156 = vsel %vm1124, %v833, 0.0
      %v1157 = vsel %vm1125, %v834, 0.0
      %v1158 = vsel %vm1126, %v835, 0.0
      %v1159 = vsel %vm1127, %v836, 0.0
      %v1160 = vsel %vm1128, %v837, 0.0
      %v1161 = vsel %vm1129, %v838, 0.0
      %v1162 = vsel %vm1130, %v839, 0.0
      %v1163 = vsel %vm1131, %v840, 0.0
      %v1164 = vsel %vm1132, %v841, 0.0
      %v1165 = vsel %vm1133, %v842, 0.0
      %v1166 = vsel %vm1134, %v843, 0.0
      %v1167 = vsel %vm1135, %v844, 0.0
      %v1168 = vsel %vm1136, %v845, 0.0
      %v1169 = vsel %vm1137, %v846, 0.0
      %v1170 = vsel %vm1138, %v847, 0.0
      %v1171 = vsel %vm1139, %v848, 0.0
      %v1172 = vsel %vm1140, %v849, 0.0
      %v1173 = vsel %vm1141, %v850, 0.0
      %v1174 = vsel %vm1142, %v851, 0.0
      %v1175 = vsel %vm1143, %v852, 0.0
      %v1176 = vsel %vm1144, %v853, 0.0
      %1177 = vst [vmem:[#allocation2 + $0x8] sm:$0xff] %v1145
      %1178 = vst [vmem:[#allocation2 + $0x50] sm:$0xff] %v1146
      %1179 = vst [vmem:[#allocation2 + $0x98] sm:$0xff] %v1147
      %1180 = vst [vmem:[#allocation2 + $0xe0] sm:$0xff] %v1148
      %1181 = vst [vmem:[#allocation2 + $0x128] sm:$0xff] %v1149
      %1182 = vst [vmem:[#allocation2 + $0x170] sm:$0xff] %v1150
      %1183 = vst [vmem:[#allocation2 + $0x1b8] sm:$0xff] %v1151
      %1184 = vst [vmem:[#allocation2 + $0x200] sm:$0xff] %v1152
      %1185 = vst [vmem:[#allocation2 + $0x248] sm:$0xff] %v1153
      %1186 = vst [vmem:[#allocation2 + $0x290] sm:$0xff] %v1154
      %1187 = vst [vmem:[#allocation2 + $0x2d8] sm:$0xff] %v1155
      %1188 = vst [vmem:[#allocation2 + $0x320] sm:$0xff] %v1156
      %1189 = vst [vmem:[#allocation2 + $0x368] sm:$0xff] %v1157
      %1190 = vst [vmem:[#allocation2 + $0x3b0] sm:$0xff] %v1158
      %1191 = vst [vmem:[#allocation2 + $0x3f8] sm:$0xff] %v1159
      %1192 = vst [vmem:[#allocation2 + $0x440] sm:$0xff] %v1160
      %1193 = vst [vmem:[#allocation2 + $0x488] sm:$0xff] %v1161
      %1194 = vst [vmem:[#allocation2 + $0x4d0] sm:$0xff] %v1162
      %1195 = vst [vmem:[#allocation2 + $0x518] sm:$0xff] %v1163
      %1196 = vst [vmem:[#allocation2 + $0x560] sm:$0xff] %v1164
      %1197 = vst [vmem:[#allocation2 + $0x5a8] sm:$0xff] %v1165
      %1198 = vst [vmem:[#allocation2 + $0x5f0] sm:$0xff] %v1166
      %1199 = vst [vmem:[#allocation2 + $0x638] sm:$0xff] %v1167
      %1200 = vst [vmem:[#allocation2 + $0x680] sm:$0xff] %v1168
      %1201 = vst [vmem:[#allocation2 + $0x6c8] sm:$0xff] %v1169
      %1202 = vst [vmem:[#allocation2 + $0x710] sm:$0xff] %v1170
      %1203 = vst [vmem:[#allocation2 + $0x758] sm:$0xff] %v1171
      %1204 = vst [vmem:[#allocation2 + $0x7a0] sm:$0xff] %v1172
      %1205 = vst [vmem:[#allocation2 + $0x7e8] sm:$0xff] %v1173
      %1206 = vst [vmem:[#allocation2 + $0x830] sm:$0xff] %v1174
      %1207 = vst [vmem:[#allocation2 + $0x878] sm:$0xff] %v1175
      %1208 = vst [vmem:[#allocation2 + $0x8c0] sm:$0xff] %v1176
      %v1209 = vrot.slane %v824, 1
      %v1210 = vrot.slane %v825, 1
      %v1211 = vrot.slane %v826, 1
      %v1212 = vrot.slane %v827, 1
      %v1213 = vrot.slane %v828, 1
      %v1214 = vrot.slane %v829, 1
      %v1215 = vrot.slane %v830, 1
      %v1216 = vrot.slane %v831, 1
      %v1217 = vrot.slane %v832, 1
      %v1218 = vrot.slane %v833, 1
      %v1219 = vrot.slane %v834, 1
      %v1220 = vrot.slane %v835, 1
      %v1221 = vrot.slane %v836, 1
      %v1222 = vrot.slane %v837, 1
      %v1223 = vrot.slane %v838, 1
      %v1224 = vrot.slane %v839, 1
      %v1225 = vrot.slane %v840, 1
      %v1226 = vrot.slane %v841, 1
      %v1227 = vrot.slane %v842, 1
      %v1228 = vrot.slane %v843, 1
      %v1229 = vrot.slane %v844, 1
      %v1230 = vrot.slane %v845, 1
      %v1231 = vrot.slane %v846, 1
      %v1232 = vrot.slane %v847, 1
      %v1233 = vrot.slane %v848, 1
      %v1234 = vrot.slane %v849, 1
      %v1235 = vrot.slane %v850, 1
      %v1236 = vrot.slane %v851, 1
      %v1237 = vrot.slane %v852, 1
      %v1238 = vrot.slane %v853, 1
      %v1239 = vrot.slane %v854, 1
      %v1240 = vrot.slane %v855, 1
      %vm1241 = vcmp.lt.s32.totalorder %v280, 7
      %v1242 = vsel %vm1241, %v1239, %v1240
      %v1243 = vsel %vm1241, %v1238, %v1239
      %v1244 = vsel %vm1241, %v1237, %v1238
      %v1245 = vsel %vm1241, %v1236, %v1237
      %v1246 = vsel %vm1241, %v1235, %v1236
      %v1247 = vsel %vm1241, %v1234, %v1235
      %v1248 = vsel %vm1241, %v1233, %v1234
      %v1249 = vsel %vm1241, %v1232, %v1233
      %v1250 = vsel %vm1241, %v1231, %v1232
      %v1251 = vsel %vm1241, %v1230, %v1231
      %v1252 = vsel %vm1241, %v1229, %v1230
      %v1253 = vsel %vm1241, %v1228, %v1229
      %v1254 = vsel %vm1241, %v1227, %v1228
      %v1255 = vsel %vm1241, %v1226, %v1227
      %v1256 = vsel %vm1241, %v1225, %v1226
      %v1257 = vsel %vm1241, %v1224, %v1225
      %v1258 = vsel %vm1241, %v1223, %v1224
      %v1259 = vsel %vm1241, %v1222, %v1223
      %v1260 = vsel %vm1241, %v1221, %v1222
      %v1261 = vsel %vm1241, %v1220, %v1221
      %v1262 = vsel %vm1241, %v1219, %v1220
      %v1263 = vsel %vm1241, %v1218, %v1219
      %v1264 = vsel %vm1241, %v1217, %v1218
      %v1265 = vsel %vm1241, %v1216, %v1217
      %v1266 = vsel %vm1241, %v1215, %v1216
      %v1267 = vsel %vm1241, %v1214, %v1215
      %v1268 = vsel %vm1241, %v1213, %v1214
      %v1269 = vsel %vm1241, %v1212, %v1213
      %v1270 = vsel %vm1241, %v1211, %v1212
      %v1271 = vsel %vm1241, %v1210, %v1211
      %v1272 = vsel %vm1241, %v1209, %v1210
      %v1273 = vsel %vm1241, %v1240, %v1209
      %vm1274 = vmand %vm696, %vm792
      %vm1275 = vmand %vm697, %vm793
      %vm1276 = vmand %vm698, %vm794
      %vm1277 = vmand %vm699, %vm795
      %vm1278 = vmand %vm700, %vm796
      %vm1279 = vmand %vm701, %vm797
      %vm1280 = vmand %vm702, %vm798
      %vm1281 = vmand %vm703, %vm799
      %vm1282 = vmand %vm704, %vm800
      %vm1283 = vmand %vm705, %vm801
      %vm1284 = vmand %vm706, %vm802
      %vm1285 = vmand %vm707, %vm803
      %vm1286 = vmand %vm708, %vm804
      %vm1287 = vmand %vm709, %vm805
      %vm1288 = vmand %vm710, %vm806
      %vm1289 = vmand %vm711, %vm807
      %vm1290 = vmand %vm712, %vm808
      %vm1291 = vmand %vm713, %vm809
      %vm1292 = vmand %vm714, %vm810
      %vm1293 = vmand %vm715, %vm811
      %vm1294 = vmand %vm716, %vm812
      %vm1295 = vmand %vm717, %vm813
      %vm1296 = vmand %vm718, %vm814
      %vm1297 = vmand %vm719, %vm815
      %vm1298 = vmand %vm720, %vm816
      %vm1299 = vmand %vm721, %vm817
      %vm1300 = vmand %vm722, %vm818
      %vm1301 = vmand %vm723, %vm819
      %vm1302 = vmand %vm724, %vm820
      %vm1303 = vmand %vm725, %vm821
      %vm1304 = vmand %vm726, %vm822
      %vm1305 = vmand %vm727, %vm823
      %v1306 = vsel %vm1274, 1, 0
      %v1307 = vsel %vm1275, 1, 0
      %v1308 = vsel %vm1276, 1, 0
      %v1309 = vsel %vm1277, 1, 0
      %v1310 = vsel %vm1278, 1, 0
      %v1311 = vsel %vm1279, 1, 0
      %v1312 = vsel %vm1280, 1, 0
      %v1313 = vsel %vm1281, 1, 0
      %v1314 = vsel %vm1282, 1, 0
      %v1315 = vsel %vm1283, 1, 0
      %v1316 = vsel %vm1284, 1, 0
      %v1317 = vsel %vm1285, 1, 0
      %v1318 = vsel %vm1286, 1, 0
      %v1319 = vsel %vm1287, 1, 0
      %v1320 = vsel %vm1288, 1, 0
      %v1321 = vsel %vm1289, 1, 0
      %v1322 = vsel %vm1290, 1, 0
      %v1323 = vsel %vm1291, 1, 0
      %v1324 = vsel %vm1292, 1, 0
      %v1325 = vsel %vm1293, 1, 0
      %v1326 = vsel %vm1294, 1, 0
      %v1327 = vsel %vm1295, 1, 0
      %v1328 = vsel %vm1296, 1, 0
      %v1329 = vsel %vm1297, 1, 0
      %v1330 = vsel %vm1298, 1, 0
      %v1331 = vsel %vm1299, 1, 0
      %v1332 = vsel %vm1300, 1, 0
      %v1333 = vsel %vm1301, 1, 0
      %v1334 = vsel %vm1302, 1, 0
      %v1335 = vsel %vm1303, 1, 0
      %v1336 = vsel %vm1304, 1, 0
      %v1337 = vsel %vm1305, 1, 0
      %vm1338 = vcmp.eq.s32.totalorder %v1306, 1
      %vm1339 = vcmp.eq.s32.totalorder %v1307, 1
      %vm1340 = vcmp.eq.s32.totalorder %v1308, 1
      %vm1341 = vcmp.eq.s32.totalorder %v1309, 1
      %vm1342 = vcmp.eq.s32.totalorder %v1310, 1
      %vm1343 = vcmp.eq.s32.totalorder %v1311, 1
      %vm1344 = vcmp.eq.s32.totalorder %v1312, 1
      %vm1345 = vcmp.eq.s32.totalorder %v1313, 1
      %vm1346 = vcmp.eq.s32.totalorder %v1314, 1
      %vm1347 = vcmp.eq.s32.totalorder %v1315, 1
      %vm1348 = vcmp.eq.s32.totalorder %v1316, 1
      %vm1349 = vcmp.eq.s32.totalorder %v1317, 1
      %vm1350 = vcmp.eq.s32.totalorder %v1318, 1
      %vm1351 = vcmp.eq.s32.totalorder %v1319, 1
      %vm1352 = vcmp.eq.s32.totalorder %v1320, 1
      %vm1353 = vcmp.eq.s32.totalorder %v1321, 1
      %vm1354 = vcmp.eq.s32.totalorder %v1322, 1
      %vm1355 = vcmp.eq.s32.totalorder %v1323, 1
      %vm1356 = vcmp.eq.s32.totalorder %v1324, 1
      %vm1357 = vcmp.eq.s32.totalorder %v1325, 1
      %vm1358 = vcmp.eq.s32.totalorder %v1326, 1
      %vm1359 = vcmp.eq.s32.totalorder %v1327, 1
      %vm1360 = vcmp.eq.s32.totalorder %v1328, 1
      %vm1361 = vcmp.eq.s32.totalorder %v1329, 1
      %vm1362 = vcmp.eq.s32.totalorder %v1330, 1
      %vm1363 = vcmp.eq.s32.totalorder %v1331, 1
      %vm1364 = vcmp.eq.s32.totalorder %v1332, 1
      %vm1365 = vcmp.eq.s32.totalorder %v1333, 1
      %vm1366 = vcmp.eq.s32.totalorder %v1334, 1
      %vm1367 = vcmp.eq.s32.totalorder %v1335, 1
      %vm1368 = vcmp.eq.s32.totalorder %v1336, 1
      %vm1369 = vcmp.eq.s32.totalorder %v1337, 1
      %v1370 = vsel %vm1338, %v1242, 0.0
      %v1371 = vsel %vm1339, %v1273, 0.0
      %v1372 = vsel %vm1340, %v1272, 0.0
      %v1373 = vsel %vm1341, %v1271, 0.0
      %v1374 = vsel %vm1342, %v1270, 0.0
      %v1375 = vsel %vm1343, %v1269, 0.0
      %v1376 = vsel %vm1344, %v1268, 0.0
      %v1377 = vsel %vm1345, %v1267, 0.0
      %v1378 = vsel %vm1346, %v1266, 0.0
      %v1379 = vsel %vm1347, %v1265, 0.0
      %v1380 = vsel %vm1348, %v1264, 0.0
      %v1381 = vsel %vm1349, %v1263, 0.0
      %v1382 = vsel %vm1350, %v1262, 0.0
      %v1383 = vsel %vm1351, %v1261, 0.0
      %v1384 = vsel %vm1352, %v1260, 0.0
      %v1385 = vsel %vm1353, %v1259, 0.0
      %v1386 = vsel %vm1354, %v1258, 0.0
      %v1387 = vsel %vm1355, %v1257, 0.0
      %v1388 = vsel %vm1356, %v1256, 0.0
      %v1389 = vsel %vm1357, %v1255, 0.0
      %v1390 = vsel %vm1358, %v1254, 0.0
      %v1391 = vsel %vm1359, %v1253, 0.0
      %v1392 = vsel %vm1360, %v1252, 0.0
      %v1393 = vsel %vm1361, %v1251, 0.0
      %v1394 = vsel %vm1362, %v1250, 0.0
      %v1395 = vsel %vm1363, %v1249, 0.0
      %v1396 = vsel %vm1364, %v1248, 0.0
      %v1397 = vsel %vm1365, %v1247, 0.0
      %v1398 = vsel %vm1366, %v1246, 0.0
      %v1399 = vsel %vm1367, %v1245, 0.0
      %v1400 = vsel %vm1368, %v1244, 0.0
      %v1401 = vsel %vm1369, %v1243, 0.0
      %1402 = vst [vmem:[#allocation2 + $0x10] sm:$0xff] %v1370
      %1403 = vst [vmem:[#allocation2 + $0x58] sm:$0xff] %v1371
      %1404 = vst [vmem:[#allocation2 + $0xa0] sm:$0xff] %v1372
      %1405 = vst [vmem:[#allocation2 + $0xe8] sm:$0xff] %v1373
      %1406 = vst [vmem:[#allocation2 + $0x130] sm:$0xff] %v1374
      %1407 = vst [vmem:[#allocation2 + $0x178] sm:$0xff] %v1375
      %1408 = vst [vmem:[#allocation2 + $0x1c0] sm:$0xff] %v1376
      %1409 = vst [vmem:[#allocation2 + $0x208] sm:$0xff] %v1377
      %1410 = vst [vmem:[#allocation2 + $0x250] sm:$0xff] %v1378
      %1411 = vst [vmem:[#allocation2 + $0x298] sm:$0xff] %v1379
      %1412 = vst [vmem:[#allocation2 + $0x2e0] sm:$0xff] %v1380
      %1413 = vst [vmem:[#allocation2 + $0x328] sm:$0xff] %v1381
      %1414 = vst [vmem:[#allocation2 + $0x370] sm:$0xff] %v1382
      %1415 = vst [vmem:[#allocation2 + $0x3b8] sm:$0xff] %v1383
      %1416 = vst [vmem:[#allocation2 + $0x400] sm:$0xff] %v1384
      %1417 = vst [vmem:[#allocation2 + $0x448] sm:$0xff] %v1385
      %1418 = vst [vmem:[#allocation2 + $0x490] sm:$0xff] %v1386
      %1419 = vst [vmem:[#allocation2 + $0x4d8] sm:$0xff] %v1387
      %1420 = vst [vmem:[#allocation2 + $0x520] sm:$0xff] %v1388
      %1421 = vst [vmem:[#allocation2 + $0x568] sm:$0xff] %v1389
      %1422 = vst [vmem:[#allocation2 + $0x5b0] sm:$0xff] %v1390
      %1423 = vst [vmem:[#allocation2 + $0x5f8] sm:$0xff] %v1391
      %1424 = vst [vmem:[#allocation2 + $0x640] sm:$0xff] %v1392
      %1425 = vst [vmem:[#allocation2 + $0x688] sm:$0xff] %v1393
      %1426 = vst [vmem:[#allocation2 + $0x6d0] sm:$0xff] %v1394
      %1427 = vst [vmem:[#allocation2 + $0x718] sm:$0xff] %v1395
      %1428 = vst [vmem:[#allocation2 + $0x760] sm:$0xff] %v1396
      %1429 = vst [vmem:[#allocation2 + $0x7a8] sm:$0xff] %v1397
      %1430 = vst [vmem:[#allocation2 + $0x7f0] sm:$0xff] %v1398
      %1431 = vst [vmem:[#allocation2 + $0x838] sm:$0xff] %v1399
      %1432 = vst [vmem:[#allocation2 + $0x880] sm:$0xff] %v1400
      %1433 = vst [vmem:[#allocation2 + $0x8c8] sm:$0xff] %v1401
      %v1434 = vsel %vm760, 1, 0
      %v1435 = vsel %vm761, 1, 0
      %v1436 = vsel %vm762, 1, 0
      %v1437 = vsel %vm763, 1, 0
      %v1438 = vsel %vm764, 1, 0
      %v1439 = vsel %vm765, 1, 0
      %v1440 = vsel %vm766, 1, 0
      %v1441 = vsel %vm767, 1, 0
      %v1442 = vsel %vm768, 1, 0
      %v1443 = vsel %vm769, 1, 0
      %v1444 = vsel %vm770, 1, 0
      %v1445 = vsel %vm771, 1, 0
      %v1446 = vsel %vm772, 1, 0
      %v1447 = vsel %vm773, 1, 0
      %v1448 = vsel %vm774, 1, 0
      %v1449 = vsel %vm775, 1, 0
      %v1450 = vsel %vm776, 1, 0
      %v1451 = vsel %vm777, 1, 0
      %v1452 = vsel %vm778, 1, 0
      %v1453 = vsel %vm779, 1, 0
      %v1454 = vsel %vm780, 1, 0
      %v1455 = vsel %vm781, 1, 0
      %v1456 = vsel %vm782, 1, 0
      %v1457 = vsel %vm783, 1, 0
      %v1458 = vsel %vm784, 1, 0
      %v1459 = vsel %vm785, 1, 0
      %v1460 = vsel %vm786, 1, 0
      %v1461 = vsel %vm787, 1, 0
      %v1462 = vsel %vm788, 1, 0
      %v1463 = vsel %vm789, 1, 0
      %v1464 = vsel %vm790, 1, 0
      %v1465 = vsel %vm791, 1, 0
      %vm1466 = vcmp.eq.s32.totalorder %v1434, 1
      %vm1467 = vcmp.eq.s32.totalorder %v1435, 1
      %vm1468 = vcmp.eq.s32.totalorder %v1436, 1
      %vm1469 = vcmp.eq.s32.totalorder %v1437, 1
      %vm1470 = vcmp.eq.s32.totalorder %v1438, 1
      %vm1471 = vcmp.eq.s32.totalorder %v1439, 1
      %vm1472 = vcmp.eq.s32.totalorder %v1440, 1
      %vm1473 = vcmp.eq.s32.totalorder %v1441, 1
      %vm1474 = vcmp.eq.s32.totalorder %v1442, 1
      %vm1475 = vcmp.eq.s32.totalorder %v1443, 1
      %vm1476 = vcmp.eq.s32.totalorder %v1444, 1
      %vm1477 = vcmp.eq.s32.totalorder %v1445, 1
      %vm1478 = vcmp.eq.s32.totalorder %v1446, 1
      %vm1479 = vcmp.eq.s32.totalorder %v1447, 1
      %vm1480 = vcmp.eq.s32.totalorder %v1448, 1
      %vm1481 = vcmp.eq.s32.totalorder %v1449, 1
      %vm1482 = vcmp.eq.s32.totalorder %v1450, 1
      %vm1483 = vcmp.eq.s32.totalorder %v1451, 1
      %vm1484 = vcmp.eq.s32.totalorder %v1452, 1
      %vm1485 = vcmp.eq.s32.totalorder %v1453, 1
      %vm1486 = vcmp.eq.s32.totalorder %v1454, 1
      %vm1487 = vcmp.eq.s32.totalorder %v1455, 1
      %vm1488 = vcmp.eq.s32.totalorder %v1456, 1
      %vm1489 = vcmp.eq.s32.totalorder %v1457, 1
      %vm1490 = vcmp.eq.s32.totalorder %v1458, 1
      %vm1491 = vcmp.eq.s32.totalorder %v1459, 1
      %vm1492 = vcmp.eq.s32.totalorder %v1460, 1
      %vm1493 = vcmp.eq.s32.totalorder %v1461, 1
      %vm1494 = vcmp.eq.s32.totalorder %v1462, 1
      %vm1495 = vcmp.eq.s32.totalorder %v1463, 1
      %vm1496 = vcmp.eq.s32.totalorder %v1464, 1
      %vm1497 = vcmp.eq.s32.totalorder %v1465, 1
      %v1498 = vsel %vm1466, %v920, 0.0
      %v1499 = vsel %vm1467, %v919, 0.0
      %v1500 = vsel %vm1468, %v918, 0.0
      %v1501 = vsel %vm1469, %v917, 0.0
      %v1502 = vsel %vm1470, %v916, 0.0
      %v1503 = vsel %vm1471, %v915, 0.0
      %v1504 = vsel %vm1472, %v914, 0.0
      %v1505 = vsel %vm1473, %v913, 0.0
      %v1506 = vsel %vm1474, %v912, 0.0
      %v1507 = vsel %vm1475, %v911, 0.0
      %v1508 = vsel %vm1476, %v910, 0.0
      %v1509 = vsel %vm1477, %v909, 0.0
      %v1510 = vsel %vm1478, %v908, 0.0
      %v1511 = vsel %vm1479, %v907, 0.0
      %v1512 = vsel %vm1480, %v906, 0.0
      %v1513 = vsel %vm1481, %v905, 0.0
      %v1514 = vsel %vm1482, %v904, 0.0
      %v1515 = vsel %vm1483, %v903, 0.0
      %v1516 = vsel %vm1484, %v902, 0.0
      %v1517 = vsel %vm1485, %v901, 0.0
      %v1518 = vsel %vm1486, %v900, 0.0
      %v1519 = vsel %vm1487, %v899, 0.0
      %v1520 = vsel %vm1488, %v898, 0.0
      %v1521 = vsel %vm1489, %v897, 0.0
      %v1522 = vsel %vm1490, %v896, 0.0
      %v1523 = vsel %vm1491, %v895, 0.0
      %v1524 = vsel %vm1492, %v894, 0.0
      %v1525 = vsel %vm1493, %v893, 0.0
      %v1526 = vsel %vm1494, %v892, 0.0
      %v1527 = vsel %vm1495, %v891, 0.0
      %v1528 = vsel %vm1496, %v890, 0.0
      %v1529 = vsel %vm1497, %v889, 0.0
      %1530 = vst [vmem:[#allocation2 + $0x18] sm:$0xff] %v1498
      %1531 = vst [vmem:[#allocation2 + $0x60] sm:$0xff] %v1499
      %1532 = vst [vmem:[#allocation2 + $0xa8] sm:$0xff] %v1500
      %1533 = vst [vmem:[#allocation2 + $0xf0] sm:$0xff] %v1501
      %1534 = vst [vmem:[#allocation2 + $0x138] sm:$0xff] %v1502
      %1535 = vst [vmem:[#allocation2 + $0x180] sm:$0xff] %v1503
      %1536 = vst [vmem:[#allocation2 + $0x1c8] sm:$0xff] %v1504
      %1537 = vst [vmem:[#allocation2 + $0x210] sm:$0xff] %v1505
      %1538 = vst [vmem:[#allocation2 + $0x258] sm:$0xff] %v1506
      %1539 = vst [vmem:[#allocation2 + $0x2a0] sm:$0xff] %v1507
      %1540 = vst [vmem:[#allocation2 + $0x2e8] sm:$0xff] %v1508
      %1541 = vst [vmem:[#allocation2 + $0x330] sm:$0xff] %v1509
      %1542 = vst [vmem:[#allocation2 + $0x378] sm:$0xff] %v1510
      %1543 = vst [vmem:[#allocation2 + $0x3c0] sm:$0xff] %v1511
      %1544 = vst [vmem:[#allocation2 + $0x408] sm:$0xff] %v1512
      %1545 = vst [vmem:[#allocation2 + $0x450] sm:$0xff] %v1513
      %1546 = vst [vmem:[#allocation2 + $0x498] sm:$0xff] %v1514
      %1547 = vst [vmem:[#allocation2 + $0x4e0] sm:$0xff] %v1515
      %1548 = vst [vmem:[#allocation2 + $0x528] sm:$0xff] %v1516
      %1549 = vst [vmem:[#allocation2 + $0x570] sm:$0xff] %v1517
      %1550 = vst [vmem:[#allocation2 + $0x5b8] sm:$0xff] %v1518
      %1551 = vst [vmem:[#allocation2 + $0x600] sm:$0xff] %v1519
      %1552 = vst [vmem:[#allocation2 + $0x648] sm:$0xff] %v1520
      %1553 = vst [vmem:[#allocation2 + $0x690] sm:$0xff] %v1521
      %1554 = vst [vmem:[#allocation2 + $0x6d8] sm:$0xff] %v1522
      %1555 = vst [vmem:[#allocation2 + $0x720] sm:$0xff] %v1523
      %1556 = vst [vmem:[#allocation2 + $0x768] sm:$0xff] %v1524
      %1557 = vst [vmem:[#allocation2 + $0x7b0] sm:$0xff] %v1525
      %1558 = vst [vmem:[#allocation2 + $0x7f8] sm:$0xff] %v1526
      %1559 = vst [vmem:[#allocation2 + $0x840] sm:$0xff] %v1527
      %1560 = vst [vmem:[#allocation2 + $0x888] sm:$0xff] %v1528
      %1561 = vst [vmem:[#allocation2 + $0x8d0] sm:$0xff] %v1529
      %1562 = vst [vmem:[#allocation2 + $0x20] sm:$0xff] %v824
      %1563 = vst [vmem:[#allocation2 + $0x68] sm:$0xff] %v825
      %1564 = vst [vmem:[#allocation2 + $0xb0] sm:$0xff] %v826
      %1565 = vst [vmem:[#allocation2 + $0xf8] sm:$0xff] %v827
      %1566 = vst [vmem:[#allocation2 + $0x140] sm:$0xff] %v828
      %1567 = vst [vmem:[#allocation2 + $0x188] sm:$0xff] %v829
      %1568 = vst [vmem:[#allocation2 + $0x1d0] sm:$0xff] %v830
      %1569 = vst [vmem:[#allocation2 + $0x218] sm:$0xff] %v831
      %1570 = vst [vmem:[#allocation2 + $0x260] sm:$0xff] %v832
      %1571 = vst [vmem:[#allocation2 + $0x2a8] sm:$0xff] %v833
      %1572 = vst [vmem:[#allocation2 + $0x2f0] sm:$0xff] %v834
      %1573 = vst [vmem:[#allocation2 + $0x338] sm:$0xff] %v835
      %1574 = vst [vmem:[#allocation2 + $0x380] sm:$0xff] %v836
      %1575 = vst [vmem:[#allocation2 + $0x3c8] sm:$0xff] %v837
      %1576 = vst [vmem:[#allocation2 + $0x410] sm:$0xff] %v838
      %1577 = vst [vmem:[#allocation2 + $0x458] sm:$0xff] %v839
      %1578 = vst [vmem:[#allocation2 + $0x4a0] sm:$0xff] %v840
      %1579 = vst [vmem:[#allocation2 + $0x4e8] sm:$0xff] %v841
      %1580 = vst [vmem:[#allocation2 + $0x530] sm:$0xff] %v842
      %1581 = vst [vmem:[#allocation2 + $0x578] sm:$0xff] %v843
      %1582 = vst [vmem:[#allocation2 + $0x5c0] sm:$0xff] %v844
      %1583 = vst [vmem:[#allocation2 + $0x608] sm:$0xff] %v845
      %1584 = vst [vmem:[#allocation2 + $0x650] sm:$0xff] %v846
      %1585 = vst [vmem:[#allocation2 + $0x698] sm:$0xff] %v847
      %1586 = vst [vmem:[#allocation2 + $0x6e0] sm:$0xff] %v848
      %1587 = vst [vmem:[#allocation2 + $0x728] sm:$0xff] %v849
      %1588 = vst [vmem:[#allocation2 + $0x770] sm:$0xff] %v850
      %1589 = vst [vmem:[#allocation2 + $0x7b8] sm:$0xff] %v851
      %1590 = vst [vmem:[#allocation2 + $0x800] sm:$0xff] %v852
      %1591 = vst [vmem:[#allocation2 + $0x848] sm:$0xff] %v853
      %1592 = vst [vmem:[#allocation2 + $0x890] sm:$0xff] %v854
      %1593 = vst [vmem:[#allocation2 + $0x8d8] sm:$0xff] %v855
      %v1594 = vsel %vm792, 1, 0
      %v1595 = vsel %vm793, 1, 0
      %v1596 = vsel %vm794, 1, 0
      %v1597 = vsel %vm795, 1, 0
      %v1598 = vsel %vm796, 1, 0
      %v1599 = vsel %vm797, 1, 0
      %v1600 = vsel %vm798, 1, 0
      %v1601 = vsel %vm799, 1, 0
      %v1602 = vsel %vm800, 1, 0
      %v1603 = vsel %vm801, 1, 0
      %v1604 = vsel %vm802, 1, 0
      %v1605 = vsel %vm803, 1, 0
      %v1606 = vsel %vm804, 1, 0
      %v1607 = vsel %vm805, 1, 0
      %v1608 = vsel %vm806, 1, 0
      %v1609 = vsel %vm807, 1, 0
      %v1610 = vsel %vm808, 1, 0
      %v1611 = vsel %vm809, 1, 0
      %v1612 = vsel %vm810, 1, 0
      %v1613 = vsel %vm811, 1, 0
      %v1614 = vsel %vm812, 1, 0
      %v1615 = vsel %vm813, 1, 0
      %v1616 = vsel %vm814, 1, 0
      %v1617 = vsel %vm815, 1, 0
      %v1618 = vsel %vm816, 1, 0
      %v1619 = vsel %vm817, 1, 0
      %v1620 = vsel %vm818, 1, 0
      %v1621 = vsel %vm819, 1, 0
      %v1622 = vsel %vm820, 1, 0
      %v1623 = vsel %vm821, 1, 0
      %v1624 = vsel %vm822, 1, 0
      %v1625 = vsel %vm823, 1, 0
      %vm1626 = vcmp.eq.s32.totalorder %v1594, 1
      %vm1627 = vcmp.eq.s32.totalorder %v1595, 1
      %vm1628 = vcmp.eq.s32.totalorder %v1596, 1
      %vm1629 = vcmp.eq.s32.totalorder %v1597, 1
      %vm1630 = vcmp.eq.s32.totalorder %v1598, 1
      %vm1631 = vcmp.eq.s32.totalorder %v1599, 1
      %vm1632 = vcmp.eq.s32.totalorder %v1600, 1
      %vm1633 = vcmp.eq.s32.totalorder %v1601, 1
      %vm1634 = vcmp.eq.s32.totalorder %v1602, 1
      %vm1635 = vcmp.eq.s32.totalorder %v1603, 1
      %vm1636 = vcmp.eq.s32.totalorder %v1604, 1
      %vm1637 = vcmp.eq.s32.totalorder %v1605, 1
      %vm1638 = vcmp.eq.s32.totalorder %v1606, 1
      %vm1639 = vcmp.eq.s32.totalorder %v1607, 1
      %vm1640 = vcmp.eq.s32.totalorder %v1608, 1
      %vm1641 = vcmp.eq.s32.totalorder %v1609, 1
      %vm1642 = vcmp.eq.s32.totalorder %v1610, 1
      %vm1643 = vcmp.eq.s32.totalorder %v1611, 1
      %vm1644 = vcmp.eq.s32.totalorder %v1612, 1
      %vm1645 = vcmp.eq.s32.totalorder %v1613, 1
      %vm1646 = vcmp.eq.s32.totalorder %v1614, 1
      %vm1647 = vcmp.eq.s32.totalorder %v1615, 1
      %vm1648 = vcmp.eq.s32.totalorder %v1616, 1
      %vm1649 = vcmp.eq.s32.totalorder %v1617, 1
      %vm1650 = vcmp.eq.s32.totalorder %v1618, 1
      %vm1651 = vcmp.eq.s32.totalorder %v1619, 1
      %vm1652 = vcmp.eq.s32.totalorder %v1620, 1
      %vm1653 = vcmp.eq.s32.totalorder %v1621, 1
      %vm1654 = vcmp.eq.s32.totalorder %v1622, 1
      %vm1655 = vcmp.eq.s32.totalorder %v1623, 1
      %vm1656 = vcmp.eq.s32.totalorder %v1624, 1
      %vm1657 = vcmp.eq.s32.totalorder %v1625, 1
      %v1658 = vsel %vm1626, %v1272, 0.0
      %v1659 = vsel %vm1627, %v1271, 0.0
      %v1660 = vsel %vm1628, %v1270, 0.0
      %v1661 = vsel %vm1629, %v1269, 0.0
      %v1662 = vsel %vm1630, %v1268, 0.0
      %v1663 = vsel %vm1631, %v1267, 0.0
      %v1664 = vsel %vm1632, %v1266, 0.0
      %v1665 = vsel %vm1633, %v1265, 0.0
      %v1666 = vsel %vm1634, %v1264, 0.0
      %v1667 = vsel %vm1635, %v1263, 0.0
      %v1668 = vsel %vm1636, %v1262, 0.0
      %v1669 = vsel %vm1637, %v1261, 0.0
      %v1670 = vsel %vm1638, %v1260, 0.0
      %v1671 = vsel %vm1639, %v1259, 0.0
      %v1672 = vsel %vm1640, %v1258, 0.0
      %v1673 = vsel %vm1641, %v1257, 0.0
      %v1674 = vsel %vm1642, %v1256, 0.0
      %v1675 = vsel %vm1643, %v1255, 0.0
      %v1676 = vsel %vm1644, %v1254, 0.0
      %v1677 = vsel %vm1645, %v1253, 0.0
      %v1678 = vsel %vm1646, %v1252, 0.0
      %v1679 = vsel %vm1647, %v1251, 0.0
      %v1680 = vsel %vm1648, %v1250, 0.0
      %v1681 = vsel %vm1649, %v1249, 0.0
      %v1682 = vsel %vm1650, %v1248, 0.0
      %v1683 = vsel %vm1651, %v1247, 0.0
      %v1684 = vsel %vm1652, %v1246, 0.0
      %v1685 = vsel %vm1653, %v1245, 0.0
      %v1686 = vsel %vm1654, %v1244, 0.0
      %v1687 = vsel %vm1655, %v1243, 0.0
      %v1688 = vsel %vm1656, %v1242, 0.0
      %v1689 = vsel %vm1657, %v1273, 0.0
      %1690 = vst [vmem:[#allocation2 + $0x28] sm:$0xff] %v1658
      %1691 = vst [vmem:[#allocation2 + $0x70] sm:$0xff] %v1659
      %1692 = vst [vmem:[#allocation2 + $0xb8] sm:$0xff] %v1660
      %1693 = vst [vmem:[#allocation2 + $0x100] sm:$0xff] %v1661
      %1694 = vst [vmem:[#allocation2 + $0x148] sm:$0xff] %v1662
      %1695 = vst [vmem:[#allocation2 + $0x190] sm:$0xff] %v1663
      %1696 = vst [vmem:[#allocation2 + $0x1d8] sm:$0xff] %v1664
      %1697 = vst [vmem:[#allocation2 + $0x220] sm:$0xff] %v1665
      %1698 = vst [vmem:[#allocation2 + $0x268] sm:$0xff] %v1666
      %1699 = vst [vmem:[#allocation2 + $0x2b0] sm:$0xff] %v1667
      %1700 = vst [vmem:[#allocation2 + $0x2f8] sm:$0xff] %v1668
      %1701 = vst [vmem:[#allocation2 + $0x340] sm:$0xff] %v1669
      %1702 = vst [vmem:[#allocation2 + $0x388] sm:$0xff] %v1670
      %1703 = vst [vmem:[#allocation2 + $0x3d0] sm:$0xff] %v1671
      %1704 = vst [vmem:[#allocation2 + $0x418] sm:$0xff] %v1672
      %1705 = vst [vmem:[#allocation2 + $0x460] sm:$0xff] %v1673
      %1706 = vst [vmem:[#allocation2 + $0x4a8] sm:$0xff] %v1674
      %1707 = vst [vmem:[#allocation2 + $0x4f0] sm:$0xff] %v1675
      %1708 = vst [vmem:[#allocation2 + $0x538] sm:$0xff] %v1676
      %1709 = vst [vmem:[#allocation2 + $0x580] sm:$0xff] %v1677
      %1710 = vst [vmem:[#allocation2 + $0x5c8] sm:$0xff] %v1678
      %1711 = vst [vmem:[#allocation2 + $0x610] sm:$0xff] %v1679
      %1712 = vst [vmem:[#allocation2 + $0x658] sm:$0xff] %v1680
      %1713 = vst [vmem:[#allocation2 + $0x6a0] sm:$0xff] %v1681
      %1714 = vst [vmem:[#allocation2 + $0x6e8] sm:$0xff] %v1682
      %1715 = vst [vmem:[#allocation2 + $0x730] sm:$0xff] %v1683
      %1716 = vst [vmem:[#allocation2 + $0x778] sm:$0xff] %v1684
      %1717 = vst [vmem:[#allocation2 + $0x7c0] sm:$0xff] %v1685
      %1718 = vst [vmem:[#allocation2 + $0x808] sm:$0xff] %v1686
      %1719 = vst [vmem:[#allocation2 + $0x850] sm:$0xff] %v1687
      %1720 = vst [vmem:[#allocation2 + $0x898] sm:$0xff] %v1688
      %1721 = vst [vmem:[#allocation2 + $0x8e0] sm:$0xff] %v1689
      %vm1722 = vmand %vm728, %vm760
      %vm1723 = vmand %vm729, %vm761
      %vm1724 = vmand %vm730, %vm762
      %vm1725 = vmand %vm731, %vm763
      %vm1726 = vmand %vm732, %vm764
      %vm1727 = vmand %vm733, %vm765
      %vm1728 = vmand %vm734, %vm766
      %vm1729 = vmand %vm735, %vm767
      %vm1730 = vmand %vm736, %vm768
      %vm1731 = vmand %vm737, %vm769
      %vm1732 = vmand %vm738, %vm770
      %vm1733 = vmand %vm739, %vm771
      %vm1734 = vmand %vm740, %vm772
      %vm1735 = vmand %vm741, %vm773
      %vm1736 = vmand %vm742, %vm774
      %vm1737 = vmand %vm743, %vm775
      %vm1738 = vmand %vm744, %vm776
      %vm1739 = vmand %vm745, %vm777
      %vm1740 = vmand %vm746, %vm778
      %vm1741 = vmand %vm747, %vm779
      %vm1742 = vmand %vm748, %vm780
      %vm1743 = vmand %vm749, %vm781
      %vm1744 = vmand %vm750, %vm782
      %vm1745 = vmand %vm751, %vm783
      %vm1746 = vmand %vm752, %vm784
      %vm1747 = vmand %vm753, %vm785
      %vm1748 = vmand %vm754, %vm786
      %vm1749 = vmand %vm755, %vm787
      %vm1750 = vmand %vm756, %vm788
      %vm1751 = vmand %vm757, %vm789
      %vm1752 = vmand %vm758, %vm790
      %vm1753 = vmand %vm759, %vm791
      %v1754 = vsel %vm1722, 1, 0
      %v1755 = vsel %vm1723, 1, 0
      %v1756 = vsel %vm1724, 1, 0
      %v1757 = vsel %vm1725, 1, 0
      %v1758 = vsel %vm1726, 1, 0
      %v1759 = vsel %vm1727, 1, 0
      %v1760 = vsel %vm1728, 1, 0
      %v1761 = vsel %vm1729, 1, 0
      %v1762 = vsel %vm1730, 1, 0
      %v1763 = vsel %vm1731, 1, 0
      %v1764 = vsel %vm1732, 1, 0
      %v1765 = vsel %vm1733, 1, 0
      %v1766 = vsel %vm1734, 1, 0
      %v1767 = vsel %vm1735, 1, 0
      %v1768 = vsel %vm1736, 1, 0
      %v1769 = vsel %vm1737, 1, 0
      %v1770 = vsel %vm1738, 1, 0
      %v1771 = vsel %vm1739, 1, 0
      %v1772 = vsel %vm1740, 1, 0
      %v1773 = vsel %vm1741, 1, 0
      %v1774 = vsel %vm1742, 1, 0
      %v1775 = vsel %vm1743, 1, 0
      %v1776 = vsel %vm1744, 1, 0
      %v1777 = vsel %vm1745, 1, 0
      %v1778 = vsel %vm1746, 1, 0
      %v1779 = vsel %vm1747, 1, 0
      %v1780 = vsel %vm1748, 1, 0
      %v1781 = vsel %vm1749, 1, 0
      %v1782 = vsel %vm1750, 1, 0
      %v1783 = vsel %vm1751, 1, 0
      %v1784 = vsel %vm1752, 1, 0
      %v1785 = vsel %vm1753, 1, 0
      %vm1786 = vcmp.eq.s32.totalorder %v1754, 1
      %vm1787 = vcmp.eq.s32.totalorder %v1755, 1
      %vm1788 = vcmp.eq.s32.totalorder %v1756, 1
      %vm1789 = vcmp.eq.s32.totalorder %v1757, 1
      %vm1790 = vcmp.eq.s32.totalorder %v1758, 1
      %vm1791 = vcmp.eq.s32.totalorder %v1759, 1
      %vm1792 = vcmp.eq.s32.totalorder %v1760, 1
      %vm1793 = vcmp.eq.s32.totalorder %v1761, 1
      %vm1794 = vcmp.eq.s32.totalorder %v1762, 1
      %vm1795 = vcmp.eq.s32.totalorder %v1763, 1
      %vm1796 = vcmp.eq.s32.totalorder %v1764, 1
      %vm1797 = vcmp.eq.s32.totalorder %v1765, 1
      %vm1798 = vcmp.eq.s32.totalorder %v1766, 1
      %vm1799 = vcmp.eq.s32.totalorder %v1767, 1
      %vm1800 = vcmp.eq.s32.totalorder %v1768, 1
      %vm1801 = vcmp.eq.s32.totalorder %v1769, 1
      %vm1802 = vcmp.eq.s32.totalorder %v1770, 1
      %vm1803 = vcmp.eq.s32.totalorder %v1771, 1
      %vm1804 = vcmp.eq.s32.totalorder %v1772, 1
      %vm1805 = vcmp.eq.s32.totalorder %v1773, 1
      %vm1806 = vcmp.eq.s32.totalorder %v1774, 1
      %vm1807 = vcmp.eq.s32.totalorder %v1775, 1
      %vm1808 = vcmp.eq.s32.totalorder %v1776, 1
      %vm1809 = vcmp.eq.s32.totalorder %v1777, 1
      %vm1810 = vcmp.eq.s32.totalorder %v1778, 1
      %vm1811 = vcmp.eq.s32.totalorder %v1779, 1
      %vm1812 = vcmp.eq.s32.totalorder %v1780, 1
      %vm1813 = vcmp.eq.s32.totalorder %v1781, 1
      %vm1814 = vcmp.eq.s32.totalorder %v1782, 1
      %vm1815 = vcmp.eq.s32.totalorder %v1783, 1
      %vm1816 = vcmp.eq.s32.totalorder %v1784, 1
      %vm1817 = vcmp.eq.s32.totalorder %v1785, 1
      %v1818 = vsel %vm1786, %v918, 0.0
      %v1819 = vsel %vm1787, %v917, 0.0
      %v1820 = vsel %vm1788, %v916, 0.0
      %v1821 = vsel %vm1789, %v915, 0.0
      %v1822 = vsel %vm1790, %v914, 0.0
      %v1823 = vsel %vm1791, %v913, 0.0
      %v1824 = vsel %vm1792, %v912, 0.0
      %v1825 = vsel %vm1793, %v911, 0.0
      %v1826 = vsel %vm1794, %v910, 0.0
      %v1827 = vsel %vm1795, %v909, 0.0
      %v1828 = vsel %vm1796, %v908, 0.0
      %v1829 = vsel %vm1797, %v907, 0.0
      %v1830 = vsel %vm1798, %v906, 0.0
      %v1831 = vsel %vm1799, %v905, 0.0
      %v1832 = vsel %vm1800, %v904, 0.0
      %v1833 = vsel %vm1801, %v903, 0.0
      %v1834 = vsel %vm1802, %v902, 0.0
      %v1835 = vsel %vm1803, %v901, 0.0
      %v1836 = vsel %vm1804, %v900, 0.0
      %v1837 = vsel %vm1805, %v899, 0.0
      %v1838 = vsel %vm1806, %v898, 0.0
      %v1839 = vsel %vm1807, %v897, 0.0
      %v1840 = vsel %vm1808, %v896, 0.0
      %v1841 = vsel %vm1809, %v895, 0.0
      %v1842 = vsel %vm1810, %v894, 0.0
      %v1843 = vsel %vm1811, %v893, 0.0
      %v1844 = vsel %vm1812, %v892, 0.0
      %v1845 = vsel %vm1813, %v891, 0.0
      %v1846 = vsel %vm1814, %v890, 0.0
      %v1847 = vsel %vm1815, %v889, 0.0
      %v1848 = vsel %vm1816, %v920, 0.0
      %v1849 = vsel %vm1817, %v919, 0.0
      %1850 = vst [vmem:[#allocation2 + $0x30] sm:$0xff] %v1818
      %1851 = vst [vmem:[#allocation2 + $0x78] sm:$0xff] %v1819
      %1852 = vst [vmem:[#allocation2 + $0xc0] sm:$0xff] %v1820
      %1853 = vst [vmem:[#allocation2 + $0x108] sm:$0xff] %v1821
      %1854 = vst [vmem:[#allocation2 + $0x150] sm:$0xff] %v1822
      %1855 = vst [vmem:[#allocation2 + $0x198] sm:$0xff] %v1823
      %1856 = vst [vmem:[#allocation2 + $0x1e0] sm:$0xff] %v1824
      %1857 = vst [vmem:[#allocation2 + $0x228] sm:$0xff] %v1825
      %1858 = vst [vmem:[#allocation2 + $0x270] sm:$0xff] %v1826
      %1859 = vst [vmem:[#allocation2 + $0x2b8] sm:$0xff] %v1827
      %1860 = vst [vmem:[#allocation2 + $0x300] sm:$0xff] %v1828
      %1861 = vst [vmem:[#allocation2 + $0x348] sm:$0xff] %v1829
      %1862 = vst [vmem:[#allocation2 + $0x390] sm:$0xff] %v1830
      %1863 = vst [vmem:[#allocation2 + $0x3d8] sm:$0xff] %v1831
      %1864 = vst [vmem:[#allocation2 + $0x420] sm:$0xff] %v1832
      %1865 = vst [vmem:[#allocation2 + $0x468] sm:$0xff] %v1833
      %1866 = vst [vmem:[#allocation2 + $0x4b0] sm:$0xff] %v1834
      %1867 = vst [vmem:[#allocation2 + $0x4f8] sm:$0xff] %v1835
      %1868 = vst [vmem:[#allocation2 + $0x540] sm:$0xff] %v1836
      %1869 = vst [vmem:[#allocation2 + $0x588] sm:$0xff] %v1837
      %1870 = vst [vmem:[#allocation2 + $0x5d0] sm:$0xff] %v1838
      %1871 = vst [vmem:[#allocation2 + $0x618] sm:$0xff] %v1839
      %1872 = vst [vmem:[#allocation2 + $0x660] sm:$0xff] %v1840
      %1873 = vst [vmem:[#allocation2 + $0x6a8] sm:$0xff] %v1841
      %1874 = vst [vmem:[#allocation2 + $0x6f0] sm:$0xff] %v1842
      %1875 = vst [vmem:[#allocation2 + $0x738] sm:$0xff] %v1843
      %1876 = vst [vmem:[#allocation2 + $0x780] sm:$0xff] %v1844
      %1877 = vst [vmem:[#allocation2 + $0x7c8] sm:$0xff] %v1845
      %1878 = vst [vmem:[#allocation2 + $0x810] sm:$0xff] %v1846
      %1879 = vst [vmem:[#allocation2 + $0x858] sm:$0xff] %v1847
      %1880 = vst [vmem:[#allocation2 + $0x8a0] sm:$0xff] %v1848
      %1881 = vst [vmem:[#allocation2 + $0x8e8] sm:$0xff] %v1849
      %v1882 = vsel %vm728, 1, 0
      %v1883 = vsel %vm729, 1, 0
      %v1884 = vsel %vm730, 1, 0
      %v1885 = vsel %vm731, 1, 0
      %v1886 = vsel %vm732, 1, 0
      %v1887 = vsel %vm733, 1, 0
      %v1888 = vsel %vm734, 1, 0
      %v1889 = vsel %vm735, 1, 0
      %v1890 = vsel %vm736, 1, 0
      %v1891 = vsel %vm737, 1, 0
      %v1892 = vsel %vm738, 1, 0
      %v1893 = vsel %vm739, 1, 0
      %v1894 = vsel %vm740, 1, 0
      %v1895 = vsel %vm741, 1, 0
      %v1896 = vsel %vm742, 1, 0
      %v1897 = vsel %vm743, 1, 0
      %v1898 = vsel %vm744, 1, 0
      %v1899 = vsel %vm745, 1, 0
      %v1900 = vsel %vm746, 1, 0
      %v1901 = vsel %vm747, 1, 0
      %v1902 = vsel %vm748, 1, 0
      %v1903 = vsel %vm749, 1, 0
      %v1904 = vsel %vm750, 1, 0
      %v1905 = vsel %vm751, 1, 0
      %v1906 = vsel %vm752, 1, 0
      %v1907 = vsel %vm753, 1, 0
      %v1908 = vsel %vm754, 1, 0
      %v1909 = vsel %vm755, 1, 0
      %v1910 = vsel %vm756, 1, 0
      %v1911 = vsel %vm757, 1, 0
      %v1912 = vsel %vm758, 1, 0
      %v1913 = vsel %vm759, 1, 0
      %vm1914 = vcmp.eq.s32.totalorder %v1882, 1
      %vm1915 = vcmp.eq.s32.totalorder %v1883, 1
      %vm1916 = vcmp.eq.s32.totalorder %v1884, 1
      %vm1917 = vcmp.eq.s32.totalorder %v1885, 1
      %vm1918 = vcmp.eq.s32.totalorder %v1886, 1
      %vm1919 = vcmp.eq.s32.totalorder %v1887, 1
      %vm1920 = vcmp.eq.s32.totalorder %v1888, 1
      %vm1921 = vcmp.eq.s32.totalorder %v1889, 1
      %vm1922 = vcmp.eq.s32.totalorder %v1890, 1
      %vm1923 = vcmp.eq.s32.totalorder %v1891, 1
      %vm1924 = vcmp.eq.s32.totalorder %v1892, 1
      %vm1925 = vcmp.eq.s32.totalorder %v1893, 1
      %vm1926 = vcmp.eq.s32.totalorder %v1894, 1
      %vm1927 = vcmp.eq.s32.totalorder %v1895, 1
      %vm1928 = vcmp.eq.s32.totalorder %v1896, 1
      %vm1929 = vcmp.eq.s32.totalorder %v1897, 1
      %vm1930 = vcmp.eq.s32.totalorder %v1898, 1
      %vm1931 = vcmp.eq.s32.totalorder %v1899, 1
      %vm1932 = vcmp.eq.s32.totalorder %v1900, 1
      %vm1933 = vcmp.eq.s32.totalorder %v1901, 1
      %vm1934 = vcmp.eq.s32.totalorder %v1902, 1
      %vm1935 = vcmp.eq.s32.totalorder %v1903, 1
      %vm1936 = vcmp.eq.s32.totalorder %v1904, 1
      %vm1937 = vcmp.eq.s32.totalorder %v1905, 1
      %vm1938 = vcmp.eq.s32.totalorder %v1906, 1
      %vm1939 = vcmp.eq.s32.totalorder %v1907, 1
      %vm1940 = vcmp.eq.s32.totalorder %v1908, 1
      %vm1941 = vcmp.eq.s32.totalorder %v1909, 1
      %vm1942 = vcmp.eq.s32.totalorder %v1910, 1
      %vm1943 = vcmp.eq.s32.totalorder %v1911, 1
      %vm1944 = vcmp.eq.s32.totalorder %v1912, 1
      %vm1945 = vcmp.eq.s32.totalorder %v1913, 1
      %v1946 = vsel %vm1914, %v826, 0.0
      %v1947 = vsel %vm1915, %v827, 0.0
      %v1948 = vsel %vm1916, %v828, 0.0
      %v1949 = vsel %vm1917, %v829, 0.0
      %v1950 = vsel %vm1918, %v830, 0.0
      %v1951 = vsel %vm1919, %v831, 0.0
      %v1952 = vsel %vm1920, %v832, 0.0
      %v1953 = vsel %vm1921, %v833, 0.0
      %v1954 = vsel %vm1922, %v834, 0.0
      %v1955 = vsel %vm1923, %v835, 0.0
      %v1956 = vsel %vm1924, %v836, 0.0
      %v1957 = vsel %vm1925, %v837, 0.0
      %v1958 = vsel %vm1926, %v838, 0.0
      %v1959 = vsel %vm1927, %v839, 0.0
      %v1960 = vsel %vm1928, %v840, 0.0
      %v1961 = vsel %vm1929, %v841, 0.0
      %v1962 = vsel %vm1930, %v842, 0.0
      %v1963 = vsel %vm1931, %v843, 0.0
      %v1964 = vsel %vm1932, %v844, 0.0
      %v1965 = vsel %vm1933, %v845, 0.0
      %v1966 = vsel %vm1934, %v846, 0.0
      %v1967 = vsel %vm1935, %v847, 0.0
      %v1968 = vsel %vm1936, %v848, 0.0
      %v1969 = vsel %vm1937, %v849, 0.0
      %v1970 = vsel %vm1938, %v850, 0.0
      %v1971 = vsel %vm1939, %v851, 0.0
      %v1972 = vsel %vm1940, %v852, 0.0
      %v1973 = vsel %vm1941, %v853, 0.0
      %v1974 = vsel %vm1942, %v854, 0.0
      %v1975 = vsel %vm1943, %v855, 0.0
      %v1976 = vsel %vm1944, %v824, 0.0
      %v1977 = vsel %vm1945, %v825, 0.0
      %1978 = vst [vmem:[#allocation2 + $0x38] sm:$0xff] %v1946
      %1979 = vst [vmem:[#allocation2 + $0x80] sm:$0xff] %v1947
      %1980 = vst [vmem:[#allocation2 + $0xc8] sm:$0xff] %v1948
      %1981 = vst [vmem:[#allocation2 + $0x110] sm:$0xff] %v1949
      %1982 = vst [vmem:[#allocation2 + $0x158] sm:$0xff] %v1950
      %1983 = vst [vmem:[#allocation2 + $0x1a0] sm:$0xff] %v1951
      %1984 = vst [vmem:[#allocation2 + $0x1e8] sm:$0xff] %v1952
      %1985 = vst [vmem:[#allocation2 + $0x230] sm:$0xff] %v1953
      %1986 = vst [vmem:[#allocation2 + $0x278] sm:$0xff] %v1954
      %1987 = vst [vmem:[#allocation2 + $0x2c0] sm:$0xff] %v1955
      %1988 = vst [vmem:[#allocation2 + $0x308] sm:$0xff] %v1956
      %1989 = vst [vmem:[#allocation2 + $0x350] sm:$0xff] %v1957
      %1990 = vst [vmem:[#allocation2 + $0x398] sm:$0xff] %v1958
      %1991 = vst [vmem:[#allocation2 + $0x3e0] sm:$0xff] %v1959
      %1992 = vst [vmem:[#allocation2 + $0x428] sm:$0xff] %v1960
      %1993 = vst [vmem:[#allocation2 + $0x470] sm:$0xff] %v1961
      %1994 = vst [vmem:[#allocation2 + $0x4b8] sm:$0xff] %v1962
      %1995 = vst [vmem:[#allocation2 + $0x500] sm:$0xff] %v1963
      %1996 = vst [vmem:[#allocation2 + $0x548] sm:$0xff] %v1964
      %1997 = vst [vmem:[#allocation2 + $0x590] sm:$0xff] %v1965
      %1998 = vst [vmem:[#allocation2 + $0x5d8] sm:$0xff] %v1966
      %1999 = vst [vmem:[#allocation2 + $0x620] sm:$0xff] %v1967
      %2000 = vst [vmem:[#allocation2 + $0x668] sm:$0xff] %v1968
      %2001 = vst [vmem:[#allocation2 + $0x6b0] sm:$0xff] %v1969
      %2002 = vst [vmem:[#allocation2 + $0x6f8] sm:$0xff] %v1970
      %2003 = vst [vmem:[#allocation2 + $0x740] sm:$0xff] %v1971
      %2004 = vst [vmem:[#allocation2 + $0x788] sm:$0xff] %v1972
      %2005 = vst [vmem:[#allocation2 + $0x7d0] sm:$0xff] %v1973
      %2006 = vst [vmem:[#allocation2 + $0x818] sm:$0xff] %v1974
      %2007 = vst [vmem:[#allocation2 + $0x860] sm:$0xff] %v1975
      %2008 = vst [vmem:[#allocation2 + $0x8a8] sm:$0xff] %v1976
      %2009 = vst [vmem:[#allocation2 + $0x8f0] sm:$0xff] %v1977
      %vm2010 = vmand %vm728, %vm792
      %vm2011 = vmand %vm729, %vm793
      %vm2012 = vmand %vm730, %vm794
      %vm2013 = vmand %vm731, %vm795
      %vm2014 = vmand %vm732, %vm796
      %vm2015 = vmand %vm733, %vm797
      %vm2016 = vmand %vm734, %vm798
      %vm2017 = vmand %vm735, %vm799
      %vm2018 = vmand %vm736, %vm800
      %vm2019 = vmand %vm737, %vm801
      %vm2020 = vmand %vm738, %vm802
      %vm2021 = vmand %vm739, %vm803
      %vm2022 = vmand %vm740, %vm804
      %vm2023 = vmand %vm741, %vm805
      %vm2024 = vmand %vm742, %vm806
      %vm2025 = vmand %vm743, %vm807
      %vm2026 = vmand %vm744, %vm808
      %vm2027 = vmand %vm745, %vm809
      %vm2028 = vmand %vm746, %vm810
      %vm2029 = vmand %vm747, %vm811
      %vm2030 = vmand %vm748, %vm812
      %vm2031 = vmand %vm749, %vm813
      %vm2032 = vmand %vm750, %vm814
      %vm2033 = vmand %vm751, %vm815
      %vm2034 = vmand %vm752, %vm816
      %vm2035 = vmand %vm753, %vm817
      %vm2036 = vmand %vm754, %vm818
      %vm2037 = vmand %vm755, %vm819
      %vm2038 = vmand %vm756, %vm820
      %vm2039 = vmand %vm757, %vm821
      %vm2040 = vmand %vm758, %vm822
      %vm2041 = vmand %vm759, %vm823
      %v2042 = vsel %vm2010, 1, 0
      %v2043 = vsel %vm2011, 1, 0
      %v2044 = vsel %vm2012, 1, 0
      %v2045 = vsel %vm2013, 1, 0
      %v2046 = vsel %vm2014, 1, 0
      %v2047 = vsel %vm2015, 1, 0
      %v2048 = vsel %vm2016, 1, 0
      %v2049 = vsel %vm2017, 1, 0
      %v2050 = vsel %vm2018, 1, 0
      %v2051 = vsel %vm2019, 1, 0
      %v2052 = vsel %vm2020, 1, 0
      %v2053 = vsel %vm2021, 1, 0
      %v2054 = vsel %vm2022, 1, 0
      %v2055 = vsel %vm2023, 1, 0
      %v2056 = vsel %vm2024, 1, 0
      %v2057 = vsel %vm2025, 1, 0
      %v2058 = vsel %vm2026, 1, 0
      %v2059 = vsel %vm2027, 1, 0
      %v2060 = vsel %vm2028, 1, 0
      %v2061 = vsel %vm2029, 1, 0
      %v2062 = vsel %vm2030, 1, 0
      %v2063 = vsel %vm2031, 1, 0
      %v2064 = vsel %vm2032, 1, 0
      %v2065 = vsel %vm2033, 1, 0
      %v2066 = vsel %vm2034, 1, 0
      %v2067 = vsel %vm2035, 1, 0
      %v2068 = vsel %vm2036, 1, 0
      %v2069 = vsel %vm2037, 1, 0
      %v2070 = vsel %vm2038, 1, 0
      %v2071 = vsel %vm2039, 1, 0
      %v2072 = vsel %vm2040, 1, 0
      %v2073 = vsel %vm2041, 1, 0
      %vm2074 = vcmp.eq.s32.totalorder %v2042, 1
      %vm2075 = vcmp.eq.s32.totalorder %v2043, 1
      %vm2076 = vcmp.eq.s32.totalorder %v2044, 1
      %vm2077 = vcmp.eq.s32.totalorder %v2045, 1
      %vm2078 = vcmp.eq.s32.totalorder %v2046, 1
      %vm2079 = vcmp.eq.s32.totalorder %v2047, 1
      %vm2080 = vcmp.eq.s32.totalorder %v2048, 1
      %vm2081 = vcmp.eq.s32.totalorder %v2049, 1
      %vm2082 = vcmp.eq.s32.totalorder %v2050, 1
      %vm2083 = vcmp.eq.s32.totalorder %v2051, 1
      %vm2084 = vcmp.eq.s32.totalorder %v2052, 1
      %vm2085 = vcmp.eq.s32.totalorder %v2053, 1
      %vm2086 = vcmp.eq.s32.totalorder %v2054, 1
      %vm2087 = vcmp.eq.s32.totalorder %v2055, 1
      %vm2088 = vcmp.eq.s32.totalorder %v2056, 1
      %vm2089 = vcmp.eq.s32.totalorder %v2057, 1
      %vm2090 = vcmp.eq.s32.totalorder %v2058, 1
      %vm2091 = vcmp.eq.s32.totalorder %v2059, 1
      %vm2092 = vcmp.eq.s32.totalorder %v2060, 1
      %vm2093 = vcmp.eq.s32.totalorder %v2061, 1
      %vm2094 = vcmp.eq.s32.totalorder %v2062, 1
      %vm2095 = vcmp.eq.s32.totalorder %v2063, 1
      %vm2096 = vcmp.eq.s32.totalorder %v2064, 1
      %vm2097 = vcmp.eq.s32.totalorder %v2065, 1
      %vm2098 = vcmp.eq.s32.totalorder %v2066, 1
      %vm2099 = vcmp.eq.s32.totalorder %v2067, 1
      %vm2100 = vcmp.eq.s32.totalorder %v2068, 1
      %vm2101 = vcmp.eq.s32.totalorder %v2069, 1
      %vm2102 = vcmp.eq.s32.totalorder %v2070, 1
      %vm2103 = vcmp.eq.s32.totalorder %v2071, 1
      %vm2104 = vcmp.eq.s32.totalorder %v2072, 1
      %vm2105 = vcmp.eq.s32.totalorder %v2073, 1
      %v2106 = vsel %vm2074, %v1270, 0.0
      %v2107 = vsel %vm2075, %v1269, 0.0
      %v2108 = vsel %vm2076, %v1268, 0.0
      %v2109 = vsel %vm2077, %v1267, 0.0
      %v2110 = vsel %vm2078, %v1266, 0.0
      %v2111 = vsel %vm2079, %v1265, 0.0
      %v2112 = vsel %vm2080, %v1264, 0.0
      %v2113 = vsel %vm2081, %v1263, 0.0
      %v2114 = vsel %vm2082, %v1262, 0.0
      %v2115 = vsel %vm2083, %v1261, 0.0
      %v2116 = vsel %vm2084, %v1260, 0.0
      %v2117 = vsel %vm2085, %v1259, 0.0
      %v2118 = vsel %vm2086, %v1258, 0.0
      %v2119 = vsel %vm2087, %v1257, 0.0
      %v2120 = vsel %vm2088, %v1256, 0.0
      %v2121 = vsel %vm2089, %v1255, 0.0
      %v2122 = vsel %vm2090, %v1254, 0.0
      %v2123 = vsel %vm2091, %v1253, 0.0
      %v2124 = vsel %vm2092, %v1252, 0.0
      %v2125 = vsel %vm2093, %v1251, 0.0
      %v2126 = vsel %vm2094, %v1250, 0.0
      %v2127 = vsel %vm2095, %v1249, 0.0
      %v2128 = vsel %vm2096, %v1248, 0.0
      %v2129 = vsel %vm2097, %v1247, 0.0
      %v2130 = vsel %vm2098, %v1246, 0.0
      %v2131 = vsel %vm2099, %v1245, 0.0
      %v2132 = vsel %vm2100, %v1244, 0.0
      %v2133 = vsel %vm2101, %v1243, 0.0
      %v2134 = vsel %vm2102, %v1242, 0.0
      %v2135 = vsel %vm2103, %v1273, 0.0
      %v2136 = vsel %vm2104, %v1272, 0.0
      %v2137 = vsel %vm2105, %v1271, 0.0
      %2138 = vst [vmem:[#allocation2 + $0x40] sm:$0xff] %v2106
      %2139 = vst [vmem:[#allocation2 + $0x88] sm:$0xff] %v2107
      %2140 = vst [vmem:[#allocation2 + $0xd0] sm:$0xff] %v2108
      %2141 = vst [vmem:[#allocation2 + $0x118] sm:$0xff] %v2109
      %2142 = vst [vmem:[#allocation2 + $0x160] sm:$0xff] %v2110
      %2143 = vst [vmem:[#allocation2 + $0x1a8] sm:$0xff] %v2111
      %2144 = vst [vmem:[#allocation2 + $0x1f0] sm:$0xff] %v2112
      %2145 = vst [vmem:[#allocation2 + $0x238] sm:$0xff] %v2113
      %2146 = vst [vmem:[#allocation2 + $0x280] sm:$0xff] %v2114
      %2147 = vst [vmem:[#allocation2 + $0x2c8] sm:$0xff] %v2115
      %2148 = vst [vmem:[#allocation2 + $0x310] sm:$0xff] %v2116
      %2149 = vst [vmem:[#allocation2 + $0x358] sm:$0xff] %v2117
      %2150 = vst [vmem:[#allocation2 + $0x3a0] sm:$0xff] %v2118
      %2151 = vst [vmem:[#allocation2 + $0x3e8] sm:$0xff] %v2119
      %2152 = vst [vmem:[#allocation2 + $0x430] sm:$0xff] %v2120
      %2153 = vst [vmem:[#allocation2 + $0x478] sm:$0xff] %v2121
      %2154 = vst [vmem:[#allocation2 + $0x4c0] sm:$0xff] %v2122
      %2155 = vst [vmem:[#allocation2 + $0x508] sm:$0xff] %v2123
      %2156 = vst [vmem:[#allocation2 + $0x550] sm:$0xff] %v2124
      %2157 = vst [vmem:[#allocation2 + $0x598] sm:$0xff] %v2125
      %2158 = vst [vmem:[#allocation2 + $0x5e0] sm:$0xff] %v2126
      %2159 = vst [vmem:[#allocation2 + $0x628] sm:$0xff] %v2127
      %2160 = vst [vmem:[#allocation2 + $0x670] sm:$0xff] %v2128
      %2161 = vst [vmem:[#allocation2 + $0x6b8] sm:$0xff] %v2129
      %2162 = vst [vmem:[#allocation2 + $0x700] sm:$0xff] %v2130
      %2163 = vst [vmem:[#allocation2 + $0x748] sm:$0xff] %v2131
      %2164 = vst [vmem:[#allocation2 + $0x790] sm:$0xff] %v2132
      %2165 = vst [vmem:[#allocation2 + $0x7d8] sm:$0xff] %v2133
      %2166 = vst [vmem:[#allocation2 + $0x820] sm:$0xff] %v2134
      %2167 = vst [vmem:[#allocation2 + $0x868] sm:$0xff] %v2135
      %2168 = vst [vmem:[#allocation2 + $0x8b0] sm:$0xff] %v2136
      %2169 = vst [vmem:[#allocation2 + $0x8f8] sm:$0xff] %v2137
      %v2170 = vld [vmem:[#allocation2] sm:$0xff]
      %v2171 = vld [vmem:[#allocation2 + $0x8] sm:$0xff]
      %v2172 = vld [vmem:[#allocation2 + $0x10] sm:$0xff]
      %v2173 = vld [vmem:[#allocation2 + $0x18] sm:$0xff]
      %v2174 = vld [vmem:[#allocation2 + $0x20] sm:$0xff]
      %v2175 = vld [vmem:[#allocation2 + $0x28] sm:$0xff]
      %v2176 = vld [vmem:[#allocation2 + $0x30] sm:$0xff]
      %v2177 = vld [vmem:[#allocation2 + $0x38] sm:$0xff]
      %v2178 = vld [vmem:[#allocation2 + $0x40] sm:$0xff]
      %v2179 = vld [vmem:[#allocation2 + $0x48] sm:$0xff]
      %v2180 = vld [vmem:[#allocation2 + $0x50] sm:$0xff]
      %v2181 = vld [vmem:[#allocation2 + $0x58] sm:$0xff]
      %v2182 = vld [vmem:[#allocation2 + $0x60] sm:$0xff]
      %v2183 = vld [vmem:[#allocation2 + $0x68] sm:$0xff]
      %v2184 = vld [vmem:[#allocation2 + $0x70] sm:$0xff]
      %v2185 = vld [vmem:[#allocation2 + $0x78] sm:$0xff]
      %v2186 = vld [vmem:[#allocation2 + $0x80] sm:$0xff]
      %v2187 = vld [vmem:[#allocation2 + $0x88] sm:$0xff]
      %v2188 = vld [vmem:[#allocation2 + $0x90] sm:$0xff]
      %v2189 = vld [vmem:[#allocation2 + $0x98] sm:$0xff]
      %v2190 = vld [vmem:[#allocation2 + $0xa0] sm:$0xff]
      %v2191 = vld [vmem:[#allocation2 + $0xa8] sm:$0xff]
      %v2192 = vld [vmem:[#allocation2 + $0xb0] sm:$0xff]
      %v2193 = vld [vmem:[#allocation2 + $0xb8] sm:$0xff]
      %v2194 = vld [vmem:[#allocation2 + $0xc0] sm:$0xff]
      %v2195 = vld [vmem:[#allocation2 + $0xc8] sm:$0xff]
      %v2196 = vld [vmem:[#allocation2 + $0xd0] sm:$0xff]
      %v2197 = vld [vmem:[#allocation2 + $0xd8] sm:$0xff]
      %v2198 = vld [vmem:[#allocation2 + $0xe0] sm:$0xff]
      %v2199 = vld [vmem:[#allocation2 + $0xe8] sm:$0xff]
      %v2200 = vld [vmem:[#allocation2 + $0xf0] sm:$0xff]
      %v2201 = vld [vmem:[#allocation2 + $0xf8] sm:$0xff]
      %v2202 = vld [vmem:[#allocation2 + $0x100] sm:$0xff]
      %v2203 = vld [vmem:[#allocation2 + $0x108] sm:$0xff]
      %v2204 = vld [vmem:[#allocation2 + $0x110] sm:$0xff]
      %v2205 = vld [vmem:[#allocation2 + $0x118] sm:$0xff]
      %v2206 = vld [vmem:[#allocation2 + $0x120] sm:$0xff]
      %v2207 = vld [vmem:[#allocation2 + $0x128] sm:$0xff]
      %v2208 = vld [vmem:[#allocation2 + $0x130] sm:$0xff]
      %v2209 = vld [vmem:[#allocation2 + $0x138] sm:$0xff]
      %v2210 = vld [vmem:[#allocation2 + $0x140] sm:$0xff]
      %v2211 = vld [vmem:[#allocation2 + $0x148] sm:$0xff]
      %v2212 = vld [vmem:[#allocation2 + $0x150] sm:$0xff]
      %v2213 = vld [vmem:[#allocation2 + $0x158] sm:$0xff]
      %v2214 = vld [vmem:[#allocation2 + $0x160] sm:$0xff]
      %v2215 = vld [vmem:[#allocation2 + $0x168] sm:$0xff]
      %v2216 = vld [vmem:[#allocation2 + $0x170] sm:$0xff]
      %v2217 = vld [vmem:[#allocation2 + $0x178] sm:$0xff]
      %v2218 = vld [vmem:[#allocation2 + $0x180] sm:$0xff]
      %v2219 = vld [vmem:[#allocation2 + $0x188] sm:$0xff]
      %v2220 = vld [vmem:[#allocation2 + $0x190] sm:$0xff]
      %v2221 = vld [vmem:[#allocation2 + $0x198] sm:$0xff]
      %v2222 = vld [vmem:[#allocation2 + $0x1a0] sm:$0xff]
      %v2223 = vld [vmem:[#allocation2 + $0x1a8] sm:$0xff]
      %v2224 = vld [vmem:[#allocation2 + $0x1b0] sm:$0xff]
      %v2225 = vld [vmem:[#allocation2 + $0x1b8] sm:$0xff]
      %v2226 = vld [vmem:[#allocation2 + $0x1c0] sm:$0xff]
      %v2227 = vld [vmem:[#allocation2 + $0x1c8] sm:$0xff]
      %v2228 = vld [vmem:[#allocation2 + $0x1d0] sm:$0xff]
      %v2229 = vld [vmem:[#allocation2 + $0x1d8] sm:$0xff]
      %v2230 = vld [vmem:[#allocation2 + $0x1e0] sm:$0xff]
      %v2231 = vld [vmem:[#allocation2 + $0x1e8] sm:$0xff]
      %v2232 = vld [vmem:[#allocation2 + $0x1f0] sm:$0xff]
      %v2233 = vld [vmem:[#allocation2 + $0x1f8] sm:$0xff]
      %v2234 = vld [vmem:[#allocation2 + $0x200] sm:$0xff]
      %v2235 = vld [vmem:[#allocation2 + $0x208] sm:$0xff]
      %v2236 = vld [vmem:[#allocation2 + $0x210] sm:$0xff]
      %v2237 = vld [vmem:[#allocation2 + $0x218] sm:$0xff]
      %v2238 = vld [vmem:[#allocation2 + $0x220] sm:$0xff]
      %v2239 = vld [vmem:[#allocation2 + $0x228] sm:$0xff]
      %v2240 = vld [vmem:[#allocation2 + $0x230] sm:$0xff]
      %v2241 = vld [vmem:[#allocation2 + $0x238] sm:$0xff]
      %v2242 = vld [vmem:[#allocation2 + $0x240] sm:$0xff]
      %v2243 = vld [vmem:[#allocation2 + $0x248] sm:$0xff]
      %v2244 = vld [vmem:[#allocation2 + $0x250] sm:$0xff]
      %v2245 = vld [vmem:[#allocation2 + $0x258] sm:$0xff]
      %v2246 = vld [vmem:[#allocation2 + $0x260] sm:$0xff]
      %v2247 = vld [vmem:[#allocation2 + $0x268] sm:$0xff]
      %v2248 = vld [vmem:[#allocation2 + $0x270] sm:$0xff]
      %v2249 = vld [vmem:[#allocation2 + $0x278] sm:$0xff]
      %v2250 = vld [vmem:[#allocation2 + $0x280] sm:$0xff]
      %v2251 = vld [vmem:[#allocation2 + $0x288] sm:$0xff]
      %v2252 = vld [vmem:[#allocation2 + $0x290] sm:$0xff]
      %v2253 = vld [vmem:[#allocation2 + $0x298] sm:$0xff]
      %v2254 = vld [vmem:[#allocation2 + $0x2a0] sm:$0xff]
      %v2255 = vld [vmem:[#allocation2 + $0x2a8] sm:$0xff]
      %v2256 = vld [vmem:[#allocation2 + $0x2b0] sm:$0xff]
      %v2257 = vld [vmem:[#allocation2 + $0x2b8] sm:$0xff]
      %v2258 = vld [vmem:[#allocation2 + $0x2c0] sm:$0xff]
      %v2259 = vld [vmem:[#allocation2 + $0x2c8] sm:$0xff]
      %v2260 = vld [vmem:[#allocation2 + $0x2d0] sm:$0xff]
      %v2261 = vld [vmem:[#allocation2 + $0x2d8] sm:$0xff]
      %v2262 = vld [vmem:[#allocation2 + $0x2e0] sm:$0xff]
      %v2263 = vld [vmem:[#allocation2 + $0x2e8] sm:$0xff]
      %v2264 = vld [vmem:[#allocation2 + $0x2f0] sm:$0xff]
      %v2265 = vld [vmem:[#allocation2 + $0x2f8] sm:$0xff]
      %v2266 = vld [vmem:[#allocation2 + $0x300] sm:$0xff]
      %v2267 = vld [vmem:[#allocation2 + $0x308] sm:$0xff]
      %v2268 = vld [vmem:[#allocation2 + $0x310] sm:$0xff]
      %v2269 = vld [vmem:[#allocation2 + $0x318] sm:$0xff]
      %v2270 = vld [vmem:[#allocation2 + $0x320] sm:$0xff]
      %v2271 = vld [vmem:[#allocation2 + $0x328] sm:$0xff]
      %v2272 = vld [vmem:[#allocation2 + $0x330] sm:$0xff]
      %v2273 = vld [vmem:[#allocation2 + $0x338] sm:$0xff]
      %v2274 = vld [vmem:[#allocation2 + $0x340] sm:$0xff]
      %v2275 = vld [vmem:[#allocation2 + $0x348] sm:$0xff]
      %v2276 = vld [vmem:[#allocation2 + $0x350] sm:$0xff]
      %v2277 = vld [vmem:[#allocation2 + $0x358] sm:$0xff]
      %v2278 = vld [vmem:[#allocation2 + $0x360] sm:$0xff]
      %v2279 = vld [vmem:[#allocation2 + $0x368] sm:$0xff]
      %v2280 = vld [vmem:[#allocation2 + $0x370] sm:$0xff]
      %v2281 = vld [vmem:[#allocation2 + $0x378] sm:$0xff]
      %v2282 = vld [vmem:[#allocation2 + $0x380] sm:$0xff]
      %v2283 = vld [vmem:[#allocation2 + $0x388] sm:$0xff]
      %v2284 = vld [vmem:[#allocation2 + $0x390] sm:$0xff]
      %v2285 = vld [vmem:[#allocation2 + $0x398] sm:$0xff]
      %v2286 = vld [vmem:[#allocation2 + $0x3a0] sm:$0xff]
      %v2287 = vld [vmem:[#allocation2 + $0x3a8] sm:$0xff]
      %v2288 = vld [vmem:[#allocation2 + $0x3b0] sm:$0xff]
      %v2289 = vld [vmem:[#allocation2 + $0x3b8] sm:$0xff]
      %v2290 = vld [vmem:[#allocation2 + $0x3c0] sm:$0xff]
      %v2291 = vld [vmem:[#allocation2 + $0x3c8] sm:$0xff]
      %v2292 = vld [vmem:[#allocation2 + $0x3d0] sm:$0xff]
      %v2293 = vld [vmem:[#allocation2 + $0x3d8] sm:$0xff]
      %v2294 = vld [vmem:[#allocation2 + $0x3e0] sm:$0xff]
      %v2295 = vld [vmem:[#allocation2 + $0x3e8] sm:$0xff]
      %v2296 = vld [vmem:[#allocation2 + $0x3f0] sm:$0xff]
      %v2297 = vld [vmem:[#allocation2 + $0x3f8] sm:$0xff]
      %v2298 = vld [vmem:[#allocation2 + $0x400] sm:$0xff]
      %v2299 = vld [vmem:[#allocation2 + $0x408] sm:$0xff]
      %v2300 = vld [vmem:[#allocation2 + $0x410] sm:$0xff]
      %v2301 = vld [vmem:[#allocation2 + $0x418] sm:$0xff]
      %v2302 = vld [vmem:[#allocation2 + $0x420] sm:$0xff]
      %v2303 = vld [vmem:[#allocation2 + $0x428] sm:$0xff]
      %v2304 = vld [vmem:[#allocation2 + $0x430] sm:$0xff]
      %v2305 = vld [vmem:[#allocation2 + $0x438] sm:$0xff]
      %v2306 = vld [vmem:[#allocation2 + $0x440] sm:$0xff]
      %v2307 = vld [vmem:[#allocation2 + $0x448] sm:$0xff]
      %v2308 = vld [vmem:[#allocation2 + $0x450] sm:$0xff]
      %v2309 = vld [vmem:[#allocation2 + $0x458] sm:$0xff]
      %v2310 = vld [vmem:[#allocation2 + $0x460] sm:$0xff]
      %v2311 = vld [vmem:[#allocation2 + $0x468] sm:$0xff]
      %v2312 = vld [vmem:[#allocation2 + $0x470] sm:$0xff]
      %v2313 = vld [vmem:[#allocation2 + $0x478] sm:$0xff]
      %v2314 = vld [vmem:[#allocation2 + $0x480] sm:$0xff]
      %v2315 = vld [vmem:[#allocation2 + $0x488] sm:$0xff]
      %v2316 = vld [vmem:[#allocation2 + $0x490] sm:$0xff]
      %v2317 = vld [vmem:[#allocation2 + $0x498] sm:$0xff]
      %v2318 = vld [vmem:[#allocation2 + $0x4a0] sm:$0xff]
      %v2319 = vld [vmem:[#allocation2 + $0x4a8] sm:$0xff]
      %v2320 = vld [vmem:[#allocation2 + $0x4b0] sm:$0xff]
      %v2321 = vld [vmem:[#allocation2 + $0x4b8] sm:$0xff]
      %v2322 = vld [vmem:[#allocation2 + $0x4c0] sm:$0xff]
      %v2323 = vld [vmem:[#allocation2 + $0x4c8] sm:$0xff]
      %v2324 = vld [vmem:[#allocation2 + $0x4d0] sm:$0xff]
      %v2325 = vld [vmem:[#allocation2 + $0x4d8] sm:$0xff]
      %v2326 = vld [vmem:[#allocation2 + $0x4e0] sm:$0xff]
      %v2327 = vld [vmem:[#allocation2 + $0x4e8] sm:$0xff]
      %v2328 = vld [vmem:[#allocation2 + $0x4f0] sm:$0xff]
      %v2329 = vld [vmem:[#allocation2 + $0x4f8] sm:$0xff]
      %v2330 = vld [vmem:[#allocation2 + $0x500] sm:$0xff]
      %v2331 = vld [vmem:[#allocation2 + $0x508] sm:$0xff]
      %v2332 = vld [vmem:[#allocation2 + $0x510] sm:$0xff]
      %v2333 = vld [vmem:[#allocation2 + $0x518] sm:$0xff]
      %v2334 = vld [vmem:[#allocation2 + $0x520] sm:$0xff]
      %v2335 = vld [vmem:[#allocation2 + $0x528] sm:$0xff]
      %v2336 = vld [vmem:[#allocation2 + $0x530] sm:$0xff]
      %v2337 = vld [vmem:[#allocation2 + $0x538] sm:$0xff]
      %v2338 = vld [vmem:[#allocation2 + $0x540] sm:$0xff]
      %v2339 = vld [vmem:[#allocation2 + $0x548] sm:$0xff]
      %v2340 = vld [vmem:[#allocation2 + $0x550] sm:$0xff]
      %v2341 = vld [vmem:[#allocation2 + $0x558] sm:$0xff]
      %v2342 = vld [vmem:[#allocation2 + $0x560] sm:$0xff]
      %v2343 = vld [vmem:[#allocation2 + $0x568] sm:$0xff]
      %v2344 = vld [vmem:[#allocation2 + $0x570] sm:$0xff]
      %v2345 = vld [vmem:[#allocation2 + $0x578] sm:$0xff]
      %v2346 = vld [vmem:[#allocation2 + $0x580] sm:$0xff]
      %v2347 = vld [vmem:[#allocation2 + $0x588] sm:$0xff]
      %v2348 = vld [vmem:[#allocation2 + $0x590] sm:$0xff]
      %v2349 = vld [vmem:[#allocation2 + $0x598] sm:$0xff]
      %v2350 = vld [vmem:[#allocation2 + $0x5a0] sm:$0xff]
      %v2351 = vld [vmem:[#allocation2 + $0x5a8] sm:$0xff]
      %v2352 = vld [vmem:[#allocation2 + $0x5b0] sm:$0xff]
      %v2353 = vld [vmem:[#allocation2 + $0x5b8] sm:$0xff]
      %v2354 = vld [vmem:[#allocation2 + $0x5c0] sm:$0xff]
      %v2355 = vld [vmem:[#allocation2 + $0x5c8] sm:$0xff]
      %v2356 = vld [vmem:[#allocation2 + $0x5d0] sm:$0xff]
      %v2357 = vld [vmem:[#allocation2 + $0x5d8] sm:$0xff]
      %v2358 = vld [vmem:[#allocation2 + $0x5e0] sm:$0xff]
      %v2359 = vld [vmem:[#allocation2 + $0x5e8] sm:$0xff]
      %v2360 = vld [vmem:[#allocation2 + $0x5f0] sm:$0xff]
      %v2361 = vld [vmem:[#allocation2 + $0x5f8] sm:$0xff]
      %v2362 = vld [vmem:[#allocation2 + $0x600] sm:$0xff]
      %v2363 = vld [vmem:[#allocation2 + $0x608] sm:$0xff]
      %v2364 = vld [vmem:[#allocation2 + $0x610] sm:$0xff]
      %v2365 = vld [vmem:[#allocation2 + $0x618] sm:$0xff]
      %v2366 = vld [vmem:[#allocation2 + $0x620] sm:$0xff]
      %v2367 = vld [vmem:[#allocation2 + $0x628] sm:$0xff]
      %v2368 = vld [vmem:[#allocation2 + $0x630] sm:$0xff]
      %v2369 = vld [vmem:[#allocation2 + $0x638] sm:$0xff]
      %v2370 = vld [vmem:[#allocation2 + $0x640] sm:$0xff]
      %v2371 = vld [vmem:[#allocation2 + $0x648] sm:$0xff]
      %v2372 = vld [vmem:[#allocation2 + $0x650] sm:$0xff]
      %v2373 = vld [vmem:[#allocation2 + $0x658] sm:$0xff]
      %v2374 = vld [vmem:[#allocation2 + $0x660] sm:$0xff]
      %v2375 = vld [vmem:[#allocation2 + $0x668] sm:$0xff]
      %v2376 = vld [vmem:[#allocation2 + $0x670] sm:$0xff]
      %v2377 = vld [vmem:[#allocation2 + $0x678] sm:$0xff]
      %v2378 = vld [vmem:[#allocation2 + $0x680] sm:$0xff]
      %v2379 = vld [vmem:[#allocation2 + $0x688] sm:$0xff]
      %v2380 = vld [vmem:[#allocation2 + $0x690] sm:$0xff]
      %v2381 = vld [vmem:[#allocation2 + $0x698] sm:$0xff]
      %v2382 = vld [vmem:[#allocation2 + $0x6a0] sm:$0xff]
      %v2383 = vld [vmem:[#allocation2 + $0x6a8] sm:$0xff]
      %v2384 = vld [vmem:[#allocation2 + $0x6b0] sm:$0xff]
      %v2385 = vld [vmem:[#allocation2 + $0x6b8] sm:$0xff]
      %v2386 = vld [vmem:[#allocation2 + $0x6c0] sm:$0xff]
      %v2387 = vld [vmem:[#allocation2 + $0x6c8] sm:$0xff]
      %v2388 = vld [vmem:[#allocation2 + $0x6d0] sm:$0xff]
      %v2389 = vld [vmem:[#allocation2 + $0x6d8] sm:$0xff]
      %v2390 = vld [vmem:[#allocation2 + $0x6e0] sm:$0xff]
      %v2391 = vld [vmem:[#allocation2 + $0x6e8] sm:$0xff]
      %v2392 = vld [vmem:[#allocation2 + $0x6f0] sm:$0xff]
      %v2393 = vld [vmem:[#allocation2 + $0x6f8] sm:$0xff]
      %v2394 = vld [vmem:[#allocation2 + $0x700] sm:$0xff]
      %v2395 = vld [vmem:[#allocation2 + $0x708] sm:$0xff]
      %v2396 = vld [vmem:[#allocation2 + $0x710] sm:$0xff]
      %v2397 = vld [vmem:[#allocation2 + $0x718] sm:$0xff]
      %v2398 = vld [vmem:[#allocation2 + $0x720] sm:$0xff]
      %v2399 = vld [vmem:[#allocation2 + $0x728] sm:$0xff]
      %v2400 = vld [vmem:[#allocation2 + $0x730] sm:$0xff]
      %v2401 = vld [vmem:[#allocation2 + $0x738] sm:$0xff]
      %v2402 = vld [vmem:[#allocation2 + $0x740] sm:$0xff]
      %v2403 = vld [vmem:[#allocation2 + $0x748] sm:$0xff]
      %v2404 = vld [vmem:[#allocation2 + $0x750] sm:$0xff]
      %v2405 = vld [vmem:[#allocation2 + $0x758] sm:$0xff]
      %v2406 = vld [vmem:[#allocation2 + $0x760] sm:$0xff]
      %v2407 = vld [vmem:[#allocation2 + $0x768] sm:$0xff]
      %v2408 = vld [vmem:[#allocation2 + $0x770] sm:$0xff]
      %v2409 = vld [vmem:[#allocation2 + $0x778] sm:$0xff]
      %v2410 = vld [vmem:[#allocation2 + $0x780] sm:$0xff]
      %v2411 = vld [vmem:[#allocation2 + $0x788] sm:$0xff]
      %v2412 = vld [vmem:[#allocation2 + $0x790] sm:$0xff]
      %v2413 = vld [vmem:[#allocation2 + $0x798] sm:$0xff]
      %v2414 = vld [vmem:[#allocation2 + $0x7a0] sm:$0xff]
      %v2415 = vld [vmem:[#allocation2 + $0x7a8] sm:$0xff]
      %v2416 = vld [vmem:[#allocation2 + $0x7b0] sm:$0xff]
      %v2417 = vld [vmem:[#allocation2 + $0x7b8] sm:$0xff]
      %v2418 = vld [vmem:[#allocation2 + $0x7c0] sm:$0xff]
      %v2419 = vld [vmem:[#allocation2 + $0x7c8] sm:$0xff]
      %v2420 = vld [vmem:[#allocation2 + $0x7d0] sm:$0xff]
      %v2421 = vld [vmem:[#allocation2 + $0x7d8] sm:$0xff]
      %v2422 = vld [vmem:[#allocation2 + $0x7e0] sm:$0xff]
      %v2423 = vld [vmem:[#allocation2 + $0x7e8] sm:$0xff]
      %v2424 = vld [vmem:[#allocation2 + $0x7f0] sm:$0xff]
      %v2425 = vld [vmem:[#allocation2 + $0x7f8] sm:$0xff]
      %v2426 = vld [vmem:[#allocation2 + $0x800] sm:$0xff]
      %v2427 = vld [vmem:[#allocation2 + $0x808] sm:$0xff]
      %v2428 = vld [vmem:[#allocation2 + $0x810] sm:$0xff]
      %v2429 = vld [vmem:[#allocation2 + $0x818] sm:$0xff]
      %v2430 = vld [vmem:[#allocation2 + $0x820] sm:$0xff]
      %v2431 = vld [vmem:[#allocation2 + $0x828] sm:$0xff]
      %v2432 = vld [vmem:[#allocation2 + $0x830] sm:$0xff]
      %v2433 = vld [vmem:[#allocation2 + $0x838] sm:$0xff]
      %v2434 = vld [vmem:[#allocation2 + $0x840] sm:$0xff]
      %v2435 = vld [vmem:[#allocation2 + $0x848] sm:$0xff]
      %v2436 = vld [vmem:[#allocation2 + $0x850] sm:$0xff]
      %v2437 = vld [vmem:[#allocation2 + $0x858] sm:$0xff]
      %v2438 = vld [vmem:[#allocation2 + $0x860] sm:$0xff]
      %v2439 = vld [vmem:[#allocation2 + $0x868] sm:$0xff]
      %v2440 = vld [vmem:[#allocation2 + $0x870] sm:$0xff]
      %v2441 = vld [vmem:[#allocation2 + $0x878] sm:$0xff]
      %v2442 = vld [vmem:[#allocation2 + $0x880] sm:$0xff]
      %v2443 = vld [vmem:[#allocation2 + $0x888] sm:$0xff]
      %v2444 = vld [vmem:[#allocation2 + $0x890] sm:$0xff]
      %v2445 = vld [vmem:[#allocation2 + $0x898] sm:$0xff]
      %v2446 = vld [vmem:[#allocation2 + $0x8a0] sm:$0xff]
      %v2447 = vld [vmem:[#allocation2 + $0x8a8] sm:$0xff]
      %v2448 = vld [vmem:[#allocation2 + $0x8b0] sm:$0xff]
      %v2449 = vld [vmem:[#allocation2 + $0x8b8] sm:$0xff]
      %v2450 = vld [vmem:[#allocation2 + $0x8c0] sm:$0xff]
      %v2451 = vld [vmem:[#allocation2 + $0x8c8] sm:$0xff]
      %v2452 = vld [vmem:[#allocation2 + $0x8d0] sm:$0xff]
      %v2453 = vld [vmem:[#allocation2 + $0x8d8] sm:$0xff]
      %v2454 = vld [vmem:[#allocation2 + $0x8e0] sm:$0xff]
      %v2455 = vld [vmem:[#allocation2 + $0x8e8] sm:$0xff]
      %v2456 = vld [vmem:[#allocation2 + $0x8f0] sm:$0xff]
      %v2457 = vld [vmem:[#allocation2 + $0x8f8] sm:$0xff]
      %v2458 = vld [vmem:[%s1] sm:$0xff]
      %v2459 = vld [vmem:[%s1 + $0x8] sm:$0xff]
      %v2460 = vld [vmem:[%s1 + $0x10] sm:$0xff]
      %v2461 = vld [vmem:[%s1 + $0x18] sm:$0xff]
      %v2462 = vld [vmem:[%s1 + $0x20] sm:$0xff]
      %v2463 = vld [vmem:[%s1 + $0x28] sm:$0xff]
      %v2464 = vld [vmem:[%s1 + $0x30] sm:$0xff]
      %v2465 = vld [vmem:[%s1 + $0x38] sm:$0xff]
      %v2466 = vld [vmem:[%s1 + $0x40] sm:$0xff]
      %v2467 = vld [vmem:[%s1 + $0x48] sm:$0xff]
      %v2468 = vld [vmem:[%s1 + $0x50] sm:$0xff]
      %v2469 = vld [vmem:[%s1 + $0x58] sm:$0xff]
      %v2470 = vld [vmem:[%s1 + $0x60] sm:$0xff]
      %v2471 = vld [vmem:[%s1 + $0x68] sm:$0xff]
      %v2472 = vld [vmem:[%s1 + $0x70] sm:$0xff]
      %v2473 = vld [vmem:[%s1 + $0x78] sm:$0xff]
      %v2474 = vld [vmem:[%s1 + $0x80] sm:$0xff]
      %v2475 = vld [vmem:[%s1 + $0x88] sm:$0xff]
      %v2476 = vld [vmem:[%s1 + $0x90] sm:$0xff]
      %v2477 = vld [vmem:[%s1 + $0x98] sm:$0xff]
      %v2478 = vld [vmem:[%s1 + $0xa0] sm:$0xff]
      %v2479 = vld [vmem:[%s1 + $0xa8] sm:$0xff]
      %v2480 = vld [vmem:[%s1 + $0xb0] sm:$0xff]
      %v2481 = vld [vmem:[%s1 + $0xb8] sm:$0xff]
      %v2482 = vld [vmem:[%s1 + $0xc0] sm:$0xff]
      %v2483 = vld [vmem:[%s1 + $0xc8] sm:$0xff]
      %v2484 = vld [vmem:[%s1 + $0xd0] sm:$0xff]
      %v2485 = vld [vmem:[%s1 + $0xd8] sm:$0xff]
      %v2486 = vld [vmem:[%s1 + $0xe0] sm:$0xff]
      %v2487 = vld [vmem:[%s1 + $0xe8] sm:$0xff]
      %v2488 = vld [vmem:[%s1 + $0xf0] sm:$0xff]
      %v2489 = vld [vmem:[%s1 + $0xf8] sm:$0xff]
      %v2490 = vld [vmem:[%s1 + $0x100] sm:$0xff]
      %v2491 = vld [vmem:[%s1 + $0x108] sm:$0xff]
      %v2492 = vld [vmem:[%s1 + $0x110] sm:$0xff]
      %v2493 = vld [vmem:[%s1 + $0x118] sm:$0xff]
      %v2494 = vld [vmem:[%s1 + $0x120] sm:$0xff]
      %v2495 = vld [vmem:[%s1 + $0x128] sm:$0xff]
      %v2496 = vld [vmem:[%s1 + $0x130] sm:$0xff]
      %v2497 = vld [vmem:[%s1 + $0x138] sm:$0xff]
      %v2498 = vld [vmem:[%s1 + $0x140] sm:$0xff]
      %v2499 = vld [vmem:[%s1 + $0x148] sm:$0xff]
      %v2500 = vld [vmem:[%s1 + $0x150] sm:$0xff]
      %v2501 = vld [vmem:[%s1 + $0x158] sm:$0xff]
      %v2502 = vld [vmem:[%s1 + $0x160] sm:$0xff]
      %v2503 = vld [vmem:[%s1 + $0x168] sm:$0xff]
      %v2504 = vld [vmem:[%s1 + $0x170] sm:$0xff]
      %v2505 = vld [vmem:[%s1 + $0x178] sm:$0xff]
      %v2506 = vld [vmem:[%s1 + $0x180] sm:$0xff]
      %v2507 = vld [vmem:[%s1 + $0x188] sm:$0xff]
      %v2508 = vld [vmem:[%s1 + $0x190] sm:$0xff]
      %v2509 = vld [vmem:[%s1 + $0x198] sm:$0xff]
      %v2510 = vld [vmem:[%s1 + $0x1a0] sm:$0xff]
      %v2511 = vld [vmem:[%s1 + $0x1a8] sm:$0xff]
      %v2512 = vld [vmem:[%s1 + $0x1b0] sm:$0xff]
      %v2513 = vld [vmem:[%s1 + $0x1b8] sm:$0xff]
      %v2514 = vld [vmem:[%s1 + $0x1c0] sm:$0xff]
      %v2515 = vld [vmem:[%s1 + $0x1c8] sm:$0xff]
      %v2516 = vld [vmem:[%s1 + $0x1d0] sm:$0xff]
      %v2517 = vld [vmem:[%s1 + $0x1d8] sm:$0xff]
      %v2518 = vld [vmem:[%s1 + $0x1e0] sm:$0xff]
      %v2519 = vld [vmem:[%s1 + $0x1e8] sm:$0xff]
      %v2520 = vld [vmem:[%s1 + $0x1f0] sm:$0xff]
      %v2521 = vld [vmem:[%s1 + $0x1f8] sm:$0xff]
      %v2522 = vld [vmem:[%s1 + $0x200] sm:$0xff]
      %v2523 = vld [vmem:[%s1 + $0x208] sm:$0xff]
      %v2524 = vld [vmem:[%s1 + $0x210] sm:$0xff]
      %v2525 = vld [vmem:[%s1 + $0x218] sm:$0xff]
      %v2526 = vld [vmem:[%s1 + $0x220] sm:$0xff]
      %v2527 = vld [vmem:[%s1 + $0x228] sm:$0xff]
      %v2528 = vld [vmem:[%s1 + $0x230] sm:$0xff]
      %v2529 = vld [vmem:[%s1 + $0x238] sm:$0xff]
      %v2530 = vld [vmem:[%s1 + $0x240] sm:$0xff]
      %v2531 = vld [vmem:[%s1 + $0x248] sm:$0xff]
      %v2532 = vld [vmem:[%s1 + $0x250] sm:$0xff]
      %v2533 = vld [vmem:[%s1 + $0x258] sm:$0xff]
      %v2534 = vld [vmem:[%s1 + $0x260] sm:$0xff]
      %v2535 = vld [vmem:[%s1 + $0x268] sm:$0xff]
      %v2536 = vld [vmem:[%s1 + $0x270] sm:$0xff]
      %v2537 = vld [vmem:[%s1 + $0x278] sm:$0xff]
      %v2538 = vld [vmem:[%s1 + $0x280] sm:$0xff]
      %v2539 = vld [vmem:[%s1 + $0x288] sm:$0xff]
      %v2540 = vld [vmem:[%s1 + $0x290] sm:$0xff]
      %v2541 = vld [vmem:[%s1 + $0x298] sm:$0xff]
      %v2542 = vld [vmem:[%s1 + $0x2a0] sm:$0xff]
      %v2543 = vld [vmem:[%s1 + $0x2a8] sm:$0xff]
      %v2544 = vld [vmem:[%s1 + $0x2b0] sm:$0xff]
      %v2545 = vld [vmem:[%s1 + $0x2b8] sm:$0xff]
      %v2546 = vld [vmem:[%s1 + $0x2c0] sm:$0xff]
      %v2547 = vld [vmem:[%s1 + $0x2c8] sm:$0xff]
      %v2548 = vld [vmem:[%s1 + $0x2d0] sm:$0xff]
      %v2549 = vld [vmem:[%s1 + $0x2d8] sm:$0xff]
      %v2550 = vld [vmem:[%s1 + $0x2e0] sm:$0xff]
      %v2551 = vld [vmem:[%s1 + $0x2e8] sm:$0xff]
      %v2552 = vld [vmem:[%s1 + $0x2f0] sm:$0xff]
      %v2553 = vld [vmem:[%s1 + $0x2f8] sm:$0xff]
      %v2554 = vld [vmem:[%s1 + $0x300] sm:$0xff]
      %v2555 = vld [vmem:[%s1 + $0x308] sm:$0xff]
      %v2556 = vld [vmem:[%s1 + $0x310] sm:$0xff]
      %v2557 = vld [vmem:[%s1 + $0x318] sm:$0xff]
      %v2558 = vld [vmem:[%s1 + $0x320] sm:$0xff]
      %v2559 = vld [vmem:[%s1 + $0x328] sm:$0xff]
      %v2560 = vld [vmem:[%s1 + $0x330] sm:$0xff]
      %v2561 = vld [vmem:[%s1 + $0x338] sm:$0xff]
      %v2562 = vld [vmem:[%s1 + $0x340] sm:$0xff]
      %v2563 = vld [vmem:[%s1 + $0x348] sm:$0xff]
      %v2564 = vld [vmem:[%s1 + $0x350] sm:$0xff]
      %v2565 = vld [vmem:[%s1 + $0x358] sm:$0xff]
      %v2566 = vld [vmem:[%s1 + $0x360] sm:$0xff]
      %v2567 = vld [vmem:[%s1 + $0x368] sm:$0xff]
      %v2568 = vld [vmem:[%s1 + $0x370] sm:$0xff]
      %v2569 = vld [vmem:[%s1 + $0x378] sm:$0xff]
      %v2570 = vld [vmem:[%s1 + $0x380] sm:$0xff]
      %v2571 = vld [vmem:[%s1 + $0x388] sm:$0xff]
      %v2572 = vld [vmem:[%s1 + $0x390] sm:$0xff]
      %v2573 = vld [vmem:[%s1 + $0x398] sm:$0xff]
      %v2574 = vld [vmem:[%s1 + $0x3a0] sm:$0xff]
      %v2575 = vld [vmem:[%s1 + $0x3a8] sm:$0xff]
      %v2576 = vld [vmem:[%s1 + $0x3b0] sm:$0xff]
      %v2577 = vld [vmem:[%s1 + $0x3b8] sm:$0xff]
      %v2578 = vld [vmem:[%s1 + $0x3c0] sm:$0xff]
      %v2579 = vld [vmem:[%s1 + $0x3c8] sm:$0xff]
      %v2580 = vld [vmem:[%s1 + $0x3d0] sm:$0xff]
      %v2581 = vld [vmem:[%s1 + $0x3d8] sm:$0xff]
      %v2582 = vld [vmem:[%s1 + $0x3e0] sm:$0xff]
      %v2583 = vld [vmem:[%s1 + $0x3e8] sm:$0xff]
      %v2584 = vld [vmem:[%s1 + $0x3f0] sm:$0xff]
      %v2585 = vld [vmem:[%s1 + $0x3f8] sm:$0xff]
      %v2586 = vld [vmem:[%s1 + $0x400] sm:$0xff]
      %v2587 = vld [vmem:[%s1 + $0x408] sm:$0xff]
      %v2588 = vld [vmem:[%s1 + $0x410] sm:$0xff]
      %v2589 = vld [vmem:[%s1 + $0x418] sm:$0xff]
      %v2590 = vld [vmem:[%s1 + $0x420] sm:$0xff]
      %v2591 = vld [vmem:[%s1 + $0x428] sm:$0xff]
      %v2592 = vld [vmem:[%s1 + $0x430] sm:$0xff]
      %v2593 = vld [vmem:[%s1 + $0x438] sm:$0xff]
      %v2594 = vld [vmem:[%s1 + $0x440] sm:$0xff]
      %v2595 = vld [vmem:[%s1 + $0x448] sm:$0xff]
      %v2596 = vld [vmem:[%s1 + $0x450] sm:$0xff]
      %v2597 = vld [vmem:[%s1 + $0x458] sm:$0xff]
      %v2598 = vld [vmem:[%s1 + $0x460] sm:$0xff]
      %v2599 = vld [vmem:[%s1 + $0x468] sm:$0xff]
      %v2600 = vld [vmem:[%s1 + $0x470] sm:$0xff]
      %v2601 = vld [vmem:[%s1 + $0x478] sm:$0xff]
      %2602 = vmatprep.subr.mxu0 0.0
      %2603 = vmatpush1.msra.mxu0 %v2473
      %2604 = vmatprep.subr.mxu0 0.0
      %2605 = vmatpush1.msra.mxu0 %v2472
      %2606 = vmatprep.subr.mxu0 0.0
      %2607 = vmatpush1.msra.mxu0 %v2471
      %2608 = vmatprep.subr.mxu0 0.0
      %2609 = vmatpush1.msra.mxu0 %v2470
      %2610 = vmatprep.subr.mxu0 0.0
      %2611 = vmatpush1.msra.mxu0 %v2469
      %2612 = vmatprep.subr.mxu0 0.0
      %2613 = vmatpush1.msra.mxu0 %v2468
      %2614 = vmatprep.subr.mxu0 0.0
      %2615 = vmatpush1.msra.mxu0 %v2467
      %2616 = vmatprep.subr.mxu0 0.0
      %2617 = vmatpush1.msra.mxu0 %v2466
      %2618 = vmatprep.subr.mxu0 0.0
      %2619 = vmatpush1.msra.mxu0 %v2465
      %2620 = vmatprep.subr.mxu0 0.0
      %2621 = vmatpush1.msra.mxu0 %v2464
      %2622 = vmatprep.subr.mxu0 0.0
      %2623 = vmatpush1.msra.mxu0 %v2463
      %2624 = vmatprep.subr.mxu0 0.0
      %2625 = vmatpush1.msra.mxu0 %v2462
      %2626 = vmatprep.subr.mxu0 0.0
      %2627 = vmatpush1.msra.mxu0 %v2461
      %2628 = vmatprep.subr.mxu0 0.0
      %2629 = vmatpush1.msra.mxu0 %v2460
      %2630 = vmatprep.subr.mxu0 0.0
      %2631 = vmatpush1.msra.mxu0 %v2459
      %2632 = vmatprep.subr.mxu0 0.0
      %2633 = vmatpush1.msra.mxu0 %v2458
      %2634 = vmatprep.subr.mxu0 0.0
      %2635 = vmatpush2.msra.mxu0 %v2489
      %2636 = vmatprep.subr.mxu0 0.0
      %2637 = vmatpush2.msra.mxu0 %v2488
      %2638 = vmatprep.subr.mxu0 0.0
      %2639 = vmatpush2.msra.mxu0 %v2487
      %2640 = vmatprep.subr.mxu0 0.0
      %2641 = vmatpush2.msra.mxu0 %v2486
      %2642 = vmatprep.subr.mxu0 0.0
      %2643 = vmatpush2.msra.mxu0 %v2485
      %2644 = vmatprep.subr.mxu0 0.0
      %2645 = vmatpush2.msra.mxu0 %v2484
      %2646 = vmatprep.subr.mxu0 0.0
      %2647 = vmatpush2.msra.mxu0 %v2483
      %2648 = vmatprep.subr.mxu0 0.0
      %2649 = vmatpush2.msra.mxu0 %v2482
      %2650 = vmatprep.subr.mxu0 0.0
      %2651 = vmatpush2.msra.mxu0 %v2481
      %2652 = vmatprep.subr.mxu0 0.0
      %2653 = vmatpush2.msra.mxu0 %v2480
      %2654 = vmatprep.subr.mxu0 0.0
      %2655 = vmatpush2.msra.mxu0 %v2479
      %2656 = vmatprep.subr.mxu0 0.0
      %2657 = vmatpush2.msra.mxu0 %v2478
      %2658 = vmatprep.subr.mxu0 0.0
      %2659 = vmatpush2.msra.mxu0 %v2477
      %2660 = vmatprep.subr.mxu0 0.0
      %2661 = vmatpush2.msra.mxu0 %v2476
      %2662 = vmatprep.subr.mxu0 0.0
      %2663 = vmatpush2.msra.mxu0 %v2475
      %2664 = vmatprep.subr.mxu0 0.0
      %2665 = vmatpush2.msra.mxu0 %v2474
      %2666 = vmatprep.mubr.f32.mxu0 %v2171
      %2667 = vmatmul.mubr.f32.gmra.mxu0 %v2170
      %v2668 = vpop.f32.mrf.mxu0
      %v2669 = vadd.f32 0.0, %v2668
      %v2670 = vpop.f32.mrf.mxu0
      %2671 = vmatprep.mubr.f32.mxu0 %v2180
      %2672 = vmatmul.mubr.f32.gmra.mxu0 %v2179
      %v2673 = vpop.f32.mrf.mxu0
      %v2674 = vadd.f32 0.0, %v2673
      %v2675 = vpop.f32.mrf.mxu0
      %2676 = vmatprep.mubr.f32.mxu0 %v2189
      %2677 = vmatmul.mubr.f32.gmra.mxu0 %v2188
      %v2678 = vpop.f32.mrf.mxu0
      %v2679 = vadd.f32 0.0, %v2678
      %v2680 = vpop.f32.mrf.mxu0
      %2681 = vmatprep.mubr.f32.mxu0 %v2198
      %2682 = vmatmul.mubr.f32.gmra.mxu0 %v2197
      %v2683 = vpop.f32.mrf.mxu0
      %v2684 = vadd.f32 0.0, %v2683
      %v2685 = vpop.f32.mrf.mxu0
      %2686 = vmatprep.mubr.f32.mxu0 %v2207
      %2687 = vmatmul.mubr.f32.gmra.mxu0 %v2206
      %v2688 = vpop.f32.mrf.mxu0
      %v2689 = vadd.f32 0.0, %v2688
      %v2690 = vpop.f32.mrf.mxu0
      %2691 = vmatprep.mubr.f32.mxu0 %v2216
      %2692 = vmatmul.mubr.f32.gmra.mxu0 %v2215
      %v2693 = vpop.f32.mrf.mxu0
      %v2694 = vadd.f32 0.0, %v2693
      %v2695 = vpop.f32.mrf.mxu0
      %2696 = vmatprep.mubr.f32.mxu0 %v2225
      %2697 = vmatmul.mubr.f32.gmra.mxu0 %v2224
      %v2698 = vpop.f32.mrf.mxu0
      %v2699 = vadd.f32 0.0, %v2698
      %v2700 = vpop.f32.mrf.mxu0
      %2701 = vmatprep.mubr.f32.mxu0 %v2234
      %2702 = vmatmul.mubr.f32.gmra.mxu0 %v2233
      %v2703 = vpop.f32.mrf.mxu0
      %v2704 = vadd.f32 0.0, %v2703
      %v2705 = vpop.f32.mrf.mxu0
      %2706 = vmatprep.mubr.f32.mxu0 %v2243
      %2707 = vmatmul.mubr.f32.gmra.mxu0 %v2242
      %v2708 = vpop.f32.mrf.mxu0
      %v2709 = vadd.f32 0.0, %v2708
      %v2710 = vpop.f32.mrf.mxu0
      %2711 = vmatprep.mubr.f32.mxu0 %v2252
      %2712 = vmatmul.mubr.f32.gmra.mxu0 %v2251
      %v2713 = vpop.f32.mrf.mxu0
      %v2714 = vadd.f32 0.0, %v2713
      %v2715 = vpop.f32.mrf.mxu0
      %2716 = vmatprep.mubr.f32.mxu0 %v2261
      %2717 = vmatmul.mubr.f32.gmra.mxu0 %v2260
      %v2718 = vpop.f32.mrf.mxu0
      %v2719 = vadd.f32 0.0, %v2718
      %v2720 = vpop.f32.mrf.mxu0
      %2721 = vmatprep.mubr.f32.mxu0 %v2270
      %2722 = vmatmul.mubr.f32.gmra.mxu0 %v2269
      %v2723 = vpop.f32.mrf.mxu0
      %v2724 = vadd.f32 0.0, %v2723
      %v2725 = vpop.f32.mrf.mxu0
      %2726 = vmatprep.mubr.f32.mxu0 %v2279
      %2727 = vmatmul.mubr.f32.gmra.mxu0 %v2278
      %v2728 = vpop.f32.mrf.mxu0
      %v2729 = vadd.f32 0.0, %v2728
      %v2730 = vpop.f32.mrf.mxu0
      %2731 = vmatprep.mubr.f32.mxu0 %v2288
      %2732 = vmatmul.mubr.f32.gmra.mxu0 %v2287
      %v2733 = vpop.f32.mrf.mxu0
      %v2734 = vadd.f32 0.0, %v2733
      %v2735 = vpop.f32.mrf.mxu0
      %2736 = vmatprep.mubr.f32.mxu0 %v2297
      %2737 = vmatmul.mubr.f32.gmra.mxu0 %v2296
      %v2738 = vpop.f32.mrf.mxu0
      %v2739 = vadd.f32 0.0, %v2738
      %v2740 = vpop.f32.mrf.mxu0
      %2741 = vmatprep.mubr.f32.mxu0 %v2306
      %2742 = vmatmul.mubr.f32.gmra.mxu0 %v2305
      %v2743 = vpop.f32.mrf.mxu0
      %v2744 = vadd.f32 0.0, %v2743
      %v2745 = vpop.f32.mrf.mxu0
      %2746 = vmatprep.mubr.f32.mxu0 %v2315
      %2747 = vmatmul.mubr.f32.gmra.mxu0 %v2314
      %v2748 = vpop.f32.mrf.mxu0
      %v2749 = vadd.f32 0.0, %v2748
      %v2750 = vpop.f32.mrf.mxu0
      %2751 = vmatprep.mubr.f32.mxu0 %v2324
      %2752 = vmatmul.mubr.f32.gmra.mxu0 %v2323
      %v2753 = vpop.f32.mrf.mxu0
      %v2754 = vadd.f32 0.0, %v2753
      %v2755 = vpop.f32.mrf.mxu0
      %2756 = vmatprep.mubr.f32.mxu0 %v2333
      %2757 = vmatmul.mubr.f32.gmra.mxu0 %v2332
      %v2758 = vpop.f32.mrf.mxu0
      %v2759 = vadd.f32 0.0, %v2758
      %v2760 = vpop.f32.mrf.mxu0
      %2761 = vmatprep.mubr.f32.mxu0 %v2342
      %2762 = vmatmul.mubr.f32.gmra.mxu0 %v2341
      %v2763 = vpop.f32.mrf.mxu0
      %v2764 = vadd.f32 0.0, %v2763
      %v2765 = vpop.f32.mrf.mxu0
      %2766 = vmatprep.mubr.f32.mxu0 %v2351
      %2767 = vmatmul.mubr.f32.gmra.mxu0 %v2350
      %v2768 = vpop.f32.mrf.mxu0
      %v2769 = vadd.f32 0.0, %v2768
      %v2770 = vpop.f32.mrf.mxu0
      %2771 = vmatprep.mubr.f32.mxu0 %v2360
      %2772 = vmatmul.mubr.f32.gmra.mxu0 %v2359
      %v2773 = vpop.f32.mrf.mxu0
      %v2774 = vadd.f32 0.0, %v2773
      %v2775 = vpop.f32.mrf.mxu0
      %2776 = vmatprep.mubr.f32.mxu0 %v2369
      %2777 = vmatmul.mubr.f32.gmra.mxu0 %v2368
      %v2778 = vpop.f32.mrf.mxu0
      %v2779 = vadd.f32 0.0, %v2778
      %v2780 = vpop.f32.mrf.mxu0
      %2781 = vmatprep.mubr.f32.mxu0 %v2378
      %2782 = vmatmul.mubr.f32.gmra.mxu0 %v2377
      %v2783 = vpop.f32.mrf.mxu0
      %v2784 = vadd.f32 0.0, %v2783
      %v2785 = vpop.f32.mrf.mxu0
      %2786 = vmatprep.mubr.f32.mxu0 %v2387
      %2787 = vmatmul.mubr.f32.gmra.mxu0 %v2386
      %v2788 = vpop.f32.mrf.mxu0
      %v2789 = vadd.f32 0.0, %v2788
      %v2790 = vpop.f32.mrf.mxu0
      %2791 = vmatprep.mubr.f32.mxu0 %v2396
      %2792 = vmatmul.mubr.f32.gmra.mxu0 %v2395
      %v2793 = vpop.f32.mrf.mxu0
      %v2794 = vadd.f32 0.0, %v2793
      %v2795 = vpop.f32.mrf.mxu0
      %2796 = vmatprep.mubr.f32.mxu0 %v2405
      %2797 = vmatmul.mubr.f32.gmra.mxu0 %v2404
      %v2798 = vpop.f32.mrf.mxu0
      %v2799 = vadd.f32 0.0, %v2798
      %v2800 = vpop.f32.mrf.mxu0
      %2801 = vmatprep.mubr.f32.mxu0 %v2414
      %2802 = vmatmul.mubr.f32.gmra.mxu0 %v2413
      %v2803 = vpop.f32.mrf.mxu0
      %v2804 = vadd.f32 0.0, %v2803
      %v2805 = vpop.f32.mrf.mxu0
      %2806 = vmatprep.mubr.f32.mxu0 %v2423
      %2807 = vmatmul.mubr.f32.gmra.mxu0 %v2422
      %v2808 = vpop.f32.mrf.mxu0
      %v2809 = vadd.f32 0.0, %v2808
      %v2810 = vpop.f32.mrf.mxu0
      %2811 = vmatprep.mubr.f32.mxu0 %v2432
      %2812 = vmatmul.mubr.f32.gmra.mxu0 %v2431
      %v2813 = vpop.f32.mrf.mxu0
      %v2814 = vadd.f32 0.0, %v2813
      %v2815 = vpop.f32.mrf.mxu0
      %2816 = vmatprep.mubr.f32.mxu0 %v2441
      %2817 = vmatmul.mubr.f32.gmra.mxu0 %v2440
      %v2818 = vpop.f32.mrf.mxu0
      %v2819 = vadd.f32 0.0, %v2818
      %v2820 = vpop.f32.mrf.mxu0
      %2821 = vmatprep.mubr.f32.mxu0 %v2450
      %2822 = vmatmul.mubr.f32.gmra.mxu0 %v2449
      %v2823 = vpop.f32.mrf.mxu0
      %v2824 = vadd.f32 0.0, %v2823
      %v2825 = vpop.f32.mrf.mxu0
      %2826 = vdwg.mxu0
      %2827 = vmatprep.subr.mxu0 0.0
      %2828 = vmatpush1.msra.mxu0 %v2505
      %2829 = vmatprep.subr.mxu0 0.0
      %2830 = vmatpush1.msra.mxu0 %v2504
      %2831 = vmatprep.subr.mxu0 0.0
      %2832 = vmatpush1.msra.mxu0 %v2503
      %2833 = vmatprep.subr.mxu0 0.0
      %2834 = vmatpush1.msra.mxu0 %v2502
      %2835 = vmatprep.subr.mxu0 0.0
      %2836 = vmatpush1.msra.mxu0 %v2501
      %2837 = vmatprep.subr.mxu0 0.0
      %2838 = vmatpush1.msra.mxu0 %v2500
      %2839 = vmatprep.subr.mxu0 0.0
      %2840 = vmatpush1.msra.mxu0 %v2499
      %2841 = vmatprep.subr.mxu0 0.0
      %2842 = vmatpush1.msra.mxu0 %v2498
      %2843 = vmatprep.subr.mxu0 0.0
      %2844 = vmatpush1.msra.mxu0 %v2497
      %2845 = vmatprep.subr.mxu0 0.0
      %2846 = vmatpush1.msra.mxu0 %v2496
      %2847 = vmatprep.subr.mxu0 0.0
      %2848 = vmatpush1.msra.mxu0 %v2495
      %2849 = vmatprep.subr.mxu0 0.0
      %2850 = vmatpush1.msra.mxu0 %v2494
      %2851 = vmatprep.subr.mxu0 0.0
      %2852 = vmatpush1.msra.mxu0 %v2493
      %2853 = vmatprep.subr.mxu0 0.0
      %2854 = vmatpush1.msra.mxu0 %v2492
      %2855 = vmatprep.subr.mxu0 0.0
      %2856 = vmatpush1.msra.mxu0 %v2491
      %2857 = vmatprep.subr.mxu0 0.0
      %2858 = vmatpush1.msra.mxu0 %v2490
      %2859 = vmatprep.subr.mxu0 0.0
      %2860 = vmatpush2.msra.mxu0 %v2521
      %2861 = vmatprep.subr.mxu0 0.0
      %2862 = vmatpush2.msra.mxu0 %v2520
      %2863 = vmatprep.subr.mxu0 0.0
      %2864 = vmatpush2.msra.mxu0 %v2519
      %2865 = vmatprep.subr.mxu0 0.0
      %2866 = vmatpush2.msra.mxu0 %v2518
      %2867 = vmatprep.subr.mxu0 0.0
      %2868 = vmatpush2.msra.mxu0 %v2517
      %2869 = vmatprep.subr.mxu0 0.0
      %2870 = vmatpush2.msra.mxu0 %v2516
      %2871 = vmatprep.subr.mxu0 0.0
      %2872 = vmatpush2.msra.mxu0 %v2515
      %2873 = vmatprep.subr.mxu0 0.0
      %2874 = vmatpush2.msra.mxu0 %v2514
      %2875 = vmatprep.subr.mxu0 0.0
      %2876 = vmatpush2.msra.mxu0 %v2513
      %2877 = vmatprep.subr.mxu0 0.0
      %2878 = vmatpush2.msra.mxu0 %v2512
      %2879 = vmatprep.subr.mxu0 0.0
      %2880 = vmatpush2.msra.mxu0 %v2511
      %2881 = vmatprep.subr.mxu0 0.0
      %2882 = vmatpush2.msra.mxu0 %v2510
      %2883 = vmatprep.subr.mxu0 0.0
      %2884 = vmatpush2.msra.mxu0 %v2509
      %2885 = vmatprep.subr.mxu0 0.0
      %2886 = vmatpush2.msra.mxu0 %v2508
      %2887 = vmatprep.subr.mxu0 0.0
      %2888 = vmatpush2.msra.mxu0 %v2507
      %2889 = vmatprep.subr.mxu0 0.0
      %2890 = vmatpush2.msra.mxu0 %v2506
      %2891 = vmatprep.mubr.f32.mxu0 %v2173
      %2892 = vmatmul.mubr.f32.gmra.mxu0 %v2172
      %v2893 = vpop.f32.mrf.mxu0
      %v2894 = vadd.f32 %v2669, %v2893
      %v2895 = vpop.f32.mrf.mxu0
      %2896 = vmatprep.mubr.f32.mxu0 %v2182
      %2897 = vmatmul.mubr.f32.gmra.mxu0 %v2181
      %v2898 = vpop.f32.mrf.mxu0
      %v2899 = vadd.f32 %v2674, %v2898
      %v2900 = vpop.f32.mrf.mxu0
      %2901 = vmatprep.mubr.f32.mxu0 %v2191
      %2902 = vmatmul.mubr.f32.gmra.mxu0 %v2190
      %v2903 = vpop.f32.mrf.mxu0
      %v2904 = vadd.f32 %v2679, %v2903
      %v2905 = vpop.f32.mrf.mxu0
      %2906 = vmatprep.mubr.f32.mxu0 %v2200
      %2907 = vmatmul.mubr.f32.gmra.mxu0 %v2199
      %v2908 = vpop.f32.mrf.mxu0
      %v2909 = vadd.f32 %v2684, %v2908
      %v2910 = vpop.f32.mrf.mxu0
      %2911 = vmatprep.mubr.f32.mxu0 %v2209
      %2912 = vmatmul.mubr.f32.gmra.mxu0 %v2208
      %v2913 = vpop.f32.mrf.mxu0
      %v2914 = vadd.f32 %v2689, %v2913
      %v2915 = vpop.f32.mrf.mxu0
      %2916 = vmatprep.mubr.f32.mxu0 %v2218
      %2917 = vmatmul.mubr.f32.gmra.mxu0 %v2217
      %v2918 = vpop.f32.mrf.mxu0
      %v2919 = vadd.f32 %v2694, %v2918
      %v2920 = vpop.f32.mrf.mxu0
      %2921 = vmatprep.mubr.f32.mxu0 %v2227
      %2922 = vmatmul.mubr.f32.gmra.mxu0 %v2226
      %v2923 = vpop.f32.mrf.mxu0
      %v2924 = vadd.f32 %v2699, %v2923
      %v2925 = vpop.f32.mrf.mxu0
      %2926 = vmatprep.mubr.f32.mxu0 %v2236
      %2927 = vmatmul.mubr.f32.gmra.mxu0 %v2235
      %v2928 = vpop.f32.mrf.mxu0
      %v2929 = vadd.f32 %v2704, %v2928
      %v2930 = vpop.f32.mrf.mxu0
      %2931 = vmatprep.mubr.f32.mxu0 %v2245
      %2932 = vmatmul.mubr.f32.gmra.mxu0 %v2244
      %v2933 = vpop.f32.mrf.mxu0
      %v2934 = vadd.f32 %v2709, %v2933
      %v2935 = vpop.f32.mrf.mxu0
      %2936 = vmatprep.mubr.f32.mxu0 %v2254
      %2937 = vmatmul.mubr.f32.gmra.mxu0 %v2253
      %v2938 = vpop.f32.mrf.mxu0
      %v2939 = vadd.f32 %v2714, %v2938
      %v2940 = vpop.f32.mrf.mxu0
      %2941 = vmatprep.mubr.f32.mxu0 %v2263
      %2942 = vmatmul.mubr.f32.gmra.mxu0 %v2262
      %v2943 = vpop.f32.mrf.mxu0
      %v2944 = vadd.f32 %v2719, %v2943
      %v2945 = vpop.f32.mrf.mxu0
      %2946 = vmatprep.mubr.f32.mxu0 %v2272
      %2947 = vmatmul.mubr.f32.gmra.mxu0 %v2271
      %v2948 = vpop.f32.mrf.mxu0
      %v2949 = vadd.f32 %v2724, %v2948
      %v2950 = vpop.f32.mrf.mxu0
      %2951 = vmatprep.mubr.f32.mxu0 %v2281
      %2952 = vmatmul.mubr.f32.gmra.mxu0 %v2280
      %v2953 = vpop.f32.mrf.mxu0
      %v2954 = vadd.f32 %v2729, %v2953
      %v2955 = vpop.f32.mrf.mxu0
      %2956 = vmatprep.mubr.f32.mxu0 %v2290
      %2957 = vmatmul.mubr.f32.gmra.mxu0 %v2289
      %v2958 = vpop.f32.mrf.mxu0
      %v2959 = vadd.f32 %v2734, %v2958
      %v2960 = vpop.f32.mrf.mxu0
      %2961 = vmatprep.mubr.f32.mxu0 %v2299
      %2962 = vmatmul.mubr.f32.gmra.mxu0 %v2298
      %v2963 = vpop.f32.mrf.mxu0
      %v2964 = vadd.f32 %v2739, %v2963
      %v2965 = vpop.f32.mrf.mxu0
      %2966 = vmatprep.mubr.f32.mxu0 %v2308
      %2967 = vmatmul.mubr.f32.gmra.mxu0 %v2307
      %v2968 = vpop.f32.mrf.mxu0
      %v2969 = vadd.f32 %v2744, %v2968
      %v2970 = vpop.f32.mrf.mxu0
      %2971 = vmatprep.mubr.f32.mxu0 %v2317
      %2972 = vmatmul.mubr.f32.gmra.mxu0 %v2316
      %v2973 = vpop.f32.mrf.mxu0
      %v2974 = vadd.f32 %v2749, %v2973
      %v2975 = vpop.f32.mrf.mxu0
      %2976 = vmatprep.mubr.f32.mxu0 %v2326
      %2977 = vmatmul.mubr.f32.gmra.mxu0 %v2325
      %v2978 = vpop.f32.mrf.mxu0
      %v2979 = vadd.f32 %v2754, %v2978
      %v2980 = vpop.f32.mrf.mxu0
      %2981 = vmatprep.mubr.f32.mxu0 %v2335
      %2982 = vmatmul.mubr.f32.gmra.mxu0 %v2334
      %v2983 = vpop.f32.mrf.mxu0
      %v2984 = vadd.f32 %v2759, %v2983
      %v2985 = vpop.f32.mrf.mxu0
      %2986 = vmatprep.mubr.f32.mxu0 %v2344
      %2987 = vmatmul.mubr.f32.gmra.mxu0 %v2343
      %v2988 = vpop.f32.mrf.mxu0
      %v2989 = vadd.f32 %v2764, %v2988
      %v2990 = vpop.f32.mrf.mxu0
      %2991 = vmatprep.mubr.f32.mxu0 %v2353
      %2992 = vmatmul.mubr.f32.gmra.mxu0 %v2352
      %v2993 = vpop.f32.mrf.mxu0
      %v2994 = vadd.f32 %v2769, %v2993
      %v2995 = vpop.f32.mrf.mxu0
      %2996 = vmatprep.mubr.f32.mxu0 %v2362
      %2997 = vmatmul.mubr.f32.gmra.mxu0 %v2361
      %v2998 = vpop.f32.mrf.mxu0
      %v2999 = vadd.f32 %v2774, %v2998
      %v3000 = vpop.f32.mrf.mxu0
      %3001 = vmatprep.mubr.f32.mxu0 %v2371
      %3002 = vmatmul.mubr.f32.gmra.mxu0 %v2370
      %v3003 = vpop.f32.mrf.mxu0
      %v3004 = vadd.f32 %v2779, %v3003
      %v3005 = vpop.f32.mrf.mxu0
      %3006 = vmatprep.mubr.f32.mxu0 %v2380
      %3007 = vmatmul.mubr.f32.gmra.mxu0 %v2379
      %v3008 = vpop.f32.mrf.mxu0
      %v3009 = vadd.f32 %v2784, %v3008
      %v3010 = vpop.f32.mrf.mxu0
      %3011 = vmatprep.mubr.f32.mxu0 %v2389
      %3012 = vmatmul.mubr.f32.gmra.mxu0 %v2388
      %v3013 = vpop.f32.mrf.mxu0
      %v3014 = vadd.f32 %v2789, %v3013
      %v3015 = vpop.f32.mrf.mxu0
      %3016 = vmatprep.mubr.f32.mxu0 %v2398
      %3017 = vmatmul.mubr.f32.gmra.mxu0 %v2397
      %v3018 = vpop.f32.mrf.mxu0
      %v3019 = vadd.f32 %v2794, %v3018
      %v3020 = vpop.f32.mrf.mxu0
      %3021 = vmatprep.mubr.f32.mxu0 %v2407
      %3022 = vmatmul.mubr.f32.gmra.mxu0 %v2406
      %v3023 = vpop.f32.mrf.mxu0
      %v3024 = vadd.f32 %v2799, %v3023
      %v3025 = vpop.f32.mrf.mxu0
      %3026 = vmatprep.mubr.f32.mxu0 %v2416
      %3027 = vmatmul.mubr.f32.gmra.mxu0 %v2415
      %v3028 = vpop.f32.mrf.mxu0
      %v3029 = vadd.f32 %v2804, %v3028
      %v3030 = vpop.f32.mrf.mxu0
      %3031 = vmatprep.mubr.f32.mxu0 %v2425
      %3032 = vmatmul.mubr.f32.gmra.mxu0 %v2424
      %v3033 = vpop.f32.mrf.mxu0
      %v3034 = vadd.f32 %v2809, %v3033
      %v3035 = vpop.f32.mrf.mxu0
      %3036 = vmatprep.mubr.f32.mxu0 %v2434
      %3037 = vmatmul.mubr.f32.gmra.mxu0 %v2433
      %v3038 = vpop.f32.mrf.mxu0
      %v3039 = vadd.f32 %v2814, %v3038
      %v3040 = vpop.f32.mrf.mxu0
      %3041 = vmatprep.mubr.f32.mxu0 %v2443
      %3042 = vmatmul.mubr.f32.gmra.mxu0 %v2442
      %v3043 = vpop.f32.mrf.mxu0
      %v3044 = vadd.f32 %v2819, %v3043
      %v3045 = vpop.f32.mrf.mxu0
      %3046 = vmatprep.mubr.f32.mxu0 %v2452
      %3047 = vmatmul.mubr.f32.gmra.mxu0 %v2451
      %v3048 = vpop.f32.mrf.mxu0
      %v3049 = vadd.f32 %v2824, %v3048
      %v3050 = vpop.f32.mrf.mxu0
      %3051 = vdwg.mxu0
      %3052 = vmatprep.subr.mxu0 0.0
      %3053 = vmatpush1.msra.mxu0 %v2537
      %3054 = vmatprep.subr.mxu0 0.0
      %3055 = vmatpush1.msra.mxu0 %v2536
      %3056 = vmatprep.subr.mxu0 0.0
      %3057 = vmatpush1.msra.mxu0 %v2535
      %3058 = vmatprep.subr.mxu0 0.0
      %3059 = vmatpush1.msra.mxu0 %v2534
      %3060 = vmatprep.subr.mxu0 0.0
      %3061 = vmatpush1.msra.mxu0 %v2533
      %3062 = vmatprep.subr.mxu0 0.0
      %3063 = vmatpush1.msra.mxu0 %v2532
      %3064 = vmatprep.subr.mxu0 0.0
      %3065 = vmatpush1.msra.mxu0 %v2531
      %3066 = vmatprep.subr.mxu0 0.0
      %3067 = vmatpush1.msra.mxu0 %v2530
      %3068 = vmatprep.subr.mxu0 0.0
      %3069 = vmatpush1.msra.mxu0 %v2529
      %3070 = vmatprep.subr.mxu0 0.0
      %3071 = vmatpush1.msra.mxu0 %v2528
      %3072 = vmatprep.subr.mxu0 0.0
      %3073 = vmatpush1.msra.mxu0 %v2527
      %3074 = vmatprep.subr.mxu0 0.0
      %3075 = vmatpush1.msra.mxu0 %v2526
      %3076 = vmatprep.subr.mxu0 0.0
      %3077 = vmatpush1.msra.mxu0 %v2525
      %3078 = vmatprep.subr.mxu0 0.0
      %3079 = vmatpush1.msra.mxu0 %v2524
      %3080 = vmatprep.subr.mxu0 0.0
      %3081 = vmatpush1.msra.mxu0 %v2523
      %3082 = vmatprep.subr.mxu0 0.0
      %3083 = vmatpush1.msra.mxu0 %v2522
      %3084 = vmatprep.subr.mxu0 0.0
      %3085 = vmatpush2.msra.mxu0 %v2553
      %3086 = vmatprep.subr.mxu0 0.0
      %3087 = vmatpush2.msra.mxu0 %v2552
      %3088 = vmatprep.subr.mxu0 0.0
      %3089 = vmatpush2.msra.mxu0 %v2551
      %3090 = vmatprep.subr.mxu0 0.0
      %3091 = vmatpush2.msra.mxu0 %v2550
      %3092 = vmatprep.subr.mxu0 0.0
      %3093 = vmatpush2.msra.mxu0 %v2549
      %3094 = vmatprep.subr.mxu0 0.0
      %3095 = vmatpush2.msra.mxu0 %v2548
      %3096 = vmatprep.subr.mxu0 0.0
      %3097 = vmatpush2.msra.mxu0 %v2547
      %3098 = vmatprep.subr.mxu0 0.0
      %3099 = vmatpush2.msra.mxu0 %v2546
      %3100 = vmatprep.subr.mxu0 0.0
      %3101 = vmatpush2.msra.mxu0 %v2545
      %3102 = vmatprep.subr.mxu0 0.0
      %3103 = vmatpush2.msra.mxu0 %v2544
      %3104 = vmatprep.subr.mxu0 0.0
      %3105 = vmatpush2.msra.mxu0 %v2543
      %3106 = vmatprep.subr.mxu0 0.0
      %3107 = vmatpush2.msra.mxu0 %v2542
      %3108 = vmatprep.subr.mxu0 0.0
      %3109 = vmatpush2.msra.mxu0 %v2541
      %3110 = vmatprep.subr.mxu0 0.0
      %3111 = vmatpush2.msra.mxu0 %v2540
      %3112 = vmatprep.subr.mxu0 0.0
      %3113 = vmatpush2.msra.mxu0 %v2539
      %3114 = vmatprep.subr.mxu0 0.0
      %3115 = vmatpush2.msra.mxu0 %v2538
      %3116 = vmatprep.mubr.f32.mxu0 %v2175
      %3117 = vmatmul.mubr.f32.gmra.mxu0 %v2174
      %v3118 = vpop.f32.mrf.mxu0
      %v3119 = vadd.f32 %v2894, %v3118
      %v3120 = vpop.f32.mrf.mxu0
      %3121 = vmatprep.mubr.f32.mxu0 %v2184
      %3122 = vmatmul.mubr.f32.gmra.mxu0 %v2183
      %v3123 = vpop.f32.mrf.mxu0
      %v3124 = vadd.f32 %v2899, %v3123
      %v3125 = vpop.f32.mrf.mxu0
      %3126 = vmatprep.mubr.f32.mxu0 %v2193
      %3127 = vmatmul.mubr.f32.gmra.mxu0 %v2192
      %v3128 = vpop.f32.mrf.mxu0
      %v3129 = vadd.f32 %v2904, %v3128
      %v3130 = vpop.f32.mrf.mxu0
      %3131 = vmatprep.mubr.f32.mxu0 %v2202
      %3132 = vmatmul.mubr.f32.gmra.mxu0 %v2201
      %v3133 = vpop.f32.mrf.mxu0
      %v3134 = vadd.f32 %v2909, %v3133
      %v3135 = vpop.f32.mrf.mxu0
      %3136 = vmatprep.mubr.f32.mxu0 %v2211
      %3137 = vmatmul.mubr.f32.gmra.mxu0 %v2210
      %v3138 = vpop.f32.mrf.mxu0
      %v3139 = vadd.f32 %v2914, %v3138
      %v3140 = vpop.f32.mrf.mxu0
      %3141 = vmatprep.mubr.f32.mxu0 %v2220
      %3142 = vmatmul.mubr.f32.gmra.mxu0 %v2219
      %v3143 = vpop.f32.mrf.mxu0
      %v3144 = vadd.f32 %v2919, %v3143
      %v3145 = vpop.f32.mrf.mxu0
      %3146 = vmatprep.mubr.f32.mxu0 %v2229
      %3147 = vmatmul.mubr.f32.gmra.mxu0 %v2228
      %v3148 = vpop.f32.mrf.mxu0
      %v3149 = vadd.f32 %v2924, %v3148
      %v3150 = vpop.f32.mrf.mxu0
      %3151 = vmatprep.mubr.f32.mxu0 %v2238
      %3152 = vmatmul.mubr.f32.gmra.mxu0 %v2237
      %v3153 = vpop.f32.mrf.mxu0
      %v3154 = vadd.f32 %v2929, %v3153
      %v3155 = vpop.f32.mrf.mxu0
      %3156 = vmatprep.mubr.f32.mxu0 %v2247
      %3157 = vmatmul.mubr.f32.gmra.mxu0 %v2246
      %v3158 = vpop.f32.mrf.mxu0
      %v3159 = vadd.f32 %v2934, %v3158
      %v3160 = vpop.f32.mrf.mxu0
      %3161 = vmatprep.mubr.f32.mxu0 %v2256
      %3162 = vmatmul.mubr.f32.gmra.mxu0 %v2255
      %v3163 = vpop.f32.mrf.mxu0
      %v3164 = vadd.f32 %v2939, %v3163
      %v3165 = vpop.f32.mrf.mxu0
      %3166 = vmatprep.mubr.f32.mxu0 %v2265
      %3167 = vmatmul.mubr.f32.gmra.mxu0 %v2264
      %v3168 = vpop.f32.mrf.mxu0
      %v3169 = vadd.f32 %v2944, %v3168
      %v3170 = vpop.f32.mrf.mxu0
      %3171 = vmatprep.mubr.f32.mxu0 %v2274
      %3172 = vmatmul.mubr.f32.gmra.mxu0 %v2273
      %v3173 = vpop.f32.mrf.mxu0
      %v3174 = vadd.f32 %v2949, %v3173
      %v3175 = vpop.f32.mrf.mxu0
      %3176 = vmatprep.mubr.f32.mxu0 %v2283
      %3177 = vmatmul.mubr.f32.gmra.mxu0 %v2282
      %v3178 = vpop.f32.mrf.mxu0
      %v3179 = vadd.f32 %v2954, %v3178
      %v3180 = vpop.f32.mrf.mxu0
      %3181 = vmatprep.mubr.f32.mxu0 %v2292
      %3182 = vmatmul.mubr.f32.gmra.mxu0 %v2291
      %v3183 = vpop.f32.mrf.mxu0
      %v3184 = vadd.f32 %v2959, %v3183
      %v3185 = vpop.f32.mrf.mxu0
      %3186 = vmatprep.mubr.f32.mxu0 %v2301
      %3187 = vmatmul.mubr.f32.gmra.mxu0 %v2300
      %v3188 = vpop.f32.mrf.mxu0
      %v3189 = vadd.f32 %v2964, %v3188
      %v3190 = vpop.f32.mrf.mxu0
      %3191 = vmatprep.mubr.f32.mxu0 %v2310
      %3192 = vmatmul.mubr.f32.gmra.mxu0 %v2309
      %v3193 = vpop.f32.mrf.mxu0
      %v3194 = vadd.f32 %v2969, %v3193
      %v3195 = vpop.f32.mrf.mxu0
      %3196 = vmatprep.mubr.f32.mxu0 %v2319
      %3197 = vmatmul.mubr.f32.gmra.mxu0 %v2318
      %v3198 = vpop.f32.mrf.mxu0
      %v3199 = vadd.f32 %v2974, %v3198
      %v3200 = vpop.f32.mrf.mxu0
      %3201 = vmatprep.mubr.f32.mxu0 %v2328
      %3202 = vmatmul.mubr.f32.gmra.mxu0 %v2327
      %v3203 = vpop.f32.mrf.mxu0
      %v3204 = vadd.f32 %v2979, %v3203
      %v3205 = vpop.f32.mrf.mxu0
      %3206 = vmatprep.mubr.f32.mxu0 %v2337
      %3207 = vmatmul.mubr.f32.gmra.mxu0 %v2336
      %v3208 = vpop.f32.mrf.mxu0
      %v3209 = vadd.f32 %v2984, %v3208
      %v3210 = vpop.f32.mrf.mxu0
      %3211 = vmatprep.mubr.f32.mxu0 %v2346
      %3212 = vmatmul.mubr.f32.gmra.mxu0 %v2345
      %v3213 = vpop.f32.mrf.mxu0
      %v3214 = vadd.f32 %v2989, %v3213
      %v3215 = vpop.f32.mrf.mxu0
      %3216 = vmatprep.mubr.f32.mxu0 %v2355
      %3217 = vmatmul.mubr.f32.gmra.mxu0 %v2354
      %v3218 = vpop.f32.mrf.mxu0
      %v3219 = vadd.f32 %v2994, %v3218
      %v3220 = vpop.f32.mrf.mxu0
      %3221 = vmatprep.mubr.f32.mxu0 %v2364
      %3222 = vmatmul.mubr.f32.gmra.mxu0 %v2363
      %v3223 = vpop.f32.mrf.mxu0
      %v3224 = vadd.f32 %v2999, %v3223
      %v3225 = vpop.f32.mrf.mxu0
      %3226 = vmatprep.mubr.f32.mxu0 %v2373
      %3227 = vmatmul.mubr.f32.gmra.mxu0 %v2372
      %v3228 = vpop.f32.mrf.mxu0
      %v3229 = vadd.f32 %v3004, %v3228
      %v3230 = vpop.f32.mrf.mxu0
      %3231 = vmatprep.mubr.f32.mxu0 %v2382
      %3232 = vmatmul.mubr.f32.gmra.mxu0 %v2381
      %v3233 = vpop.f32.mrf.mxu0
      %v3234 = vadd.f32 %v3009, %v3233
      %v3235 = vpop.f32.mrf.mxu0
      %3236 = vmatprep.mubr.f32.mxu0 %v2391
      %3237 = vmatmul.mubr.f32.gmra.mxu0 %v2390
      %v3238 = vpop.f32.mrf.mxu0
      %v3239 = vadd.f32 %v3014, %v3238
      %v3240 = vpop.f32.mrf.mxu0
      %3241 = vmatprep.mubr.f32.mxu0 %v2400
      %3242 = vmatmul.mubr.f32.gmra.mxu0 %v2399
      %v3243 = vpop.f32.mrf.mxu0
      %v3244 = vadd.f32 %v3019, %v3243
      %v3245 = vpop.f32.mrf.mxu0
      %3246 = vmatprep.mubr.f32.mxu0 %v2409
      %3247 = vmatmul.mubr.f32.gmra.mxu0 %v2408
      %v3248 = vpop.f32.mrf.mxu0
      %v3249 = vadd.f32 %v3024, %v3248
      %v3250 = vpop.f32.mrf.mxu0
      %3251 = vmatprep.mubr.f32.mxu0 %v2418
      %3252 = vmatmul.mubr.f32.gmra.mxu0 %v2417
      %v3253 = vpop.f32.mrf.mxu0
      %v3254 = vadd.f32 %v3029, %v3253
      %v3255 = vpop.f32.mrf.mxu0
      %3256 = vmatprep.mubr.f32.mxu0 %v2427
      %3257 = vmatmul.mubr.f32.gmra.mxu0 %v2426
      %v3258 = vpop.f32.mrf.mxu0
      %v3259 = vadd.f32 %v3034, %v3258
      %v3260 = vpop.f32.mrf.mxu0
      %3261 = vmatprep.mubr.f32.mxu0 %v2436
      %3262 = vmatmul.mubr.f32.gmra.mxu0 %v2435
      %v3263 = vpop.f32.mrf.mxu0
      %v3264 = vadd.f32 %v3039, %v3263
      %v3265 = vpop.f32.mrf.mxu0
      %3266 = vmatprep.mubr.f32.mxu0 %v2445
      %3267 = vmatmul.mubr.f32.gmra.mxu0 %v2444
      %v3268 = vpop.f32.mrf.mxu0
      %v3269 = vadd.f32 %v3044, %v3268
      %v3270 = vpop.f32.mrf.mxu0
      %3271 = vmatprep.mubr.f32.mxu0 %v2454
      %3272 = vmatmul.mubr.f32.gmra.mxu0 %v2453
      %v3273 = vpop.f32.mrf.mxu0
      %v3274 = vadd.f32 %v3049, %v3273
      %v3275 = vpop.f32.mrf.mxu0
      %3276 = vdwg.mxu0
      %3277 = vmatprep.subr.mxu0 0.0
      %3278 = vmatpush1.msra.mxu0 %v2569
      %3279 = vmatprep.subr.mxu0 0.0
      %3280 = vmatpush1.msra.mxu0 %v2568
      %3281 = vmatprep.subr.mxu0 0.0
      %3282 = vmatpush1.msra.mxu0 %v2567
      %3283 = vmatprep.subr.mxu0 0.0
      %3284 = vmatpush1.msra.mxu0 %v2566
      %3285 = vmatprep.subr.mxu0 0.0
      %3286 = vmatpush1.msra.mxu0 %v2565
      %3287 = vmatprep.subr.mxu0 0.0
      %3288 = vmatpush1.msra.mxu0 %v2564
      %3289 = vmatprep.subr.mxu0 0.0
      %3290 = vmatpush1.msra.mxu0 %v2563
      %3291 = vmatprep.subr.mxu0 0.0
      %3292 = vmatpush1.msra.mxu0 %v2562
      %3293 = vmatprep.subr.mxu0 0.0
      %3294 = vmatpush1.msra.mxu0 %v2561
      %3295 = vmatprep.subr.mxu0 0.0
      %3296 = vmatpush1.msra.mxu0 %v2560
      %3297 = vmatprep.subr.mxu0 0.0
      %3298 = vmatpush1.msra.mxu0 %v2559
      %3299 = vmatprep.subr.mxu0 0.0
      %3300 = vmatpush1.msra.mxu0 %v2558
      %3301 = vmatprep.subr.mxu0 0.0
      %3302 = vmatpush1.msra.mxu0 %v2557
      %3303 = vmatprep.subr.mxu0 0.0
      %3304 = vmatpush1.msra.mxu0 %v2556
      %3305 = vmatprep.subr.mxu0 0.0
      %3306 = vmatpush1.msra.mxu0 %v2555
      %3307 = vmatprep.subr.mxu0 0.0
      %3308 = vmatpush1.msra.mxu0 %v2554
      %3309 = vmatprep.subr.mxu0 0.0
      %3310 = vmatpush2.msra.mxu0 %v2585
      %3311 = vmatprep.subr.mxu0 0.0
      %3312 = vmatpush2.msra.mxu0 %v2584
      %3313 = vmatprep.subr.mxu0 0.0
      %3314 = vmatpush2.msra.mxu0 %v2583
      %3315 = vmatprep.subr.mxu0 0.0
      %3316 = vmatpush2.msra.mxu0 %v2582
      %3317 = vmatprep.subr.mxu0 0.0
      %3318 = vmatpush2.msra.mxu0 %v2581
      %3319 = vmatprep.subr.mxu0 0.0
      %3320 = vmatpush2.msra.mxu0 %v2580
      %3321 = vmatprep.subr.mxu0 0.0
      %3322 = vmatpush2.msra.mxu0 %v2579
      %3323 = vmatprep.subr.mxu0 0.0
      %3324 = vmatpush2.msra.mxu0 %v2578
      %3325 = vmatprep.subr.mxu0 0.0
      %3326 = vmatpush2.msra.mxu0 %v2577
      %3327 = vmatprep.subr.mxu0 0.0
      %3328 = vmatpush2.msra.mxu0 %v2576
      %3329 = vmatprep.subr.mxu0 0.0
      %3330 = vmatpush2.msra.mxu0 %v2575
      %3331 = vmatprep.subr.mxu0 0.0
      %3332 = vmatpush2.msra.mxu0 %v2574
      %3333 = vmatprep.subr.mxu0 0.0
      %3334 = vmatpush2.msra.mxu0 %v2573
      %3335 = vmatprep.subr.mxu0 0.0
      %3336 = vmatpush2.msra.mxu0 %v2572
      %3337 = vmatprep.subr.mxu0 0.0
      %3338 = vmatpush2.msra.mxu0 %v2571
      %3339 = vmatprep.subr.mxu0 0.0
      %3340 = vmatpush2.msra.mxu0 %v2570
      %3341 = vmatprep.mubr.f32.mxu0 %v2177
      %3342 = vmatmul.mubr.f32.gmra.mxu0 %v2176
      %v3343 = vpop.f32.mrf.mxu0
      %v3344 = vadd.f32 %v3119, %v3343
      %v3345 = vpop.f32.mrf.mxu0
      %3346 = vmatprep.mubr.f32.mxu0 %v2186
      %3347 = vmatmul.mubr.f32.gmra.mxu0 %v2185
      %v3348 = vpop.f32.mrf.mxu0
      %v3349 = vadd.f32 %v3124, %v3348
      %v3350 = vpop.f32.mrf.mxu0
      %3351 = vmatprep.mubr.f32.mxu0 %v2195
      %3352 = vmatmul.mubr.f32.gmra.mxu0 %v2194
      %v3353 = vpop.f32.mrf.mxu0
      %v3354 = vadd.f32 %v3129, %v3353
      %v3355 = vpop.f32.mrf.mxu0
      %3356 = vmatprep.mubr.f32.mxu0 %v2204
      %3357 = vmatmul.mubr.f32.gmra.mxu0 %v2203
      %v3358 = vpop.f32.mrf.mxu0
      %v3359 = vadd.f32 %v3134, %v3358
      %v3360 = vpop.f32.mrf.mxu0
      %3361 = vmatprep.mubr.f32.mxu0 %v2213
      %3362 = vmatmul.mubr.f32.gmra.mxu0 %v2212
      %v3363 = vpop.f32.mrf.mxu0
      %v3364 = vadd.f32 %v3139, %v3363
      %v3365 = vpop.f32.mrf.mxu0
      %3366 = vmatprep.mubr.f32.mxu0 %v2222
      %3367 = vmatmul.mubr.f32.gmra.mxu0 %v2221
      %v3368 = vpop.f32.mrf.mxu0
      %v3369 = vadd.f32 %v3144, %v3368
      %v3370 = vpop.f32.mrf.mxu0
      %3371 = vmatprep.mubr.f32.mxu0 %v2231
      %3372 = vmatmul.mubr.f32.gmra.mxu0 %v2230
      %v3373 = vpop.f32.mrf.mxu0
      %v3374 = vadd.f32 %v3149, %v3373
      %v3375 = vpop.f32.mrf.mxu0
      %3376 = vmatprep.mubr.f32.mxu0 %v2240
      %3377 = vmatmul.mubr.f32.gmra.mxu0 %v2239
      %v3378 = vpop.f32.mrf.mxu0
      %v3379 = vadd.f32 %v3154, %v3378
      %v3380 = vpop.f32.mrf.mxu0
      %3381 = vmatprep.mubr.f32.mxu0 %v2249
      %3382 = vmatmul.mubr.f32.gmra.mxu0 %v2248
      %v3383 = vpop.f32.mrf.mxu0
      %v3384 = vadd.f32 %v3159, %v3383
      %v3385 = vpop.f32.mrf.mxu0
      %3386 = vmatprep.mubr.f32.mxu0 %v2258
      %3387 = vmatmul.mubr.f32.gmra.mxu0 %v2257
      %v3388 = vpop.f32.mrf.mxu0
      %v3389 = vadd.f32 %v3164, %v3388
      %v3390 = vpop.f32.mrf.mxu0
      %3391 = vmatprep.mubr.f32.mxu0 %v2267
      %3392 = vmatmul.mubr.f32.gmra.mxu0 %v2266
      %v3393 = vpop.f32.mrf.mxu0
      %v3394 = vadd.f32 %v3169, %v3393
      %v3395 = vpop.f32.mrf.mxu0
      %3396 = vmatprep.mubr.f32.mxu0 %v2276
      %3397 = vmatmul.mubr.f32.gmra.mxu0 %v2275
      %v3398 = vpop.f32.mrf.mxu0
      %v3399 = vadd.f32 %v3174, %v3398
      %v3400 = vpop.f32.mrf.mxu0
      %3401 = vmatprep.mubr.f32.mxu0 %v2285
      %3402 = vmatmul.mubr.f32.gmra.mxu0 %v2284
      %v3403 = vpop.f32.mrf.mxu0
      %v3404 = vadd.f32 %v3179, %v3403
      %v3405 = vpop.f32.mrf.mxu0
      %3406 = vmatprep.mubr.f32.mxu0 %v2294
      %3407 = vmatmul.mubr.f32.gmra.mxu0 %v2293
      %v3408 = vpop.f32.mrf.mxu0
      %v3409 = vadd.f32 %v3184, %v3408
      %v3410 = vpop.f32.mrf.mxu0
      %3411 = vmatprep.mubr.f32.mxu0 %v2303
      %3412 = vmatmul.mubr.f32.gmra.mxu0 %v2302
      %v3413 = vpop.f32.mrf.mxu0
      %v3414 = vadd.f32 %v3189, %v3413
      %v3415 = vpop.f32.mrf.mxu0
      %3416 = vmatprep.mubr.f32.mxu0 %v2312
      %3417 = vmatmul.mubr.f32.gmra.mxu0 %v2311
      %v3418 = vpop.f32.mrf.mxu0
      %v3419 = vadd.f32 %v3194, %v3418
      %v3420 = vpop.f32.mrf.mxu0
      %3421 = vmatprep.mubr.f32.mxu0 %v2321
      %3422 = vmatmul.mubr.f32.gmra.mxu0 %v2320
      %v3423 = vpop.f32.mrf.mxu0
      %v3424 = vadd.f32 %v3199, %v3423
      %v3425 = vpop.f32.mrf.mxu0
      %3426 = vmatprep.mubr.f32.mxu0 %v2330
      %3427 = vmatmul.mubr.f32.gmra.mxu0 %v2329
      %v3428 = vpop.f32.mrf.mxu0
      %v3429 = vadd.f32 %v3204, %v3428
      %v3430 = vpop.f32.mrf.mxu0
      %3431 = vmatprep.mubr.f32.mxu0 %v2339
      %3432 = vmatmul.mubr.f32.gmra.mxu0 %v2338
      %v3433 = vpop.f32.mrf.mxu0
      %v3434 = vadd.f32 %v3209, %v3433
      %v3435 = vpop.f32.mrf.mxu0
      %3436 = vmatprep.mubr.f32.mxu0 %v2348
      %3437 = vmatmul.mubr.f32.gmra.mxu0 %v2347
      %v3438 = vpop.f32.mrf.mxu0
      %v3439 = vadd.f32 %v3214, %v3438
      %v3440 = vpop.f32.mrf.mxu0
      %3441 = vmatprep.mubr.f32.mxu0 %v2357
      %3442 = vmatmul.mubr.f32.gmra.mxu0 %v2356
      %v3443 = vpop.f32.mrf.mxu0
      %v3444 = vadd.f32 %v3219, %v3443
      %v3445 = vpop.f32.mrf.mxu0
      %3446 = vmatprep.mubr.f32.mxu0 %v2366
      %3447 = vmatmul.mubr.f32.gmra.mxu0 %v2365
      %v3448 = vpop.f32.mrf.mxu0
      %v3449 = vadd.f32 %v3224, %v3448
      %v3450 = vpop.f32.mrf.mxu0
      %3451 = vmatprep.mubr.f32.mxu0 %v2375
      %3452 = vmatmul.mubr.f32.gmra.mxu0 %v2374
      %v3453 = vpop.f32.mrf.mxu0
      %v3454 = vadd.f32 %v3229, %v3453
      %v3455 = vpop.f32.mrf.mxu0
      %3456 = vmatprep.mubr.f32.mxu0 %v2384
      %3457 = vmatmul.mubr.f32.gmra.mxu0 %v2383
      %v3458 = vpop.f32.mrf.mxu0
      %v3459 = vadd.f32 %v3234, %v3458
      %v3460 = vpop.f32.mrf.mxu0
      %3461 = vmatprep.mubr.f32.mxu0 %v2393
      %3462 = vmatmul.mubr.f32.gmra.mxu0 %v2392
      %v3463 = vpop.f32.mrf.mxu0
      %v3464 = vadd.f32 %v3239, %v3463
      %v3465 = vpop.f32.mrf.mxu0
      %3466 = vmatprep.mubr.f32.mxu0 %v2402
      %3467 = vmatmul.mubr.f32.gmra.mxu0 %v2401
      %v3468 = vpop.f32.mrf.mxu0
      %v3469 = vadd.f32 %v3244, %v3468
      %v3470 = vpop.f32.mrf.mxu0
      %3471 = vmatprep.mubr.f32.mxu0 %v2411
      %3472 = vmatmul.mubr.f32.gmra.mxu0 %v2410
      %v3473 = vpop.f32.mrf.mxu0
      %v3474 = vadd.f32 %v3249, %v3473
      %v3475 = vpop.f32.mrf.mxu0
      %3476 = vmatprep.mubr.f32.mxu0 %v2420
      %3477 = vmatmul.mubr.f32.gmra.mxu0 %v2419
      %v3478 = vpop.f32.mrf.mxu0
      %v3479 = vadd.f32 %v3254, %v3478
      %v3480 = vpop.f32.mrf.mxu0
      %3481 = vmatprep.mubr.f32.mxu0 %v2429
      %3482 = vmatmul.mubr.f32.gmra.mxu0 %v2428
      %v3483 = vpop.f32.mrf.mxu0
      %v3484 = vadd.f32 %v3259, %v3483
      %v3485 = vpop.f32.mrf.mxu0
      %3486 = vmatprep.mubr.f32.mxu0 %v2438
      %3487 = vmatmul.mubr.f32.gmra.mxu0 %v2437
      %v3488 = vpop.f32.mrf.mxu0
      %v3489 = vadd.f32 %v3264, %v3488
      %v3490 = vpop.f32.mrf.mxu0
      %3491 = vmatprep.mubr.f32.mxu0 %v2447
      %3492 = vmatmul.mubr.f32.gmra.mxu0 %v2446
      %v3493 = vpop.f32.mrf.mxu0
      %v3494 = vadd.f32 %v3269, %v3493
      %v3495 = vpop.f32.mrf.mxu0
      %3496 = vmatprep.mubr.f32.mxu0 %v2456
      %3497 = vmatmul.mubr.f32.gmra.mxu0 %v2455
      %v3498 = vpop.f32.mrf.mxu0
      %v3499 = vadd.f32 %v3274, %v3498
      %v3500 = vpop.f32.mrf.mxu0
      %3501 = vdwg.mxu0
      %3502 = vmatprep.subr.mxu0 0.0
      %3503 = vmatpush1.msra.mxu0 %v2601
      %3504 = vmatprep.subr.mxu0 0.0
      %3505 = vmatpush1.msra.mxu0 %v2600
      %3506 = vmatprep.subr.mxu0 0.0
      %3507 = vmatpush1.msra.mxu0 %v2599
      %3508 = vmatprep.subr.mxu0 0.0
      %3509 = vmatpush1.msra.mxu0 %v2598
      %3510 = vmatprep.subr.mxu0 0.0
      %3511 = vmatpush1.msra.mxu0 %v2597
      %3512 = vmatprep.subr.mxu0 0.0
      %3513 = vmatpush1.msra.mxu0 %v2596
      %3514 = vmatprep.subr.mxu0 0.0
      %3515 = vmatpush1.msra.mxu0 %v2595
      %3516 = vmatprep.subr.mxu0 0.0
      %3517 = vmatpush1.msra.mxu0 %v2594
      %3518 = vmatprep.subr.mxu0 0.0
      %3519 = vmatpush1.msra.mxu0 %v2593
      %3520 = vmatprep.subr.mxu0 0.0
      %3521 = vmatpush1.msra.mxu0 %v2592
      %3522 = vmatprep.subr.mxu0 0.0
      %3523 = vmatpush1.msra.mxu0 %v2591
      %3524 = vmatprep.subr.mxu0 0.0
      %3525 = vmatpush1.msra.mxu0 %v2590
      %3526 = vmatprep.subr.mxu0 0.0
      %3527 = vmatpush1.msra.mxu0 %v2589
      %3528 = vmatprep.subr.mxu0 0.0
      %3529 = vmatpush1.msra.mxu0 %v2588
      %3530 = vmatprep.subr.mxu0 0.0
      %3531 = vmatpush1.msra.mxu0 %v2587
      %3532 = vmatprep.subr.mxu0 0.0
      %3533 = vmatpush1.msra.mxu0 %v2586
      %3534 = vmatprep.subr.mxu0 0.0
      %3535 = vmatpush2.msra.mxu0 0.0
      %3536 = vmatprep.subr.mxu0 0.0
      %3537 = vmatpush2.msra.mxu0 0.0
      %3538 = vmatprep.subr.mxu0 0.0
      %3539 = vmatpush2.msra.mxu0 0.0
      %3540 = vmatprep.subr.mxu0 0.0
      %3541 = vmatpush2.msra.mxu0 0.0
      %3542 = vmatprep.subr.mxu0 0.0
      %3543 = vmatpush2.msra.mxu0 0.0
      %3544 = vmatprep.subr.mxu0 0.0
      %3545 = vmatpush2.msra.mxu0 0.0
      %3546 = vmatprep.subr.mxu0 0.0
      %3547 = vmatpush2.msra.mxu0 0.0
      %3548 = vmatprep.subr.mxu0 0.0
      %3549 = vmatpush2.msra.mxu0 0.0
      %3550 = vmatprep.subr.mxu0 0.0
      %3551 = vmatpush2.msra.mxu0 0.0
      %3552 = vmatprep.subr.mxu0 0.0
      %3553 = vmatpush2.msra.mxu0 0.0
      %3554 = vmatprep.subr.mxu0 0.0
      %3555 = vmatpush2.msra.mxu0 0.0
      %3556 = vmatprep.subr.mxu0 0.0
      %3557 = vmatpush2.msra.mxu0 0.0
      %3558 = vmatprep.subr.mxu0 0.0
      %3559 = vmatpush2.msra.mxu0 0.0
      %3560 = vmatprep.subr.mxu0 0.0
      %3561 = vmatpush2.msra.mxu0 0.0
      %3562 = vmatprep.subr.mxu0 0.0
      %3563 = vmatpush2.msra.mxu0 0.0
      %3564 = vmatprep.subr.mxu0 0.0
      %3565 = vmatpush2.msra.mxu0 0.0
      %3566 = vmatprep.mubr.f32.mxu0 0.0
      %3567 = vmatmul.mubr.f32.gmra.mxu0 %v2178
      %v3568 = vpop.f32.mrf.mxu0
      %v3569 = vadd.f32 %v3344, %v3568
      %v3570 = vpop.f32.mrf.mxu0
      %3571 = vmatprep.mubr.f32.mxu0 0.0
      %3572 = vmatmul.mubr.f32.gmra.mxu0 %v2187
      %v3573 = vpop.f32.mrf.mxu0
      %v3574 = vadd.f32 %v3349, %v3573
      %v3575 = vpop.f32.mrf.mxu0
      %3576 = vmatprep.mubr.f32.mxu0 0.0
      %3577 = vmatmul.mubr.f32.gmra.mxu0 %v2196
      %v3578 = vpop.f32.mrf.mxu0
      %v3579 = vadd.f32 %v3354, %v3578
      %v3580 = vpop.f32.mrf.mxu0
      %3581 = vmatprep.mubr.f32.mxu0 0.0
      %3582 = vmatmul.mubr.f32.gmra.mxu0 %v2205
      %v3583 = vpop.f32.mrf.mxu0
      %v3584 = vadd.f32 %v3359, %v3583
      %v3585 = vpop.f32.mrf.mxu0
      %3586 = vmatprep.mubr.f32.mxu0 0.0
      %3587 = vmatmul.mubr.f32.gmra.mxu0 %v2214
      %v3588 = vpop.f32.mrf.mxu0
      %v3589 = vadd.f32 %v3364, %v3588
      %v3590 = vpop.f32.mrf.mxu0
      %3591 = vmatprep.mubr.f32.mxu0 0.0
      %3592 = vmatmul.mubr.f32.gmra.mxu0 %v2223
      %v3593 = vpop.f32.mrf.mxu0
      %v3594 = vadd.f32 %v3369, %v3593
      %v3595 = vpop.f32.mrf.mxu0
      %3596 = vmatprep.mubr.f32.mxu0 0.0
      %3597 = vmatmul.mubr.f32.gmra.mxu0 %v2232
      %v3598 = vpop.f32.mrf.mxu0
      %v3599 = vadd.f32 %v3374, %v3598
      %v3600 = vpop.f32.mrf.mxu0
      %3601 = vmatprep.mubr.f32.mxu0 0.0
      %3602 = vmatmul.mubr.f32.gmra.mxu0 %v2241
      %v3603 = vpop.f32.mrf.mxu0
      %v3604 = vadd.f32 %v3379, %v3603
      %v3605 = vpop.f32.mrf.mxu0
      %3606 = vmatprep.mubr.f32.mxu0 0.0
      %3607 = vmatmul.mubr.f32.gmra.mxu0 %v2250
      %v3608 = vpop.f32.mrf.mxu0
      %v3609 = vadd.f32 %v3384, %v3608
      %v3610 = vpop.f32.mrf.mxu0
      %3611 = vmatprep.mubr.f32.mxu0 0.0
      %3612 = vmatmul.mubr.f32.gmra.mxu0 %v2259
      %v3613 = vpop.f32.mrf.mxu0
      %v3614 = vadd.f32 %v3389, %v3613
      %v3615 = vpop.f32.mrf.mxu0
      %3616 = vmatprep.mubr.f32.mxu0 0.0
      %3617 = vmatmul.mubr.f32.gmra.mxu0 %v2268
      %v3618 = vpop.f32.mrf.mxu0
      %v3619 = vadd.f32 %v3394, %v3618
      %v3620 = vpop.f32.mrf.mxu0
      %3621 = vmatprep.mubr.f32.mxu0 0.0
      %3622 = vmatmul.mubr.f32.gmra.mxu0 %v2277
      %v3623 = vpop.f32.mrf.mxu0
      %v3624 = vadd.f32 %v3399, %v3623
      %v3625 = vpop.f32.mrf.mxu0
      %3626 = vmatprep.mubr.f32.mxu0 0.0
      %3627 = vmatmul.mubr.f32.gmra.mxu0 %v2286
      %v3628 = vpop.f32.mrf.mxu0
      %v3629 = vadd.f32 %v3404, %v3628
      %v3630 = vpop.f32.mrf.mxu0
      %3631 = vmatprep.mubr.f32.mxu0 0.0
      %3632 = vmatmul.mubr.f32.gmra.mxu0 %v2295
      %v3633 = vpop.f32.mrf.mxu0
      %v3634 = vadd.f32 %v3409, %v3633
      %v3635 = vpop.f32.mrf.mxu0
      %3636 = vmatprep.mubr.f32.mxu0 0.0
      %3637 = vmatmul.mubr.f32.gmra.mxu0 %v2304
      %v3638 = vpop.f32.mrf.mxu0
      %v3639 = vadd.f32 %v3414, %v3638
      %v3640 = vpop.f32.mrf.mxu0
      %3641 = vmatprep.mubr.f32.mxu0 0.0
      %3642 = vmatmul.mubr.f32.gmra.mxu0 %v2313
      %v3643 = vpop.f32.mrf.mxu0
      %v3644 = vadd.f32 %v3419, %v3643
      %v3645 = vpop.f32.mrf.mxu0
      %3646 = vmatprep.mubr.f32.mxu0 0.0
      %3647 = vmatmul.mubr.f32.gmra.mxu0 %v2322
      %v3648 = vpop.f32.mrf.mxu0
      %v3649 = vadd.f32 %v3424, %v3648
      %v3650 = vpop.f32.mrf.mxu0
      %3651 = vmatprep.mubr.f32.mxu0 0.0
      %3652 = vmatmul.mubr.f32.gmra.mxu0 %v2331
      %v3653 = vpop.f32.mrf.mxu0
      %v3654 = vadd.f32 %v3429, %v3653
      %v3655 = vpop.f32.mrf.mxu0
      %3656 = vmatprep.mubr.f32.mxu0 0.0
      %3657 = vmatmul.mubr.f32.gmra.mxu0 %v2340
      %v3658 = vpop.f32.mrf.mxu0
      %v3659 = vadd.f32 %v3434, %v3658
      %v3660 = vpop.f32.mrf.mxu0
      %3661 = vmatprep.mubr.f32.mxu0 0.0
      %3662 = vmatmul.mubr.f32.gmra.mxu0 %v2349
      %v3663 = vpop.f32.mrf.mxu0
      %v3664 = vadd.f32 %v3439, %v3663
      %v3665 = vpop.f32.mrf.mxu0
      %3666 = vmatprep.mubr.f32.mxu0 0.0
      %3667 = vmatmul.mubr.f32.gmra.mxu0 %v2358
      %v3668 = vpop.f32.mrf.mxu0
      %v3669 = vadd.f32 %v3444, %v3668
      %v3670 = vpop.f32.mrf.mxu0
      %3671 = vmatprep.mubr.f32.mxu0 0.0
      %3672 = vmatmul.mubr.f32.gmra.mxu0 %v2367
      %v3673 = vpop.f32.mrf.mxu0
      %v3674 = vadd.f32 %v3449, %v3673
      %v3675 = vpop.f32.mrf.mxu0
      %3676 = vmatprep.mubr.f32.mxu0 0.0
      %3677 = vmatmul.mubr.f32.gmra.mxu0 %v2376
      %v3678 = vpop.f32.mrf.mxu0
      %v3679 = vadd.f32 %v3454, %v3678
      %v3680 = vpop.f32.mrf.mxu0
      %3681 = vmatprep.mubr.f32.mxu0 0.0
      %3682 = vmatmul.mubr.f32.gmra.mxu0 %v2385
      %v3683 = vpop.f32.mrf.mxu0
      %v3684 = vadd.f32 %v3459, %v3683
      %v3685 = vpop.f32.mrf.mxu0
      %3686 = vmatprep.mubr.f32.mxu0 0.0
      %3687 = vmatmul.mubr.f32.gmra.mxu0 %v2394
      %v3688 = vpop.f32.mrf.mxu0
      %v3689 = vadd.f32 %v3464, %v3688
      %v3690 = vpop.f32.mrf.mxu0
      %3691 = vmatprep.mubr.f32.mxu0 0.0
      %3692 = vmatmul.mubr.f32.gmra.mxu0 %v2403
      %v3693 = vpop.f32.mrf.mxu0
      %v3694 = vadd.f32 %v3469, %v3693
      %v3695 = vpop.f32.mrf.mxu0
      %3696 = vmatprep.mubr.f32.mxu0 0.0
      %3697 = vmatmul.mubr.f32.gmra.mxu0 %v2412
      %v3698 = vpop.f32.mrf.mxu0
      %v3699 = vadd.f32 %v3474, %v3698
      %v3700 = vpop.f32.mrf.mxu0
      %3701 = vmatprep.mubr.f32.mxu0 0.0
      %3702 = vmatmul.mubr.f32.gmra.mxu0 %v2421
      %v3703 = vpop.f32.mrf.mxu0
      %v3704 = vadd.f32 %v3479, %v3703
      %v3705 = vpop.f32.mrf.mxu0
      %3706 = vmatprep.mubr.f32.mxu0 0.0
      %3707 = vmatmul.mubr.f32.gmra.mxu0 %v2430
      %v3708 = vpop.f32.mrf.mxu0
      %v3709 = vadd.f32 %v3484, %v3708
      %v3710 = vpop.f32.mrf.mxu0
      %3711 = vmatprep.mubr.f32.mxu0 0.0
      %3712 = vmatmul.mubr.f32.gmra.mxu0 %v2439
      %v3713 = vpop.f32.mrf.mxu0
      %v3714 = vadd.f32 %v3489, %v3713
      %v3715 = vpop.f32.mrf.mxu0
      %3716 = vmatprep.mubr.f32.mxu0 0.0
      %3717 = vmatmul.mubr.f32.gmra.mxu0 %v2448
      %v3718 = vpop.f32.mrf.mxu0
      %v3719 = vadd.f32 %v3494, %v3718
      %v3720 = vpop.f32.mrf.mxu0
      %3721 = vmatprep.mubr.f32.mxu0 0.0
      %3722 = vmatmul.mubr.f32.gmra.mxu0 %v2457
      %v3723 = vpop.f32.mrf.mxu0
      %v3724 = vadd.f32 %v3499, %v3723
      %v3725 = vpop.f32.mrf.mxu0
      %3726 = vdwg.mxu0
      %v3727 = vld [vmem:[%s2] sm:$0x1]
      %v3729 = vlaneseq
      %v3730 = vshrl.u32 %v3729, 7
      %v3731 = vsub.s32 0, %v3730
      %v3732 = vrot.slane %v3727, %v3731
      %v3734 = vmul.f32 %v3569, %v3732
      %v3735 = vmul.f32 %v3574, %v3732
      %v3736 = vmul.f32 %v3579, %v3732
      %v3737 = vmul.f32 %v3584, %v3732
      %v3738 = vmul.f32 %v3589, %v3732
      %v3739 = vmul.f32 %v3594, %v3732
      %v3740 = vmul.f32 %v3599, %v3732
      %v3741 = vmul.f32 %v3604, %v3732
      %v3742 = vmul.f32 %v3609, %v3732
      %v3743 = vmul.f32 %v3614, %v3732
      %v3744 = vmul.f32 %v3619, %v3732
      %v3745 = vmul.f32 %v3624, %v3732
      %v3746 = vmul.f32 %v3629, %v3732
      %v3747 = vmul.f32 %v3634, %v3732
      %v3748 = vmul.f32 %v3639, %v3732
      %v3749 = vmul.f32 %v3644, %v3732
      %v3750 = vmul.f32 %v3649, %v3732
      %v3751 = vmul.f32 %v3654, %v3732
      %v3752 = vmul.f32 %v3659, %v3732
      %v3753 = vmul.f32 %v3664, %v3732
      %v3754 = vmul.f32 %v3669, %v3732
      %v3755 = vmul.f32 %v3674, %v3732
      %v3756 = vmul.f32 %v3679, %v3732
      %v3757 = vmul.f32 %v3684, %v3732
      %v3758 = vmul.f32 %v3689, %v3732
      %v3759 = vmul.f32 %v3694, %v3732
      %v3760 = vmul.f32 %v3699, %v3732
      %v3761 = vmul.f32 %v3704, %v3732
      %v3762 = vmul.f32 %v3709, %v3732
      %v3763 = vmul.f32 %v3714, %v3732
      %v3764 = vmul.f32 %v3719, %v3732
      %v3765 = vmul.f32 %v3724, %v3732
      %v3766 = vld [vmem:[%s3] sm:$0x1]
      %v3768 = vlaneseq
      %v3769 = vshrl.u32 %v3768, 7
      %v3770 = vsub.s32 0, %v3769
      %v3771 = vrot.slane %v3766, %v3770
      %v3773 = vadd.f32 %v3734, %v3771
      %v3774 = vadd.f32 %v3735, %v3771
      %v3775 = vadd.f32 %v3736, %v3771
      %v3776 = vadd.f32 %v3737, %v3771
      %v3777 = vadd.f32 %v3738, %v3771
      %v3778 = vadd.f32 %v3739, %v3771
      %v3779 = vadd.f32 %v3740, %v3771
      %v3780 = vadd.f32 %v3741, %v3771
      %v3781 = vadd.f32 %v3742, %v3771
      %v3782 = vadd.f32 %v3743, %v3771
      %v3783 = vadd.f32 %v3744, %v3771
      %v3784 = vadd.f32 %v3745, %v3771
      %v3785 = vadd.f32 %v3746, %v3771
      %v3786 = vadd.f32 %v3747, %v3771
      %v3787 = vadd.f32 %v3748, %v3771
      %v3788 = vadd.f32 %v3749, %v3771
      %v3789 = vadd.f32 %v3750, %v3771
      %v3790 = vadd.f32 %v3751, %v3771
      %v3791 = vadd.f32 %v3752, %v3771
      %v3792 = vadd.f32 %v3753, %v3771
      %v3793 = vadd.f32 %v3754, %v3771
      %v3794 = vadd.f32 %v3755, %v3771
      %v3795 = vadd.f32 %v3756, %v3771
      %v3796 = vadd.f32 %v3757, %v3771
      %v3797 = vadd.f32 %v3758, %v3771
      %v3798 = vadd.f32 %v3759, %v3771
      %v3799 = vadd.f32 %v3760, %v3771
      %v3800 = vadd.f32 %v3761, %v3771
      %v3801 = vadd.f32 %v3762, %v3771
      %v3802 = vadd.f32 %v3763, %v3771
      %v3803 = vadd.f32 %v3764, %v3771
      %v3804 = vadd.f32 %v3765, %v3771
      %v3805 = vmax.f32 %v3773, 0.0
      %v3806 = vmax.f32 %v3774, 0.0
      %v3807 = vmax.f32 %v3775, 0.0
      %v3808 = vmax.f32 %v3776, 0.0
      %v3809 = vmax.f32 %v3777, 0.0
      %v3810 = vmax.f32 %v3778, 0.0
      %v3811 = vmax.f32 %v3779, 0.0
      %v3812 = vmax.f32 %v3780, 0.0
      %v3813 = vmax.f32 %v3781, 0.0
      %v3814 = vmax.f32 %v3782, 0.0
      %v3815 = vmax.f32 %v3783, 0.0
      %v3816 = vmax.f32 %v3784, 0.0
      %v3817 = vmax.f32 %v3785, 0.0
      %v3818 = vmax.f32 %v3786, 0.0
      %v3819 = vmax.f32 %v3787, 0.0
      %v3820 = vmax.f32 %v3788, 0.0
      %v3821 = vmax.f32 %v3789, 0.0
      %v3822 = vmax.f32 %v3790, 0.0
      %v3823 = vmax.f32 %v3791, 0.0
      %v3824 = vmax.f32 %v3792, 0.0
      %v3825 = vmax.f32 %v3793, 0.0
      %v3826 = vmax.f32 %v3794, 0.0
      %v3827 = vmax.f32 %v3795, 0.0
      %v3828 = vmax.f32 %v3796, 0.0
      %v3829 = vmax.f32 %v3797, 0.0
      %v3830 = vmax.f32 %v3798, 0.0
      %v3831 = vmax.f32 %v3799, 0.0
      %v3832 = vmax.f32 %v3800, 0.0
      %v3833 = vmax.f32 %v3801, 0.0
      %v3834 = vmax.f32 %v3802, 0.0
      %v3835 = vmax.f32 %v3803, 0.0
      %v3836 = vmax.f32 %v3804, 0.0
      %3837 = vst [vmem:[#allocation3] sm:$0xff] %v3805
      %3838 = vst [vmem:[#allocation3 + $0x8] sm:$0xff] %v3806
      %3839 = vst [vmem:[#allocation3 + $0x10] sm:$0xff] %v3807
      %3840 = vst [vmem:[#allocation3 + $0x18] sm:$0xff] %v3808
      %3841 = vst [vmem:[#allocation3 + $0x20] sm:$0xff] %v3809
      %3842 = vst [vmem:[#allocation3 + $0x28] sm:$0xff] %v3810
      %3843 = vst [vmem:[#allocation3 + $0x30] sm:$0xff] %v3811
      %3844 = vst [vmem:[#allocation3 + $0x38] sm:$0xff] %v3812
      %3845 = vst [vmem:[#allocation3 + $0x40] sm:$0xff] %v3813
      %3846 = vst [vmem:[#allocation3 + $0x48] sm:$0xff] %v3814
      %3847 = vst [vmem:[#allocation3 + $0x50] sm:$0xff] %v3815
      %3848 = vst [vmem:[#allocation3 + $0x58] sm:$0xff] %v3816
      %3849 = vst [vmem:[#allocation3 + $0x60] sm:$0xff] %v3817
      %3850 = vst [vmem:[#allocation3 + $0x68] sm:$0xff] %v3818
      %3851 = vst [vmem:[#allocation3 + $0x70] sm:$0xff] %v3819
      %3852 = vst [vmem:[#allocation3 + $0x78] sm:$0xff] %v3820
      %3853 = vst [vmem:[#allocation3 + $0x80] sm:$0xff] %v3821
      %3854 = vst [vmem:[#allocation3 + $0x88] sm:$0xff] %v3822
      %3855 = vst [vmem:[#allocation3 + $0x90] sm:$0xff] %v3823
      %3856 = vst [vmem:[#allocation3 + $0x98] sm:$0xff] %v3824
      %3857 = vst [vmem:[#allocation3 + $0xa0] sm:$0xff] %v3825
      %3858 = vst [vmem:[#allocation3 + $0xa8] sm:$0xff] %v3826
      %3859 = vst [vmem:[#allocation3 + $0xb0] sm:$0xff] %v3827
      %3860 = vst [vmem:[#allocation3 + $0xb8] sm:$0xff] %v3828
      %3861 = vst [vmem:[#allocation3 + $0xc0] sm:$0xff] %v3829
      %3862 = vst [vmem:[#allocation3 + $0xc8] sm:$0xff] %v3830
      %3863 = vst [vmem:[#allocation3 + $0xd0] sm:$0xff] %v3831
      %3864 = vst [vmem:[#allocation3 + $0xd8] sm:$0xff] %v3832
      %3865 = vst [vmem:[#allocation3 + $0xe0] sm:$0xff] %v3833
      %3866 = vst [vmem:[#allocation3 + $0xe8] sm:$0xff] %v3834
      %3867 = vst [vmem:[#allocation3 + $0xf0] sm:$0xff] %v3835
      %3868 = vst [vmem:[#allocation3 + $0xf8] sm:$0xff] %v3836
      %v3869 = vld [vmem:[#allocation3] sm:$0xff]
      %v3870 = vld [vmem:[#allocation3 + $0x8] sm:$0xff]
      %v3871 = vld [vmem:[#allocation3 + $0x10] sm:$0xff]
      %v3872 = vld [vmem:[#allocation3 + $0x18] sm:$0xff]
      %v3873 = vld [vmem:[#allocation3 + $0x20] sm:$0xff]
      %v3874 = vld [vmem:[#allocation3 + $0x28] sm:$0xff]
      %v3875 = vld [vmem:[#allocation3 + $0x30] sm:$0xff]
      %v3876 = vld [vmem:[#allocation3 + $0x38] sm:$0xff]
      %v3877 = vld [vmem:[#allocation3 + $0x40] sm:$0xff]
      %v3878 = vld [vmem:[#allocation3 + $0x48] sm:$0xff]
      %v3879 = vld [vmem:[#allocation3 + $0x50] sm:$0xff]
      %v3880 = vld [vmem:[#allocation3 + $0x58] sm:$0xff]
      %v3881 = vld [vmem:[#allocation3 + $0x60] sm:$0xff]
      %v3882 = vld [vmem:[#allocation3 + $0x68] sm:$0xff]
      %v3883 = vld [vmem:[#allocation3 + $0x70] sm:$0xff]
      %v3884 = vld [vmem:[#allocation3 + $0x78] sm:$0xff]
      %v3885 = vld [vmem:[#allocation3 + $0x80] sm:$0xff]
      %v3886 = vld [vmem:[#allocation3 + $0x88] sm:$0xff]
      %v3887 = vld [vmem:[#allocation3 + $0x90] sm:$0xff]
      %v3888 = vld [vmem:[#allocation3 + $0x98] sm:$0xff]
      %v3889 = vld [vmem:[#allocation3 + $0xa0] sm:$0xff]
      %v3890 = vld [vmem:[#allocation3 + $0xa8] sm:$0xff]
      %v3891 = vld [vmem:[#allocation3 + $0xb0] sm:$0xff]
      %v3892 = vld [vmem:[#allocation3 + $0xb8] sm:$0xff]
      %v3893 = vld [vmem:[#allocation3 + $0xc0] sm:$0xff]
      %v3894 = vld [vmem:[#allocation3 + $0xc8] sm:$0xff]
      %v3895 = vld [vmem:[#allocation3 + $0xd0] sm:$0xff]
      %v3896 = vld [vmem:[#allocation3 + $0xd8] sm:$0xff]
      %v3897 = vld [vmem:[#allocation3 + $0xe0] sm:$0xff]
      %v3898 = vld [vmem:[#allocation3 + $0xe8] sm:$0xff]
      %v3899 = vld [vmem:[#allocation3 + $0xf0] sm:$0xff]
      %v3900 = vld [vmem:[#allocation3 + $0xf8] sm:$0xff]
      %v3901 = vrot.slane %v3869, 7
      %v3902 = vrot.slane %v3870, 7
      %v3903 = vrot.slane %v3871, 7
      %v3904 = vrot.slane %v3872, 7
      %v3905 = vrot.slane %v3873, 7
      %v3906 = vrot.slane %v3874, 7
      %v3907 = vrot.slane %v3875, 7
      %v3908 = vrot.slane %v3876, 7
      %v3909 = vrot.slane %v3877, 7
      %v3910 = vrot.slane %v3878, 7
      %v3911 = vrot.slane %v3879, 7
      %v3912 = vrot.slane %v3880, 7
      %v3913 = vrot.slane %v3881, 7
      %v3914 = vrot.slane %v3882, 7
      %v3915 = vrot.slane %v3883, 7
      %v3916 = vrot.slane %v3884, 7
      %v3917 = vrot.slane %v3885, 7
      %v3918 = vrot.slane %v3886, 7
      %v3919 = vrot.slane %v3887, 7
      %v3920 = vrot.slane %v3888, 7
      %v3921 = vrot.slane %v3889, 7
      %v3922 = vrot.slane %v3890, 7
      %v3923 = vrot.slane %v3891, 7
      %v3924 = vrot.slane %v3892, 7
      %v3925 = vrot.slane %v3893, 7
      %v3926 = vrot.slane %v3894, 7
      %v3927 = vrot.slane %v3895, 7
      %v3928 = vrot.slane %v3896, 7
      %v3929 = vrot.slane %v3897, 7
      %v3930 = vrot.slane %v3898, 7
      %v3931 = vrot.slane %v3899, 7
      %v3932 = vrot.slane %v3900, 7
      %v3933 = vsel %vm888, %v3931, %v3932
      %v3934 = vsel %vm888, %v3930, %v3931
      %v3935 = vsel %vm888, %v3929, %v3930
      %v3936 = vsel %vm888, %v3928, %v3929
      %v3937 = vsel %vm888, %v3927, %v3928
      %v3938 = vsel %vm888, %v3926, %v3927
      %v3939 = vsel %vm888, %v3925, %v3926
      %v3940 = vsel %vm888, %v3924, %v3925
      %v3941 = vsel %vm888, %v3923, %v3924
      %v3942 = vsel %vm888, %v3922, %v3923
      %v3943 = vsel %vm888, %v3921, %v3922
      %v3944 = vsel %vm888, %v3920, %v3921
      %v3945 = vsel %vm888, %v3919, %v3920
      %v3946 = vsel %vm888, %v3918, %v3919
      %v3947 = vsel %vm888, %v3917, %v3918
      %v3948 = vsel %vm888, %v3916, %v3917
      %v3949 = vsel %vm888, %v3915, %v3916
      %v3950 = vsel %vm888, %v3914, %v3915
      %v3951 = vsel %vm888, %v3913, %v3914
      %v3952 = vsel %vm888, %v3912, %v3913
      %v3953 = vsel %vm888, %v3911, %v3912
      %v3954 = vsel %vm888, %v3910, %v3911
      %v3955 = vsel %vm888, %v3909, %v3910
      %v3956 = vsel %vm888, %v3908, %v3909
      %v3957 = vsel %vm888, %v3907, %v3908
      %v3958 = vsel %vm888, %v3906, %v3907
      %v3959 = vsel %vm888, %v3905, %v3906
      %v3960 = vsel %vm888, %v3904, %v3905
      %v3961 = vsel %vm888, %v3903, %v3904
      %v3962 = vsel %vm888, %v3902, %v3903
      %v3963 = vsel %vm888, %v3901, %v3902
      %v3964 = vsel %vm888, %v3932, %v3901
      %v3965 = vsel %vm985, %v3934, 0.0
      %v3966 = vsel %vm986, %v3933, 0.0
      %v3967 = vsel %vm987, %v3964, 0.0
      %v3968 = vsel %vm988, %v3963, 0.0
      %v3969 = vsel %vm989, %v3962, 0.0
      %v3970 = vsel %vm990, %v3961, 0.0
      %v3971 = vsel %vm991, %v3960, 0.0
      %v3972 = vsel %vm992, %v3959, 0.0
      %v3973 = vsel %vm993, %v3958, 0.0
      %v3974 = vsel %vm994, %v3957, 0.0
      %v3975 = vsel %vm995, %v3956, 0.0
      %v3976 = vsel %vm996, %v3955, 0.0
      %v3977 = vsel %vm997, %v3954, 0.0
      %v3978 = vsel %vm998, %v3953, 0.0
      %v3979 = vsel %vm999, %v3952, 0.0
      %v3980 = vsel %vm1000, %v3951, 0.0
      %v3981 = vsel %vm1001, %v3950, 0.0
      %v3982 = vsel %vm1002, %v3949, 0.0
      %v3983 = vsel %vm1003, %v3948, 0.0
      %v3984 = vsel %vm1004, %v3947, 0.0
      %v3985 = vsel %vm1005, %v3946, 0.0
      %v3986 = vsel %vm1006, %v3945, 0.0
      %v3987 = vsel %vm1007, %v3944, 0.0
      %v3988 = vsel %vm1008, %v3943, 0.0
      %v3989 = vsel %vm1009, %v3942, 0.0
      %v3990 = vsel %vm1010, %v3941, 0.0
      %v3991 = vsel %vm1011, %v3940, 0.0
      %v3992 = vsel %vm1012, %v3939, 0.0
      %v3993 = vsel %vm1013, %v3938, 0.0
      %v3994 = vsel %vm1014, %v3937, 0.0
      %v3995 = vsel %vm1015, %v3936, 0.0
      %v3996 = vsel %vm1016, %v3935, 0.0
      %3997 = vst [vmem:[#allocation2] sm:$0xff] %v3965
      %3998 = vst [vmem:[#allocation2 + $0x48] sm:$0xff] %v3966
      %3999 = vst [vmem:[#allocation2 + $0x90] sm:$0xff] %v3967
      %4000 = vst [vmem:[#allocation2 + $0xd8] sm:$0xff] %v3968
      %4001 = vst [vmem:[#allocation2 + $0x120] sm:$0xff] %v3969
      %4002 = vst [vmem:[#allocation2 + $0x168] sm:$0xff] %v3970
      %4003 = vst [vmem:[#allocation2 + $0x1b0] sm:$0xff] %v3971
      %4004 = vst [vmem:[#allocation2 + $0x1f8] sm:$0xff] %v3972
      %4005 = vst [vmem:[#allocation2 + $0x240] sm:$0xff] %v3973
      %4006 = vst [vmem:[#allocation2 + $0x288] sm:$0xff] %v3974
      %4007 = vst [vmem:[#allocation2 + $0x2d0] sm:$0xff] %v3975
      %4008 = vst [vmem:[#allocation2 + $0x318] sm:$0xff] %v3976
      %4009 = vst [vmem:[#allocation2 + $0x360] sm:$0xff] %v3977
      %4010 = vst [vmem:[#allocation2 + $0x3a8] sm:$0xff] %v3978
      %4011 = vst [vmem:[#allocation2 + $0x3f0] sm:$0xff] %v3979
      %4012 = vst [vmem:[#allocation2 + $0x438] sm:$0xff] %v3980
      %4013 = vst [vmem:[#allocation2 + $0x480] sm:$0xff] %v3981
      %4014 = vst [vmem:[#allocation2 + $0x4c8] sm:$0xff] %v3982
      %4015 = vst [vmem:[#allocation2 + $0x510] sm:$0xff] %v3983
      %4016 = vst [vmem:[#allocation2 + $0x558] sm:$0xff] %v3984
      %4017 = vst [vmem:[#allocation2 + $0x5a0] sm:$0xff] %v3985
      %4018 = vst [vmem:[#allocation2 + $0x5e8] sm:$0xff] %v3986
      %4019 = vst [vmem:[#allocation2 + $0x630] sm:$0xff] %v3987
      %4020 = vst [vmem:[#allocation2 + $0x678] sm:$0xff] %v3988
      %4021 = vst [vmem:[#allocation2 + $0x6c0] sm:$0xff] %v3989
      %4022 = vst [vmem:[#allocation2 + $0x708] sm:$0xff] %v3990
      %4023 = vst [vmem:[#allocation2 + $0x750] sm:$0xff] %v3991
      %4024 = vst [vmem:[#allocation2 + $0x798] sm:$0xff] %v3992
      %4025 = vst [vmem:[#allocation2 + $0x7e0] sm:$0xff] %v3993
      %4026 = vst [vmem:[#allocation2 + $0x828] sm:$0xff] %v3994
      %4027 = vst [vmem:[#allocation2 + $0x870] sm:$0xff] %v3995
      %4028 = vst [vmem:[#allocation2 + $0x8b8] sm:$0xff] %v3996
      %v4029 = vsel %vm1113, %v3899, 0.0
      %v4030 = vsel %vm1114, %v3900, 0.0
      %v4031 = vsel %vm1115, %v3869, 0.0
      %v4032 = vsel %vm1116, %v3870, 0.0
      %v4033 = vsel %vm1117, %v3871, 0.0
      %v4034 = vsel %vm1118, %v3872, 0.0
      %v4035 = vsel %vm1119, %v3873, 0.0
      %v4036 = vsel %vm1120, %v3874, 0.0
      %v4037 = vsel %vm1121, %v3875, 0.0
      %v4038 = vsel %vm1122, %v3876, 0.0
      %v4039 = vsel %vm1123, %v3877, 0.0
      %v4040 = vsel %vm1124, %v3878, 0.0
      %v4041 = vsel %vm1125, %v3879, 0.0
      %v4042 = vsel %vm1126, %v3880, 0.0
      %v4043 = vsel %vm1127, %v3881, 0.0
      %v4044 = vsel %vm1128, %v3882, 0.0
      %v4045 = vsel %vm1129, %v3883, 0.0
      %v4046 = vsel %vm1130, %v3884, 0.0
      %v4047 = vsel %vm1131, %v3885, 0.0
      %v4048 = vsel %vm1132, %v3886, 0.0
      %v4049 = vsel %vm1133, %v3887, 0.0
      %v4050 = vsel %vm1134, %v3888, 0.0
      %v4051 = vsel %vm1135, %v3889, 0.0
      %v4052 = vsel %vm1136, %v3890, 0.0
      %v4053 = vsel %vm1137, %v3891, 0.0
      %v4054 = vsel %vm1138, %v3892, 0.0
      %v4055 = vsel %vm1139, %v3893, 0.0
      %v4056 = vsel %vm1140, %v3894, 0.0
      %v4057 = vsel %vm1141, %v3895, 0.0
      %v4058 = vsel %vm1142, %v3896, 0.0
      %v4059 = vsel %vm1143, %v3897, 0.0
      %v4060 = vsel %vm1144, %v3898, 0.0
      %4061 = vst [vmem:[#allocation2 + $0x8] sm:$0xff] %v4029
      %4062 = vst [vmem:[#allocation2 + $0x50] sm:$0xff] %v4030
      %4063 = vst [vmem:[#allocation2 + $0x98] sm:$0xff] %v4031
      %4064 = vst [vmem:[#allocation2 + $0xe0] sm:$0xff] %v4032
      %4065 = vst [vmem:[#allocation2 + $0x128] sm:$0xff] %v4033
      %4066 = vst [vmem:[#allocation2 + $0x170] sm:$0xff] %v4034
      %4067 = vst [vmem:[#allocation2 + $0x1b8] sm:$0xff] %v4035
      %4068 = vst [vmem:[#allocation2 + $0x200] sm:$0xff] %v4036
      %4069 = vst [vmem:[#allocation2 + $0x248] sm:$0xff] %v4037
      %4070 = vst [vmem:[#allocation2 + $0x290] sm:$0xff] %v4038
      %4071 = vst [vmem:[#allocation2 + $0x2d8] sm:$0xff] %v4039
      %4072 = vst [vmem:[#allocation2 + $0x320] sm:$0xff] %v4040
      %4073 = vst [vmem:[#allocation2 + $0x368] sm:$0xff] %v4041
      %4074 = vst [vmem:[#allocation2 + $0x3b0] sm:$0xff] %v4042
      %4075 = vst [vmem:[#allocation2 + $0x3f8] sm:$0xff] %v4043
      %4076 = vst [vmem:[#allocation2 + $0x440] sm:$0xff] %v4044
      %4077 = vst [vmem:[#allocation2 + $0x488] sm:$0xff] %v4045
      %4078 = vst [vmem:[#allocation2 + $0x4d0] sm:$0xff] %v4046
      %4079 = vst [vmem:[#allocation2 + $0x518] sm:$0xff] %v4047
      %4080 = vst [vmem:[#allocation2 + $0x560] sm:$0xff] %v4048
      %4081 = vst [vmem:[#allocation2 + $0x5a8] sm:$0xff] %v4049
      %4082 = vst [vmem:[#allocation2 + $0x5f0] sm:$0xff] %v4050
      %4083 = vst [vmem:[#allocation2 + $0x638] sm:$0xff] %v4051
      %4084 = vst [vmem:[#allocation2 + $0x680] sm:$0xff] %v4052
      %4085 = vst [vmem:[#allocation2 + $0x6c8] sm:$0xff] %v4053
      %4086 = vst [vmem:[#allocation2 + $0x710] sm:$0xff] %v4054
      %4087 = vst [vmem:[#allocation2 + $0x758] sm:$0xff] %v4055
      %4088 = vst [vmem:[#allocation2 + $0x7a0] sm:$0xff] %v4056
      %4089 = vst [vmem:[#allocation2 + $0x7e8] sm:$0xff] %v4057
      %4090 = vst [vmem:[#allocation2 + $0x830] sm:$0xff] %v4058
      %4091 = vst [vmem:[#allocation2 + $0x878] sm:$0xff] %v4059
      %4092 = vst [vmem:[#allocation2 + $0x8c0] sm:$0xff] %v4060
      %v4093 = vrot.slane %v3869, 1
      %v4094 = vrot.slane %v3870, 1
      %v4095 = vrot.slane %v3871, 1
      %v4096 = vrot.slane %v3872, 1
      %v4097 = vrot.slane %v3873, 1
      %v4098 = vrot.slane %v3874, 1
      %v4099 = vrot.slane %v3875, 1
      %v4100 = vrot.slane %v3876, 1
      %v4101 = vrot.slane %v3877, 1
      %v4102 = vrot.slane %v3878, 1
      %v4103 = vrot.slane %v3879, 1
      %v4104 = vrot.slane %v3880, 1
      %v4105 = vrot.slane %v3881, 1
      %v4106 = vrot.slane %v3882, 1
      %v4107 = vrot.slane %v3883, 1
      %v4108 = vrot.slane %v3884, 1
      %v4109 = vrot.slane %v3885, 1
      %v4110 = vrot.slane %v3886, 1
      %v4111 = vrot.slane %v3887, 1
      %v4112 = vrot.slane %v3888, 1
      %v4113 = vrot.slane %v3889, 1
      %v4114 = vrot.slane %v3890, 1
      %v4115 = vrot.slane %v3891, 1
      %v4116 = vrot.slane %v3892, 1
      %v4117 = vrot.slane %v3893, 1
      %v4118 = vrot.slane %v3894, 1
      %v4119 = vrot.slane %v3895, 1
      %v4120 = vrot.slane %v3896, 1
      %v4121 = vrot.slane %v3897, 1
      %v4122 = vrot.slane %v3898, 1
      %v4123 = vrot.slane %v3899, 1
      %v4124 = vrot.slane %v3900, 1
      %v4125 = vsel %vm1241, %v4123, %v4124
      %v4126 = vsel %vm1241, %v4122, %v4123
      %v4127 = vsel %vm1241, %v4121, %v4122
      %v4128 = vsel %vm1241, %v4120, %v4121
      %v4129 = vsel %vm1241, %v4119, %v4120
      %v4130 = vsel %vm1241, %v4118, %v4119
      %v4131 = vsel %vm1241, %v4117, %v4118
      %v4132 = vsel %vm1241, %v4116, %v4117
      %v4133 = vsel %vm1241, %v4115, %v4116
      %v4134 = vsel %vm1241, %v4114, %v4115
      %v4135 = vsel %vm1241, %v4113, %v4114
      %v4136 = vsel %vm1241, %v4112, %v4113
      %v4137 = vsel %vm1241, %v4111, %v4112
      %v4138 = vsel %vm1241, %v4110, %v4111
      %v4139 = vsel %vm1241, %v4109, %v4110
      %v4140 = vsel %vm1241, %v4108, %v4109
      %v4141 = vsel %vm1241, %v4107, %v4108
      %v4142 = vsel %vm1241, %v4106, %v4107
      %v4143 = vsel %vm1241, %v4105, %v4106
      %v4144 = vsel %vm1241, %v4104, %v4105
      %v4145 = vsel %vm1241, %v4103, %v4104
      %v4146 = vsel %vm1241, %v4102, %v4103
      %v4147 = vsel %vm1241, %v4101, %v4102
      %v4148 = vsel %vm1241, %v4100, %v4101
      %v4149 = vsel %vm1241, %v4099, %v4100
      %v4150 = vsel %vm1241, %v4098, %v4099
      %v4151 = vsel %vm1241, %v4097, %v4098
      %v4152 = vsel %vm1241, %v4096, %v4097
      %v4153 = vsel %vm1241, %v4095, %v4096
      %v4154 = vsel %vm1241, %v4094, %v4095
      %v4155 = vsel %vm1241, %v4093, %v4094
      %v4156 = vsel %vm1241, %v4124, %v4093
      %v4157 = vsel %vm1338, %v4125, 0.0
      %v4158 = vsel %vm1339, %v4156, 0.0
      %v4159 = vsel %vm1340, %v4155, 0.0
      %v4160 = vsel %vm1341, %v4154, 0.0
      %v4161 = vsel %vm1342, %v4153, 0.0
      %v4162 = vsel %vm1343, %v4152, 0.0
      %v4163 = vsel %vm1344, %v4151, 0.0
      %v4164 = vsel %vm1345, %v4150, 0.0
      %v4165 = vsel %vm1346, %v4149, 0.0
      %v4166 = vsel %vm1347, %v4148, 0.0
      %v4167 = vsel %vm1348, %v4147, 0.0
      %v4168 = vsel %vm1349, %v4146, 0.0
      %v4169 = vsel %vm1350, %v4145, 0.0
      %v4170 = vsel %vm1351, %v4144, 0.0
      %v4171 = vsel %vm1352, %v4143, 0.0
      %v4172 = vsel %vm1353, %v4142, 0.0
      %v4173 = vsel %vm1354, %v4141, 0.0
      %v4174 = vsel %vm1355, %v4140, 0.0
      %v4175 = vsel %vm1356, %v4139, 0.0
      %v4176 = vsel %vm1357, %v4138, 0.0
      %v4177 = vsel %vm1358, %v4137, 0.0
      %v4178 = vsel %vm1359, %v4136, 0.0
      %v4179 = vsel %vm1360, %v4135, 0.0
      %v4180 = vsel %vm1361, %v4134, 0.0
      %v4181 = vsel %vm1362, %v4133, 0.0
      %v4182 = vsel %vm1363, %v4132, 0.0
      %v4183 = vsel %vm1364, %v4131, 0.0
      %v4184 = vsel %vm1365, %v4130, 0.0
      %v4185 = vsel %vm1366, %v4129, 0.0
      %v4186 = vsel %vm1367, %v4128, 0.0
      %v4187 = vsel %vm1368, %v4127, 0.0
      %v4188 = vsel %vm1369, %v4126, 0.0
      %4189 = vst [vmem:[#allocation2 + $0x10] sm:$0xff] %v4157
      %4190 = vst [vmem:[#allocation2 + $0x58] sm:$0xff] %v4158
      %4191 = vst [vmem:[#allocation2 + $0xa0] sm:$0xff] %v4159
      %4192 = vst [vmem:[#allocation2 + $0xe8] sm:$0xff] %v4160
      %4193 = vst [vmem:[#allocation2 + $0x130] sm:$0xff] %v4161
      %4194 = vst [vmem:[#allocation2 + $0x178] sm:$0xff] %v4162
      %4195 = vst [vmem:[#allocation2 + $0x1c0] sm:$0xff] %v4163
      %4196 = vst [vmem:[#allocation2 + $0x208] sm:$0xff] %v4164
      %4197 = vst [vmem:[#allocation2 + $0x250] sm:$0xff] %v4165
      %4198 = vst [vmem:[#allocation2 + $0x298] sm:$0xff] %v4166
      %4199 = vst [vmem:[#allocation2 + $0x2e0] sm:$0xff] %v4167
      %4200 = vst [vmem:[#allocation2 + $0x328] sm:$0xff] %v4168
      %4201 = vst [vmem:[#allocation2 + $0x370] sm:$0xff] %v4169
      %4202 = vst [vmem:[#allocation2 + $0x3b8] sm:$0xff] %v4170
      %4203 = vst [vmem:[#allocation2 + $0x400] sm:$0xff] %v4171
      %4204 = vst [vmem:[#allocation2 + $0x448] sm:$0xff] %v4172
      %4205 = vst [vmem:[#allocation2 + $0x490] sm:$0xff] %v4173
      %4206 = vst [vmem:[#allocation2 + $0x4d8] sm:$0xff] %v4174
      %4207 = vst [vmem:[#allocation2 + $0x520] sm:$0xff] %v4175
      %4208 = vst [vmem:[#allocation2 + $0x568] sm:$0xff] %v4176
      %4209 = vst [vmem:[#allocation2 + $0x5b0] sm:$0xff] %v4177
      %4210 = vst [vmem:[#allocation2 + $0x5f8] sm:$0xff] %v4178
      %4211 = vst [vmem:[#allocation2 + $0x640] sm:$0xff] %v4179
      %4212 = vst [vmem:[#allocation2 + $0x688] sm:$0xff] %v4180
      %4213 = vst [vmem:[#allocation2 + $0x6d0] sm:$0xff] %v4181
      %4214 = vst [vmem:[#allocation2 + $0x718] sm:$0xff] %v4182
      %4215 = vst [vmem:[#allocation2 + $0x760] sm:$0xff] %v4183
      %4216 = vst [vmem:[#allocation2 + $0x7a8] sm:$0xff] %v4184
      %4217 = vst [vmem:[#allocation2 + $0x7f0] sm:$0xff] %v4185
      %4218 = vst [vmem:[#allocation2 + $0x838] sm:$0xff] %v4186
      %4219 = vst [vmem:[#allocation2 + $0x880] sm:$0xff] %v4187
      %4220 = vst [vmem:[#allocation2 + $0x8c8] sm:$0xff] %v4188
      %v4221 = vsel %vm1466, %v3964, 0.0
      %v4222 = vsel %vm1467, %v3963, 0.0
      %v4223 = vsel %vm1468, %v3962, 0.0
      %v4224 = vsel %vm1469, %v3961, 0.0
      %v4225 = vsel %vm1470, %v3960, 0.0
      %v4226 = vsel %vm1471, %v3959, 0.0
      %v4227 = vsel %vm1472, %v3958, 0.0
      %v4228 = vsel %vm1473, %v3957, 0.0
      %v4229 = vsel %vm1474, %v3956, 0.0
      %v4230 = vsel %vm1475, %v3955, 0.0
      %v4231 = vsel %vm1476, %v3954, 0.0
      %v4232 = vsel %vm1477, %v3953, 0.0
      %v4233 = vsel %vm1478, %v3952, 0.0
      %v4234 = vsel %vm1479, %v3951, 0.0
      %v4235 = vsel %vm1480, %v3950, 0.0
      %v4236 = vsel %vm1481, %v3949, 0.0
      %v4237 = vsel %vm1482, %v3948, 0.0
      %v4238 = vsel %vm1483, %v3947, 0.0
      %v4239 = vsel %vm1484, %v3946, 0.0
      %v4240 = vsel %vm1485, %v3945, 0.0
      %v4241 = vsel %vm1486, %v3944, 0.0
      %v4242 = vsel %vm1487, %v3943, 0.0
      %v4243 = vsel %vm1488, %v3942, 0.0
      %v4244 = vsel %vm1489, %v3941, 0.0
      %v4245 = vsel %vm1490, %v3940, 0.0
      %v4246 = vsel %vm1491, %v3939, 0.0
      %v4247 = vsel %vm1492, %v3938, 0.0
      %v4248 = vsel %vm1493, %v3937, 0.0
      %v4249 = vsel %vm1494, %v3936, 0.0
      %v4250 = vsel %vm1495, %v3935, 0.0
      %v4251 = vsel %vm1496, %v3934, 0.0
      %v4252 = vsel %vm1497, %v3933, 0.0
      %4253 = vst [vmem:[#allocation2 + $0x18] sm:$0xff] %v4221
      %4254 = vst [vmem:[#allocation2 + $0x60] sm:$0xff] %v4222
      %4255 = vst [vmem:[#allocation2 + $0xa8] sm:$0xff] %v4223
      %4256 = vst [vmem:[#allocation2 + $0xf0] sm:$0xff] %v4224
      %4257 = vst [vmem:[#allocation2 + $0x138] sm:$0xff] %v4225
      %4258 = vst [vmem:[#allocation2 + $0x180] sm:$0xff] %v4226
      %4259 = vst [vmem:[#allocation2 + $0x1c8] sm:$0xff] %v4227
      %4260 = vst [vmem:[#allocation2 + $0x210] sm:$0xff] %v4228
      %4261 = vst [vmem:[#allocation2 + $0x258] sm:$0xff] %v4229
      %4262 = vst [vmem:[#allocation2 + $0x2a0] sm:$0xff] %v4230
      %4263 = vst [vmem:[#allocation2 + $0x2e8] sm:$0xff] %v4231
      %4264 = vst [vmem:[#allocation2 + $0x330] sm:$0xff] %v4232
      %4265 = vst [vmem:[#allocation2 + $0x378] sm:$0xff] %v4233
      %4266 = vst [vmem:[#allocation2 + $0x3c0] sm:$0xff] %v4234
      %4267 = vst [vmem:[#allocation2 + $0x408] sm:$0xff] %v4235
      %4268 = vst [vmem:[#allocation2 + $0x450] sm:$0xff] %v4236
      %4269 = vst [vmem:[#allocation2 + $0x498] sm:$0xff] %v4237
      %4270 = vst [vmem:[#allocation2 + $0x4e0] sm:$0xff] %v4238
      %4271 = vst [vmem:[#allocation2 + $0x528] sm:$0xff] %v4239
      %4272 = vst [vmem:[#allocation2 + $0x570] sm:$0xff] %v4240
      %4273 = vst [vmem:[#allocation2 + $0x5b8] sm:$0xff] %v4241
      %4274 = vst [vmem:[#allocation2 + $0x600] sm:$0xff] %v4242
      %4275 = vst [vmem:[#allocation2 + $0x648] sm:$0xff] %v4243
      %4276 = vst [vmem:[#allocation2 + $0x690] sm:$0xff] %v4244
      %4277 = vst [vmem:[#allocation2 + $0x6d8] sm:$0xff] %v4245
      %4278 = vst [vmem:[#allocation2 + $0x720] sm:$0xff] %v4246
      %4279 = vst [vmem:[#allocation2 + $0x768] sm:$0xff] %v4247
      %4280 = vst [vmem:[#allocation2 + $0x7b0] sm:$0xff] %v4248
      %4281 = vst [vmem:[#allocation2 + $0x7f8] sm:$0xff] %v4249
      %4282 = vst [vmem:[#allocation2 + $0x840] sm:$0xff] %v4250
      %4283 = vst [vmem:[#allocation2 + $0x888] sm:$0xff] %v4251
      %4284 = vst [vmem:[#allocation2 + $0x8d0] sm:$0xff] %v4252
      %4285 = vst [vmem:[#allocation2 + $0x20] sm:$0xff] %v3869
      %4286 = vst [vmem:[#allocation2 + $0x68] sm:$0xff] %v3870
      %4287 = vst [vmem:[#allocation2 + $0xb0] sm:$0xff] %v3871
      %4288 = vst [vmem:[#allocation2 + $0xf8] sm:$0xff] %v3872
      %4289 = vst [vmem:[#allocation2 + $0x140] sm:$0xff] %v3873
      %4290 = vst [vmem:[#allocation2 + $0x188] sm:$0xff] %v3874
      %4291 = vst [vmem:[#allocation2 + $0x1d0] sm:$0xff] %v3875
      %4292 = vst [vmem:[#allocation2 + $0x218] sm:$0xff] %v3876
      %4293 = vst [vmem:[#allocation2 + $0x260] sm:$0xff] %v3877
      %4294 = vst [vmem:[#allocation2 + $0x2a8] sm:$0xff] %v3878
      %4295 = vst [vmem:[#allocation2 + $0x2f0] sm:$0xff] %v3879
      %4296 = vst [vmem:[#allocation2 + $0x338] sm:$0xff] %v3880
      %4297 = vst [vmem:[#allocation2 + $0x380] sm:$0xff] %v3881
      %4298 = vst [vmem:[#allocation2 + $0x3c8] sm:$0xff] %v3882
      %4299 = vst [vmem:[#allocation2 + $0x410] sm:$0xff] %v3883
      %4300 = vst [vmem:[#allocation2 + $0x458] sm:$0xff] %v3884
      %4301 = vst [vmem:[#allocation2 + $0x4a0] sm:$0xff] %v3885
      %4302 = vst [vmem:[#allocation2 + $0x4e8] sm:$0xff] %v3886
      %4303 = vst [vmem:[#allocation2 + $0x530] sm:$0xff] %v3887
      %4304 = vst [vmem:[#allocation2 + $0x578] sm:$0xff] %v3888
      %4305 = vst [vmem:[#allocation2 + $0x5c0] sm:$0xff] %v3889
      %4306 = vst [vmem:[#allocation2 + $0x608] sm:$0xff] %v3890
      %4307 = vst [vmem:[#allocation2 + $0x650] sm:$0xff] %v3891
      %4308 = vst [vmem:[#allocation2 + $0x698] sm:$0xff] %v3892
      %4309 = vst [vmem:[#allocation2 + $0x6e0] sm:$0xff] %v3893
      %4310 = vst [vmem:[#allocation2 + $0x728] sm:$0xff] %v3894
      %4311 = vst [vmem:[#allocation2 + $0x770] sm:$0xff] %v3895
      %4312 = vst [vmem:[#allocation2 + $0x7b8] sm:$0xff] %v3896
      %4313 = vst [vmem:[#allocation2 + $0x800] sm:$0xff] %v3897
      %4314 = vst [vmem:[#allocation2 + $0x848] sm:$0xff] %v3898
      %4315 = vst [vmem:[#allocation2 + $0x890] sm:$0xff] %v3899
      %4316 = vst [vmem:[#allocation2 + $0x8d8] sm:$0xff] %v3900
      %v4317 = vsel %vm1626, %v4155, 0.0
      %v4318 = vsel %vm1627, %v4154, 0.0
      %v4319 = vsel %vm1628, %v4153, 0.0
      %v4320 = vsel %vm1629, %v4152, 0.0
      %v4321 = vsel %vm1630, %v4151, 0.0
      %v4322 = vsel %vm1631, %v4150, 0.0
      %v4323 = vsel %vm1632, %v4149, 0.0
      %v4324 = vsel %vm1633, %v4148, 0.0
      %v4325 = vsel %vm1634, %v4147, 0.0
      %v4326 = vsel %vm1635, %v4146, 0.0
      %v4327 = vsel %vm1636, %v4145, 0.0
      %v4328 = vsel %vm1637, %v4144, 0.0
      %v4329 = vsel %vm1638, %v4143, 0.0
      %v4330 = vsel %vm1639, %v4142, 0.0
      %v4331 = vsel %vm1640, %v4141, 0.0
      %v4332 = vsel %vm1641, %v4140, 0.0
      %v4333 = vsel %vm1642, %v4139, 0.0
      %v4334 = vsel %vm1643, %v4138, 0.0
      %v4335 = vsel %vm1644, %v4137, 0.0
      %v4336 = vsel %vm1645, %v4136, 0.0
      %v4337 = vsel %vm1646, %v4135, 0.0
      %v4338 = vsel %vm1647, %v4134, 0.0
      %v4339 = vsel %vm1648, %v4133, 0.0
      %v4340 = vsel %vm1649, %v4132, 0.0
      %v4341 = vsel %vm1650, %v4131, 0.0
      %v4342 = vsel %vm1651, %v4130, 0.0
      %v4343 = vsel %vm1652, %v4129, 0.0
      %v4344 = vsel %vm1653, %v4128, 0.0
      %v4345 = vsel %vm1654, %v4127, 0.0
      %v4346 = vsel %vm1655, %v4126, 0.0
      %v4347 = vsel %vm1656, %v4125, 0.0
      %v4348 = vsel %vm1657, %v4156, 0.0
      %4349 = vst [vmem:[#allocation2 + $0x28] sm:$0xff] %v4317
      %4350 = vst [vmem:[#allocation2 + $0x70] sm:$0xff] %v4318
      %4351 = vst [vmem:[#allocation2 + $0xb8] sm:$0xff] %v4319
      %4352 = vst [vmem:[#allocation2 + $0x100] sm:$0xff] %v4320
      %4353 = vst [vmem:[#allocation2 + $0x148] sm:$0xff] %v4321
      %4354 = vst [vmem:[#allocation2 + $0x190] sm:$0xff] %v4322
      %4355 = vst [vmem:[#allocation2 + $0x1d8] sm:$0xff] %v4323
      %4356 = vst [vmem:[#allocation2 + $0x220] sm:$0xff] %v4324
      %4357 = vst [vmem:[#allocation2 + $0x268] sm:$0xff] %v4325
      %4358 = vst [vmem:[#allocation2 + $0x2b0] sm:$0xff] %v4326
      %4359 = vst [vmem:[#allocation2 + $0x2f8] sm:$0xff] %v4327
      %4360 = vst [vmem:[#allocation2 + $0x340] sm:$0xff] %v4328
      %4361 = vst [vmem:[#allocation2 + $0x388] sm:$0xff] %v4329
      %4362 = vst [vmem:[#allocation2 + $0x3d0] sm:$0xff] %v4330
      %4363 = vst [vmem:[#allocation2 + $0x418] sm:$0xff] %v4331
      %4364 = vst [vmem:[#allocation2 + $0x460] sm:$0xff] %v4332
      %4365 = vst [vmem:[#allocation2 + $0x4a8] sm:$0xff] %v4333
      %4366 = vst [vmem:[#allocation2 + $0x4f0] sm:$0xff] %v4334
      %4367 = vst [vmem:[#allocation2 + $0x538] sm:$0xff] %v4335
      %4368 = vst [vmem:[#allocation2 + $0x580] sm:$0xff] %v4336
      %4369 = vst [vmem:[#allocation2 + $0x5c8] sm:$0xff] %v4337
      %4370 = vst [vmem:[#allocation2 + $0x610] sm:$0xff] %v4338
      %4371 = vst [vmem:[#allocation2 + $0x658] sm:$0xff] %v4339
      %4372 = vst [vmem:[#allocation2 + $0x6a0] sm:$0xff] %v4340
      %4373 = vst [vmem:[#allocation2 + $0x6e8] sm:$0xff] %v4341
      %4374 = vst [vmem:[#allocation2 + $0x730] sm:$0xff] %v4342
      %4375 = vst [vmem:[#allocation2 + $0x778] sm:$0xff] %v4343
      %4376 = vst [vmem:[#allocation2 + $0x7c0] sm:$0xff] %v4344
      %4377 = vst [vmem:[#allocation2 + $0x808] sm:$0xff] %v4345
      %4378 = vst [vmem:[#allocation2 + $0x850] sm:$0xff] %v4346
      %4379 = vst [vmem:[#allocation2 + $0x898] sm:$0xff] %v4347
      %4380 = vst [vmem:[#allocation2 + $0x8e0] sm:$0xff] %v4348
      %v4381 = vsel %vm1786, %v3962, 0.0
      %v4382 = vsel %vm1787, %v3961, 0.0
      %v4383 = vsel %vm1788, %v3960, 0.0
      %v4384 = vsel %vm1789, %v3959, 0.0
      %v4385 = vsel %vm1790, %v3958, 0.0
      %v4386 = vsel %vm1791, %v3957, 0.0
      %v4387 = vsel %vm1792, %v3956, 0.0
      %v4388 = vsel %vm1793, %v3955, 0.0
      %v4389 = vsel %vm1794, %v3954, 0.0
      %v4390 = vsel %vm1795, %v3953, 0.0
      %v4391 = vsel %vm1796, %v3952, 0.0
      %v4392 = vsel %vm1797, %v3951, 0.0
      %v4393 = vsel %vm1798, %v3950, 0.0
      %v4394 = vsel %vm1799, %v3949, 0.0
      %v4395 = vsel %vm1800, %v3948, 0.0
      %v4396 = vsel %vm1801, %v3947, 0.0
      %v4397 = vsel %vm1802, %v3946, 0.0
      %v4398 = vsel %vm1803, %v3945, 0.0
      %v4399 = vsel %vm1804, %v3944, 0.0
      %v4400 = vsel %vm1805, %v3943, 0.0
      %v4401 = vsel %vm1806, %v3942, 0.0
      %v4402 = vsel %vm1807, %v3941, 0.0
      %v4403 = vsel %vm1808, %v3940, 0.0
      %v4404 = vsel %vm1809, %v3939, 0.0
      %v4405 = vsel %vm1810, %v3938, 0.0
      %v4406 = vsel %vm1811, %v3937, 0.0
      %v4407 = vsel %vm1812, %v3936, 0.0
      %v4408 = vsel %vm1813, %v3935, 0.0
      %v4409 = vsel %vm1814, %v3934, 0.0
      %v4410 = vsel %vm1815, %v3933, 0.0
      %v4411 = vsel %vm1816, %v3964, 0.0
      %v4412 = vsel %vm1817, %v3963, 0.0
      %4413 = vst [vmem:[#allocation2 + $0x30] sm:$0xff] %v4381
      %4414 = vst [vmem:[#allocation2 + $0x78] sm:$0xff] %v4382
      %4415 = vst [vmem:[#allocation2 + $0xc0] sm:$0xff] %v4383
      %4416 = vst [vmem:[#allocation2 + $0x108] sm:$0xff] %v4384
      %4417 = vst [vmem:[#allocation2 + $0x150] sm:$0xff] %v4385
      %4418 = vst [vmem:[#allocation2 + $0x198] sm:$0xff] %v4386
      %4419 = vst [vmem:[#allocation2 + $0x1e0] sm:$0xff] %v4387
      %4420 = vst [vmem:[#allocation2 + $0x228] sm:$0xff] %v4388
      %4421 = vst [vmem:[#allocation2 + $0x270] sm:$0xff] %v4389
      %4422 = vst [vmem:[#allocation2 + $0x2b8] sm:$0xff] %v4390
      %4423 = vst [vmem:[#allocation2 + $0x300] sm:$0xff] %v4391
      %4424 = vst [vmem:[#allocation2 + $0x348] sm:$0xff] %v4392
      %4425 = vst [vmem:[#allocation2 + $0x390] sm:$0xff] %v4393
      %4426 = vst [vmem:[#allocation2 + $0x3d8] sm:$0xff] %v4394
      %4427 = vst [vmem:[#allocation2 + $0x420] sm:$0xff] %v4395
      %4428 = vst [vmem:[#allocation2 + $0x468] sm:$0xff] %v4396
      %4429 = vst [vmem:[#allocation2 + $0x4b0] sm:$0xff] %v4397
      %4430 = vst [vmem:[#allocation2 + $0x4f8] sm:$0xff] %v4398
      %4431 = vst [vmem:[#allocation2 + $0x540] sm:$0xff] %v4399
      %4432 = vst [vmem:[#allocation2 + $0x588] sm:$0xff] %v4400
      %4433 = vst [vmem:[#allocation2 + $0x5d0] sm:$0xff] %v4401
      %4434 = vst [vmem:[#allocation2 + $0x618] sm:$0xff] %v4402
      %4435 = vst [vmem:[#allocation2 + $0x660] sm:$0xff] %v4403
      %4436 = vst [vmem:[#allocation2 + $0x6a8] sm:$0xff] %v4404
      %4437 = vst [vmem:[#allocation2 + $0x6f0] sm:$0xff] %v4405
      %4438 = vst [vmem:[#allocation2 + $0x738] sm:$0xff] %v4406
      %4439 = vst [vmem:[#allocation2 + $0x780] sm:$0xff] %v4407
      %4440 = vst [vmem:[#allocation2 + $0x7c8] sm:$0xff] %v4408
      %4441 = vst [vmem:[#allocation2 + $0x810] sm:$0xff] %v4409
      %4442 = vst [vmem:[#allocation2 + $0x858] sm:$0xff] %v4410
      %4443 = vst [vmem:[#allocation2 + $0x8a0] sm:$0xff] %v4411
      %4444 = vst [vmem:[#allocation2 + $0x8e8] sm:$0xff] %v4412
      %v4445 = vsel %vm1914, %v3871, 0.0
      %v4446 = vsel %vm1915, %v3872, 0.0
      %v4447 = vsel %vm1916, %v3873, 0.0
      %v4448 = vsel %vm1917, %v3874, 0.0
      %v4449 = vsel %vm1918, %v3875, 0.0
      %v4450 = vsel %vm1919, %v3876, 0.0
      %v4451 = vsel %vm1920, %v3877, 0.0
      %v4452 = vsel %vm1921, %v3878, 0.0
      %v4453 = vsel %vm1922, %v3879, 0.0
      %v4454 = vsel %vm1923, %v3880, 0.0
      %v4455 = vsel %vm1924, %v3881, 0.0
      %v4456 = vsel %vm1925, %v3882, 0.0
      %v4457 = vsel %vm1926, %v3883, 0.0
      %v4458 = vsel %vm1927, %v3884, 0.0
      %v4459 = vsel %vm1928, %v3885, 0.0
      %v4460 = vsel %vm1929, %v3886, 0.0
      %v4461 = vsel %vm1930, %v3887, 0.0
      %v4462 = vsel %vm1931, %v3888, 0.0
      %v4463 = vsel %vm1932, %v3889, 0.0
      %v4464 = vsel %vm1933, %v3890, 0.0
      %v4465 = vsel %vm1934, %v3891, 0.0
      %v4466 = vsel %vm1935, %v3892, 0.0
      %v4467 = vsel %vm1936, %v3893, 0.0
      %v4468 = vsel %vm1937, %v3894, 0.0
      %v4469 = vsel %vm1938, %v3895, 0.0
      %v4470 = vsel %vm1939, %v3896, 0.0
      %v4471 = vsel %vm1940, %v3897, 0.0
      %v4472 = vsel %vm1941, %v3898, 0.0
      %v4473 = vsel %vm1942, %v3899, 0.0
      %v4474 = vsel %vm1943, %v3900, 0.0
      %v4475 = vsel %vm1944, %v3869, 0.0
      %v4476 = vsel %vm1945, %v3870, 0.0
      %4477 = vst [vmem:[#allocation2 + $0x38] sm:$0xff] %v4445
      %4478 = vst [vmem:[#allocation2 + $0x80] sm:$0xff] %v4446
      %4479 = vst [vmem:[#allocation2 + $0xc8] sm:$0xff] %v4447
      %4480 = vst [vmem:[#allocation2 + $0x110] sm:$0xff] %v4448
      %4481 = vst [vmem:[#allocation2 + $0x158] sm:$0xff] %v4449
      %4482 = vst [vmem:[#allocation2 + $0x1a0] sm:$0xff] %v4450
      %4483 = vst [vmem:[#allocation2 + $0x1e8] sm:$0xff] %v4451
      %4484 = vst [vmem:[#allocation2 + $0x230] sm:$0xff] %v4452
      %4485 = vst [vmem:[#allocation2 + $0x278] sm:$0xff] %v4453
      %4486 = vst [vmem:[#allocation2 + $0x2c0] sm:$0xff] %v4454
      %4487 = vst [vmem:[#allocation2 + $0x308] sm:$0xff] %v4455
      %4488 = vst [vmem:[#allocation2 + $0x350] sm:$0xff] %v4456
      %4489 = vst [vmem:[#allocation2 + $0x398] sm:$0xff] %v4457
      %4490 = vst [vmem:[#allocation2 + $0x3e0] sm:$0xff] %v4458
      %4491 = vst [vmem:[#allocation2 + $0x428] sm:$0xff] %v4459
      %4492 = vst [vmem:[#allocation2 + $0x470] sm:$0xff] %v4460
      %4493 = vst [vmem:[#allocation2 + $0x4b8] sm:$0xff] %v4461
      %4494 = vst [vmem:[#allocation2 + $0x500] sm:$0xff] %v4462
      %4495 = vst [vmem:[#allocation2 + $0x548] sm:$0xff] %v4463
      %4496 = vst [vmem:[#allocation2 + $0x590] sm:$0xff] %v4464
      %4497 = vst [vmem:[#allocation2 + $0x5d8] sm:$0xff] %v4465
      %4498 = vst [vmem:[#allocation2 + $0x620] sm:$0xff] %v4466
      %4499 = vst [vmem:[#allocation2 + $0x668] sm:$0xff] %v4467
      %4500 = vst [vmem:[#allocation2 + $0x6b0] sm:$0xff] %v4468
      %4501 = vst [vmem:[#allocation2 + $0x6f8] sm:$0xff] %v4469
      %4502 = vst [vmem:[#allocation2 + $0x740] sm:$0xff] %v4470
      %4503 = vst [vmem:[#allocation2 + $0x788] sm:$0xff] %v4471
      %4504 = vst [vmem:[#allocation2 + $0x7d0] sm:$0xff] %v4472
      %4505 = vst [vmem:[#allocation2 + $0x818] sm:$0xff] %v4473
      %4506 = vst [vmem:[#allocation2 + $0x860] sm:$0xff] %v4474
      %4507 = vst [vmem:[#allocation2 + $0x8a8] sm:$0xff] %v4475
      %4508 = vst [vmem:[#allocation2 + $0x8f0] sm:$0xff] %v4476
      %v4509 = vsel %vm2074, %v4153, 0.0
      %v4510 = vsel %vm2075, %v4152, 0.0
      %v4511 = vsel %vm2076, %v4151, 0.0
      %v4512 = vsel %vm2077, %v4150, 0.0
      %v4513 = vsel %vm2078, %v4149, 0.0
      %v4514 = vsel %vm2079, %v4148, 0.0
      %v4515 = vsel %vm2080, %v4147, 0.0
      %v4516 = vsel %vm2081, %v4146, 0.0
      %v4517 = vsel %vm2082, %v4145, 0.0
      %v4518 = vsel %vm2083, %v4144, 0.0
      %v4519 = vsel %vm2084, %v4143, 0.0
      %v4520 = vsel %vm2085, %v4142, 0.0
      %v4521 = vsel %vm2086, %v4141, 0.0
      %v4522 = vsel %vm2087, %v4140, 0.0
      %v4523 = vsel %vm2088, %v4139, 0.0
      %v4524 = vsel %vm2089, %v4138, 0.0
      %v4525 = vsel %vm2090, %v4137, 0.0
      %v4526 = vsel %vm2091, %v4136, 0.0
      %v4527 = vsel %vm2092, %v4135, 0.0
      %v4528 = vsel %vm2093, %v4134, 0.0
      %v4529 = vsel %vm2094, %v4133, 0.0
      %v4530 = vsel %vm2095, %v4132, 0.0
      %v4531 = vsel %vm2096, %v4131, 0.0
      %v4532 = vsel %vm2097, %v4130, 0.0
      %v4533 = vsel %vm2098, %v4129, 0.0
      %v4534 = vsel %vm2099, %v4128, 0.0
      %v4535 = vsel %vm2100, %v4127, 0.0
      %v4536 = vsel %vm2101, %v4126, 0.0
      %v4537 = vsel %vm2102, %v4125, 0.0
      %v4538 = vsel %vm2103, %v4156, 0.0
      %v4539 = vsel %vm2104, %v4155, 0.0
      %v4540 = vsel %vm2105, %v4154, 0.0
      %4541 = vst [vmem:[#allocation2 + $0x40] sm:$0xff] %v4509
      %4542 = vst [vmem:[#allocation2 + $0x88] sm:$0xff] %v4510
      %4543 = vst [vmem:[#allocation2 + $0xd0] sm:$0xff] %v4511
      %4544 = vst [vmem:[#allocation2 + $0x118] sm:$0xff] %v4512
      %4545 = vst [vmem:[#allocation2 + $0x160] sm:$0xff] %v4513
      %4546 = vst [vmem:[#allocation2 + $0x1a8] sm:$0xff] %v4514
      %4547 = vst [vmem:[#allocation2 + $0x1f0] sm:$0xff] %v4515
      %4548 = vst [vmem:[#allocation2 + $0x238] sm:$0xff] %v4516
      %4549 = vst [vmem:[#allocation2 + $0x280] sm:$0xff] %v4517
      %4550 = vst [vmem:[#allocation2 + $0x2c8] sm:$0xff] %v4518
      %4551 = vst [vmem:[#allocation2 + $0x310] sm:$0xff] %v4519
      %4552 = vst [vmem:[#allocation2 + $0x358] sm:$0xff] %v4520
      %4553 = vst [vmem:[#allocation2 + $0x3a0] sm:$0xff] %v4521
      %4554 = vst [vmem:[#allocation2 + $0x3e8] sm:$0xff] %v4522
      %4555 = vst [vmem:[#allocation2 + $0x430] sm:$0xff] %v4523
      %4556 = vst [vmem:[#allocation2 + $0x478] sm:$0xff] %v4524
      %4557 = vst [vmem:[#allocation2 + $0x4c0] sm:$0xff] %v4525
      %4558 = vst [vmem:[#allocation2 + $0x508] sm:$0xff] %v4526
      %4559 = vst [vmem:[#allocation2 + $0x550] sm:$0xff] %v4527
      %4560 = vst [vmem:[#allocation2 + $0x598] sm:$0xff] %v4528
      %4561 = vst [vmem:[#allocation2 + $0x5e0] sm:$0xff] %v4529
      %4562 = vst [vmem:[#allocation2 + $0x628] sm:$0xff] %v4530
      %4563 = vst [vmem:[#allocation2 + $0x670] sm:$0xff] %v4531
      %4564 = vst [vmem:[#allocation2 + $0x6b8] sm:$0xff] %v4532
      %4565 = vst [vmem:[#allocation2 + $0x700] sm:$0xff] %v4533
      %4566 = vst [vmem:[#allocation2 + $0x748] sm:$0xff] %v4534
      %4567 = vst [vmem:[#allocation2 + $0x790] sm:$0xff] %v4535
      %4568 = vst [vmem:[#allocation2 + $0x7d8] sm:$0xff] %v4536
      %4569 = vst [vmem:[#allocation2 + $0x820] sm:$0xff] %v4537
      %4570 = vst [vmem:[#allocation2 + $0x868] sm:$0xff] %v4538
      %4571 = vst [vmem:[#allocation2 + $0x8b0] sm:$0xff] %v4539
      %4572 = vst [vmem:[#allocation2 + $0x8f8] sm:$0xff] %v4540
      %v4573 = vld [vmem:[#allocation2] sm:$0xff]
      %v4574 = vld [vmem:[#allocation2 + $0x8] sm:$0xff]
      %v4575 = vld [vmem:[#allocation2 + $0x10] sm:$0xff]
      %v4576 = vld [vmem:[#allocation2 + $0x18] sm:$0xff]
      %v4577 = vld [vmem:[#allocation2 + $0x20] sm:$0xff]
      %v4578 = vld [vmem:[#allocation2 + $0x28] sm:$0xff]
      %v4579 = vld [vmem:[#allocation2 + $0x30] sm:$0xff]
      %v4580 = vld [vmem:[#allocation2 + $0x38] sm:$0xff]
      %v4581 = vld [vmem:[#allocation2 + $0x40] sm:$0xff]
      %v4582 = vld [vmem:[#allocation2 + $0x48] sm:$0xff]
      %v4583 = vld [vmem:[#allocation2 + $0x50] sm:$0xff]
      %v4584 = vld [vmem:[#allocation2 + $0x58] sm:$0xff]
      %v4585 = vld [vmem:[#allocation2 + $0x60] sm:$0xff]
      %v4586 = vld [vmem:[#allocation2 + $0x68] sm:$0xff]
      %v4587 = vld [vmem:[#allocation2 + $0x70] sm:$0xff]
      %v4588 = vld [vmem:[#allocation2 + $0x78] sm:$0xff]
      %v4589 = vld [vmem:[#allocation2 + $0x80] sm:$0xff]
      %v4590 = vld [vmem:[#allocation2 + $0x88] sm:$0xff]
      %v4591 = vld [vmem:[#allocation2 + $0x90] sm:$0xff]
      %v4592 = vld [vmem:[#allocation2 + $0x98] sm:$0xff]
      %v4593 = vld [vmem:[#allocation2 + $0xa0] sm:$0xff]
      %v4594 = vld [vmem:[#allocation2 + $0xa8] sm:$0xff]
      %v4595 = vld [vmem:[#allocation2 + $0xb0] sm:$0xff]
      %v4596 = vld [vmem:[#allocation2 + $0xb8] sm:$0xff]
      %v4597 = vld [vmem:[#allocation2 + $0xc0] sm:$0xff]
      %v4598 = vld [vmem:[#allocation2 + $0xc8] sm:$0xff]
      %v4599 = vld [vmem:[#allocation2 + $0xd0] sm:$0xff]
      %v4600 = vld [vmem:[#allocation2 + $0xd8] sm:$0xff]
      %v4601 = vld [vmem:[#allocation2 + $0xe0] sm:$0xff]
      %v4602 = vld [vmem:[#allocation2 + $0xe8] sm:$0xff]
      %v4603 = vld [vmem:[#allocation2 + $0xf0] sm:$0xff]
      %v4604 = vld [vmem:[#allocation2 + $0xf8] sm:$0xff]
      %v4605 = vld [vmem:[#allocation2 + $0x100] sm:$0xff]
      %v4606 = vld [vmem:[#allocation2 + $0x108] sm:$0xff]
      %v4607 = vld [vmem:[#allocation2 + $0x110] sm:$0xff]
      %v4608 = vld [vmem:[#allocation2 + $0x118] sm:$0xff]
      %v4609 = vld [vmem:[#allocation2 + $0x120] sm:$0xff]
      %v4610 = vld [vmem:[#allocation2 + $0x128] sm:$0xff]
      %v4611 = vld [vmem:[#allocation2 + $0x130] sm:$0xff]
      %v4612 = vld [vmem:[#allocation2 + $0x138] sm:$0xff]
      %v4613 = vld [vmem:[#allocation2 + $0x140] sm:$0xff]
      %v4614 = vld [vmem:[#allocation2 + $0x148] sm:$0xff]
      %v4615 = vld [vmem:[#allocation2 + $0x150] sm:$0xff]
      %v4616 = vld [vmem:[#allocation2 + $0x158] sm:$0xff]
      %v4617 = vld [vmem:[#allocation2 + $0x160] sm:$0xff]
      %v4618 = vld [vmem:[#allocation2 + $0x168] sm:$0xff]
      %v4619 = vld [vmem:[#allocation2 + $0x170] sm:$0xff]
      %v4620 = vld [vmem:[#allocation2 + $0x178] sm:$0xff]
      %v4621 = vld [vmem:[#allocation2 + $0x180] sm:$0xff]
      %v4622 = vld [vmem:[#allocation2 + $0x188] sm:$0xff]
      %v4623 = vld [vmem:[#allocation2 + $0x190] sm:$0xff]
      %v4624 = vld [vmem:[#allocation2 + $0x198] sm:$0xff]
      %v4625 = vld [vmem:[#allocation2 + $0x1a0] sm:$0xff]
      %v4626 = vld [vmem:[#allocation2 + $0x1a8] sm:$0xff]
      %v4627 = vld [vmem:[#allocation2 + $0x1b0] sm:$0xff]
      %v4628 = vld [vmem:[#allocation2 + $0x1b8] sm:$0xff]
      %v4629 = vld [vmem:[#allocation2 + $0x1c0] sm:$0xff]
      %v4630 = vld [vmem:[#allocation2 + $0x1c8] sm:$0xff]
      %v4631 = vld [vmem:[#allocation2 + $0x1d0] sm:$0xff]
      %v4632 = vld [vmem:[#allocation2 + $0x1d8] sm:$0xff]
      %v4633 = vld [vmem:[#allocation2 + $0x1e0] sm:$0xff]
      %v4634 = vld [vmem:[#allocation2 + $0x1e8] sm:$0xff]
      %v4635 = vld [vmem:[#allocation2 + $0x1f0] sm:$0xff]
      %v4636 = vld [vmem:[#allocation2 + $0x1f8] sm:$0xff]
      %v4637 = vld [vmem:[#allocation2 + $0x200] sm:$0xff]
      %v4638 = vld [vmem:[#allocation2 + $0x208] sm:$0xff]
      %v4639 = vld [vmem:[#allocation2 + $0x210] sm:$0xff]
      %v4640 = vld [vmem:[#allocation2 + $0x218] sm:$0xff]
      %v4641 = vld [vmem:[#allocation2 + $0x220] sm:$0xff]
      %v4642 = vld [vmem:[#allocation2 + $0x228] sm:$0xff]
      %v4643 = vld [vmem:[#allocation2 + $0x230] sm:$0xff]
      %v4644 = vld [vmem:[#allocation2 + $0x238] sm:$0xff]
      %v4645 = vld [vmem:[#allocation2 + $0x240] sm:$0xff]
      %v4646 = vld [vmem:[#allocation2 + $0x248] sm:$0xff]
      %v4647 = vld [vmem:[#allocation2 + $0x250] sm:$0xff]
      %v4648 = vld [vmem:[#allocation2 + $0x258] sm:$0xff]
      %v4649 = vld [vmem:[#allocation2 + $0x260] sm:$0xff]
      %v4650 = vld [vmem:[#allocation2 + $0x268] sm:$0xff]
      %v4651 = vld [vmem:[#allocation2 + $0x270] sm:$0xff]
      %v4652 = vld [vmem:[#allocation2 + $0x278] sm:$0xff]
      %v4653 = vld [vmem:[#allocation2 + $0x280] sm:$0xff]
      %v4654 = vld [vmem:[#allocation2 + $0x288] sm:$0xff]
      %v4655 = vld [vmem:[#allocation2 + $0x290] sm:$0xff]
      %v4656 = vld [vmem:[#allocation2 + $0x298] sm:$0xff]
      %v4657 = vld [vmem:[#allocation2 + $0x2a0] sm:$0xff]
      %v4658 = vld [vmem:[#allocation2 + $0x2a8] sm:$0xff]
      %v4659 = vld [vmem:[#allocation2 + $0x2b0] sm:$0xff]
      %v4660 = vld [vmem:[#allocation2 + $0x2b8] sm:$0xff]
      %v4661 = vld [vmem:[#allocation2 + $0x2c0] sm:$0xff]
      %v4662 = vld [vmem:[#allocation2 + $0x2c8] sm:$0xff]
      %v4663 = vld [vmem:[#allocation2 + $0x2d0] sm:$0xff]
      %v4664 = vld [vmem:[#allocation2 + $0x2d8] sm:$0xff]
      %v4665 = vld [vmem:[#allocation2 + $0x2e0] sm:$0xff]
      %v4666 = vld [vmem:[#allocation2 + $0x2e8] sm:$0xff]
      %v4667 = vld [vmem:[#allocation2 + $0x2f0] sm:$0xff]
      %v4668 = vld [vmem:[#allocation2 + $0x2f8] sm:$0xff]
      %v4669 = vld [vmem:[#allocation2 + $0x300] sm:$0xff]
      %v4670 = vld [vmem:[#allocation2 + $0x308] sm:$0xff]
      %v4671 = vld [vmem:[#allocation2 + $0x310] sm:$0xff]
      %v4672 = vld [vmem:[#allocation2 + $0x318] sm:$0xff]
      %v4673 = vld [vmem:[#allocation2 + $0x320] sm:$0xff]
      %v4674 = vld [vmem:[#allocation2 + $0x328] sm:$0xff]
      %v4675 = vld [vmem:[#allocation2 + $0x330] sm:$0xff]
      %v4676 = vld [vmem:[#allocation2 + $0x338] sm:$0xff]
      %v4677 = vld [vmem:[#allocation2 + $0x340] sm:$0xff]
      %v4678 = vld [vmem:[#allocation2 + $0x348] sm:$0xff]
      %v4679 = vld [vmem:[#allocation2 + $0x350] sm:$0xff]
      %v4680 = vld [vmem:[#allocation2 + $0x358] sm:$0xff]
      %v4681 = vld [vmem:[#allocation2 + $0x360] sm:$0xff]
      %v4682 = vld [vmem:[#allocation2 + $0x368] sm:$0xff]
      %v4683 = vld [vmem:[#allocation2 + $0x370] sm:$0xff]
      %v4684 = vld [vmem:[#allocation2 + $0x378] sm:$0xff]
      %v4685 = vld [vmem:[#allocation2 + $0x380] sm:$0xff]
      %v4686 = vld [vmem:[#allocation2 + $0x388] sm:$0xff]
      %v4687 = vld [vmem:[#allocation2 + $0x390] sm:$0xff]
      %v4688 = vld [vmem:[#allocation2 + $0x398] sm:$0xff]
      %v4689 = vld [vmem:[#allocation2 + $0x3a0] sm:$0xff]
      %v4690 = vld [vmem:[#allocation2 + $0x3a8] sm:$0xff]
      %v4691 = vld [vmem:[#allocation2 + $0x3b0] sm:$0xff]
      %v4692 = vld [vmem:[#allocation2 + $0x3b8] sm:$0xff]
      %v4693 = vld [vmem:[#allocation2 + $0x3c0] sm:$0xff]
      %v4694 = vld [vmem:[#allocation2 + $0x3c8] sm:$0xff]
      %v4695 = vld [vmem:[#allocation2 + $0x3d0] sm:$0xff]
      %v4696 = vld [vmem:[#allocation2 + $0x3d8] sm:$0xff]
      %v4697 = vld [vmem:[#allocation2 + $0x3e0] sm:$0xff]
      %v4698 = vld [vmem:[#allocation2 + $0x3e8] sm:$0xff]
      %v4699 = vld [vmem:[#allocation2 + $0x3f0] sm:$0xff]
      %v4700 = vld [vmem:[#allocation2 + $0x3f8] sm:$0xff]
      %v4701 = vld [vmem:[#allocation2 + $0x400] sm:$0xff]
      %v4702 = vld [vmem:[#allocation2 + $0x408] sm:$0xff]
      %v4703 = vld [vmem:[#allocation2 + $0x410] sm:$0xff]
      %v4704 = vld [vmem:[#allocation2 + $0x418] sm:$0xff]
      %v4705 = vld [vmem:[#allocation2 + $0x420] sm:$0xff]
      %v4706 = vld [vmem:[#allocation2 + $0x428] sm:$0xff]
      %v4707 = vld [vmem:[#allocation2 + $0x430] sm:$0xff]
      %v4708 = vld [vmem:[#allocation2 + $0x438] sm:$0xff]
      %v4709 = vld [vmem:[#allocation2 + $0x440] sm:$0xff]
      %v4710 = vld [vmem:[#allocation2 + $0x448] sm:$0xff]
      %v4711 = vld [vmem:[#allocation2 + $0x450] sm:$0xff]
      %v4712 = vld [vmem:[#allocation2 + $0x458] sm:$0xff]
      %v4713 = vld [vmem:[#allocation2 + $0x460] sm:$0xff]
      %v4714 = vld [vmem:[#allocation2 + $0x468] sm:$0xff]
      %v4715 = vld [vmem:[#allocation2 + $0x470] sm:$0xff]
      %v4716 = vld [vmem:[#allocation2 + $0x478] sm:$0xff]
      %v4717 = vld [vmem:[#allocation2 + $0x480] sm:$0xff]
      %v4718 = vld [vmem:[#allocation2 + $0x488] sm:$0xff]
      %v4719 = vld [vmem:[#allocation2 + $0x490] sm:$0xff]
      %v4720 = vld [vmem:[#allocation2 + $0x498] sm:$0xff]
      %v4721 = vld [vmem:[#allocation2 + $0x4a0] sm:$0xff]
      %v4722 = vld [vmem:[#allocation2 + $0x4a8] sm:$0xff]
      %v4723 = vld [vmem:[#allocation2 + $0x4b0] sm:$0xff]
      %v4724 = vld [vmem:[#allocation2 + $0x4b8] sm:$0xff]
      %v4725 = vld [vmem:[#allocation2 + $0x4c0] sm:$0xff]
      %v4726 = vld [vmem:[#allocation2 + $0x4c8] sm:$0xff]
      %v4727 = vld [vmem:[#allocation2 + $0x4d0] sm:$0xff]
      %v4728 = vld [vmem:[#allocation2 + $0x4d8] sm:$0xff]
      %v4729 = vld [vmem:[#allocation2 + $0x4e0] sm:$0xff]
      %v4730 = vld [vmem:[#allocation2 + $0x4e8] sm:$0xff]
      %v4731 = vld [vmem:[#allocation2 + $0x4f0] sm:$0xff]
      %v4732 = vld [vmem:[#allocation2 + $0x4f8] sm:$0xff]
      %v4733 = vld [vmem:[#allocation2 + $0x500] sm:$0xff]
      %v4734 = vld [vmem:[#allocation2 + $0x508] sm:$0xff]
      %v4735 = vld [vmem:[#allocation2 + $0x510] sm:$0xff]
      %v4736 = vld [vmem:[#allocation2 + $0x518] sm:$0xff]
      %v4737 = vld [vmem:[#allocation2 + $0x520] sm:$0xff]
      %v4738 = vld [vmem:[#allocation2 + $0x528] sm:$0xff]
      %v4739 = vld [vmem:[#allocation2 + $0x530] sm:$0xff]
      %v4740 = vld [vmem:[#allocation2 + $0x538] sm:$0xff]
      %v4741 = vld [vmem:[#allocation2 + $0x540] sm:$0xff]
      %v4742 = vld [vmem:[#allocation2 + $0x548] sm:$0xff]
      %v4743 = vld [vmem:[#allocation2 + $0x550] sm:$0xff]
      %v4744 = vld [vmem:[#allocation2 + $0x558] sm:$0xff]
      %v4745 = vld [vmem:[#allocation2 + $0x560] sm:$0xff]
      %v4746 = vld [vmem:[#allocation2 + $0x568] sm:$0xff]
      %v4747 = vld [vmem:[#allocation2 + $0x570] sm:$0xff]
      %v4748 = vld [vmem:[#allocation2 + $0x578] sm:$0xff]
      %v4749 = vld [vmem:[#allocation2 + $0x580] sm:$0xff]
      %v4750 = vld [vmem:[#allocation2 + $0x588] sm:$0xff]
      %v4751 = vld [vmem:[#allocation2 + $0x590] sm:$0xff]
      %v4752 = vld [vmem:[#allocation2 + $0x598] sm:$0xff]
      %v4753 = vld [vmem:[#allocation2 + $0x5a0] sm:$0xff]
      %v4754 = vld [vmem:[#allocation2 + $0x5a8] sm:$0xff]
      %v4755 = vld [vmem:[#allocation2 + $0x5b0] sm:$0xff]
      %v4756 = vld [vmem:[#allocation2 + $0x5b8] sm:$0xff]
      %v4757 = vld [vmem:[#allocation2 + $0x5c0] sm:$0xff]
      %v4758 = vld [vmem:[#allocation2 + $0x5c8] sm:$0xff]
      %v4759 = vld [vmem:[#allocation2 + $0x5d0] sm:$0xff]
      %v4760 = vld [vmem:[#allocation2 + $0x5d8] sm:$0xff]
      %v4761 = vld [vmem:[#allocation2 + $0x5e0] sm:$0xff]
      %v4762 = vld [vmem:[#allocation2 + $0x5e8] sm:$0xff]
      %v4763 = vld [vmem:[#allocation2 + $0x5f0] sm:$0xff]
      %v4764 = vld [vmem:[#allocation2 + $0x5f8] sm:$0xff]
      %v4765 = vld [vmem:[#allocation2 + $0x600] sm:$0xff]
      %v4766 = vld [vmem:[#allocation2 + $0x608] sm:$0xff]
      %v4767 = vld [vmem:[#allocation2 + $0x610] sm:$0xff]
      %v4768 = vld [vmem:[#allocation2 + $0x618] sm:$0xff]
      %v4769 = vld [vmem:[#allocation2 + $0x620] sm:$0xff]
      %v4770 = vld [vmem:[#allocation2 + $0x628] sm:$0xff]
      %v4771 = vld [vmem:[#allocation2 + $0x630] sm:$0xff]
      %v4772 = vld [vmem:[#allocation2 + $0x638] sm:$0xff]
      %v4773 = vld [vmem:[#allocation2 + $0x640] sm:$0xff]
      %v4774 = vld [vmem:[#allocation2 + $0x648] sm:$0xff]
      %v4775 = vld [vmem:[#allocation2 + $0x650] sm:$0xff]
      %v4776 = vld [vmem:[#allocation2 + $0x658] sm:$0xff]
      %v4777 = vld [vmem:[#allocation2 + $0x660] sm:$0xff]
      %v4778 = vld [vmem:[#allocation2 + $0x668] sm:$0xff]
      %v4779 = vld [vmem:[#allocation2 + $0x670] sm:$0xff]
      %v4780 = vld [vmem:[#allocation2 + $0x678] sm:$0xff]
      %v4781 = vld [vmem:[#allocation2 + $0x680] sm:$0xff]
      %v4782 = vld [vmem:[#allocation2 + $0x688] sm:$0xff]
      %v4783 = vld [vmem:[#allocation2 + $0x690] sm:$0xff]
      %v4784 = vld [vmem:[#allocation2 + $0x698] sm:$0xff]
      %v4785 = vld [vmem:[#allocation2 + $0x6a0] sm:$0xff]
      %v4786 = vld [vmem:[#allocation2 + $0x6a8] sm:$0xff]
      %v4787 = vld [vmem:[#allocation2 + $0x6b0] sm:$0xff]
      %v4788 = vld [vmem:[#allocation2 + $0x6b8] sm:$0xff]
      %v4789 = vld [vmem:[#allocation2 + $0x6c0] sm:$0xff]
      %v4790 = vld [vmem:[#allocation2 + $0x6c8] sm:$0xff]
      %v4791 = vld [vmem:[#allocation2 + $0x6d0] sm:$0xff]
      %v4792 = vld [vmem:[#allocation2 + $0x6d8] sm:$0xff]
      %v4793 = vld [vmem:[#allocation2 + $0x6e0] sm:$0xff]
      %v4794 = vld [vmem:[#allocation2 + $0x6e8] sm:$0xff]
      %v4795 = vld [vmem:[#allocation2 + $0x6f0] sm:$0xff]
      %v4796 = vld [vmem:[#allocation2 + $0x6f8] sm:$0xff]
      %v4797 = vld [vmem:[#allocation2 + $0x700] sm:$0xff]
      %v4798 = vld [vmem:[#allocation2 + $0x708] sm:$0xff]
      %v4799 = vld [vmem:[#allocation2 + $0x710] sm:$0xff]
      %v4800 = vld [vmem:[#allocation2 + $0x718] sm:$0xff]
      %v4801 = vld [vmem:[#allocation2 + $0x720] sm:$0xff]
      %v4802 = vld [vmem:[#allocation2 + $0x728] sm:$0xff]
      %v4803 = vld [vmem:[#allocation2 + $0x730] sm:$0xff]
      %v4804 = vld [vmem:[#allocation2 + $0x738] sm:$0xff]
      %v4805 = vld [vmem:[#allocation2 + $0x740] sm:$0xff]
      %v4806 = vld [vmem:[#allocation2 + $0x748] sm:$0xff]
      %v4807 = vld [vmem:[#allocation2 + $0x750] sm:$0xff]
      %v4808 = vld [vmem:[#allocation2 + $0x758] sm:$0xff]
      %v4809 = vld [vmem:[#allocation2 + $0x760] sm:$0xff]
      %v4810 = vld [vmem:[#allocation2 + $0x768] sm:$0xff]
      %v4811 = vld [vmem:[#allocation2 + $0x770] sm:$0xff]
      %v4812 = vld [vmem:[#allocation2 + $0x778] sm:$0xff]
      %v4813 = vld [vmem:[#allocation2 + $0x780] sm:$0xff]
      %v4814 = vld [vmem:[#allocation2 + $0x788] sm:$0xff]
      %v4815 = vld [vmem:[#allocation2 + $0x790] sm:$0xff]
      %v4816 = vld [vmem:[#allocation2 + $0x798] sm:$0xff]
      %v4817 = vld [vmem:[#allocation2 + $0x7a0] sm:$0xff]
      %v4818 = vld [vmem:[#allocation2 + $0x7a8] sm:$0xff]
      %v4819 = vld [vmem:[#allocation2 + $0x7b0] sm:$0xff]
      %v4820 = vld [vmem:[#allocation2 + $0x7b8] sm:$0xff]
      %v4821 = vld [vmem:[#allocation2 + $0x7c0] sm:$0xff]
      %v4822 = vld [vmem:[#allocation2 + $0x7c8] sm:$0xff]
      %v4823 = vld [vmem:[#allocation2 + $0x7d0] sm:$0xff]
      %v4824 = vld [vmem:[#allocation2 + $0x7d8] sm:$0xff]
      %v4825 = vld [vmem:[#allocation2 + $0x7e0] sm:$0xff]
      %v4826 = vld [vmem:[#allocation2 + $0x7e8] sm:$0xff]
      %v4827 = vld [vmem:[#allocation2 + $0x7f0] sm:$0xff]
      %v4828 = vld [vmem:[#allocation2 + $0x7f8] sm:$0xff]
      %v4829 = vld [vmem:[#allocation2 + $0x800] sm:$0xff]
      %v4830 = vld [vmem:[#allocation2 + $0x808] sm:$0xff]
      %v4831 = vld [vmem:[#allocation2 + $0x810] sm:$0xff]
      %v4832 = vld [vmem:[#allocation2 + $0x818] sm:$0xff]
      %v4833 = vld [vmem:[#allocation2 + $0x820] sm:$0xff]
      %v4834 = vld [vmem:[#allocation2 + $0x828] sm:$0xff]
      %v4835 = vld [vmem:[#allocation2 + $0x830] sm:$0xff]
      %v4836 = vld [vmem:[#allocation2 + $0x838] sm:$0xff]
      %v4837 = vld [vmem:[#allocation2 + $0x840] sm:$0xff]
      %v4838 = vld [vmem:[#allocation2 + $0x848] sm:$0xff]
      %v4839 = vld [vmem:[#allocation2 + $0x850] sm:$0xff]
      %v4840 = vld [vmem:[#allocation2 + $0x858] sm:$0xff]
      %v4841 = vld [vmem:[#allocation2 + $0x860] sm:$0xff]
      %v4842 = vld [vmem:[#allocation2 + $0x868] sm:$0xff]
      %v4843 = vld [vmem:[#allocation2 + $0x870] sm:$0xff]
      %v4844 = vld [vmem:[#allocation2 + $0x878] sm:$0xff]
      %v4845 = vld [vmem:[#allocation2 + $0x880] sm:$0xff]
      %v4846 = vld [vmem:[#allocation2 + $0x888] sm:$0xff]
      %v4847 = vld [vmem:[#allocation2 + $0x890] sm:$0xff]
      %v4848 = vld [vmem:[#allocation2 + $0x898] sm:$0xff]
      %v4849 = vld [vmem:[#allocation2 + $0x8a0] sm:$0xff]
      %v4850 = vld [vmem:[#allocation2 + $0x8a8] sm:$0xff]
      %v4851 = vld [vmem:[#allocation2 + $0x8b0] sm:$0xff]
      %v4852 = vld [vmem:[#allocation2 + $0x8b8] sm:$0xff]
      %v4853 = vld [vmem:[#allocation2 + $0x8c0] sm:$0xff]
      %v4854 = vld [vmem:[#allocation2 + $0x8c8] sm:$0xff]
      %v4855 = vld [vmem:[#allocation2 + $0x8d0] sm:$0xff]
      %v4856 = vld [vmem:[#allocation2 + $0x8d8] sm:$0xff]
      %v4857 = vld [vmem:[#allocation2 + $0x8e0] sm:$0xff]
      %v4858 = vld [vmem:[#allocation2 + $0x8e8] sm:$0xff]
      %v4859 = vld [vmem:[#allocation2 + $0x8f0] sm:$0xff]
      %v4860 = vld [vmem:[#allocation2 + $0x8f8] sm:$0xff]
      %v4861 = vld [vmem:[%s4] sm:$0xff]
      %v4862 = vld [vmem:[%s4 + $0x8] sm:$0xff]
      %v4863 = vld [vmem:[%s4 + $0x10] sm:$0xff]
      %v4864 = vld [vmem:[%s4 + $0x18] sm:$0xff]
      %v4865 = vld [vmem:[%s4 + $0x20] sm:$0xff]
      %v4866 = vld [vmem:[%s4 + $0x28] sm:$0xff]
      %v4867 = vld [vmem:[%s4 + $0x30] sm:$0xff]
      %v4868 = vld [vmem:[%s4 + $0x38] sm:$0xff]
      %v4869 = vld [vmem:[%s4 + $0x40] sm:$0xff]
      %v4870 = vld [vmem:[%s4 + $0x48] sm:$0xff]
      %v4871 = vld [vmem:[%s4 + $0x50] sm:$0xff]
      %v4872 = vld [vmem:[%s4 + $0x58] sm:$0xff]
      %v4873 = vld [vmem:[%s4 + $0x60] sm:$0xff]
      %v4874 = vld [vmem:[%s4 + $0x68] sm:$0xff]
      %v4875 = vld [vmem:[%s4 + $0x70] sm:$0xff]
      %v4876 = vld [vmem:[%s4 + $0x78] sm:$0xff]
      %v4877 = vld [vmem:[%s4 + $0x80] sm:$0xff]
      %v4878 = vld [vmem:[%s4 + $0x88] sm:$0xff]
      %v4879 = vld [vmem:[%s4 + $0x90] sm:$0xff]
      %v4880 = vld [vmem:[%s4 + $0x98] sm:$0xff]
      %v4881 = vld [vmem:[%s4 + $0xa0] sm:$0xff]
      %v4882 = vld [vmem:[%s4 + $0xa8] sm:$0xff]
      %v4883 = vld [vmem:[%s4 + $0xb0] sm:$0xff]
      %v4884 = vld [vmem:[%s4 + $0xb8] sm:$0xff]
      %v4885 = vld [vmem:[%s4 + $0xc0] sm:$0xff]
      %v4886 = vld [vmem:[%s4 + $0xc8] sm:$0xff]
      %v4887 = vld [vmem:[%s4 + $0xd0] sm:$0xff]
      %v4888 = vld [vmem:[%s4 + $0xd8] sm:$0xff]
      %v4889 = vld [vmem:[%s4 + $0xe0] sm:$0xff]
      %v4890 = vld [vmem:[%s4 + $0xe8] sm:$0xff]
      %v4891 = vld [vmem:[%s4 + $0xf0] sm:$0xff]
      %v4892 = vld [vmem:[%s4 + $0xf8] sm:$0xff]
      %v4893 = vld [vmem:[%s4 + $0x100] sm:$0xff]
      %v4894 = vld [vmem:[%s4 + $0x108] sm:$0xff]
      %v4895 = vld [vmem:[%s4 + $0x110] sm:$0xff]
      %v4896 = vld [vmem:[%s4 + $0x118] sm:$0xff]
      %v4897 = vld [vmem:[%s4 + $0x120] sm:$0xff]
      %v4898 = vld [vmem:[%s4 + $0x128] sm:$0xff]
      %v4899 = vld [vmem:[%s4 + $0x130] sm:$0xff]
      %v4900 = vld [vmem:[%s4 + $0x138] sm:$0xff]
      %v4901 = vld [vmem:[%s4 + $0x140] sm:$0xff]
      %v4902 = vld [vmem:[%s4 + $0x148] sm:$0xff]
      %v4903 = vld [vmem:[%s4 + $0x150] sm:$0xff]
      %v4904 = vld [vmem:[%s4 + $0x158] sm:$0xff]
      %v4905 = vld [vmem:[%s4 + $0x160] sm:$0xff]
      %v4906 = vld [vmem:[%s4 + $0x168] sm:$0xff]
      %v4907 = vld [vmem:[%s4 + $0x170] sm:$0xff]
      %v4908 = vld [vmem:[%s4 + $0x178] sm:$0xff]
      %v4909 = vld [vmem:[%s4 + $0x180] sm:$0xff]
      %v4910 = vld [vmem:[%s4 + $0x188] sm:$0xff]
      %v4911 = vld [vmem:[%s4 + $0x190] sm:$0xff]
      %v4912 = vld [vmem:[%s4 + $0x198] sm:$0xff]
      %v4913 = vld [vmem:[%s4 + $0x1a0] sm:$0xff]
      %v4914 = vld [vmem:[%s4 + $0x1a8] sm:$0xff]
      %v4915 = vld [vmem:[%s4 + $0x1b0] sm:$0xff]
      %v4916 = vld [vmem:[%s4 + $0x1b8] sm:$0xff]
      %v4917 = vld [vmem:[%s4 + $0x1c0] sm:$0xff]
      %v4918 = vld [vmem:[%s4 + $0x1c8] sm:$0xff]
      %v4919 = vld [vmem:[%s4 + $0x1d0] sm:$0xff]
      %v4920 = vld [vmem:[%s4 + $0x1d8] sm:$0xff]
      %v4921 = vld [vmem:[%s4 + $0x1e0] sm:$0xff]
      %v4922 = vld [vmem:[%s4 + $0x1e8] sm:$0xff]
      %v4923 = vld [vmem:[%s4 + $0x1f0] sm:$0xff]
      %v4924 = vld [vmem:[%s4 + $0x1f8] sm:$0xff]
      %v4925 = vld [vmem:[%s4 + $0x200] sm:$0xff]
      %v4926 = vld [vmem:[%s4 + $0x208] sm:$0xff]
      %v4927 = vld [vmem:[%s4 + $0x210] sm:$0xff]
      %v4928 = vld [vmem:[%s4 + $0x218] sm:$0xff]
      %v4929 = vld [vmem:[%s4 + $0x220] sm:$0xff]
      %v4930 = vld [vmem:[%s4 + $0x228] sm:$0xff]
      %v4931 = vld [vmem:[%s4 + $0x230] sm:$0xff]
      %v4932 = vld [vmem:[%s4 + $0x238] sm:$0xff]
      %v4933 = vld [vmem:[%s4 + $0x240] sm:$0xff]
      %v4934 = vld [vmem:[%s4 + $0x248] sm:$0xff]
      %v4935 = vld [vmem:[%s4 + $0x250] sm:$0xff]
      %v4936 = vld [vmem:[%s4 + $0x258] sm:$0xff]
      %v4937 = vld [vmem:[%s4 + $0x260] sm:$0xff]
      %v4938 = vld [vmem:[%s4 + $0x268] sm:$0xff]
      %v4939 = vld [vmem:[%s4 + $0x270] sm:$0xff]
      %v4940 = vld [vmem:[%s4 + $0x278] sm:$0xff]
      %v4941 = vld [vmem:[%s4 + $0x280] sm:$0xff]
      %v4942 = vld [vmem:[%s4 + $0x288] sm:$0xff]
      %v4943 = vld [vmem:[%s4 + $0x290] sm:$0xff]
      %v4944 = vld [vmem:[%s4 + $0x298] sm:$0xff]
      %v4945 = vld [vmem:[%s4 + $0x2a0] sm:$0xff]
      %v4946 = vld [vmem:[%s4 + $0x2a8] sm:$0xff]
      %v4947 = vld [vmem:[%s4 + $0x2b0] sm:$0xff]
      %v4948 = vld [vmem:[%s4 + $0x2b8] sm:$0xff]
      %v4949 = vld [vmem:[%s4 + $0x2c0] sm:$0xff]
      %v4950 = vld [vmem:[%s4 + $0x2c8] sm:$0xff]
      %v4951 = vld [vmem:[%s4 + $0x2d0] sm:$0xff]
      %v4952 = vld [vmem:[%s4 + $0x2d8] sm:$0xff]
      %v4953 = vld [vmem:[%s4 + $0x2e0] sm:$0xff]
      %v4954 = vld [vmem:[%s4 + $0x2e8] sm:$0xff]
      %v4955 = vld [vmem:[%s4 + $0x2f0] sm:$0xff]
      %v4956 = vld [vmem:[%s4 + $0x2f8] sm:$0xff]
      %v4957 = vld [vmem:[%s4 + $0x300] sm:$0xff]
      %v4958 = vld [vmem:[%s4 + $0x308] sm:$0xff]
      %v4959 = vld [vmem:[%s4 + $0x310] sm:$0xff]
      %v4960 = vld [vmem:[%s4 + $0x318] sm:$0xff]
      %v4961 = vld [vmem:[%s4 + $0x320] sm:$0xff]
      %v4962 = vld [vmem:[%s4 + $0x328] sm:$0xff]
      %v4963 = vld [vmem:[%s4 + $0x330] sm:$0xff]
      %v4964 = vld [vmem:[%s4 + $0x338] sm:$0xff]
      %v4965 = vld [vmem:[%s4 + $0x340] sm:$0xff]
      %v4966 = vld [vmem:[%s4 + $0x348] sm:$0xff]
      %v4967 = vld [vmem:[%s4 + $0x350] sm:$0xff]
      %v4968 = vld [vmem:[%s4 + $0x358] sm:$0xff]
      %v4969 = vld [vmem:[%s4 + $0x360] sm:$0xff]
      %v4970 = vld [vmem:[%s4 + $0x368] sm:$0xff]
      %v4971 = vld [vmem:[%s4 + $0x370] sm:$0xff]
      %v4972 = vld [vmem:[%s4 + $0x378] sm:$0xff]
      %v4973 = vld [vmem:[%s4 + $0x380] sm:$0xff]
      %v4974 = vld [vmem:[%s4 + $0x388] sm:$0xff]
      %v4975 = vld [vmem:[%s4 + $0x390] sm:$0xff]
      %v4976 = vld [vmem:[%s4 + $0x398] sm:$0xff]
      %v4977 = vld [vmem:[%s4 + $0x3a0] sm:$0xff]
      %v4978 = vld [vmem:[%s4 + $0x3a8] sm:$0xff]
      %v4979 = vld [vmem:[%s4 + $0x3b0] sm:$0xff]
      %v4980 = vld [vmem:[%s4 + $0x3b8] sm:$0xff]
      %v4981 = vld [vmem:[%s4 + $0x3c0] sm:$0xff]
      %v4982 = vld [vmem:[%s4 + $0x3c8] sm:$0xff]
      %v4983 = vld [vmem:[%s4 + $0x3d0] sm:$0xff]
      %v4984 = vld [vmem:[%s4 + $0x3d8] sm:$0xff]
      %v4985 = vld [vmem:[%s4 + $0x3e0] sm:$0xff]
      %v4986 = vld [vmem:[%s4 + $0x3e8] sm:$0xff]
      %v4987 = vld [vmem:[%s4 + $0x3f0] sm:$0xff]
      %v4988 = vld [vmem:[%s4 + $0x3f8] sm:$0xff]
      %v4989 = vld [vmem:[%s4 + $0x400] sm:$0xff]
      %v4990 = vld [vmem:[%s4 + $0x408] sm:$0xff]
      %v4991 = vld [vmem:[%s4 + $0x410] sm:$0xff]
      %v4992 = vld [vmem:[%s4 + $0x418] sm:$0xff]
      %v4993 = vld [vmem:[%s4 + $0x420] sm:$0xff]
      %v4994 = vld [vmem:[%s4 + $0x428] sm:$0xff]
      %v4995 = vld [vmem:[%s4 + $0x430] sm:$0xff]
      %v4996 = vld [vmem:[%s4 + $0x438] sm:$0xff]
      %v4997 = vld [vmem:[%s4 + $0x440] sm:$0xff]
      %v4998 = vld [vmem:[%s4 + $0x448] sm:$0xff]
      %v4999 = vld [vmem:[%s4 + $0x450] sm:$0xff]
      %v5000 = vld [vmem:[%s4 + $0x458] sm:$0xff]
      %v5001 = vld [vmem:[%s4 + $0x460] sm:$0xff]
      %v5002 = vld [vmem:[%s4 + $0x468] sm:$0xff]
      %v5003 = vld [vmem:[%s4 + $0x470] sm:$0xff]
      %v5004 = vld [vmem:[%s4 + $0x478] sm:$0xff]
      %5005 = vmatprep.subr.mxu0 0.0
      %5006 = vmatpush1.msra.mxu0 %v4876
      %5007 = vmatprep.subr.mxu0 0.0
      %5008 = vmatpush1.msra.mxu0 %v4875
      %5009 = vmatprep.subr.mxu0 0.0
      %5010 = vmatpush1.msra.mxu0 %v4874
      %5011 = vmatprep.subr.mxu0 0.0
      %5012 = vmatpush1.msra.mxu0 %v4873
      %5013 = vmatprep.subr.mxu0 0.0
      %5014 = vmatpush1.msra.mxu0 %v4872
      %5015 = vmatprep.subr.mxu0 0.0
      %5016 = vmatpush1.msra.mxu0 %v4871
      %5017 = vmatprep.subr.mxu0 0.0
      %5018 = vmatpush1.msra.mxu0 %v4870
      %5019 = vmatprep.subr.mxu0 0.0
      %5020 = vmatpush1.msra.mxu0 %v4869
      %5021 = vmatprep.subr.mxu0 0.0
      %5022 = vmatpush1.msra.mxu0 %v4868
      %5023 = vmatprep.subr.mxu0 0.0
      %5024 = vmatpush1.msra.mxu0 %v4867
      %5025 = vmatprep.subr.mxu0 0.0
      %5026 = vmatpush1.msra.mxu0 %v4866
      %5027 = vmatprep.subr.mxu0 0.0
      %5028 = vmatpush1.msra.mxu0 %v4865
      %5029 = vmatprep.subr.mxu0 0.0
      %5030 = vmatpush1.msra.mxu0 %v4864
      %5031 = vmatprep.subr.mxu0 0.0
      %5032 = vmatpush1.msra.mxu0 %v4863
      %5033 = vmatprep.subr.mxu0 0.0
      %5034 = vmatpush1.msra.mxu0 %v4862
      %5035 = vmatprep.subr.mxu0 0.0
      %5036 = vmatpush1.msra.mxu0 %v4861
      %5037 = vmatprep.subr.mxu0 0.0
      %5038 = vmatpush2.msra.mxu0 %v4892
      %5039 = vmatprep.subr.mxu0 0.0
      %5040 = vmatpush2.msra.mxu0 %v4891
      %5041 = vmatprep.subr.mxu0 0.0
      %5042 = vmatpush2.msra.mxu0 %v4890
      %5043 = vmatprep.subr.mxu0 0.0
      %5044 = vmatpush2.msra.mxu0 %v4889
      %5045 = vmatprep.subr.mxu0 0.0
      %5046 = vmatpush2.msra.mxu0 %v4888
      %5047 = vmatprep.subr.mxu0 0.0
      %5048 = vmatpush2.msra.mxu0 %v4887
      %5049 = vmatprep.subr.mxu0 0.0
      %5050 = vmatpush2.msra.mxu0 %v4886
      %5051 = vmatprep.subr.mxu0 0.0
      %5052 = vmatpush2.msra.mxu0 %v4885
      %5053 = vmatprep.subr.mxu0 0.0
      %5054 = vmatpush2.msra.mxu0 %v4884
      %5055 = vmatprep.subr.mxu0 0.0
      %5056 = vmatpush2.msra.mxu0 %v4883
      %5057 = vmatprep.subr.mxu0 0.0
      %5058 = vmatpush2.msra.mxu0 %v4882
      %5059 = vmatprep.subr.mxu0 0.0
      %5060 = vmatpush2.msra.mxu0 %v4881
      %5061 = vmatprep.subr.mxu0 0.0
      %5062 = vmatpush2.msra.mxu0 %v4880
      %5063 = vmatprep.subr.mxu0 0.0
      %5064 = vmatpush2.msra.mxu0 %v4879
      %5065 = vmatprep.subr.mxu0 0.0
      %5066 = vmatpush2.msra.mxu0 %v4878
      %5067 = vmatprep.subr.mxu0 0.0
      %5068 = vmatpush2.msra.mxu0 %v4877
      %5069 = vmatprep.mubr.f32.mxu0 %v4574
      %5070 = vmatmul.mubr.f32.gmra.mxu0 %v4573
      %v5071 = vpop.f32.mrf.mxu0
      %v5072 = vadd.f32 0.0, %v5071
      %v5073 = vpop.f32.mrf.mxu0
      %5074 = vmatprep.mubr.f32.mxu0 %v4583
      %5075 = vmatmul.mubr.f32.gmra.mxu0 %v4582
      %v5076 = vpop.f32.mrf.mxu0
      %v5077 = vadd.f32 0.0, %v5076
      %v5078 = vpop.f32.mrf.mxu0
      %5079 = vmatprep.mubr.f32.mxu0 %v4592
      %5080 = vmatmul.mubr.f32.gmra.mxu0 %v4591
      %v5081 = vpop.f32.mrf.mxu0
      %v5082 = vadd.f32 0.0, %v5081
      %v5083 = vpop.f32.mrf.mxu0
      %5084 = vmatprep.mubr.f32.mxu0 %v4601
      %5085 = vmatmul.mubr.f32.gmra.mxu0 %v4600
      %v5086 = vpop.f32.mrf.mxu0
      %v5087 = vadd.f32 0.0, %v5086
      %v5088 = vpop.f32.mrf.mxu0
      %5089 = vmatprep.mubr.f32.mxu0 %v4610
      %5090 = vmatmul.mubr.f32.gmra.mxu0 %v4609
      %v5091 = vpop.f32.mrf.mxu0
      %v5092 = vadd.f32 0.0, %v5091
      %v5093 = vpop.f32.mrf.mxu0
      %5094 = vmatprep.mubr.f32.mxu0 %v4619
      %5095 = vmatmul.mubr.f32.gmra.mxu0 %v4618
      %v5096 = vpop.f32.mrf.mxu0
      %v5097 = vadd.f32 0.0, %v5096
      %v5098 = vpop.f32.mrf.mxu0
      %5099 = vmatprep.mubr.f32.mxu0 %v4628
      %5100 = vmatmul.mubr.f32.gmra.mxu0 %v4627
      %v5101 = vpop.f32.mrf.mxu0
      %v5102 = vadd.f32 0.0, %v5101
      %v5103 = vpop.f32.mrf.mxu0
      %5104 = vmatprep.mubr.f32.mxu0 %v4637
      %5105 = vmatmul.mubr.f32.gmra.mxu0 %v4636
      %v5106 = vpop.f32.mrf.mxu0
      %v5107 = vadd.f32 0.0, %v5106
      %v5108 = vpop.f32.mrf.mxu0
      %5109 = vmatprep.mubr.f32.mxu0 %v4646
      %5110 = vmatmul.mubr.f32.gmra.mxu0 %v4645
      %v5111 = vpop.f32.mrf.mxu0
      %v5112 = vadd.f32 0.0, %v5111
      %v5113 = vpop.f32.mrf.mxu0
      %5114 = vmatprep.mubr.f32.mxu0 %v4655
      %5115 = vmatmul.mubr.f32.gmra.mxu0 %v4654
      %v5116 = vpop.f32.mrf.mxu0
      %v5117 = vadd.f32 0.0, %v5116
      %v5118 = vpop.f32.mrf.mxu0
      %5119 = vmatprep.mubr.f32.mxu0 %v4664
      %5120 = vmatmul.mubr.f32.gmra.mxu0 %v4663
      %v5121 = vpop.f32.mrf.mxu0
      %v5122 = vadd.f32 0.0, %v5121
      %v5123 = vpop.f32.mrf.mxu0
      %5124 = vmatprep.mubr.f32.mxu0 %v4673
      %5125 = vmatmul.mubr.f32.gmra.mxu0 %v4672
      %v5126 = vpop.f32.mrf.mxu0
      %v5127 = vadd.f32 0.0, %v5126
      %v5128 = vpop.f32.mrf.mxu0
      %5129 = vmatprep.mubr.f32.mxu0 %v4682
      %5130 = vmatmul.mubr.f32.gmra.mxu0 %v4681
      %v5131 = vpop.f32.mrf.mxu0
      %v5132 = vadd.f32 0.0, %v5131
      %v5133 = vpop.f32.mrf.mxu0
      %5134 = vmatprep.mubr.f32.mxu0 %v4691
      %5135 = vmatmul.mubr.f32.gmra.mxu0 %v4690
      %v5136 = vpop.f32.mrf.mxu0
      %v5137 = vadd.f32 0.0, %v5136
      %v5138 = vpop.f32.mrf.mxu0
      %5139 = vmatprep.mubr.f32.mxu0 %v4700
      %5140 = vmatmul.mubr.f32.gmra.mxu0 %v4699
      %v5141 = vpop.f32.mrf.mxu0
      %v5142 = vadd.f32 0.0, %v5141
      %v5143 = vpop.f32.mrf.mxu0
      %5144 = vmatprep.mubr.f32.mxu0 %v4709
      %5145 = vmatmul.mubr.f32.gmra.mxu0 %v4708
      %v5146 = vpop.f32.mrf.mxu0
      %v5147 = vadd.f32 0.0, %v5146
      %v5148 = vpop.f32.mrf.mxu0
      %5149 = vmatprep.mubr.f32.mxu0 %v4718
      %5150 = vmatmul.mubr.f32.gmra.mxu0 %v4717
      %v5151 = vpop.f32.mrf.mxu0
      %v5152 = vadd.f32 0.0, %v5151
      %v5153 = vpop.f32.mrf.mxu0
      %5154 = vmatprep.mubr.f32.mxu0 %v4727
      %5155 = vmatmul.mubr.f32.gmra.mxu0 %v4726
      %v5156 = vpop.f32.mrf.mxu0
      %v5157 = vadd.f32 0.0, %v5156
      %v5158 = vpop.f32.mrf.mxu0
      %5159 = vmatprep.mubr.f32.mxu0 %v4736
      %5160 = vmatmul.mubr.f32.gmra.mxu0 %v4735
      %v5161 = vpop.f32.mrf.mxu0
      %v5162 = vadd.f32 0.0, %v5161
      %v5163 = vpop.f32.mrf.mxu0
      %5164 = vmatprep.mubr.f32.mxu0 %v4745
      %5165 = vmatmul.mubr.f32.gmra.mxu0 %v4744
      %v5166 = vpop.f32.mrf.mxu0
      %v5167 = vadd.f32 0.0, %v5166
      %v5168 = vpop.f32.mrf.mxu0
      %5169 = vmatprep.mubr.f32.mxu0 %v4754
      %5170 = vmatmul.mubr.f32.gmra.mxu0 %v4753
      %v5171 = vpop.f32.mrf.mxu0
      %v5172 = vadd.f32 0.0, %v5171
      %v5173 = vpop.f32.mrf.mxu0
      %5174 = vmatprep.mubr.f32.mxu0 %v4763
      %5175 = vmatmul.mubr.f32.gmra.mxu0 %v4762
      %v5176 = vpop.f32.mrf.mxu0
      %v5177 = vadd.f32 0.0, %v5176
      %v5178 = vpop.f32.mrf.mxu0
      %5179 = vmatprep.mubr.f32.mxu0 %v4772
      %5180 = vmatmul.mubr.f32.gmra.mxu0 %v4771
      %v5181 = vpop.f32.mrf.mxu0
      %v5182 = vadd.f32 0.0, %v5181
      %v5183 = vpop.f32.mrf.mxu0
      %5184 = vmatprep.mubr.f32.mxu0 %v4781
      %5185 = vmatmul.mubr.f32.gmra.mxu0 %v4780
      %v5186 = vpop.f32.mrf.mxu0
      %v5187 = vadd.f32 0.0, %v5186
      %v5188 = vpop.f32.mrf.mxu0
      %5189 = vmatprep.mubr.f32.mxu0 %v4790
      %5190 = vmatmul.mubr.f32.gmra.mxu0 %v4789
      %v5191 = vpop.f32.mrf.mxu0
      %v5192 = vadd.f32 0.0, %v5191
      %v5193 = vpop.f32.mrf.mxu0
      %5194 = vmatprep.mubr.f32.mxu0 %v4799
      %5195 = vmatmul.mubr.f32.gmra.mxu0 %v4798
      %v5196 = vpop.f32.mrf.mxu0
      %v5197 = vadd.f32 0.0, %v5196
      %v5198 = vpop.f32.mrf.mxu0
      %5199 = vmatprep.mubr.f32.mxu0 %v4808
      %5200 = vmatmul.mubr.f32.gmra.mxu0 %v4807
      %v5201 = vpop.f32.mrf.mxu0
      %v5202 = vadd.f32 0.0, %v5201
      %v5203 = vpop.f32.mrf.mxu0
      %5204 = vmatprep.mubr.f32.mxu0 %v4817
      %5205 = vmatmul.mubr.f32.gmra.mxu0 %v4816
      %v5206 = vpop.f32.mrf.mxu0
      %v5207 = vadd.f32 0.0, %v5206
      %v5208 = vpop.f32.mrf.mxu0
      %5209 = vmatprep.mubr.f32.mxu0 %v4826
      %5210 = vmatmul.mubr.f32.gmra.mxu0 %v4825
      %v5211 = vpop.f32.mrf.mxu0
      %v5212 = vadd.f32 0.0, %v5211
      %v5213 = vpop.f32.mrf.mxu0
      %5214 = vmatprep.mubr.f32.mxu0 %v4835
      %5215 = vmatmul.mubr.f32.gmra.mxu0 %v4834
      %v5216 = vpop.f32.mrf.mxu0
      %v5217 = vadd.f32 0.0, %v5216
      %v5218 = vpop.f32.mrf.mxu0
      %5219 = vmatprep.mubr.f32.mxu0 %v4844
      %5220 = vmatmul.mubr.f32.gmra.mxu0 %v4843
      %v5221 = vpop.f32.mrf.mxu0
      %v5222 = vadd.f32 0.0, %v5221
      %v5223 = vpop.f32.mrf.mxu0
      %5224 = vmatprep.mubr.f32.mxu0 %v4853
      %5225 = vmatmul.mubr.f32.gmra.mxu0 %v4852
      %v5226 = vpop.f32.mrf.mxu0
      %v5227 = vadd.f32 0.0, %v5226
      %v5228 = vpop.f32.mrf.mxu0
      %5229 = vdwg.mxu0
      %5230 = vmatprep.subr.mxu0 0.0
      %5231 = vmatpush1.msra.mxu0 %v4908
      %5232 = vmatprep.subr.mxu0 0.0
      %5233 = vmatpush1.msra.mxu0 %v4907
      %5234 = vmatprep.subr.mxu0 0.0
      %5235 = vmatpush1.msra.mxu0 %v4906
      %5236 = vmatprep.subr.mxu0 0.0
      %5237 = vmatpush1.msra.mxu0 %v4905
      %5238 = vmatprep.subr.mxu0 0.0
      %5239 = vmatpush1.msra.mxu0 %v4904
      %5240 = vmatprep.subr.mxu0 0.0
      %5241 = vmatpush1.msra.mxu0 %v4903
      %5242 = vmatprep.subr.mxu0 0.0
      %5243 = vmatpush1.msra.mxu0 %v4902
      %5244 = vmatprep.subr.mxu0 0.0
      %5245 = vmatpush1.msra.mxu0 %v4901
      %5246 = vmatprep.subr.mxu0 0.0
      %5247 = vmatpush1.msra.mxu0 %v4900
      %5248 = vmatprep.subr.mxu0 0.0
      %5249 = vmatpush1.msra.mxu0 %v4899
      %5250 = vmatprep.subr.mxu0 0.0
      %5251 = vmatpush1.msra.mxu0 %v4898
      %5252 = vmatprep.subr.mxu0 0.0
      %5253 = vmatpush1.msra.mxu0 %v4897
      %5254 = vmatprep.subr.mxu0 0.0
      %5255 = vmatpush1.msra.mxu0 %v4896
      %5256 = vmatprep.subr.mxu0 0.0
      %5257 = vmatpush1.msra.mxu0 %v4895
      %5258 = vmatprep.subr.mxu0 0.0
      %5259 = vmatpush1.msra.mxu0 %v4894
      %5260 = vmatprep.subr.mxu0 0.0
      %5261 = vmatpush1.msra.mxu0 %v4893
      %5262 = vmatprep.subr.mxu0 0.0
      %5263 = vmatpush2.msra.mxu0 %v4924
      %5264 = vmatprep.subr.mxu0 0.0
      %5265 = vmatpush2.msra.mxu0 %v4923
      %5266 = vmatprep.subr.mxu0 0.0
      %5267 = vmatpush2.msra.mxu0 %v4922
      %5268 = vmatprep.subr.mxu0 0.0
      %5269 = vmatpush2.msra.mxu0 %v4921
      %5270 = vmatprep.subr.mxu0 0.0
      %5271 = vmatpush2.msra.mxu0 %v4920
      %5272 = vmatprep.subr.mxu0 0.0
      %5273 = vmatpush2.msra.mxu0 %v4919
      %5274 = vmatprep.subr.mxu0 0.0
      %5275 = vmatpush2.msra.mxu0 %v4918
      %5276 = vmatprep.subr.mxu0 0.0
      %5277 = vmatpush2.msra.mxu0 %v4917
      %5278 = vmatprep.subr.mxu0 0.0
      %5279 = vmatpush2.msra.mxu0 %v4916
      %5280 = vmatprep.subr.mxu0 0.0
      %5281 = vmatpush2.msra.mxu0 %v4915
      %5282 = vmatprep.subr.mxu0 0.0
      %5283 = vmatpush2.msra.mxu0 %v4914
      %5284 = vmatprep.subr.mxu0 0.0
      %5285 = vmatpush2.msra.mxu0 %v4913
      %5286 = vmatprep.subr.mxu0 0.0
      %5287 = vmatpush2.msra.mxu0 %v4912
      %5288 = vmatprep.subr.mxu0 0.0
      %5289 = vmatpush2.msra.mxu0 %v4911
      %5290 = vmatprep.subr.mxu0 0.0
      %5291 = vmatpush2.msra.mxu0 %v4910
      %5292 = vmatprep.subr.mxu0 0.0
      %5293 = vmatpush2.msra.mxu0 %v4909
      %5294 = vmatprep.mubr.f32.mxu0 %v4576
      %5295 = vmatmul.mubr.f32.gmra.mxu0 %v4575
      %v5296 = vpop.f32.mrf.mxu0
      %v5297 = vadd.f32 %v5072, %v5296
      %v5298 = vpop.f32.mrf.mxu0
      %5299 = vmatprep.mubr.f32.mxu0 %v4585
      %5300 = vmatmul.mubr.f32.gmra.mxu0 %v4584
      %v5301 = vpop.f32.mrf.mxu0
      %v5302 = vadd.f32 %v5077, %v5301
      %v5303 = vpop.f32.mrf.mxu0
      %5304 = vmatprep.mubr.f32.mxu0 %v4594
      %5305 = vmatmul.mubr.f32.gmra.mxu0 %v4593
      %v5306 = vpop.f32.mrf.mxu0
      %v5307 = vadd.f32 %v5082, %v5306
      %v5308 = vpop.f32.mrf.mxu0
      %5309 = vmatprep.mubr.f32.mxu0 %v4603
      %5310 = vmatmul.mubr.f32.gmra.mxu0 %v4602
      %v5311 = vpop.f32.mrf.mxu0
      %v5312 = vadd.f32 %v5087, %v5311
      %v5313 = vpop.f32.mrf.mxu0
      %5314 = vmatprep.mubr.f32.mxu0 %v4612
      %5315 = vmatmul.mubr.f32.gmra.mxu0 %v4611
      %v5316 = vpop.f32.mrf.mxu0
      %v5317 = vadd.f32 %v5092, %v5316
      %v5318 = vpop.f32.mrf.mxu0
      %5319 = vmatprep.mubr.f32.mxu0 %v4621
      %5320 = vmatmul.mubr.f32.gmra.mxu0 %v4620
      %v5321 = vpop.f32.mrf.mxu0
      %v5322 = vadd.f32 %v5097, %v5321
      %v5323 = vpop.f32.mrf.mxu0
      %5324 = vmatprep.mubr.f32.mxu0 %v4630
      %5325 = vmatmul.mubr.f32.gmra.mxu0 %v4629
      %v5326 = vpop.f32.mrf.mxu0
      %v5327 = vadd.f32 %v5102, %v5326
      %v5328 = vpop.f32.mrf.mxu0
      %5329 = vmatprep.mubr.f32.mxu0 %v4639
      %5330 = vmatmul.mubr.f32.gmra.mxu0 %v4638
      %v5331 = vpop.f32.mrf.mxu0
      %v5332 = vadd.f32 %v5107, %v5331
      %v5333 = vpop.f32.mrf.mxu0
      %5334 = vmatprep.mubr.f32.mxu0 %v4648
      %5335 = vmatmul.mubr.f32.gmra.mxu0 %v4647
      %v5336 = vpop.f32.mrf.mxu0
      %v5337 = vadd.f32 %v5112, %v5336
      %v5338 = vpop.f32.mrf.mxu0
      %5339 = vmatprep.mubr.f32.mxu0 %v4657
      %5340 = vmatmul.mubr.f32.gmra.mxu0 %v4656
      %v5341 = vpop.f32.mrf.mxu0
      %v5342 = vadd.f32 %v5117, %v5341
      %v5343 = vpop.f32.mrf.mxu0
      %5344 = vmatprep.mubr.f32.mxu0 %v4666
      %5345 = vmatmul.mubr.f32.gmra.mxu0 %v4665
      %v5346 = vpop.f32.mrf.mxu0
      %v5347 = vadd.f32 %v5122, %v5346
      %v5348 = vpop.f32.mrf.mxu0
      %5349 = vmatprep.mubr.f32.mxu0 %v4675
      %5350 = vmatmul.mubr.f32.gmra.mxu0 %v4674
      %v5351 = vpop.f32.mrf.mxu0
      %v5352 = vadd.f32 %v5127, %v5351
      %v5353 = vpop.f32.mrf.mxu0
      %5354 = vmatprep.mubr.f32.mxu0 %v4684
      %5355 = vmatmul.mubr.f32.gmra.mxu0 %v4683
      %v5356 = vpop.f32.mrf.mxu0
      %v5357 = vadd.f32 %v5132, %v5356
      %v5358 = vpop.f32.mrf.mxu0
      %5359 = vmatprep.mubr.f32.mxu0 %v4693
      %5360 = vmatmul.mubr.f32.gmra.mxu0 %v4692
      %v5361 = vpop.f32.mrf.mxu0
      %v5362 = vadd.f32 %v5137, %v5361
      %v5363 = vpop.f32.mrf.mxu0
      %5364 = vmatprep.mubr.f32.mxu0 %v4702
      %5365 = vmatmul.mubr.f32.gmra.mxu0 %v4701
      %v5366 = vpop.f32.mrf.mxu0
      %v5367 = vadd.f32 %v5142, %v5366
      %v5368 = vpop.f32.mrf.mxu0
      %5369 = vmatprep.mubr.f32.mxu0 %v4711
      %5370 = vmatmul.mubr.f32.gmra.mxu0 %v4710
      %v5371 = vpop.f32.mrf.mxu0
      %v5372 = vadd.f32 %v5147, %v5371
      %v5373 = vpop.f32.mrf.mxu0
      %5374 = vmatprep.mubr.f32.mxu0 %v4720
      %5375 = vmatmul.mubr.f32.gmra.mxu0 %v4719
      %v5376 = vpop.f32.mrf.mxu0
      %v5377 = vadd.f32 %v5152, %v5376
      %v5378 = vpop.f32.mrf.mxu0
      %5379 = vmatprep.mubr.f32.mxu0 %v4729
      %5380 = vmatmul.mubr.f32.gmra.mxu0 %v4728
      %v5381 = vpop.f32.mrf.mxu0
      %v5382 = vadd.f32 %v5157, %v5381
      %v5383 = vpop.f32.mrf.mxu0
      %5384 = vmatprep.mubr.f32.mxu0 %v4738
      %5385 = vmatmul.mubr.f32.gmra.mxu0 %v4737
      %v5386 = vpop.f32.mrf.mxu0
      %v5387 = vadd.f32 %v5162, %v5386
      %v5388 = vpop.f32.mrf.mxu0
      %5389 = vmatprep.mubr.f32.mxu0 %v4747
      %5390 = vmatmul.mubr.f32.gmra.mxu0 %v4746
      %v5391 = vpop.f32.mrf.mxu0
      %v5392 = vadd.f32 %v5167, %v5391
      %v5393 = vpop.f32.mrf.mxu0
      %5394 = vmatprep.mubr.f32.mxu0 %v4756
      %5395 = vmatmul.mubr.f32.gmra.mxu0 %v4755
      %v5396 = vpop.f32.mrf.mxu0
      %v5397 = vadd.f32 %v5172, %v5396
      %v5398 = vpop.f32.mrf.mxu0
      %5399 = vmatprep.mubr.f32.mxu0 %v4765
      %5400 = vmatmul.mubr.f32.gmra.mxu0 %v4764
      %v5401 = vpop.f32.mrf.mxu0
      %v5402 = vadd.f32 %v5177, %v5401
      %v5403 = vpop.f32.mrf.mxu0
      %5404 = vmatprep.mubr.f32.mxu0 %v4774
      %5405 = vmatmul.mubr.f32.gmra.mxu0 %v4773
      %v5406 = vpop.f32.mrf.mxu0
      %v5407 = vadd.f32 %v5182, %v5406
      %v5408 = vpop.f32.mrf.mxu0
      %5409 = vmatprep.mubr.f32.mxu0 %v4783
      %5410 = vmatmul.mubr.f32.gmra.mxu0 %v4782
      %v5411 = vpop.f32.mrf.mxu0
      %v5412 = vadd.f32 %v5187, %v5411
      %v5413 = vpop.f32.mrf.mxu0
      %5414 = vmatprep.mubr.f32.mxu0 %v4792
      %5415 = vmatmul.mubr.f32.gmra.mxu0 %v4791
      %v5416 = vpop.f32.mrf.mxu0
      %v5417 = vadd.f32 %v5192, %v5416
      %v5418 = vpop.f32.mrf.mxu0
      %5419 = vmatprep.mubr.f32.mxu0 %v4801
      %5420 = vmatmul.mubr.f32.gmra.mxu0 %v4800
      %v5421 = vpop.f32.mrf.mxu0
      %v5422 = vadd.f32 %v5197, %v5421
      %v5423 = vpop.f32.mrf.mxu0
      %5424 = vmatprep.mubr.f32.mxu0 %v4810
      %5425 = vmatmul.mubr.f32.gmra.mxu0 %v4809
      %v5426 = vpop.f32.mrf.mxu0
      %v5427 = vadd.f32 %v5202, %v5426
      %v5428 = vpop.f32.mrf.mxu0
      %5429 = vmatprep.mubr.f32.mxu0 %v4819
      %5430 = vmatmul.mubr.f32.gmra.mxu0 %v4818
      %v5431 = vpop.f32.mrf.mxu0
      %v5432 = vadd.f32 %v5207, %v5431
      %v5433 = vpop.f32.mrf.mxu0
      %5434 = vmatprep.mubr.f32.mxu0 %v4828
      %5435 = vmatmul.mubr.f32.gmra.mxu0 %v4827
      %v5436 = vpop.f32.mrf.mxu0
      %v5437 = vadd.f32 %v5212, %v5436
      %v5438 = vpop.f32.mrf.mxu0
      %5439 = vmatprep.mubr.f32.mxu0 %v4837
      %5440 = vmatmul.mubr.f32.gmra.mxu0 %v4836
      %v5441 = vpop.f32.mrf.mxu0
      %v5442 = vadd.f32 %v5217, %v5441
      %v5443 = vpop.f32.mrf.mxu0
      %5444 = vmatprep.mubr.f32.mxu0 %v4846
      %5445 = vmatmul.mubr.f32.gmra.mxu0 %v4845
      %v5446 = vpop.f32.mrf.mxu0
      %v5447 = vadd.f32 %v5222, %v5446
      %v5448 = vpop.f32.mrf.mxu0
      %5449 = vmatprep.mubr.f32.mxu0 %v4855
      %5450 = vmatmul.mubr.f32.gmra.mxu0 %v4854
      %v5451 = vpop.f32.mrf.mxu0
      %v5452 = vadd.f32 %v5227, %v5451
      %v5453 = vpop.f32.mrf.mxu0
      %5454 = vdwg.mxu0
      %5455 = vmatprep.subr.mxu0 0.0
      %5456 = vmatpush1.msra.mxu0 %v4940
      %5457 = vmatprep.subr.mxu0 0.0
      %5458 = vmatpush1.msra.mxu0 %v4939
      %5459 = vmatprep.subr.mxu0 0.0
      %5460 = vmatpush1.msra.mxu0 %v4938
      %5461 = vmatprep.subr.mxu0 0.0
      %5462 = vmatpush1.msra.mxu0 %v4937
      %5463 = vmatprep.subr.mxu0 0.0
      %5464 = vmatpush1.msra.mxu0 %v4936
      %5465 = vmatprep.subr.mxu0 0.0
      %5466 = vmatpush1.msra.mxu0 %v4935
      %5467 = vmatprep.subr.mxu0 0.0
      %5468 = vmatpush1.msra.mxu0 %v4934
      %5469 = vmatprep.subr.mxu0 0.0
      %5470 = vmatpush1.msra.mxu0 %v4933
      %5471 = vmatprep.subr.mxu0 0.0
      %5472 = vmatpush1.msra.mxu0 %v4932
      %5473 = vmatprep.subr.mxu0 0.0
      %5474 = vmatpush1.msra.mxu0 %v4931
      %5475 = vmatprep.subr.mxu0 0.0
      %5476 = vmatpush1.msra.mxu0 %v4930
      %5477 = vmatprep.subr.mxu0 0.0
      %5478 = vmatpush1.msra.mxu0 %v4929
      %5479 = vmatprep.subr.mxu0 0.0
      %5480 = vmatpush1.msra.mxu0 %v4928
      %5481 = vmatprep.subr.mxu0 0.0
      %5482 = vmatpush1.msra.mxu0 %v4927
      %5483 = vmatprep.subr.mxu0 0.0
      %5484 = vmatpush1.msra.mxu0 %v4926
      %5485 = vmatprep.subr.mxu0 0.0
      %5486 = vmatpush1.msra.mxu0 %v4925
      %5487 = vmatprep.subr.mxu0 0.0
      %5488 = vmatpush2.msra.mxu0 %v4956
      %5489 = vmatprep.subr.mxu0 0.0
      %5490 = vmatpush2.msra.mxu0 %v4955
      %5491 = vmatprep.subr.mxu0 0.0
      %5492 = vmatpush2.msra.mxu0 %v4954
      %5493 = vmatprep.subr.mxu0 0.0
      %5494 = vmatpush2.msra.mxu0 %v4953
      %5495 = vmatprep.subr.mxu0 0.0
      %5496 = vmatpush2.msra.mxu0 %v4952
      %5497 = vmatprep.subr.mxu0 0.0
      %5498 = vmatpush2.msra.mxu0 %v4951
      %5499 = vmatprep.subr.mxu0 0.0
      %5500 = vmatpush2.msra.mxu0 %v4950
      %5501 = vmatprep.subr.mxu0 0.0
      %5502 = vmatpush2.msra.mxu0 %v4949
      %5503 = vmatprep.subr.mxu0 0.0
      %5504 = vmatpush2.msra.mxu0 %v4948
      %5505 = vmatprep.subr.mxu0 0.0
      %5506 = vmatpush2.msra.mxu0 %v4947
      %5507 = vmatprep.subr.mxu0 0.0
      %5508 = vmatpush2.msra.mxu0 %v4946
      %5509 = vmatprep.subr.mxu0 0.0
      %5510 = vmatpush2.msra.mxu0 %v4945
      %5511 = vmatprep.subr.mxu0 0.0
      %5512 = vmatpush2.msra.mxu0 %v4944
      %5513 = vmatprep.subr.mxu0 0.0
      %5514 = vmatpush2.msra.mxu0 %v4943
      %5515 = vmatprep.subr.mxu0 0.0
      %5516 = vmatpush2.msra.mxu0 %v4942
      %5517 = vmatprep.subr.mxu0 0.0
      %5518 = vmatpush2.msra.mxu0 %v4941
      %5519 = vmatprep.mubr.f32.mxu0 %v4578
      %5520 = vmatmul.mubr.f32.gmra.mxu0 %v4577
      %v5521 = vpop.f32.mrf.mxu0
      %v5522 = vadd.f32 %v5297, %v5521
      %v5523 = vpop.f32.mrf.mxu0
      %5524 = vmatprep.mubr.f32.mxu0 %v4587
      %5525 = vmatmul.mubr.f32.gmra.mxu0 %v4586
      %v5526 = vpop.f32.mrf.mxu0
      %v5527 = vadd.f32 %v5302, %v5526
      %v5528 = vpop.f32.mrf.mxu0
      %5529 = vmatprep.mubr.f32.mxu0 %v4596
      %5530 = vmatmul.mubr.f32.gmra.mxu0 %v4595
      %v5531 = vpop.f32.mrf.mxu0
      %v5532 = vadd.f32 %v5307, %v5531
      %v5533 = vpop.f32.mrf.mxu0
      %5534 = vmatprep.mubr.f32.mxu0 %v4605
      %5535 = vmatmul.mubr.f32.gmra.mxu0 %v4604
      %v5536 = vpop.f32.mrf.mxu0
      %v5537 = vadd.f32 %v5312, %v5536
      %v5538 = vpop.f32.mrf.mxu0
      %5539 = vmatprep.mubr.f32.mxu0 %v4614
      %5540 = vmatmul.mubr.f32.gmra.mxu0 %v4613
      %v5541 = vpop.f32.mrf.mxu0
      %v5542 = vadd.f32 %v5317, %v5541
      %v5543 = vpop.f32.mrf.mxu0
      %5544 = vmatprep.mubr.f32.mxu0 %v4623
      %5545 = vmatmul.mubr.f32.gmra.mxu0 %v4622
      %v5546 = vpop.f32.mrf.mxu0
      %v5547 = vadd.f32 %v5322, %v5546
      %v5548 = vpop.f32.mrf.mxu0
      %5549 = vmatprep.mubr.f32.mxu0 %v4632
      %5550 = vmatmul.mubr.f32.gmra.mxu0 %v4631
      %v5551 = vpop.f32.mrf.mxu0
      %v5552 = vadd.f32 %v5327, %v5551
      %v5553 = vpop.f32.mrf.mxu0
      %5554 = vmatprep.mubr.f32.mxu0 %v4641
      %5555 = vmatmul.mubr.f32.gmra.mxu0 %v4640
      %v5556 = vpop.f32.mrf.mxu0
      %v5557 = vadd.f32 %v5332, %v5556
      %v5558 = vpop.f32.mrf.mxu0
      %5559 = vmatprep.mubr.f32.mxu0 %v4650
      %5560 = vmatmul.mubr.f32.gmra.mxu0 %v4649
      %v5561 = vpop.f32.mrf.mxu0
      %v5562 = vadd.f32 %v5337, %v5561
      %v5563 = vpop.f32.mrf.mxu0
      %5564 = vmatprep.mubr.f32.mxu0 %v4659
      %5565 = vmatmul.mubr.f32.gmra.mxu0 %v4658
      %v5566 = vpop.f32.mrf.mxu0
      %v5567 = vadd.f32 %v5342, %v5566
      %v5568 = vpop.f32.mrf.mxu0
      %5569 = vmatprep.mubr.f32.mxu0 %v4668
      %5570 = vmatmul.mubr.f32.gmra.mxu0 %v4667
      %v5571 = vpop.f32.mrf.mxu0
      %v5572 = vadd.f32 %v5347, %v5571
      %v5573 = vpop.f32.mrf.mxu0
      %5574 = vmatprep.mubr.f32.mxu0 %v4677
      %5575 = vmatmul.mubr.f32.gmra.mxu0 %v4676
      %v5576 = vpop.f32.mrf.mxu0
      %v5577 = vadd.f32 %v5352, %v5576
      %v5578 = vpop.f32.mrf.mxu0
      %5579 = vmatprep.mubr.f32.mxu0 %v4686
      %5580 = vmatmul.mubr.f32.gmra.mxu0 %v4685
      %v5581 = vpop.f32.mrf.mxu0
      %v5582 = vadd.f32 %v5357, %v5581
      %v5583 = vpop.f32.mrf.mxu0
      %5584 = vmatprep.mubr.f32.mxu0 %v4695
      %5585 = vmatmul.mubr.f32.gmra.mxu0 %v4694
      %v5586 = vpop.f32.mrf.mxu0
      %v5587 = vadd.f32 %v5362, %v5586
      %v5588 = vpop.f32.mrf.mxu0
      %5589 = vmatprep.mubr.f32.mxu0 %v4704
      %5590 = vmatmul.mubr.f32.gmra.mxu0 %v4703
      %v5591 = vpop.f32.mrf.mxu0
      %v5592 = vadd.f32 %v5367, %v5591
      %v5593 = vpop.f32.mrf.mxu0
      %5594 = vmatprep.mubr.f32.mxu0 %v4713
      %5595 = vmatmul.mubr.f32.gmra.mxu0 %v4712
      %v5596 = vpop.f32.mrf.mxu0
      %v5597 = vadd.f32 %v5372, %v5596
      %v5598 = vpop.f32.mrf.mxu0
      %5599 = vmatprep.mubr.f32.mxu0 %v4722
      %5600 = vmatmul.mubr.f32.gmra.mxu0 %v4721
      %v5601 = vpop.f32.mrf.mxu0
      %v5602 = vadd.f32 %v5377, %v5601
      %v5603 = vpop.f32.mrf.mxu0
      %5604 = vmatprep.mubr.f32.mxu0 %v4731
      %5605 = vmatmul.mubr.f32.gmra.mxu0 %v4730
      %v5606 = vpop.f32.mrf.mxu0
      %v5607 = vadd.f32 %v5382, %v5606
      %v5608 = vpop.f32.mrf.mxu0
      %5609 = vmatprep.mubr.f32.mxu0 %v4740
      %5610 = vmatmul.mubr.f32.gmra.mxu0 %v4739
      %v5611 = vpop.f32.mrf.mxu0
      %v5612 = vadd.f32 %v5387, %v5611
      %v5613 = vpop.f32.mrf.mxu0
      %5614 = vmatprep.mubr.f32.mxu0 %v4749
      %5615 = vmatmul.mubr.f32.gmra.mxu0 %v4748
      %v5616 = vpop.f32.mrf.mxu0
      %v5617 = vadd.f32 %v5392, %v5616
      %v5618 = vpop.f32.mrf.mxu0
      %5619 = vmatprep.mubr.f32.mxu0 %v4758
      %5620 = vmatmul.mubr.f32.gmra.mxu0 %v4757
      %v5621 = vpop.f32.mrf.mxu0
      %v5622 = vadd.f32 %v5397, %v5621
      %v5623 = vpop.f32.mrf.mxu0
      %5624 = vmatprep.mubr.f32.mxu0 %v4767
      %5625 = vmatmul.mubr.f32.gmra.mxu0 %v4766
      %v5626 = vpop.f32.mrf.mxu0
      %v5627 = vadd.f32 %v5402, %v5626
      %v5628 = vpop.f32.mrf.mxu0
      %5629 = vmatprep.mubr.f32.mxu0 %v4776
      %5630 = vmatmul.mubr.f32.gmra.mxu0 %v4775
      %v5631 = vpop.f32.mrf.mxu0
      %v5632 = vadd.f32 %v5407, %v5631
      %v5633 = vpop.f32.mrf.mxu0
      %5634 = vmatprep.mubr.f32.mxu0 %v4785
      %5635 = vmatmul.mubr.f32.gmra.mxu0 %v4784
      %v5636 = vpop.f32.mrf.mxu0
      %v5637 = vadd.f32 %v5412, %v5636
      %v5638 = vpop.f32.mrf.mxu0
      %5639 = vmatprep.mubr.f32.mxu0 %v4794
      %5640 = vmatmul.mubr.f32.gmra.mxu0 %v4793
      %v5641 = vpop.f32.mrf.mxu0
      %v5642 = vadd.f32 %v5417, %v5641
      %v5643 = vpop.f32.mrf.mxu0
      %5644 = vmatprep.mubr.f32.mxu0 %v4803
      %5645 = vmatmul.mubr.f32.gmra.mxu0 %v4802
      %v5646 = vpop.f32.mrf.mxu0
      %v5647 = vadd.f32 %v5422, %v5646
      %v5648 = vpop.f32.mrf.mxu0
      %5649 = vmatprep.mubr.f32.mxu0 %v4812
      %5650 = vmatmul.mubr.f32.gmra.mxu0 %v4811
      %v5651 = vpop.f32.mrf.mxu0
      %v5652 = vadd.f32 %v5427, %v5651
      %v5653 = vpop.f32.mrf.mxu0
      %5654 = vmatprep.mubr.f32.mxu0 %v4821
      %5655 = vmatmul.mubr.f32.gmra.mxu0 %v4820
      %v5656 = vpop.f32.mrf.mxu0
      %v5657 = vadd.f32 %v5432, %v5656
      %v5658 = vpop.f32.mrf.mxu0
      %5659 = vmatprep.mubr.f32.mxu0 %v4830
      %5660 = vmatmul.mubr.f32.gmra.mxu0 %v4829
      %v5661 = vpop.f32.mrf.mxu0
      %v5662 = vadd.f32 %v5437, %v5661
      %v5663 = vpop.f32.mrf.mxu0
      %5664 = vmatprep.mubr.f32.mxu0 %v4839
      %5665 = vmatmul.mubr.f32.gmra.mxu0 %v4838
      %v5666 = vpop.f32.mrf.mxu0
      %v5667 = vadd.f32 %v5442, %v5666
      %v5668 = vpop.f32.mrf.mxu0
      %5669 = vmatprep.mubr.f32.mxu0 %v4848
      %5670 = vmatmul.mubr.f32.gmra.mxu0 %v4847
      %v5671 = vpop.f32.mrf.mxu0
      %v5672 = vadd.f32 %v5447, %v5671
      %v5673 = vpop.f32.mrf.mxu0
      %5674 = vmatprep.mubr.f32.mxu0 %v4857
      %5675 = vmatmul.mubr.f32.gmra.mxu0 %v4856
      %v5676 = vpop.f32.mrf.mxu0
      %v5677 = vadd.f32 %v5452, %v5676
      %v5678 = vpop.f32.mrf.mxu0
      %5679 = vdwg.mxu0
      %5680 = vmatprep.subr.mxu0 0.0
      %5681 = vmatpush1.msra.mxu0 %v4972
      %5682 = vmatprep.subr.mxu0 0.0
      %5683 = vmatpush1.msra.mxu0 %v4971
      %5684 = vmatprep.subr.mxu0 0.0
      %5685 = vmatpush1.msra.mxu0 %v4970
      %5686 = vmatprep.subr.mxu0 0.0
      %5687 = vmatpush1.msra.mxu0 %v4969
      %5688 = vmatprep.subr.mxu0 0.0
      %5689 = vmatpush1.msra.mxu0 %v4968
      %5690 = vmatprep.subr.mxu0 0.0
      %5691 = vmatpush1.msra.mxu0 %v4967
      %5692 = vmatprep.subr.mxu0 0.0
      %5693 = vmatpush1.msra.mxu0 %v4966
      %5694 = vmatprep.subr.mxu0 0.0
      %5695 = vmatpush1.msra.mxu0 %v4965
      %5696 = vmatprep.subr.mxu0 0.0
      %5697 = vmatpush1.msra.mxu0 %v4964
      %5698 = vmatprep.subr.mxu0 0.0
      %5699 = vmatpush1.msra.mxu0 %v4963
      %5700 = vmatprep.subr.mxu0 0.0
      %5701 = vmatpush1.msra.mxu0 %v4962
      %5702 = vmatprep.subr.mxu0 0.0
      %5703 = vmatpush1.msra.mxu0 %v4961
      %5704 = vmatprep.subr.mxu0 0.0
      %5705 = vmatpush1.msra.mxu0 %v4960
      %5706 = vmatprep.subr.mxu0 0.0
      %5707 = vmatpush1.msra.mxu0 %v4959
      %5708 = vmatprep.subr.mxu0 0.0
      %5709 = vmatpush1.msra.mxu0 %v4958
      %5710 = vmatprep.subr.mxu0 0.0
      %5711 = vmatpush1.msra.mxu0 %v4957
      %5712 = vmatprep.subr.mxu0 0.0
      %5713 = vmatpush2.msra.mxu0 %v4988
      %5714 = vmatprep.subr.mxu0 0.0
      %5715 = vmatpush2.msra.mxu0 %v4987
      %5716 = vmatprep.subr.mxu0 0.0
      %5717 = vmatpush2.msra.mxu0 %v4986
      %5718 = vmatprep.subr.mxu0 0.0
      %5719 = vmatpush2.msra.mxu0 %v4985
      %5720 = vmatprep.subr.mxu0 0.0
      %5721 = vmatpush2.msra.mxu0 %v4984
      %5722 = vmatprep.subr.mxu0 0.0
      %5723 = vmatpush2.msra.mxu0 %v4983
      %5724 = vmatprep.subr.mxu0 0.0
      %5725 = vmatpush2.msra.mxu0 %v4982
      %5726 = vmatprep.subr.mxu0 0.0
      %5727 = vmatpush2.msra.mxu0 %v4981
      %5728 = vmatprep.subr.mxu0 0.0
      %5729 = vmatpush2.msra.mxu0 %v4980
      %5730 = vmatprep.subr.mxu0 0.0
      %5731 = vmatpush2.msra.mxu0 %v4979
      %5732 = vmatprep.subr.mxu0 0.0
      %5733 = vmatpush2.msra.mxu0 %v4978
      %5734 = vmatprep.subr.mxu0 0.0
      %5735 = vmatpush2.msra.mxu0 %v4977
      %5736 = vmatprep.subr.mxu0 0.0
      %5737 = vmatpush2.msra.mxu0 %v4976
      %5738 = vmatprep.subr.mxu0 0.0
      %5739 = vmatpush2.msra.mxu0 %v4975
      %5740 = vmatprep.subr.mxu0 0.0
      %5741 = vmatpush2.msra.mxu0 %v4974
      %5742 = vmatprep.subr.mxu0 0.0
      %5743 = vmatpush2.msra.mxu0 %v4973
      %5744 = vmatprep.mubr.f32.mxu0 %v4580
      %5745 = vmatmul.mubr.f32.gmra.mxu0 %v4579
      %v5746 = vpop.f32.mrf.mxu0
      %v5747 = vadd.f32 %v5522, %v5746
      %v5748 = vpop.f32.mrf.mxu0
      %5749 = vmatprep.mubr.f32.mxu0 %v4589
      %5750 = vmatmul.mubr.f32.gmra.mxu0 %v4588
      %v5751 = vpop.f32.mrf.mxu0
      %v5752 = vadd.f32 %v5527, %v5751
      %v5753 = vpop.f32.mrf.mxu0
      %5754 = vmatprep.mubr.f32.mxu0 %v4598
      %5755 = vmatmul.mubr.f32.gmra.mxu0 %v4597
      %v5756 = vpop.f32.mrf.mxu0
      %v5757 = vadd.f32 %v5532, %v5756
      %v5758 = vpop.f32.mrf.mxu0
      %5759 = vmatprep.mubr.f32.mxu0 %v4607
      %5760 = vmatmul.mubr.f32.gmra.mxu0 %v4606
      %v5761 = vpop.f32.mrf.mxu0
      %v5762 = vadd.f32 %v5537, %v5761
      %v5763 = vpop.f32.mrf.mxu0
      %5764 = vmatprep.mubr.f32.mxu0 %v4616
      %5765 = vmatmul.mubr.f32.gmra.mxu0 %v4615
      %v5766 = vpop.f32.mrf.mxu0
      %v5767 = vadd.f32 %v5542, %v5766
      %v5768 = vpop.f32.mrf.mxu0
      %5769 = vmatprep.mubr.f32.mxu0 %v4625
      %5770 = vmatmul.mubr.f32.gmra.mxu0 %v4624
      %v5771 = vpop.f32.mrf.mxu0
      %v5772 = vadd.f32 %v5547, %v5771
      %v5773 = vpop.f32.mrf.mxu0
      %5774 = vmatprep.mubr.f32.mxu0 %v4634
      %5775 = vmatmul.mubr.f32.gmra.mxu0 %v4633
      %v5776 = vpop.f32.mrf.mxu0
      %v5777 = vadd.f32 %v5552, %v5776
      %v5778 = vpop.f32.mrf.mxu0
      %5779 = vmatprep.mubr.f32.mxu0 %v4643
      %5780 = vmatmul.mubr.f32.gmra.mxu0 %v4642
      %v5781 = vpop.f32.mrf.mxu0
      %v5782 = vadd.f32 %v5557, %v5781
      %v5783 = vpop.f32.mrf.mxu0
      %5784 = vmatprep.mubr.f32.mxu0 %v4652
      %5785 = vmatmul.mubr.f32.gmra.mxu0 %v4651
      %v5786 = vpop.f32.mrf.mxu0
      %v5787 = vadd.f32 %v5562, %v5786
      %v5788 = vpop.f32.mrf.mxu0
      %5789 = vmatprep.mubr.f32.mxu0 %v4661
      %5790 = vmatmul.mubr.f32.gmra.mxu0 %v4660
      %v5791 = vpop.f32.mrf.mxu0
      %v5792 = vadd.f32 %v5567, %v5791
      %v5793 = vpop.f32.mrf.mxu0
      %5794 = vmatprep.mubr.f32.mxu0 %v4670
      %5795 = vmatmul.mubr.f32.gmra.mxu0 %v4669
      %v5796 = vpop.f32.mrf.mxu0
      %v5797 = vadd.f32 %v5572, %v5796
      %v5798 = vpop.f32.mrf.mxu0
      %5799 = vmatprep.mubr.f32.mxu0 %v4679
      %5800 = vmatmul.mubr.f32.gmra.mxu0 %v4678
      %v5801 = vpop.f32.mrf.mxu0
      %v5802 = vadd.f32 %v5577, %v5801
      %v5803 = vpop.f32.mrf.mxu0
      %5804 = vmatprep.mubr.f32.mxu0 %v4688
      %5805 = vmatmul.mubr.f32.gmra.mxu0 %v4687
      %v5806 = vpop.f32.mrf.mxu0
      %v5807 = vadd.f32 %v5582, %v5806
      %v5808 = vpop.f32.mrf.mxu0
      %5809 = vmatprep.mubr.f32.mxu0 %v4697
      %5810 = vmatmul.mubr.f32.gmra.mxu0 %v4696
      %v5811 = vpop.f32.mrf.mxu0
      %v5812 = vadd.f32 %v5587, %v5811
      %v5813 = vpop.f32.mrf.mxu0
      %5814 = vmatprep.mubr.f32.mxu0 %v4706
      %5815 = vmatmul.mubr.f32.gmra.mxu0 %v4705
      %v5816 = vpop.f32.mrf.mxu0
      %v5817 = vadd.f32 %v5592, %v5816
      %v5818 = vpop.f32.mrf.mxu0
      %5819 = vmatprep.mubr.f32.mxu0 %v4715
      %5820 = vmatmul.mubr.f32.gmra.mxu0 %v4714
      %v5821 = vpop.f32.mrf.mxu0
      %v5822 = vadd.f32 %v5597, %v5821
      %v5823 = vpop.f32.mrf.mxu0
      %5824 = vmatprep.mubr.f32.mxu0 %v4724
      %5825 = vmatmul.mubr.f32.gmra.mxu0 %v4723
      %v5826 = vpop.f32.mrf.mxu0
      %v5827 = vadd.f32 %v5602, %v5826
      %v5828 = vpop.f32.mrf.mxu0
      %5829 = vmatprep.mubr.f32.mxu0 %v4733
      %5830 = vmatmul.mubr.f32.gmra.mxu0 %v4732
      %v5831 = vpop.f32.mrf.mxu0
      %v5832 = vadd.f32 %v5607, %v5831
      %v5833 = vpop.f32.mrf.mxu0
      %5834 = vmatprep.mubr.f32.mxu0 %v4742
      %5835 = vmatmul.mubr.f32.gmra.mxu0 %v4741
      %v5836 = vpop.f32.mrf.mxu0
      %v5837 = vadd.f32 %v5612, %v5836
      %v5838 = vpop.f32.mrf.mxu0
      %5839 = vmatprep.mubr.f32.mxu0 %v4751
      %5840 = vmatmul.mubr.f32.gmra.mxu0 %v4750
      %v5841 = vpop.f32.mrf.mxu0
      %v5842 = vadd.f32 %v5617, %v5841
      %v5843 = vpop.f32.mrf.mxu0
      %5844 = vmatprep.mubr.f32.mxu0 %v4760
      %5845 = vmatmul.mubr.f32.gmra.mxu0 %v4759
      %v5846 = vpop.f32.mrf.mxu0
      %v5847 = vadd.f32 %v5622, %v5846
      %v5848 = vpop.f32.mrf.mxu0
      %5849 = vmatprep.mubr.f32.mxu0 %v4769
      %5850 = vmatmul.mubr.f32.gmra.mxu0 %v4768
      %v5851 = vpop.f32.mrf.mxu0
      %v5852 = vadd.f32 %v5627, %v5851
      %v5853 = vpop.f32.mrf.mxu0
      %5854 = vmatprep.mubr.f32.mxu0 %v4778
      %5855 = vmatmul.mubr.f32.gmra.mxu0 %v4777
      %v5856 = vpop.f32.mrf.mxu0
      %v5857 = vadd.f32 %v5632, %v5856
      %v5858 = vpop.f32.mrf.mxu0
      %5859 = vmatprep.mubr.f32.mxu0 %v4787
      %5860 = vmatmul.mubr.f32.gmra.mxu0 %v4786
      %v5861 = vpop.f32.mrf.mxu0
      %v5862 = vadd.f32 %v5637, %v5861
      %v5863 = vpop.f32.mrf.mxu0
      %5864 = vmatprep.mubr.f32.mxu0 %v4796
      %5865 = vmatmul.mubr.f32.gmra.mxu0 %v4795
      %v5866 = vpop.f32.mrf.mxu0
      %v5867 = vadd.f32 %v5642, %v5866
      %v5868 = vpop.f32.mrf.mxu0
      %5869 = vmatprep.mubr.f32.mxu0 %v4805
      %5870 = vmatmul.mubr.f32.gmra.mxu0 %v4804
      %v5871 = vpop.f32.mrf.mxu0
      %v5872 = vadd.f32 %v5647, %v5871
      %v5873 = vpop.f32.mrf.mxu0
      %5874 = vmatprep.mubr.f32.mxu0 %v4814
      %5875 = vmatmul.mubr.f32.gmra.mxu0 %v4813
      %v5876 = vpop.f32.mrf.mxu0
      %v5877 = vadd.f32 %v5652, %v5876
      %v5878 = vpop.f32.mrf.mxu0
      %5879 = vmatprep.mubr.f32.mxu0 %v4823
      %5880 = vmatmul.mubr.f32.gmra.mxu0 %v4822
      %v5881 = vpop.f32.mrf.mxu0
      %v5882 = vadd.f32 %v5657, %v5881
      %v5883 = vpop.f32.mrf.mxu0
      %5884 = vmatprep.mubr.f32.mxu0 %v4832
      %5885 = vmatmul.mubr.f32.gmra.mxu0 %v4831
      %v5886 = vpop.f32.mrf.mxu0
      %v5887 = vadd.f32 %v5662, %v5886
      %v5888 = vpop.f32.mrf.mxu0
      %5889 = vmatprep.mubr.f32.mxu0 %v4841
      %5890 = vmatmul.mubr.f32.gmra.mxu0 %v4840
      %v5891 = vpop.f32.mrf.mxu0
      %v5892 = vadd.f32 %v5667, %v5891
      %v5893 = vpop.f32.mrf.mxu0
      %5894 = vmatprep.mubr.f32.mxu0 %v4850
      %5895 = vmatmul.mubr.f32.gmra.mxu0 %v4849
      %v5896 = vpop.f32.mrf.mxu0
      %v5897 = vadd.f32 %v5672, %v5896
      %v5898 = vpop.f32.mrf.mxu0
      %5899 = vmatprep.mubr.f32.mxu0 %v4859
      %5900 = vmatmul.mubr.f32.gmra.mxu0 %v4858
      %v5901 = vpop.f32.mrf.mxu0
      %v5902 = vadd.f32 %v5677, %v5901
      %v5903 = vpop.f32.mrf.mxu0
      %5904 = vdwg.mxu0
      %5905 = vmatprep.subr.mxu0 0.0
      %5906 = vmatpush1.msra.mxu0 %v5004
      %5907 = vmatprep.subr.mxu0 0.0
      %5908 = vmatpush1.msra.mxu0 %v5003
      %5909 = vmatprep.subr.mxu0 0.0
      %5910 = vmatpush1.msra.mxu0 %v5002
      %5911 = vmatprep.subr.mxu0 0.0
      %5912 = vmatpush1.msra.mxu0 %v5001
      %5913 = vmatprep.subr.mxu0 0.0
      %5914 = vmatpush1.msra.mxu0 %v5000
      %5915 = vmatprep.subr.mxu0 0.0
      %5916 = vmatpush1.msra.mxu0 %v4999
      %5917 = vmatprep.subr.mxu0 0.0
      %5918 = vmatpush1.msra.mxu0 %v4998
      %5919 = vmatprep.subr.mxu0 0.0
      %5920 = vmatpush1.msra.mxu0 %v4997
      %5921 = vmatprep.subr.mxu0 0.0
      %5922 = vmatpush1.msra.mxu0 %v4996
      %5923 = vmatprep.subr.mxu0 0.0
      %5924 = vmatpush1.msra.mxu0 %v4995
      %5925 = vmatprep.subr.mxu0 0.0
      %5926 = vmatpush1.msra.mxu0 %v4994
      %5927 = vmatprep.subr.mxu0 0.0
      %5928 = vmatpush1.msra.mxu0 %v4993
      %5929 = vmatprep.subr.mxu0 0.0
      %5930 = vmatpush1.msra.mxu0 %v4992
      %5931 = vmatprep.subr.mxu0 0.0
      %5932 = vmatpush1.msra.mxu0 %v4991
      %5933 = vmatprep.subr.mxu0 0.0
      %5934 = vmatpush1.msra.mxu0 %v4990
      %5935 = vmatprep.subr.mxu0 0.0
      %5936 = vmatpush1.msra.mxu0 %v4989
      %5937 = vmatprep.subr.mxu0 0.0
      %5938 = vmatpush2.msra.mxu0 0.0
      %5939 = vmatprep.subr.mxu0 0.0
      %5940 = vmatpush2.msra.mxu0 0.0
      %5941 = vmatprep.subr.mxu0 0.0
      %5942 = vmatpush2.msra.mxu0 0.0
      %5943 = vmatprep.subr.mxu0 0.0
      %5944 = vmatpush2.msra.mxu0 0.0
      %5945 = vmatprep.subr.mxu0 0.0
      %5946 = vmatpush2.msra.mxu0 0.0
      %5947 = vmatprep.subr.mxu0 0.0
      %5948 = vmatpush2.msra.mxu0 0.0
      %5949 = vmatprep.subr.mxu0 0.0
      %5950 = vmatpush2.msra.mxu0 0.0
      %5951 = vmatprep.subr.mxu0 0.0
      %5952 = vmatpush2.msra.mxu0 0.0
      %5953 = vmatprep.subr.mxu0 0.0
      %5954 = vmatpush2.msra.mxu0 0.0
      %5955 = vmatprep.subr.mxu0 0.0
      %5956 = vmatpush2.msra.mxu0 0.0
      %5957 = vmatprep.subr.mxu0 0.0
      %5958 = vmatpush2.msra.mxu0 0.0
      %5959 = vmatprep.subr.mxu0 0.0
      %5960 = vmatpush2.msra.mxu0 0.0
      %5961 = vmatprep.subr.mxu0 0.0
      %5962 = vmatpush2.msra.mxu0 0.0
      %5963 = vmatprep.subr.mxu0 0.0
      %5964 = vmatpush2.msra.mxu0 0.0
      %5965 = vmatprep.subr.mxu0 0.0
      %5966 = vmatpush2.msra.mxu0 0.0
      %5967 = vmatprep.subr.mxu0 0.0
      %5968 = vmatpush2.msra.mxu0 0.0
      %5969 = vmatprep.mubr.f32.mxu0 0.0
      %5970 = vmatmul.mubr.f32.gmra.mxu0 %v4581
      %v5971 = vpop.f32.mrf.mxu0
      %v5972 = vadd.f32 %v5747, %v5971
      %v5973 = vpop.f32.mrf.mxu0
      %5974 = vmatprep.mubr.f32.mxu0 0.0
      %5975 = vmatmul.mubr.f32.gmra.mxu0 %v4590
      %v5976 = vpop.f32.mrf.mxu0
      %v5977 = vadd.f32 %v5752, %v5976
      %v5978 = vpop.f32.mrf.mxu0
      %5979 = vmatprep.mubr.f32.mxu0 0.0
      %5980 = vmatmul.mubr.f32.gmra.mxu0 %v4599
      %v5981 = vpop.f32.mrf.mxu0
      %v5982 = vadd.f32 %v5757, %v5981
      %v5983 = vpop.f32.mrf.mxu0
      %5984 = vmatprep.mubr.f32.mxu0 0.0
      %5985 = vmatmul.mubr.f32.gmra.mxu0 %v4608
      %v5986 = vpop.f32.mrf.mxu0
      %v5987 = vadd.f32 %v5762, %v5986
      %v5988 = vpop.f32.mrf.mxu0
      %5989 = vmatprep.mubr.f32.mxu0 0.0
      %5990 = vmatmul.mubr.f32.gmra.mxu0 %v4617
      %v5991 = vpop.f32.mrf.mxu0
      %v5992 = vadd.f32 %v5767, %v5991
      %v5993 = vpop.f32.mrf.mxu0
      %5994 = vmatprep.mubr.f32.mxu0 0.0
      %5995 = vmatmul.mubr.f32.gmra.mxu0 %v4626
      %v5996 = vpop.f32.mrf.mxu0
      %v5997 = vadd.f32 %v5772, %v5996
      %v5998 = vpop.f32.mrf.mxu0
      %5999 = vmatprep.mubr.f32.mxu0 0.0
      %6000 = vmatmul.mubr.f32.gmra.mxu0 %v4635
      %v6001 = vpop.f32.mrf.mxu0
      %v6002 = vadd.f32 %v5777, %v6001
      %v6003 = vpop.f32.mrf.mxu0
      %6004 = vmatprep.mubr.f32.mxu0 0.0
      %6005 = vmatmul.mubr.f32.gmra.mxu0 %v4644
      %v6006 = vpop.f32.mrf.mxu0
      %v6007 = vadd.f32 %v5782, %v6006
      %v6008 = vpop.f32.mrf.mxu0
      %6009 = vmatprep.mubr.f32.mxu0 0.0
      %6010 = vmatmul.mubr.f32.gmra.mxu0 %v4653
      %v6011 = vpop.f32.mrf.mxu0
      %v6012 = vadd.f32 %v5787, %v6011
      %v6013 = vpop.f32.mrf.mxu0
      %6014 = vmatprep.mubr.f32.mxu0 0.0
      %6015 = vmatmul.mubr.f32.gmra.mxu0 %v4662
      %v6016 = vpop.f32.mrf.mxu0
      %v6017 = vadd.f32 %v5792, %v6016
      %v6018 = vpop.f32.mrf.mxu0
      %6019 = vmatprep.mubr.f32.mxu0 0.0
      %6020 = vmatmul.mubr.f32.gmra.mxu0 %v4671
      %v6021 = vpop.f32.mrf.mxu0
      %v6022 = vadd.f32 %v5797, %v6021
      %v6023 = vpop.f32.mrf.mxu0
      %6024 = vmatprep.mubr.f32.mxu0 0.0
      %6025 = vmatmul.mubr.f32.gmra.mxu0 %v4680
      %v6026 = vpop.f32.mrf.mxu0
      %v6027 = vadd.f32 %v5802, %v6026
      %v6028 = vpop.f32.mrf.mxu0
      %6029 = vmatprep.mubr.f32.mxu0 0.0
      %6030 = vmatmul.mubr.f32.gmra.mxu0 %v4689
      %v6031 = vpop.f32.mrf.mxu0
      %v6032 = vadd.f32 %v5807, %v6031
      %v6033 = vpop.f32.mrf.mxu0
      %6034 = vmatprep.mubr.f32.mxu0 0.0
      %6035 = vmatmul.mubr.f32.gmra.mxu0 %v4698
      %v6036 = vpop.f32.mrf.mxu0
      %v6037 = vadd.f32 %v5812, %v6036
      %v6038 = vpop.f32.mrf.mxu0
      %6039 = vmatprep.mubr.f32.mxu0 0.0
      %6040 = vmatmul.mubr.f32.gmra.mxu0 %v4707
      %v6041 = vpop.f32.mrf.mxu0
      %v6042 = vadd.f32 %v5817, %v6041
      %v6043 = vpop.f32.mrf.mxu0
      %6044 = vmatprep.mubr.f32.mxu0 0.0
      %6045 = vmatmul.mubr.f32.gmra.mxu0 %v4716
      %v6046 = vpop.f32.mrf.mxu0
      %v6047 = vadd.f32 %v5822, %v6046
      %v6048 = vpop.f32.mrf.mxu0
      %6049 = vmatprep.mubr.f32.mxu0 0.0
      %6050 = vmatmul.mubr.f32.gmra.mxu0 %v4725
      %v6051 = vpop.f32.mrf.mxu0
      %v6052 = vadd.f32 %v5827, %v6051
      %v6053 = vpop.f32.mrf.mxu0
      %6054 = vmatprep.mubr.f32.mxu0 0.0
      %6055 = vmatmul.mubr.f32.gmra.mxu0 %v4734
      %v6056 = vpop.f32.mrf.mxu0
      %v6057 = vadd.f32 %v5832, %v6056
      %v6058 = vpop.f32.mrf.mxu0
      %6059 = vmatprep.mubr.f32.mxu0 0.0
      %6060 = vmatmul.mubr.f32.gmra.mxu0 %v4743
      %v6061 = vpop.f32.mrf.mxu0
      %v6062 = vadd.f32 %v5837, %v6061
      %v6063 = vpop.f32.mrf.mxu0
      %6064 = vmatprep.mubr.f32.mxu0 0.0
      %6065 = vmatmul.mubr.f32.gmra.mxu0 %v4752
      %v6066 = vpop.f32.mrf.mxu0
      %v6067 = vadd.f32 %v5842, %v6066
      %v6068 = vpop.f32.mrf.mxu0
      %6069 = vmatprep.mubr.f32.mxu0 0.0
      %6070 = vmatmul.mubr.f32.gmra.mxu0 %v4761
      %v6071 = vpop.f32.mrf.mxu0
      %v6072 = vadd.f32 %v5847, %v6071
      %v6073 = vpop.f32.mrf.mxu0
      %6074 = vmatprep.mubr.f32.mxu0 0.0
      %6075 = vmatmul.mubr.f32.gmra.mxu0 %v4770
      %v6076 = vpop.f32.mrf.mxu0
      %v6077 = vadd.f32 %v5852, %v6076
      %v6078 = vpop.f32.mrf.mxu0
      %6079 = vmatprep.mubr.f32.mxu0 0.0
      %6080 = vmatmul.mubr.f32.gmra.mxu0 %v4779
      %v6081 = vpop.f32.mrf.mxu0
      %v6082 = vadd.f32 %v5857, %v6081
      %v6083 = vpop.f32.mrf.mxu0
      %6084 = vmatprep.mubr.f32.mxu0 0.0
      %6085 = vmatmul.mubr.f32.gmra.mxu0 %v4788
      %v6086 = vpop.f32.mrf.mxu0
      %v6087 = vadd.f32 %v5862, %v6086
      %v6088 = vpop.f32.mrf.mxu0
      %6089 = vmatprep.mubr.f32.mxu0 0.0
      %6090 = vmatmul.mubr.f32.gmra.mxu0 %v4797
      %v6091 = vpop.f32.mrf.mxu0
      %v6092 = vadd.f32 %v5867, %v6091
      %v6093 = vpop.f32.mrf.mxu0
      %6094 = vmatprep.mubr.f32.mxu0 0.0
      %6095 = vmatmul.mubr.f32.gmra.mxu0 %v4806
      %v6096 = vpop.f32.mrf.mxu0
      %v6097 = vadd.f32 %v5872, %v6096
      %v6098 = vpop.f32.mrf.mxu0
      %6099 = vmatprep.mubr.f32.mxu0 0.0
      %6100 = vmatmul.mubr.f32.gmra.mxu0 %v4815
      %v6101 = vpop.f32.mrf.mxu0
      %v6102 = vadd.f32 %v5877, %v6101
      %v6103 = vpop.f32.mrf.mxu0
      %6104 = vmatprep.mubr.f32.mxu0 0.0
      %6105 = vmatmul.mubr.f32.gmra.mxu0 %v4824
      %v6106 = vpop.f32.mrf.mxu0
      %v6107 = vadd.f32 %v5882, %v6106
      %v6108 = vpop.f32.mrf.mxu0
      %6109 = vmatprep.mubr.f32.mxu0 0.0
      %6110 = vmatmul.mubr.f32.gmra.mxu0 %v4833
      %v6111 = vpop.f32.mrf.mxu0
      %v6112 = vadd.f32 %v5887, %v6111
      %v6113 = vpop.f32.mrf.mxu0
      %6114 = vmatprep.mubr.f32.mxu0 0.0
      %6115 = vmatmul.mubr.f32.gmra.mxu0 %v4842
      %v6116 = vpop.f32.mrf.mxu0
      %v6117 = vadd.f32 %v5892, %v6116
      %v6118 = vpop.f32.mrf.mxu0
      %6119 = vmatprep.mubr.f32.mxu0 0.0
      %6120 = vmatmul.mubr.f32.gmra.mxu0 %v4851
      %v6121 = vpop.f32.mrf.mxu0
      %v6122 = vadd.f32 %v5897, %v6121
      %v6123 = vpop.f32.mrf.mxu0
      %6124 = vmatprep.mubr.f32.mxu0 0.0
      %6125 = vmatmul.mubr.f32.gmra.mxu0 %v4860
      %v6126 = vpop.f32.mrf.mxu0
      %v6127 = vadd.f32 %v5902, %v6126
      %v6128 = vpop.f32.mrf.mxu0
      %6129 = vdwg.mxu0
      %v6130 = vld [vmem:[%s5] sm:$0x1]
      %v6132 = vlaneseq
      %v6133 = vshrl.u32 %v6132, 7
      %v6134 = vsub.s32 0, %v6133
      %v6135 = vrot.slane %v6130, %v6134
      %v6137 = vmul.f32 %v5972, %v6135
      %v6138 = vmul.f32 %v5977, %v6135
      %v6139 = vmul.f32 %v5982, %v6135
      %v6140 = vmul.f32 %v5987, %v6135
      %v6141 = vmul.f32 %v5992, %v6135
      %v6142 = vmul.f32 %v5997, %v6135
      %v6143 = vmul.f32 %v6002, %v6135
      %v6144 = vmul.f32 %v6007, %v6135
      %v6145 = vmul.f32 %v6012, %v6135
      %v6146 = vmul.f32 %v6017, %v6135
      %v6147 = vmul.f32 %v6022, %v6135
      %v6148 = vmul.f32 %v6027, %v6135
      %v6149 = vmul.f32 %v6032, %v6135
      %v6150 = vmul.f32 %v6037, %v6135
      %v6151 = vmul.f32 %v6042, %v6135
      %v6152 = vmul.f32 %v6047, %v6135
      %v6153 = vmul.f32 %v6052, %v6135
      %v6154 = vmul.f32 %v6057, %v6135
      %v6155 = vmul.f32 %v6062, %v6135
      %v6156 = vmul.f32 %v6067, %v6135
      %v6157 = vmul.f32 %v6072, %v6135
      %v6158 = vmul.f32 %v6077, %v6135
      %v6159 = vmul.f32 %v6082, %v6135
      %v6160 = vmul.f32 %v6087, %v6135
      %v6161 = vmul.f32 %v6092, %v6135
      %v6162 = vmul.f32 %v6097, %v6135
      %v6163 = vmul.f32 %v6102, %v6135
      %v6164 = vmul.f32 %v6107, %v6135
      %v6165 = vmul.f32 %v6112, %v6135
      %v6166 = vmul.f32 %v6117, %v6135
      %v6167 = vmul.f32 %v6122, %v6135
      %v6168 = vmul.f32 %v6127, %v6135
      %v6169 = vld [vmem:[%s6] sm:$0x1]
      %v6171 = vlaneseq
      %v6172 = vshrl.u32 %v6171, 7
      %v6173 = vsub.s32 0, %v6172
      %v6174 = vrot.slane %v6169, %v6173
      %v6176 = vadd.f32 %v6137, %v6174
      %v6177 = vadd.f32 %v6138, %v6174
      %v6178 = vadd.f32 %v6139, %v6174
      %v6179 = vadd.f32 %v6140, %v6174
      %v6180 = vadd.f32 %v6141, %v6174
      %v6181 = vadd.f32 %v6142, %v6174
      %v6182 = vadd.f32 %v6143, %v6174
      %v6183 = vadd.f32 %v6144, %v6174
      %v6184 = vadd.f32 %v6145, %v6174
      %v6185 = vadd.f32 %v6146, %v6174
      %v6186 = vadd.f32 %v6147, %v6174
      %v6187 = vadd.f32 %v6148, %v6174
      %v6188 = vadd.f32 %v6149, %v6174
      %v6189 = vadd.f32 %v6150, %v6174
      %v6190 = vadd.f32 %v6151, %v6174
      %v6191 = vadd.f32 %v6152, %v6174
      %v6192 = vadd.f32 %v6153, %v6174
      %v6193 = vadd.f32 %v6154, %v6174
      %v6194 = vadd.f32 %v6155, %v6174
      %v6195 = vadd.f32 %v6156, %v6174
      %v6196 = vadd.f32 %v6157, %v6174
      %v6197 = vadd.f32 %v6158, %v6174
      %v6198 = vadd.f32 %v6159, %v6174
      %v6199 = vadd.f32 %v6160, %v6174
      %v6200 = vadd.f32 %v6161, %v6174
      %v6201 = vadd.f32 %v6162, %v6174
      %v6202 = vadd.f32 %v6163, %v6174
      %v6203 = vadd.f32 %v6164, %v6174
      %v6204 = vadd.f32 %v6165, %v6174
      %v6205 = vadd.f32 %v6166, %v6174
      %v6206 = vadd.f32 %v6167, %v6174
      %v6207 = vadd.f32 %v6168, %v6174
      %v6208 = vld [vmem:[%s273] sm:$0xff]
      %v6209 = vld [vmem:[%s273 + $0x8] sm:$0xff]
      %v6210 = vld [vmem:[%s273 + $0x10] sm:$0xff]
      %v6211 = vld [vmem:[%s273 + $0x18] sm:$0xff]
      %v6212 = vld [vmem:[%s273 + $0x20] sm:$0xff]
      %v6213 = vld [vmem:[%s273 + $0x28] sm:$0xff]
      %v6214 = vld [vmem:[%s273 + $0x30] sm:$0xff]
      %v6215 = vld [vmem:[%s273 + $0x38] sm:$0xff]
      %v6216 = vld [vmem:[%s273 + $0x40] sm:$0xff]
      %v6217 = vld [vmem:[%s273 + $0x48] sm:$0xff]
      %v6218 = vld [vmem:[%s273 + $0x50] sm:$0xff]
      %v6219 = vld [vmem:[%s273 + $0x58] sm:$0xff]
      %v6220 = vld [vmem:[%s273 + $0x60] sm:$0xff]
      %v6221 = vld [vmem:[%s273 + $0x68] sm:$0xff]
      %v6222 = vld [vmem:[%s273 + $0x70] sm:$0xff]
      %v6223 = vld [vmem:[%s273 + $0x78] sm:$0xff]
      %v6224 = vld [vmem:[%s273 + $0x80] sm:$0xff]
      %v6225 = vld [vmem:[%s273 + $0x88] sm:$0xff]
      %v6226 = vld [vmem:[%s273 + $0x90] sm:$0xff]
      %v6227 = vld [vmem:[%s273 + $0x98] sm:$0xff]
      %v6228 = vld [vmem:[%s273 + $0xa0] sm:$0xff]
      %v6229 = vld [vmem:[%s273 + $0xa8] sm:$0xff]
      %v6230 = vld [vmem:[%s273 + $0xb0] sm:$0xff]
      %v6231 = vld [vmem:[%s273 + $0xb8] sm:$0xff]
      %v6232 = vld [vmem:[%s273 + $0xc0] sm:$0xff]
      %v6233 = vld [vmem:[%s273 + $0xc8] sm:$0xff]
      %v6234 = vld [vmem:[%s273 + $0xd0] sm:$0xff]
      %v6235 = vld [vmem:[%s273 + $0xd8] sm:$0xff]
      %v6236 = vld [vmem:[%s273 + $0xe0] sm:$0xff]
      %v6237 = vld [vmem:[%s273 + $0xe8] sm:$0xff]
      %v6238 = vld [vmem:[%s273 + $0xf0] sm:$0xff]
      %v6239 = vld [vmem:[%s273 + $0xf8] sm:$0xff]
      %v6240 = vadd.f32 %v6176, %v6208
      %v6241 = vadd.f32 %v6177, %v6209
      %v6242 = vadd.f32 %v6178, %v6210
      %v6243 = vadd.f32 %v6179, %v6211
      %v6244 = vadd.f32 %v6180, %v6212
      %v6245 = vadd.f32 %v6181, %v6213
      %v6246 = vadd.f32 %v6182, %v6214
      %v6247 = vadd.f32 %v6183, %v6215
      %v6248 = vadd.f32 %v6184, %v6216
      %v6249 = vadd.f32 %v6185, %v6217
      %v6250 = vadd.f32 %v6186, %v6218
      %v6251 = vadd.f32 %v6187, %v6219
      %v6252 = vadd.f32 %v6188, %v6220
      %v6253 = vadd.f32 %v6189, %v6221
      %v6254 = vadd.f32 %v6190, %v6222
      %v6255 = vadd.f32 %v6191, %v6223
      %v6256 = vadd.f32 %v6192, %v6224
      %v6257 = vadd.f32 %v6193, %v6225
      %v6258 = vadd.f32 %v6194, %v6226
      %v6259 = vadd.f32 %v6195, %v6227
      %v6260 = vadd.f32 %v6196, %v6228
      %v6261 = vadd.f32 %v6197, %v6229
      %v6262 = vadd.f32 %v6198, %v6230
      %v6263 = vadd.f32 %v6199, %v6231
      %v6264 = vadd.f32 %v6200, %v6232
      %v6265 = vadd.f32 %v6201, %v6233
      %v6266 = vadd.f32 %v6202, %v6234
      %v6267 = vadd.f32 %v6203, %v6235
      %v6268 = vadd.f32 %v6204, %v6236
      %v6269 = vadd.f32 %v6205, %v6237
      %v6270 = vadd.f32 %v6206, %v6238
      %v6271 = vadd.f32 %v6207, %v6239
      %v6272 = vmax.f32 %v6240, 0.0
      %v6273 = vmax.f32 %v6241, 0.0
      %v6274 = vmax.f32 %v6242, 0.0
      %v6275 = vmax.f32 %v6243, 0.0
      %v6276 = vmax.f32 %v6244, 0.0
      %v6277 = vmax.f32 %v6245, 0.0
      %v6278 = vmax.f32 %v6246, 0.0
      %v6279 = vmax.f32 %v6247, 0.0
      %v6280 = vmax.f32 %v6248, 0.0
      %v6281 = vmax.f32 %v6249, 0.0
      %v6282 = vmax.f32 %v6250, 0.0
      %v6283 = vmax.f32 %v6251, 0.0
      %v6284 = vmax.f32 %v6252, 0.0
      %v6285 = vmax.f32 %v6253, 0.0
      %v6286 = vmax.f32 %v6254, 0.0
      %v6287 = vmax.f32 %v6255, 0.0
      %v6288 = vmax.f32 %v6256, 0.0
      %v6289 = vmax.f32 %v6257, 0.0
      %v6290 = vmax.f32 %v6258, 0.0
      %v6291 = vmax.f32 %v6259, 0.0
      %v6292 = vmax.f32 %v6260, 0.0
      %v6293 = vmax.f32 %v6261, 0.0
      %v6294 = vmax.f32 %v6262, 0.0
      %v6295 = vmax.f32 %v6263, 0.0
      %v6296 = vmax.f32 %v6264, 0.0
      %v6297 = vmax.f32 %v6265, 0.0
      %v6298 = vmax.f32 %v6266, 0.0
      %v6299 = vmax.f32 %v6267, 0.0
      %v6300 = vmax.f32 %v6268, 0.0
      %v6301 = vmax.f32 %v6269, 0.0
      %v6302 = vmax.f32 %v6270, 0.0
      %v6303 = vmax.f32 %v6271, 0.0
      %6304 = vst [vmem:[%s278] sm:$0xff] %v6272
      %6305 = vst [vmem:[%s278 + $0x8] sm:$0xff] %v6273
      %6306 = vst [vmem:[%s278 + $0x10] sm:$0xff] %v6274
      %6307 = vst [vmem:[%s278 + $0x18] sm:$0xff] %v6275
      %6308 = vst [vmem:[%s278 + $0x20] sm:$0xff] %v6276
      %6309 = vst [vmem:[%s278 + $0x28] sm:$0xff] %v6277
      %6310 = vst [vmem:[%s278 + $0x30] sm:$0xff] %v6278
      %6311 = vst [vmem:[%s278 + $0x38] sm:$0xff] %v6279
      %6312 = vst [vmem:[%s278 + $0x40] sm:$0xff] %v6280
      %6313 = vst [vmem:[%s278 + $0x48] sm:$0xff] %v6281
      %6314 = vst [vmem:[%s278 + $0x50] sm:$0xff] %v6282
      %6315 = vst [vmem:[%s278 + $0x58] sm:$0xff] %v6283
      %6316 = vst [vmem:[%s278 + $0x60] sm:$0xff] %v6284
      %6317 = vst [vmem:[%s278 + $0x68] sm:$0xff] %v6285
      %6318 = vst [vmem:[%s278 + $0x70] sm:$0xff] %v6286
      %6319 = vst [vmem:[%s278 + $0x78] sm:$0xff] %v6287
      %6320 = vst [vmem:[%s278 + $0x80] sm:$0xff] %v6288
      %6321 = vst [vmem:[%s278 + $0x88] sm:$0xff] %v6289
      %6322 = vst [vmem:[%s278 + $0x90] sm:$0xff] %v6290
      %6323 = vst [vmem:[%s278 + $0x98] sm:$0xff] %v6291
      %6324 = vst [vmem:[%s278 + $0xa0] sm:$0xff] %v6292
      %6325 = vst [vmem:[%s278 + $0xa8] sm:$0xff] %v6293
      %6326 = vst [vmem:[%s278 + $0xb0] sm:$0xff] %v6294
      %6327 = vst [vmem:[%s278 + $0xb8] sm:$0xff] %v6295
      %6328 = vst [vmem:[%s278 + $0xc0] sm:$0xff] %v6296
      %6329 = vst [vmem:[%s278 + $0xc8] sm:$0xff] %v6297
      %6330 = vst [vmem:[%s278 + $0xd0] sm:$0xff] %v6298
      %6331 = vst [vmem:[%s278 + $0xd8] sm:$0xff] %v6299
      %6332 = vst [vmem:[%s278 + $0xe0] sm:$0xff] %v6300
      %6333 = vst [vmem:[%s278 + $0xe8] sm:$0xff] %v6301
      %6334 = vst [vmem:[%s278 + $0xf0] sm:$0xff] %v6302
      %6335 = vst [vmem:[%s278 + $0xf8] sm:$0xff] %v6303
      %p6336 = scmp.lt.s32.totalorder %s18, 1
      %s6337 = scalar_select %p6336, %s18, 1
      %s6338 = smul.addr %s6337, 32
      %s6339 = smul.addr %s6338, 8
      %s6340 = scalar_lea.vmem %s7, %s6339
      // Predicated region
      $region49: #{basic_block_forward_nhwc.1} parent=47 // pred_check
        %p6341 = pneg %p188
      $region50: #{basic_block_forward_nhwc.1} parent=47 // pred_check_branch
        %6343 = sbr.rel (%p6341) target = $region52
      $region51: #{basic_block_forward_nhwc.1} parent=47 // pred_region
        _
      $region52: #{basic_block_forward_nhwc.1} parent=47 // pred_fallthru
        _
    $region48: #{basic_block_forward_nhwc.1} parent=5 // pred_fallthru
      _
    %p6344 = scmp.le.s32.totalorder 2, %s13
    // Predicated region
    $region53: #{basic_block_forward_nhwc.1} parent=5 // pred_check
      %p6345 = pneg %p6344
    $region54: #{basic_block_forward_nhwc.1} parent=5 // pred_check_branch
      %6347 = sbr.rel (%p6345) target = $region56
    $region55: #{basic_block_forward_nhwc.1} parent=5 // pred_region
      %s6348 = ssub.s32 %s13, 2
      // Predicated region
      $region57: #{basic_block_forward_nhwc.1} parent=55 // pred_check
        %p6349 = pneg %p194
      $region58: #{basic_block_forward_nhwc.1} parent=55 // pred_check_branch
        %6351 = sbr.rel (%p6349) target = $region60
      $region59: #{basic_block_forward_nhwc.1} parent=55 // pred_region
        %p6352 = scmp.lt.s32.totalorder %s19, 1
        %s6353 = scalar_select %p6352, %s19, 1
        %s6354 = smul.addr %s6353, 32
        %s6355 = smul.addr %s6354, 8
        %s6356 = scalar_lea.vmem %s7, %s6355
      $region60: #{basic_block_forward_nhwc.1} parent=55 // pred_fallthru
        _
    $region56: #{basic_block_forward_nhwc.1} parent=5 // pred_fallthru
      _
  $region6: #{basic_block_forward_nhwc.1} parent=0 // loop_footer
    %s17 = sadd.s32 1, %s13
  $region7: #{basic_block_forward_nhwc.1} parent=0 // loop_footer_branch
    %12 = sbr.rel target = $region3
  $region8: #{basic_block_forward_nhwc.1} parent=0 // loop_exit
    _

</llo_original>
